<compile_context>
chip_gen: v7x
topology: tpu7x:2x2x1
jax: 0.10.0
libtpu: 0.0.40
codegen_flags: <defaults>
</compile_context>

<pallas_src>
import functools
import math

import jax
import jax.numpy as jnp
from jax import lax
from jax.experimental import pallas as pl
from jax.experimental.pallas import tpu as pltpu


_VMEM_LIMIT = 32 * 1024 * 1024  # safe on v5e/v6e/v7x scoped-VMEM budgets


def _round_up(x, m):
    return ((x + m - 1) // m) * m


def _row_tile(M, want=512):
    """Largest row tile <= want that divides M (16-granular preferred, then 8).
    Never pads: every caller in this script has M that is a multiple of 16."""
    if M <= want:
        return M
    for step in (16, 8):
        start = want - want % step
        for t in range(start, step - 1, -step):
            if M % t == 0:
                return t
    return M


def _cp(*sem):
    return pltpu.CompilerParams(dimension_semantics=sem,
                                vmem_limit_bytes=_VMEM_LIMIT)


# ----------------------------------------------------------------------------
# Kernels
# ----------------------------------------------------------------------------

def _ffn_plain_kernel(x_ref, w1_ref, b1_ref, w2_ref, b2_ref, o_ref):
    """relu(x @ w1 + b1) @ w2 + b2  (backbone patchify + 1x1 reshape conv)."""
    h = jnp.dot(x_ref[...], w1_ref[...],
                preferred_element_type=jnp.float32) + b1_ref[...]
    h = jnp.maximum(h, 0.0).astype(w2_ref.dtype)
    y = jnp.dot(h, w2_ref[...], preferred_element_type=jnp.float32) + b2_ref[...]
    o_ref[...] = y.astype(o_ref.dtype)


def _proj_qkv_kernel(x_ref, add_ref, wq_ref, bq_ref, wk_ref, bk_ref,
                     wv_ref, bv_ref, q_ref, k_ref, v_ref):
    """Self-attn projections: q,k from (x+add), v from x.  One pass over x."""
    x = x_ref[...]
    xa = (x.astype(jnp.float32) + add_ref[...].astype(jnp.float32)).astype(x.dtype)
    q_ref[...] = (jnp.dot(xa, wq_ref[...], preferred_element_type=jnp.float32)
                  + bq_ref[...]).astype(q_ref.dtype)
    k_ref[...] = (jnp.dot(xa, wk_ref[...], preferred_element_type=jnp.float32)
                  + bk_ref[...]).astype(k_ref.dtype)
    v_ref[...] = (jnp.dot(x, wv_ref[...], preferred_element_type=jnp.float32)
                  + bv_ref[...]).astype(v_ref.dtype)


def _proj_q_kernel(x_ref, add_ref, w_ref, b_ref, o_ref):
    """Cross-attn query projection: (x+add) @ w + b."""
    x = x_ref[...]
    xa = (x.astype(jnp.float32) + add_ref[...].astype(jnp.float32)).astype(x.dtype)
    o_ref[...] = (jnp.dot(xa, w_ref[...], preferred_element_type=jnp.float32)
                  + b_ref[...]).astype(o_ref.dtype)


def _proj_kv_kernel(x_ref, add_ref, wk_ref, bk_ref, wv_ref, bv_ref, k_ref, v_ref):
    """Cross-attn key/value projections: k from (mem+pos), v from mem."""
    x = x_ref[...]
    xa = (x.astype(jnp.float32) + add_ref[...].astype(jnp.float32)).astype(x.dtype)
    k_ref[...] = (jnp.dot(xa, wk_ref[...], preferred_element_type=jnp.float32)
                  + bk_ref[...]).astype(k_ref.dtype)
    v_ref[...] = (jnp.dot(x, wv_ref[...], preferred_element_type=jnp.float32)
                  + bv_ref[...]).astype(v_ref.dtype)


def _attn_out_ln_kernel(q_ref, k_ref, v_ref, wo_ref, bo_ref, r_ref, g_ref, be_ref,
                        o_ref, *, num_heads, scale, eps):
    """All heads' attention + output projection + residual add + LayerNorm.

    Each head's context is folded into the f32 accumulator through the matching
    row-slab of Wo, so there is no head concatenation and no partial-lane store.
    """
    d = q_ref.shape[-1]
    dh = d // num_heads
    q_all = q_ref[0]
    k_all = k_ref[0]
    v_all = v_ref[0]
    wo = wo_ref[...]
    acc = r_ref[0].astype(jnp.float32) + bo_ref[...]
    for h in range(num_heads):
        lo = h * dh
        q = q_all[:, lo:lo + dh]
        k = k_all[:, lo:lo + dh]
        v = v_all[:, lo:lo + dh]
        s = lax.dot_general(q, k, (((1,), (1,)), ((), ())),
                            preferred_element_type=jnp.float32) * scale
        s = s - jnp.max(s, axis=-1, keepdims=True)
        p = jnp.exp(s)
        p = p / jnp.sum(p, axis=-1, keepdims=True)      # exact normalization
        ctx = lax.dot_general(p.astype(v.dtype), v, (((1,), (0,)), ((), ())),
                              preferred_element_type=jnp.float32)
        acc = acc + lax.dot_general(ctx.astype(wo.dtype), wo[lo:lo + dh, :],
                                    (((1,), (0,)), ((), ())),
                                    preferred_element_type=jnp.float32)
    mu = jnp.mean(acc, axis=-1, keepdims=True)
    yc = acc - mu
    var = jnp.mean(yc * yc, axis=-1, keepdims=True)
    o_ref[0] = (yc * lax.rsqrt(var + eps) * g_ref[...]
                + be_ref[...]).astype(o_ref.dtype)


def _ffn_res_ln_kernel(x_ref, w1_ref, b1_ref, w2_ref, b2_ref, g_ref, be_ref,
                       o_ref, *, eps):
    """LayerNorm(x + relu(x@w1+b1)@w2 + b2); the [tm, ff] stays in VMEM."""
    x = x_ref[...]
    h = jnp.dot(x, w1_ref[...], preferred_element_type=jnp.float32) + b1_ref[...]
    h = jnp.maximum(h, 0.0).astype(x.dtype)
    y = jnp.dot(h, w2_ref[...], preferred_element_type=jnp.float32) + b2_ref[...]
    y = y + x.astype(jnp.float32)
    mu = jnp.mean(y, axis=-1, keepdims=True)
    yc = y - mu
    var = jnp.mean(yc * yc, axis=-1, keepdims=True)
    o_ref[...] = (yc * lax.rsqrt(var + eps) * g_ref[...]
                  + be_ref[...]).astype(o_ref.dtype)


def _layernorm_kernel(x_ref, g_ref, be_ref, o_ref, *, eps):
    x = x_ref[...].astype(jnp.float32)
    mu = jnp.mean(x, axis=-1, keepdims=True)
    xc = x - mu
    var = jnp.mean(xc * xc, axis=-1, keepdims=True)
    o_ref[...] = (xc * lax.rsqrt(var + eps) * g_ref[...]
                  + be_ref[...]).astype(o_ref.dtype)


def _heads_kernel(x_ref, wc_ref, bc_ref, w1_ref, b1_ref, w2_ref, b2_ref,
                  w3_ref, b3_ref, cls_ref, box_ref):
    """Fused class linear + 3-layer bbox MLP (sigmoid). Lane-padded outputs."""
    x = x_ref[...]
    cls = jnp.dot(x, wc_ref[...], preferred_element_type=jnp.float32) + bc_ref[...]
    cls_ref[...] = cls.astype(cls_ref.dtype)
    h = jnp.maximum(jnp.dot(x, w1_ref[...],
                            preferred_element_type=jnp.float32) + b1_ref[...], 0.0)
    h = jnp.maximum(jnp.dot(h.astype(x.dtype), w2_ref[...],
                            preferred_element_type=jnp.float32) + b2_ref[...], 0.0)
    box = jax.nn.sigmoid(jnp.dot(h.astype(x.dtype), w3_ref[...],
                                 preferred_element_type=jnp.float32) + b3_ref[...])
    box_ref[...] = box.astype(box_ref.dtype)


# ----------------------------------------------------------------------------
# Wrappers (row-tiled pallas_calls; bf16 activations in/out)
# ----------------------------------------------------------------------------

def ffn_plain(x, w1, b1, w2, b2, want_tm=512):
    M, K = x.shape
    F = w1.shape[1]
    Dout = w2.shape[1]
    tm = _row_tile(M, want_tm)
    row = lambda i: (i, 0)
    full = lambda i: (0, 0)
    return pl.pallas_call(
        _ffn_plain_kernel,
        out_shape=jax.ShapeDtypeStruct((M, Dout), jnp.bfloat16),
        grid=(M // tm,),
        in_specs=[pl.BlockSpec((tm, K), row),
                  pl.BlockSpec((K, F), full), pl.BlockSpec((1, F), full),
                  pl.BlockSpec((F, Dout), full), pl.BlockSpec((1, Dout), full)],
        out_specs=pl.BlockSpec((tm, Dout), row),
        compiler_params=_cp("parallel"),
    )(x, w1, b1, w2, b2)


def proj_qkv(x, add, p, want_tm=512):
    M, D = x.shape
    tm = _row_tile(M, want_tm)
    row = lambda i: (i, 0)
    full = lambda i: (0, 0)
    return pl.pallas_call(
        _proj_qkv_kernel,
        out_shape=tuple(jax.ShapeDtypeStruct((M, D), jnp.bfloat16) for _ in range(3)),
        grid=(M // tm,),
        in_specs=[pl.BlockSpec((tm, D), row), pl.BlockSpec((tm, D), row),
                  pl.BlockSpec((D, D), full), pl.BlockSpec((1, D), full),
                  pl.BlockSpec((D, D), full), pl.BlockSpec((1, D), full),
                  pl.BlockSpec((D, D), full), pl.BlockSpec((1, D), full)],
        out_specs=tuple(pl.BlockSpec((tm, D), row) for _ in range(3)),
        compiler_params=_cp("parallel"),
    )(x, add, p["wq"], p["bq"], p["wk"], p["bk"], p["wv"], p["bv"])


def proj_q(x, add, w, b, want_tm=512):
    M, D = x.shape
    N = w.shape[1]
    tm = _row_tile(M, want_tm)
    row = lambda i: (i, 0)
    full = lambda i: (0, 0)
    return pl.pallas_call(
        _proj_q_kernel,
        out_shape=jax.ShapeDtypeStruct((M, N), jnp.bfloat16),
        grid=(M // tm,),
        in_specs=[pl.BlockSpec((tm, D), row), pl.BlockSpec((tm, D), row),
                  pl.BlockSpec((D, N), full), pl.BlockSpec((1, N), full)],
        out_specs=pl.BlockSpec((tm, N), row),
        compiler_params=_cp("parallel"),
    )(x, add, w, b)


def proj_kv(x, add, p, want_tm=512):
    M, D = x.shape
    tm = _row_tile(M, want_tm)
    row = lambda i: (i, 0)
    full = lambda i: (0, 0)
    return pl.pallas_call(
        _proj_kv_kernel,
        out_shape=tuple(jax.ShapeDtypeStruct((M, D), jnp.bfloat16) for _ in range(2)),
        grid=(M // tm,),
        in_specs=[pl.BlockSpec((tm, D), row), pl.BlockSpec((tm, D), row),
                  pl.BlockSpec((D, D), full), pl.BlockSpec((1, D), full),
                  pl.BlockSpec((D, D), full), pl.BlockSpec((1, D), full)],
        out_specs=tuple(pl.BlockSpec((tm, D), row) for _ in range(2)),
        compiler_params=_cp("parallel"),
    )(x, add, p["wk"], p["bk"], p["wv"], p["bv"])


def attention_out_ln(q, k, v, residual, wo, bo, gamma, beta, num_heads,
                     eps=1e-5, want_tq=512):
    """q/residual: [N, Lq, d], k/v: [N, Lk, d]  ->  LN(res + MHA(q,k,v)@Wo + bo)."""
    N, Lq, D = q.shape
    Lk = k.shape[1]
    scale = 1.0 / math.sqrt(D // num_heads)
    tq = _row_tile(Lq, want_tq)
    row3 = lambda b, qi: (b, qi, 0)
    kv3 = lambda b, qi: (b, 0, 0)
    full = lambda b, qi: (0, 0)
    return pl.pallas_call(
        functools.partial(_attn_out_ln_kernel, num_heads=num_heads,
                          scale=scale, eps=eps),
        out_shape=jax.ShapeDtypeStruct((N, Lq, D), jnp.bfloat16),
        grid=(N, Lq // tq),
        in_specs=[pl.BlockSpec((1, tq, D), row3),
                  pl.BlockSpec((1, Lk, D), kv3),
                  pl.BlockSpec((1, Lk, D), kv3),
                  pl.BlockSpec((D, D), full),
                  pl.BlockSpec((1, D), full),
                  pl.BlockSpec((1, tq, D), row3),
                  pl.BlockSpec((1, D), full),
                  pl.BlockSpec((1, D), full)],
        out_specs=pl.BlockSpec((1, tq, D), row3),
        compiler_params=_cp("parallel", "parallel"),
    )(q, k, v, wo, bo, residual, gamma, beta)


def ffn_res_ln(x, w1, b1, w2, b2, gamma, beta, eps=1e-5, want_tm=512):
    M, D = x.shape
    F = w1.shape[1]
    tm = _row_tile(M, want_tm)
    row = lambda i: (i, 0)
    full = lambda i: (0, 0)
    return pl.pallas_call(
        functools.partial(_ffn_res_ln_kernel, eps=eps),
        out_shape=jax.ShapeDtypeStruct((M, D), jnp.bfloat16),
        grid=(M // tm,),
        in_specs=[pl.BlockSpec((tm, D), row),
                  pl.BlockSpec((D, F), full), pl.BlockSpec((1, F), full),
                  pl.BlockSpec((F, D), full), pl.BlockSpec((1, D), full),
                  pl.BlockSpec((1, D), full), pl.BlockSpec((1, D), full)],
        out_specs=pl.BlockSpec((tm, D), row),
        compiler_params=_cp("parallel"),
    )(x, w1, b1, w2, b2, gamma, beta)


def layernorm(x, gamma, beta, eps=1e-5, want_tm=512):
    M, D = x.shape
    tm = _row_tile(M, want_tm)
    row = lambda i: (i, 0)
    full = lambda i: (0, 0)
    return pl.pallas_call(
        functools.partial(_layernorm_kernel, eps=eps),
        out_shape=jax.ShapeDtypeStruct((M, D), jnp.bfloat16),
        grid=(M // tm,),
        in_specs=[pl.BlockSpec((tm, D), row),
                  pl.BlockSpec((1, D), full), pl.BlockSpec((1, D), full)],
        out_specs=pl.BlockSpec((tm, D), row),
        compiler_params=_cp("parallel"),
    )(x, gamma, beta)


def prediction_heads(x, p, num_class, want_tm=512):
    M, D = x.shape
    Cp = p["class_w"].shape[1]
    Bp = p["mlp_w3"].shape[1]
    tm = _row_tile(M, want_tm)
    row = lambda i: (i, 0)
    full = lambda i: (0, 0)
    cls, box = pl.pallas_call(
        _heads_kernel,
        out_shape=(jax.ShapeDtypeStruct((M, Cp), jnp.float32),
                   jax.ShapeDtypeStruct((M, Bp), jnp.float32)),
        grid=(M // tm,),
        in_specs=[pl.BlockSpec((tm, D), row),
                  pl.BlockSpec((D, Cp), full), pl.BlockSpec((1, Cp), full),
                  pl.BlockSpec((D, D), full), pl.BlockSpec((1, D), full),
                  pl.BlockSpec((D, D), full), pl.BlockSpec((1, D), full),
                  pl.BlockSpec((D, Bp), full), pl.BlockSpec((1, Bp), full)],
        out_specs=(pl.BlockSpec((tm, Cp), row), pl.BlockSpec((tm, Bp), row)),
        compiler_params=_cp("parallel"),
    )(x, p["class_w"], p["class_b"], p["mlp_w1"], p["mlp_b1"],
      p["mlp_w2"], p["mlp_b2"], p["mlp_w3"], p["mlp_b3"])
    return cls[:, :num_class + 1], box[:, :4]


# ----------------------------------------------------------------------------
# Transformer layers (thin glue; all heavy ops in the kernels above)
# ----------------------------------------------------------------------------

def self_attention_block(x2d, add2d, N, L, p, nh, gamma, beta):
    d = x2d.shape[1]
    q, k, v = proj_qkv(x2d, add2d, p)
    out = attention_out_ln(q.reshape(N, L, d), k.reshape(N, L, d),
                           v.reshape(N, L, d), x2d.reshape(N, L, d),
                           p["wo"], p["bo"], gamma, beta, nh)
    return out.reshape(N * L, d)


def encoder_layer(src2d, pos2d, N, L, p, nh):
    src2d = self_attention_block(src2d, pos2d, N, L, p["self_attn"], nh,
                                 p["norm1_g"], p["norm1_b"])
    src2d = ffn_res_ln(src2d, p["ffn_w1"], p["ffn_b1"], p["ffn_w2"], p["ffn_b2"],
                       p["norm2_g"], p["norm2_b"])
    return src2d


def decoder_layer(tgt2d, mem2d, pos2d, qpos2d, N, Q, Lm, p, nh):
    d = tgt2d.shape[1]
    # self-attention (+ out-proj + residual + LN fused)
    tgt2d = self_attention_block(tgt2d, qpos2d, N, Q, p["self_attn"], nh,
                                 p["norm1_g"], p["norm1_b"])
    # cross-attention
    ca = p["cross_attn"]
    q = proj_q(tgt2d, qpos2d, ca["wq"], ca["bq"])
    k, v = proj_kv(mem2d, pos2d, ca)
    tgt2d = attention_out_ln(q.reshape(N, Q, d), k.reshape(N, Lm, d),
                             v.reshape(N, Lm, d), tgt2d.reshape(N, Q, d),
                             ca["wo"], ca["bo"], p["norm2_g"], p["norm2_b"],
                             nh).reshape(N * Q, d)
    # FFN (+ residual + LN fused)
    tgt2d = ffn_res_ln(tgt2d, p["ffn_w1"], p["ffn_b1"], p["ffn_w2"], p["ffn_b2"],
                       p["norm3_g"], p["norm3_b"])
    return tgt2d


def sine_pos_embed(H, W, d):
    """DETR PositionEmbeddingSine (normalize=True), mask all-False -> [HW, d]."""
    num_pos_feats = d // 2
    temperature = 10000.0
    scale = 2.0 * math.pi
    eps = 1e-6
    y = jnp.arange(1, H + 1, dtype=jnp.float32)[:, None] * jnp.ones((1, W), jnp.float32)
    x = jnp.arange(1, W + 1, dtype=jnp.float32)[None, :] * jnp.ones((H, 1), jnp.float32)
    y = y / (H + eps) * scale
    x = x / (W + eps) * scale
    dim_t = jnp.arange(num_pos_feats, dtype=jnp.float32)
    dim_t = temperature ** (2.0 * (dim_t // 2) / num_pos_feats)
    pos_x = x[..., None] / dim_t
    pos_y = y[..., None] / dim_t
    pos_x = jnp.stack([jnp.sin(pos_x[..., 0::2]), jnp.cos(pos_x[..., 1::2])],
                      axis=-1).reshape(H, W, num_pos_feats)
    pos_y = jnp.stack([jnp.sin(pos_y[..., 0::2]), jnp.cos(pos_y[..., 1::2])],
                      axis=-1).reshape(H, W, num_pos_feats)
    return jnp.concatenate([pos_y, pos_x], axis=-1).reshape(H * W, d)


# ----------------------------------------------------------------------------
# Full DETR forward
# ----------------------------------------------------------------------------

def detr_forward(params, x, cfg):
    N, C, Himg, Wimg = x.shape
    P = cfg["patch"]
    H, W = Himg // P, Wimg // P
    HW = H * W
    d = cfg["hiddenDims"]
    Q = cfg["numQuery"]
    nh = cfg["numHead"]

    # ---- backbone stand-in: bf16 patchify + fused (patch conv, relu, 1x1 conv) ----
    # TODO(synk): original buildBackbone is an external ResNet; approximated here.
    patches = (x.astype(jnp.bfloat16)
               .reshape(N, C, H, P, W, P)
               .transpose(0, 2, 4, 1, 3, 5)
               .reshape(N * HW, C * P * P))
    src2d = ffn_plain(patches, params["backbone_w"], params["backbone_b"],
                      params["reshape_w"], params["reshape_b"])      # [N*HW, d] bf16

    pos2d = jnp.broadcast_to(
        sine_pos_embed(H, W, d).astype(jnp.bfloat16)[None], (N, HW, d)
    ).reshape(N * HW, d)
    qpos2d = jnp.broadcast_to(
        params["query_embed"][None], (N, Q, d)).reshape(N * Q, d)

    # ---- transformer encoder ----
    for lp in params["encoder"]:
        src2d = encoder_layer(src2d, pos2d, N, HW, lp, nh)
    mem2d = src2d

    # ---- transformer decoder (return_intermediate) ----
    tgt2d = jnp.zeros((N * Q, d), jnp.bfloat16)
    intermediate = []
    for lp in params["decoder"]:
        tgt2d = decoder_layer(tgt2d, mem2d, pos2d, qpos2d, N, Q, HW, lp, nh)
        intermediate.append(layernorm(tgt2d, params["dec_norm_g"],
                                      params["dec_norm_b"]))
    hs = jnp.stack(intermediate, axis=0)                              # [L, N*Q, d]

    # ---- fused prediction heads ----
    L = hs.shape[0]
    flat = hs.reshape(L * N * Q, d)
    cls_flat, box_flat = prediction_heads(flat, params, cfg["numClass"])
    cls = cls_flat.reshape(L, N, Q, cfg["numClass"] + 1)
    bbox = box_flat.reshape(L, N, Q, 4)

    return {
        "class": cls[-1],
        "bbox": bbox[-1],
        "aux": [{"class": cls[i], "bbox": bbox[i]} for i in range(L - 1)],
    }


# ----------------------------------------------------------------------------
# Deterministic parameter init (matmul weights bf16, biases/LN f32, 2-D biases)
# ----------------------------------------------------------------------------

def init_params(key, cfg):
    d, Cb, P, ff = (cfg["hiddenDims"], cfg["outChannels"],
                    cfg["patch"], cfg["dimFeedForward"])
    keys = iter(jax.random.split(key, 256))

    def lin(din, dout):
        w = (0.02 * jax.random.normal(next(keys), (din, dout), jnp.float32)
             ).astype(jnp.bfloat16)
        return w, jnp.zeros((1, dout), jnp.float32)

    def mha_p():
        p = {}
        for nm in ("q", "k", "v", "o"):
            p["w" + nm], p["b" + nm] = lin(d, d)
        return p

    def ln():
        return jnp.ones((1, d), jnp.float32), jnp.zeros((1, d), jnp.float32)

    params = {}
    params["backbone_w"], params["backbone_b"] = lin(3 * P * P, Cb)
    params["reshape_w"], params["reshape_b"] = lin(Cb, d)

    enc = []
    for _ in range(cfg["numEncoderLayer"]):
        lp = {"self_attn": mha_p()}
        lp["ffn_w1"], lp["ffn_b1"] = lin(d, ff)
        lp["ffn_w2"], lp["ffn_b2"] = lin(ff, d)
        lp["norm1_g"], lp["norm1_b"] = ln()
        lp["norm2_g"], lp["norm2_b"] = ln()
        enc.append(lp)
    params["encoder"] = enc

    dec = []
    for _ in range(cfg["numDecoderLayer"]):
        lp = {"self_attn": mha_p(), "cross_attn": mha_p()}
        lp["ffn_w1"], lp["ffn_b1"] = lin(d, ff)
        lp["ffn_w2"], lp["ffn_b2"] = lin(ff, d)
        lp["norm1_g"], lp["norm1_b"] = ln()
        lp["norm2_g"], lp["norm2_b"] = ln()
        lp["norm3_g"], lp["norm3_b"] = ln()
        dec.append(lp)
    params["decoder"] = dec
    params["dec_norm_g"], params["dec_norm_b"] = ln()

    params["query_embed"] = jax.random.normal(
        next(keys), (cfg["numQuery"], d), jnp.float32).astype(jnp.bfloat16)

    # heads: output widths padded to 128 lanes (sliced back in the wrapper)
    nc1 = cfg["numClass"] + 1
    Cp = _round_up(nc1, 128)
    wc, bc = lin(d, nc1)
    params["class_w"] = jnp.pad(wc, ((0, 0), (0, Cp - nc1)))
    params["class_b"] = jnp.pad(bc, ((0, 0), (0, Cp - nc1)))
    params["mlp_w1"], params["mlp_b1"] = lin(d, d)
    params["mlp_w2"], params["mlp_b2"] = lin(d, d)
    Bp = 128
    w3, b3 = lin(d, 4)
    params["mlp_w3"] = jnp.pad(w3, ((0, 0), (0, Bp - 4)))
    params["mlp_b3"] = jnp.pad(b3, ((0, 0), (0, Bp - 4)))
    return params


# ----------------------------------------------------------------------------
# Main
# ----------------------------------------------------------------------------

if __name__ == "__main__":
    cfg = dict(
        hiddenDims=32,
        numHead=4,
        numEncoderLayer=2,
        numDecoderLayer=2,
        dimFeedForward=64,
        numQuery=8,
        numClass=5,
        outChannels=16,   # backbone output channels
        patch=8,          # backbone downsample factor
    )

    key = jax.random.PRNGKey(0)
    k_params, k_x = jax.random.split(key)
    params = init_params(k_params, cfg)

    # NCHW input just like the PyTorch module: [batch, 3, H, W]
    x = jax.random.normal(k_x, (2, 3, 32, 32), jnp.float32)

    fwd = jax.jit(lambda p, xx: detr_forward(p, xx, cfg))
    out = fwd(params, x)
    jax.block_until_ready(out["class"])
    jax.block_until_ready(out["bbox"])

    assert out["class"].shape == (2, cfg["numQuery"], cfg["numClass"] + 1)
    assert out["bbox"].shape == (2, cfg["numQuery"], 4)
    assert len(out["aux"]) == cfg["numDecoderLayer"] - 1

    print("KERNEL_OK")
</pallas_src>

<mosaic_0001>
module attributes {stable_mosaic.version = 11 : i64} {
  func.func @_proj_qkv_kernel(%arg0: i32, %arg1: memref<32x32xbf16, #tpu.memory_space<vmem>>, %arg2: memref<32x32xbf16, #tpu.memory_space<vmem>>, %arg3: memref<32x32xbf16, #tpu.memory_space<vmem>>, %arg4: memref<1x32xf32, #tpu.memory_space<vmem>>, %arg5: memref<32x32xbf16, #tpu.memory_space<vmem>>, %arg6: memref<1x32xf32, #tpu.memory_space<vmem>>, %arg7: memref<32x32xbf16, #tpu.memory_space<vmem>>, %arg8: memref<1x32xf32, #tpu.memory_space<vmem>>, %arg9: memref<32x32xbf16, #tpu.memory_space<vmem>>, %arg10: memref<32x32xbf16, #tpu.memory_space<vmem>>, %arg11: memref<32x32xbf16, #tpu.memory_space<vmem>>) attributes {dimension_semantics = [#tpu.dimension_semantics<parallel>], iteration_bounds = array<i64: 1>, scalar_prefetch = 0 : i64, scratch_operands = 0 : i64, tpu.core_type = #tpu.core_type<tc>, window_params = [{transform_indices = @transform_0, window_bounds = array<i64: 32, 32>}, {transform_indices = @transform_1, window_bounds = array<i64: 32, 32>}, {pipeline_mode = #tpu.pipeline_mode<synchronous>, transform_indices = @transform_2, window_bounds = array<i64: 32, 32>}, {pipeline_mode = #tpu.pipeline_mode<synchronous>, transform_indices = @transform_3, window_bounds = array<i64: 1, 32>}, {pipeline_mode = #tpu.pipeline_mode<synchronous>, transform_indices = @transform_4, window_bounds = array<i64: 32, 32>}, {pipeline_mode = #tpu.pipeline_mode<synchronous>, transform_indices = @transform_5, window_bounds = array<i64: 1, 32>}, {pipeline_mode = #tpu.pipeline_mode<synchronous>, transform_indices = @transform_6, window_bounds = array<i64: 32, 32>}, {pipeline_mode = #tpu.pipeline_mode<synchronous>, transform_indices = @transform_7, window_bounds = array<i64: 1, 32>}, {transform_indices = @transform_8, window_bounds = array<i64: 32, 32>}, {transform_indices = @transform_9, window_bounds = array<i64: 32, 32>}, {transform_indices = @transform_10, window_bounds = array<i64: 32, 32>}]} {
    %c0 = arith.constant 0 : index
    %c0_0 = arith.constant 0 : index
    %0 = vector.load %arg1[%c0, %c0_0] : memref<32x32xbf16, #tpu.memory_space<vmem>>, vector<32x32xbf16>
    %1 = arith.extf %0 : vector<32x32xbf16> to vector<32x32xf32>
    %c0_1 = arith.constant 0 : index
    %c0_2 = arith.constant 0 : index
    %2 = vector.load %arg2[%c0_1, %c0_2] : memref<32x32xbf16, #tpu.memory_space<vmem>>, vector<32x32xbf16>
    %3 = arith.extf %2 : vector<32x32xbf16> to vector<32x32xf32>
    %4 = arith.addf %1, %3 : vector<32x32xf32>
    %5 = arith.truncf %4 : vector<32x32xf32> to vector<32x32xbf16>
    %c0_3 = arith.constant 0 : index
    %c0_4 = arith.constant 0 : index
    %6 = vector.load %arg3[%c0_3, %c0_4] : memref<32x32xbf16, #tpu.memory_space<vmem>>, vector<32x32xbf16>
    %cst = arith.constant dense<0.000000e+00> : vector<32x32xf32>
    %7 = tpu.matmul %5, %6, %cst {dimension_numbers = #tpu.dot_dimension_numbers<[1], [0], [0], [1], [0, 0, 1, 1], [], []>} : vector<32x32xbf16>, vector<32x32xbf16>, vector<32x32xf32> -> vector<32x32xf32>
    %c0_5 = arith.constant 0 : index
    %c0_6 = arith.constant 0 : index
    %8 = vector.load %arg4[%c0_5, %c0_6] : memref<1x32xf32, #tpu.memory_space<vmem>>, vector<1x32xf32>
    %9 = vector.broadcast %8 : vector<1x32xf32> to vector<32x32xf32>
    %10 = arith.addf %7, %9 : vector<32x32xf32>
    %11 = arith.truncf %10 : vector<32x32xf32> to vector<32x32xbf16>
    %c0_7 = arith.constant 0 : index
    %c0_8 = arith.constant 0 : index
    %12 = vector.load %arg9[%c0_7, %c0_8] : memref<32x32xbf16, #tpu.memory_space<vmem>>, vector<32x32xbf16>
    tpu.vector_store %arg9[%c0_7, %c0_8], %11 {strides = array<i32>} : memref<32x32xbf16, #tpu.memory_space<vmem>>, vector<32x32xbf16>,
    %c0_9 = arith.constant 0 : index
    %c0_10 = arith.constant 0 : index
    %13 = vector.load %arg5[%c0_9, %c0_10] : memref<32x32xbf16, #tpu.memory_space<vmem>>, vector<32x32xbf16>
    %cst_11 = arith.constant dense<0.000000e+00> : vector<32x32xf32>
    %14 = tpu.matmul %5, %13, %cst_11 {dimension_numbers = #tpu.dot_dimension_numbers<[1], [0], [0], [1], [0, 0, 1, 1], [], []>} : vector<32x32xbf16>, vector<32x32xbf16>, vector<32x32xf32> -> vector<32x32xf32>
    %c0_12 = arith.constant 0 : index
    %c0_13 = arith.constant 0 : index
    %15 = vector.load %arg6[%c0_12, %c0_13] : memref<1x32xf32, #tpu.memory_space<vmem>>, vector<1x32xf32>
    %16 = vector.broadcast %15 : vector<1x32xf32> to vector<32x32xf32>
    %17 = arith.addf %14, %16 : vector<32x32xf32>
    %18 = arith.truncf %17 : vector<32x32xf32> to vector<32x32xbf16>
    %c0_14 = arith.constant 0 : index
    %c0_15 = arith.constant 0 : index
    %19 = vector.load %arg10[%c0_14, %c0_15] : memref<32x32xbf16, #tpu.memory_space<vmem>>, vector<32x32xbf16>
    tpu.vector_store %arg10[%c0_14, %c0_15], %18 {strides = array<i32>} : memref<32x32xbf16, #tpu.memory_space<vmem>>, vector<32x32xbf16>,
    %c0_16 = arith.constant 0 : index
    %c0_17 = arith.constant 0 : index
    %20 = vector.load %arg7[%c0_16, %c0_17] : memref<32x32xbf16, #tpu.memory_space<vmem>>, vector<32x32xbf16>
    %cst_18 = arith.constant dense<0.000000e+00> : vector<32x32xf32>
    %21 = tpu.matmul %0, %20, %cst_18 {dimension_numbers = #tpu.dot_dimension_numbers<[1], [0], [0], [1], [0, 0, 1, 1], [], []>} : vector<32x32xbf16>, vector<32x32xbf16>, vector<32x32xf32> -> vector<32x32xf32>
    %c0_19 = arith.constant 0 : index
    %c0_20 = arith.constant 0 : index
    %22 = vector.load %arg8[%c0_19, %c0_20] : memref<1x32xf32, #tpu.memory_space<vmem>>, vector<1x32xf32>
    %23 = vector.broadcast %22 : vector<1x32xf32> to vector<32x32xf32>
    %24 = arith.addf %21, %23 : vector<32x32xf32>
    %25 = arith.truncf %24 : vector<32x32xf32> to vector<32x32xbf16>
    %c0_21 = arith.constant 0 : index
    %c0_22 = arith.constant 0 : index
    %26 = vector.load %arg11[%c0_21, %c0_22] : memref<32x32xbf16, #tpu.memory_space<vmem>>, vector<32x32xbf16>
    tpu.vector_store %arg11[%c0_21, %c0_22], %25 {strides = array<i32>} : memref<32x32xbf16, #tpu.memory_space<vmem>>, vector<32x32xbf16>,
    return
  }
  func.func @transform_0(%arg0: i32) -> (i32, i32) {
    %c0_i32 = arith.constant 0 : i32
    %c0_i32_0 = arith.constant 0 : i32
    return %arg0, %c0_i32 : i32, i32
  }
  func.func @transform_1(%arg0: i32) -> (i32, i32) {
    %c0_i32 = arith.constant 0 : i32
    %c0_i32_0 = arith.constant 0 : i32
    return %arg0, %c0_i32 : i32, i32
  }
  func.func @transform_2(%arg0: i32) -> (i32, i32) {
    %c0_i32 = arith.constant 0 : i32
    %c0_i32_0 = arith.constant 0 : i32
    %c0_i32_1 = arith.constant 0 : i32
    return %c0_i32, %c0_i32_0 : i32, i32
  }
  func.func @transform_3(%arg0: i32) -> (i32, i32) {
    %c0_i32 = arith.constant 0 : i32
    %c0_i32_0 = arith.constant 0 : i32
    %c0_i32_1 = arith.constant 0 : i32
    return %c0_i32, %c0_i32_0 : i32, i32
  }
  func.func @transform_4(%arg0: i32) -> (i32, i32) {
    %c0_i32 = arith.constant 0 : i32
    %c0_i32_0 = arith.constant 0 : i32
    %c0_i32_1 = arith.constant 0 : i32
    return %c0_i32, %c0_i32_0 : i32, i32
  }
  func.func @transform_5(%arg0: i32) -> (i32, i32) {
    %c0_i32 = arith.constant 0 : i32
    %c0_i32_0 = arith.constant 0 : i32
    %c0_i32_1 = arith.constant 0 : i32
    return %c0_i32, %c0_i32_0 : i32, i32
  }
  func.func @transform_6(%arg0: i32) -> (i32, i32) {
    %c0_i32 = arith.constant 0 : i32
    %c0_i32_0 = arith.constant 0 : i32
    %c0_i32_1 = arith.constant 0 : i32
    return %c0_i32, %c0_i32_0 : i32, i32
  }
  func.func @transform_7(%arg0: i32) -> (i32, i32) {
    %c0_i32 = arith.constant 0 : i32
    %c0_i32_0 = arith.constant 0 : i32
    %c0_i32_1 = arith.constant 0 : i32
    return %c0_i32, %c0_i32_0 : i32, i32
  }
  func.func @transform_8(%arg0: i32) -> (i32, i32) {
    %c0_i32 = arith.constant 0 : i32
    %c0_i32_0 = arith.constant 0 : i32
    return %arg0, %c0_i32 : i32, i32
  }
  func.func @transform_9(%arg0: i32) -> (i32, i32) {
    %c0_i32 = arith.constant 0 : i32
    %c0_i32_0 = arith.constant 0 : i32
    return %arg0, %c0_i32 : i32, i32
  }
  func.func @transform_10(%arg0: i32) -> (i32, i32) {
    %c0_i32 = arith.constant 0 : i32
    %c0_i32_0 = arith.constant 0 : i32
    return %arg0, %c0_i32 : i32, i32
  }
}

module attributes {stable_mosaic.version = 11 : i64} {
  func.func @_ffn_plain_kernel(%arg0: i32, %arg1: memref<32x192xbf16, #tpu.memory_space<vmem>>, %arg2: memref<192x16xbf16, #tpu.memory_space<vmem>>, %arg3: memref<1x16xf32, #tpu.memory_space<vmem>>, %arg4: memref<16x32xbf16, #tpu.memory_space<vmem>>, %arg5: memref<1x32xf32, #tpu.memory_space<vmem>>, %arg6: memref<32x32xbf16, #tpu.memory_space<vmem>>) attributes {dimension_semantics = [#tpu.dimension_semantics<parallel>], iteration_bounds = array<i64: 1>, scalar_prefetch = 0 : i64, scratch_operands = 0 : i64, tpu.core_type = #tpu.core_type<tc>, window_params = [{transform_indices = @transform_0, window_bounds = array<i64: 32, 192>}, {pipeline_mode = #tpu.pipeline_mode<synchronous>, transform_indices = @transform_1, window_bounds = array<i64: 192, 16>}, {pipeline_mode = #tpu.pipeline_mode<synchronous>, transform_indices = @transform_2, window_bounds = array<i64: 1, 16>}, {pipeline_mode = #tpu.pipeline_mode<synchronous>, transform_indices = @transform_3, window_bounds = array<i64: 16, 32>}, {pipeline_mode = #tpu.pipeline_mode<synchronous>, transform_indices = @transform_4, window_bounds = array<i64: 1, 32>}, {transform_indices = @transform_5, window_bounds = array<i64: 32, 32>}]} {
    %c0 = arith.constant 0 : index
    %c0_0 = arith.constant 0 : index
    %0 = vector.load %arg1[%c0, %c0_0] : memref<32x192xbf16, #tpu.memory_space<vmem>>, vector<32x192xbf16>
    %c0_1 = arith.constant 0 : index
    %c0_2 = arith.constant 0 : index
    %1 = vector.load %arg2[%c0_1, %c0_2] : memref<192x16xbf16, #tpu.memory_space<vmem>>, vector<192x16xbf16>
    %cst = arith.constant dense<0.000000e+00> : vector<32x16xf32>
    %2 = tpu.matmul %0, %1, %cst {dimension_numbers = #tpu.dot_dimension_numbers<[1], [0], [0], [1], [0, 0, 1, 1], [], []>} : vector<32x192xbf16>, vector<192x16xbf16>, vector<32x16xf32> -> vector<32x16xf32>
    %c0_3 = arith.constant 0 : index
    %c0_4 = arith.constant 0 : index
    %3 = vector.load %arg3[%c0_3, %c0_4] : memref<1x16xf32, #tpu.memory_space<vmem>>, vector<1x16xf32>
    %4 = vector.broadcast %3 : vector<1x16xf32> to vector<32x16xf32>
    %5 = arith.addf %2, %4 : vector<32x16xf32>
    %cst_5 = arith.constant 0.000000e+00 : f32
    %6 = vector.broadcast %cst_5 : f32 to vector<32x16xf32>
    %7 = arith.maximumf %5, %6 : vector<32x16xf32>
    %8 = arith.truncf %7 : vector<32x16xf32> to vector<32x16xbf16>
    %c0_6 = arith.constant 0 : index
    %c0_7 = arith.constant 0 : index
    %9 = vector.load %arg4[%c0_6, %c0_7] : memref<16x32xbf16, #tpu.memory_space<vmem>>, vector<16x32xbf16>
    %cst_8 = arith.constant dense<0.000000e+00> : vector<32x32xf32>
    %10 = tpu.matmul %8, %9, %cst_8 {dimension_numbers = #tpu.dot_dimension_numbers<[1], [0], [0], [1], [0, 0, 1, 1], [], []>} : vector<32x16xbf16>, vector<16x32xbf16>, vector<32x32xf32> -> vector<32x32xf32>
    %c0_9 = arith.constant 0 : index
    %c0_10 = arith.constant 0 : index
    %11 = vector.load %arg5[%c0_9, %c0_10] : memref<1x32xf32, #tpu.memory_space<vmem>>, vector<1x32xf32>
    %12 = vector.broadcast %11 : vector<1x32xf32> to vector<32x32xf32>
    %13 = arith.addf %10, %12 : vector<32x32xf32>
    %14 = arith.truncf %13 : vector<32x32xf32> to vector<32x32xbf16>
    %c0_11 = arith.constant 0 : index
    %c0_12 = arith.constant 0 : index
    %15 = vector.load %arg6[%c0_11, %c0_12] : memref<32x32xbf16, #tpu.memory_space<vmem>>, vector<32x32xbf16>
    tpu.vector_store %arg6[%c0_11, %c0_12], %14 {strides = array<i32>} : memref<32x32xbf16, #tpu.memory_space<vmem>>, vector<32x32xbf16>,
    return
  }
  func.func @transform_0(%arg0: i32) -> (i32, i32) {
    %c0_i32 = arith.constant 0 : i32
    %c0_i32_0 = arith.constant 0 : i32
    return %arg0, %c0_i32 : i32, i32
  }
  func.func @transform_1(%arg0: i32) -> (i32, i32) {
    %c0_i32 = arith.constant 0 : i32
    %c0_i32_0 = arith.constant 0 : i32
    %c0_i32_1 = arith.constant 0 : i32
    return %c0_i32, %c0_i32_0 : i32, i32
  }
  func.func @transform_2(%arg0: i32) -> (i32, i32) {
    %c0_i32 = arith.constant 0 : i32
    %c0_i32_0 = arith.constant 0 : i32
    %c0_i32_1 = arith.constant 0 : i32
    return %c0_i32, %c0_i32_0 : i32, i32
  }
  func.func @transform_3(%arg0: i32) -> (i32, i32) {
    %c0_i32 = arith.constant 0 : i32
    %c0_i32_0 = arith.constant 0 : i32
    %c0_i32_1 = arith.constant 0 : i32
    return %c0_i32, %c0_i32_0 : i32, i32
  }
  func.func @transform_4(%arg0: i32) -> (i32, i32) {
    %c0_i32 = arith.constant 0 : i32
    %c0_i32_0 = arith.constant 0 : i32
    %c0_i32_1 = arith.constant 0 : i32
    return %c0_i32, %c0_i32_0 : i32, i32
  }
  func.func @transform_5(%arg0: i32) -> (i32, i32) {
    %c0_i32 = arith.constant 0 : i32
    %c0_i32_0 = arith.constant 0 : i32
    return %arg0, %c0_i32 : i32, i32
  }
}

module attributes {stable_mosaic.version = 11 : i64} {
  func.func @_attn_out_ln_kernel(%arg0: i32, %arg1: i32, %arg2: memref<1x16x32xbf16, #tpu.memory_space<vmem>>, %arg3: memref<1x16x32xbf16, #tpu.memory_space<vmem>>, %arg4: memref<1x16x32xbf16, #tpu.memory_space<vmem>>, %arg5: memref<32x32xbf16, #tpu.memory_space<vmem>>, %arg6: memref<1x32xf32, #tpu.memory_space<vmem>>, %arg7: memref<1x16x32xbf16, #tpu.memory_space<vmem>>, %arg8: memref<1x32xf32, #tpu.memory_space<vmem>>, %arg9: memref<1x32xf32, #tpu.memory_space<vmem>>, %arg10: memref<1x16x32xbf16, #tpu.memory_space<vmem>>) attributes {dimension_semantics = [#tpu.dimension_semantics<parallel>, #tpu.dimension_semantics<parallel>], iteration_bounds = array<i64: 2, 1>, scalar_prefetch = 0 : i64, scratch_operands = 0 : i64, tpu.core_type = #tpu.core_type<tc>, window_params = [{transform_indices = @transform_0, window_bounds = array<i64: 1, 16, 32>}, {transform_indices = @transform_1, window_bounds = array<i64: 1, 16, 32>}, {transform_indices = @transform_2, window_bounds = array<i64: 1, 16, 32>}, {pipeline_mode = #tpu.pipeline_mode<synchronous>, transform_indices = @transform_3, window_bounds = array<i64: 32, 32>}, {pipeline_mode = #tpu.pipeline_mode<synchronous>, transform_indices = @transform_4, window_bounds = array<i64: 1, 32>}, {transform_indices = @transform_5, window_bounds = array<i64: 1, 16, 32>}, {pipeline_mode = #tpu.pipeline_mode<synchronous>, transform_indices = @transform_6, window_bounds = array<i64: 1, 32>}, {pipeline_mode = #tpu.pipeline_mode<synchronous>, transform_indices = @transform_7, window_bounds = array<i64: 1, 32>}, {transform_indices = @transform_8, window_bounds = array<i64: 1, 16, 32>}]} {
    %c0 = arith.constant 0 : index
    %c0_0 = arith.constant 0 : index
    %c0_1 = arith.constant 0 : index
    %0 = vector.load %arg2[%c0, %c0_0, %c0_1] : memref<1x16x32xbf16, #tpu.memory_space<vmem>>, vector<1x16x32xbf16>
    %1 = vector.shape_cast %0 : vector<1x16x32xbf16> to vector<16x32xbf16>
    %c0_2 = arith.constant 0 : index
    %c0_3 = arith.constant 0 : index
    %c0_4 = arith.constant 0 : index
    %2 = vector.load %arg3[%c0_2, %c0_3, %c0_4] : memref<1x16x32xbf16, #tpu.memory_space<vmem>>, vector<1x16x32xbf16>
    %3 = vector.shape_cast %2 : vector<1x16x32xbf16> to vector<16x32xbf16>
    %c0_5 = arith.constant 0 : index
    %c0_6 = arith.constant 0 : index
    %c0_7 = arith.constant 0 : index
    %4 = vector.load %arg4[%c0_5, %c0_6, %c0_7] : memref<1x16x32xbf16, #tpu.memory_space<vmem>>, vector<1x16x32xbf16>
    %5 = vector.shape_cast %4 : vector<1x16x32xbf16> to vector<16x32xbf16>
    %c0_8 = arith.constant 0 : index
    %c0_9 = arith.constant 0 : index
    %6 = vector.load %arg5[%c0_8, %c0_9] : memref<32x32xbf16, #tpu.memory_space<vmem>>, vector<32x32xbf16>
    %c0_10 = arith.constant 0 : index
    %c0_11 = arith.constant 0 : index
    %c0_12 = arith.constant 0 : index
    %7 = vector.load %arg7[%c0_10, %c0_11, %c0_12] : memref<1x16x32xbf16, #tpu.memory_space<vmem>>, vector<1x16x32xbf16>
    %8 = vector.shape_cast %7 : vector<1x16x32xbf16> to vector<16x32xbf16>
    %9 = arith.extf %8 : vector<16x32xbf16> to vector<16x32xf32>
    %c0_13 = arith.constant 0 : index
    %c0_14 = arith.constant 0 : index
    %10 = vector.load %arg6[%c0_13, %c0_14] : memref<1x32xf32, #tpu.memory_space<vmem>>, vector<1x32xf32>
    %11 = vector.broadcast %10 : vector<1x32xf32> to vector<16x32xf32>
    %12 = arith.addf %9, %11 : vector<16x32xf32>
    %13 = vector.extract_strided_slice %1 {offsets = [0, 0], sizes = [16, 8], strides = [1, 1]} : vector<16x32xbf16> to vector<16x8xbf16>
    %14 = vector.extract_strided_slice %3 {offsets = [0, 0], sizes = [16, 8], strides = [1, 1]} : vector<16x32xbf16> to vector<16x8xbf16>
    %15 = vector.extract_strided_slice %5 {offsets = [0, 0], sizes = [16, 8], strides = [1, 1]} : vector<16x32xbf16> to vector<16x8xbf16>
    %cst = arith.constant dense<0.000000e+00> : vector<16x16xf32>
    %16 = tpu.matmul %13, %14, %cst {dimension_numbers = #tpu.dot_dimension_numbers<[1], [1], [0], [0], [0, 0, 1, 0], [], []>} : vector<16x8xbf16>, vector<16x8xbf16>, vector<16x16xf32> -> vector<16x16xf32>
    %cst_15 = arith.constant 0.353553385 : f32
    %17 = vector.broadcast %cst_15 : f32 to vector<16x16xf32>
    %18 = arith.mulf %16, %17 : vector<16x16xf32>
    %cst_16 = arith.constant dense<0xFF800000> : vector<16xf32>
    %19 = vector.multi_reduction <maximumf>, %18, %cst_16 [1] : vector<16x16xf32> to vector<16xf32>
    %20 = vector.shape_cast %19 : vector<16xf32> to vector<16x1xf32>
    %21 = vector.broadcast %20 : vector<16x1xf32> to vector<16x16xf32>
    %22 = arith.subf %18, %21 : vector<16x16xf32>
    %23 = math.exp %22 : vector<16x16xf32>
    %cst_17 = arith.constant dense<0.000000e+00> : vector<16xf32>
    %24 = vector.multi_reduction <add>, %23, %cst_17 [1] : vector<16x16xf32> to vector<16xf32>
    %25 = vector.shape_cast %24 : vector<16xf32> to vector<16x1xf32>
    %26 = vector.broadcast %25 : vector<16x1xf32> to vector<16x16xf32>
    %27 = arith.divf %23, %26 : vector<16x16xf32>
    %28 = arith.truncf %27 : vector<16x16xf32> to vector<16x16xbf16>
    %cst_18 = arith.constant dense<0.000000e+00> : vector<16x8xf32>
    %29 = tpu.matmul %28, %15, %cst_18 {dimension_numbers = #tpu.dot_dimension_numbers<[1], [0], [0], [1], [0, 0, 1, 1], [], []>} : vector<16x16xbf16>, vector<16x8xbf16>, vector<16x8xf32> -> vector<16x8xf32>
    %30 = arith.truncf %29 : vector<16x8xf32> to vector<16x8xbf16>
    %31 = vector.extract_strided_slice %6 {offsets = [0, 0], sizes = [8, 32], strides = [1, 1]} : vector<32x32xbf16> to vector<8x32xbf16>
    %cst_19 = arith.constant dense<0.000000e+00> : vector<16x32xf32>
    %32 = tpu.matmul %30, %31, %cst_19 {dimension_numbers = #tpu.dot_dimension_numbers<[1], [0], [0], [1], [0, 0, 1, 1], [], []>} : vector<16x8xbf16>, vector<8x32xbf16>, vector<16x32xf32> -> vector<16x32xf32>
    %33 = arith.addf %12, %32 : vector<16x32xf32>
    %34 = vector.extract_strided_slice %1 {offsets = [0, 8], sizes = [16, 8], strides = [1, 1]} : vector<16x32xbf16> to vector<16x8xbf16>
    %35 = vector.extract_strided_slice %3 {offsets = [0, 8], sizes = [16, 8], strides = [1, 1]} : vector<16x32xbf16> to vector<16x8xbf16>
    %36 = vector.extract_strided_slice %5 {offsets = [0, 8], sizes = [16, 8], strides = [1, 1]} : vector<16x32xbf16> to vector<16x8xbf16>
    %cst_20 = arith.constant dense<0.000000e+00> : vector<16x16xf32>
    %37 = tpu.matmul %34, %35, %cst_20 {dimension_numbers = #tpu.dot_dimension_numbers<[1], [1], [0], [0], [0, 0, 1, 0], [], []>} : vector<16x8xbf16>, vector<16x8xbf16>, vector<16x16xf32> -> vector<16x16xf32>
    %cst_21 = arith.constant 0.353553385 : f32
    %38 = vector.broadcast %cst_21 : f32 to vector<16x16xf32>
    %39 = arith.mulf %37, %38 : vector<16x16xf32>
    %cst_22 = arith.constant dense<0xFF800000> : vector<16xf32>
    %40 = vector.multi_reduction <maximumf>, %39, %cst_22 [1] : vector<16x16xf32> to vector<16xf32>
    %41 = vector.shape_cast %40 : vector<16xf32> to vector<16x1xf32>
    %42 = vector.broadcast %41 : vector<16x1xf32> to vector<16x16xf32>
    %43 = arith.subf %39, %42 : vector<16x16xf32>
    %44 = math.exp %43 : vector<16x16xf32>
    %cst_23 = arith.constant dense<0.000000e+00> : vector<16xf32>
    %45 = vector.multi_reduction <add>, %44, %cst_23 [1] : vector<16x16xf32> to vector<16xf32>
    %46 = vector.shape_cast %45 : vector<16xf32> to vector<16x1xf32>
    %47 = vector.broadcast %46 : vector<16x1xf32> to vector<16x16xf32>
    %48 = arith.divf %44, %47 : vector<16x16xf32>
    %49 = arith.truncf %48 : vector<16x16xf32> to vector<16x16xbf16>
    %cst_24 = arith.constant dense<0.000000e+00> : vector<16x8xf32>
    %50 = tpu.matmul %49, %36, %cst_24 {dimension_numbers = #tpu.dot_dimension_numbers<[1], [0], [0], [1], [0, 0, 1, 1], [], []>} : vector<16x16xbf16>, vector<16x8xbf16>, vector<16x8xf32> -> vector<16x8xf32>
    %51 = arith.truncf %50 : vector<16x8xf32> to vector<16x8xbf16>
    %52 = vector.extract_strided_slice %6 {offsets = [8, 0], sizes = [8, 32], strides = [1, 1]} : vector<32x32xbf16> to vector<8x32xbf16>
    %cst_25 = arith.constant dense<0.000000e+00> : vector<16x32xf32>
    %53 = tpu.matmul %51, %52, %cst_25 {dimension_numbers = #tpu.dot_dimension_numbers<[1], [0], [0], [1], [0, 0, 1, 1], [], []>} : vector<16x8xbf16>, vector<8x32xbf16>, vector<16x32xf32> -> vector<16x32xf32>
    %54 = arith.addf %33, %53 : vector<16x32xf32>
    %55 = vector.extract_strided_slice %1 {offsets = [0, 16], sizes = [16, 8], strides = [1, 1]} : vector<16x32xbf16> to vector<16x8xbf16>
    %56 = vector.extract_strided_slice %3 {offsets = [0, 16], sizes = [16, 8], strides = [1, 1]} : vector<16x32xbf16> to vector<16x8xbf16>
    %57 = vector.extract_strided_slice %5 {offsets = [0, 16], sizes = [16, 8], strides = [1, 1]} : vector<16x32xbf16> to vector<16x8xbf16>
    %cst_26 = arith.constant dense<0.000000e+00> : vector<16x16xf32>
    %58 = tpu.matmul %55, %56, %cst_26 {dimension_numbers = #tpu.dot_dimension_numbers<[1], [1], [0], [0], [0, 0, 1, 0], [], []>} : vector<16x8xbf16>, vector<16x8xbf16>, vector<16x16xf32> -> vector<16x16xf32>
    %cst_27 = arith.constant 0.353553385 : f32
    %59 = vector.broadcast %cst_27 : f32 to vector<16x16xf32>
    %60 = arith.mulf %58, %59 : vector<16x16xf32>
    %cst_28 = arith.constant dense<0xFF800000> : vector<16xf32>
    %61 = vector.multi_reduction <maximumf>, %60, %cst_28 [1] : vector<16x16xf32> to vector<16xf32>
    %62 = vector.shape_cast %61 : vector<16xf32> to vector<16x1xf32>
    %63 = vector.broadcast %62 : vector<16x1xf32> to vector<16x16xf32>
    %64 = arith.subf %60, %63 : vector<16x16xf32>
    %65 = math.exp %64 : vector<16x16xf32>
    %cst_29 = arith.constant dense<0.000000e+00> : vector<16xf32>
    %66 = vector.multi_reduction <add>, %65, %cst_29 [1] : vector<16x16xf32> to vector<16xf32>
    %67 = vector.shape_cast %66 : vector<16xf32> to vector<16x1xf32>
    %68 = vector.broadcast %67 : vector<16x1xf32> to vector<16x16xf32>
    %69 = arith.divf %65, %68 : vector<16x16xf32>
    %70 = arith.truncf %69 : vector<16x16xf32> to vector<16x16xbf16>
    %cst_30 = arith.constant dense<0.000000e+00> : vector<16x8xf32>
    %71 = tpu.matmul %70, %57, %cst_30 {dimension_numbers = #tpu.dot_dimension_numbers<[1], [0], [0], [1], [0, 0, 1, 1], [], []>} : vector<16x16xbf16>, vector<16x8xbf16>, vector<16x8xf32> -> vector<16x8xf32>
    %72 = arith.truncf %71 : vector<16x8xf32> to vector<16x8xbf16>
    %73 = vector.extract_strided_slice %6 {offsets = [16, 0], sizes = [8, 32], strides = [1, 1]} : vector<32x32xbf16> to vector<8x32xbf16>
    %cst_31 = arith.constant dense<0.000000e+00> : vector<16x32xf32>
    %74 = tpu.matmul %72, %73, %cst_31 {dimension_numbers = #tpu.dot_dimension_numbers<[1], [0], [0], [1], [0, 0, 1, 1], [], []>} : vector<16x8xbf16>, vector<8x32xbf16>, vector<16x32xf32> -> vector<16x32xf32>
    %75 = arith.addf %54, %74 : vector<16x32xf32>
    %76 = vector.extract_strided_slice %1 {offsets = [0, 24], sizes = [16, 8], strides = [1, 1]} : vector<16x32xbf16> to vector<16x8xbf16>
    %77 = vector.extract_strided_slice %3 {offsets = [0, 24], sizes = [16, 8], strides = [1, 1]} : vector<16x32xbf16> to vector<16x8xbf16>
    %78 = vector.extract_strided_slice %5 {offsets = [0, 24], sizes = [16, 8], strides = [1, 1]} : vector<16x32xbf16> to vector<16x8xbf16>
    %cst_32 = arith.constant dense<0.000000e+00> : vector<16x16xf32>
    %79 = tpu.matmul %76, %77, %cst_32 {dimension_numbers = #tpu.dot_dimension_numbers<[1], [1], [0], [0], [0, 0, 1, 0], [], []>} : vector<16x8xbf16>, vector<16x8xbf16>, vector<16x16xf32> -> vector<16x16xf32>
    %cst_33 = arith.constant 0.353553385 : f32
    %80 = vector.broadcast %cst_33 : f32 to vector<16x16xf32>
    %81 = arith.mulf %79, %80 : vector<16x16xf32>
    %cst_34 = arith.constant dense<0xFF800000> : vector<16xf32>
    %82 = vector.multi_reduction <maximumf>, %81, %cst_34 [1] : vector<16x16xf32> to vector<16xf32>
    %83 = vector.shape_cast %82 : vector<16xf32> to vector<16x1xf32>
    %84 = vector.broadcast %83 : vector<16x1xf32> to vector<16x16xf32>
    %85 = arith.subf %81, %84 : vector<16x16xf32>
    %86 = math.exp %85 : vector<16x16xf32>
    %cst_35 = arith.constant dense<0.000000e+00> : vector<16xf32>
    %87 = vector.multi_reduction <add>, %86, %cst_35 [1] : vector<16x16xf32> to vector<16xf32>
    %88 = vector.shape_cast %87 : vector<16xf32> to vector<16x1xf32>
    %89 = vector.broadcast %88 : vector<16x1xf32> to vector<16x16xf32>
    %90 = arith.divf %86, %89 : vector<16x16xf32>
    %91 = arith.truncf %90 : vector<16x16xf32> to vector<16x16xbf16>
    %cst_36 = arith.constant dense<0.000000e+00> : vector<16x8xf32>
    %92 = tpu.matmul %91, %78, %cst_36 {dimension_numbers = #tpu.dot_dimension_numbers<[1], [0], [0], [1], [0, 0, 1, 1], [], []>} : vector<16x16xbf16>, vector<16x8xbf16>, vector<16x8xf32> -> vector<16x8xf32>
    %93 = arith.truncf %92 : vector<16x8xf32> to vector<16x8xbf16>
    %94 = vector.extract_strided_slice %6 {offsets = [24, 0], sizes = [8, 32], strides = [1, 1]} : vector<32x32xbf16> to vector<8x32xbf16>
    %cst_37 = arith.constant dense<0.000000e+00> : vector<16x32xf32>
    %95 = tpu.matmul %93, %94, %cst_37 {dimension_numbers = #tpu.dot_dimension_numbers<[1], [0], [0], [1], [0, 0, 1, 1], [], []>} : vector<16x8xbf16>, vector<8x32xbf16>, vector<16x32xf32> -> vector<16x32xf32>
    %96 = arith.addf %75, %95 : vector<16x32xf32>
    %cst_38 = arith.constant dense<0.000000e+00> : vector<16xf32>
    %97 = vector.multi_reduction <add>, %96, %cst_38 [1] : vector<16x32xf32> to vector<16xf32>
    %98 = vector.shape_cast %97 : vector<16xf32> to vector<16x1xf32>
    %cst_39 = arith.constant 3.200000e+01 : f32
    %99 = vector.broadcast %cst_39 : f32 to vector<16x1xf32>
    %100 = arith.divf %98, %99 : vector<16x1xf32>
    %101 = vector.broadcast %100 : vector<16x1xf32> to vector<16x32xf32>
    %102 = arith.subf %96, %101 : vector<16x32xf32>
    %103 = arith.mulf %102, %102 : vector<16x32xf32>
    %cst_40 = arith.constant dense<0.000000e+00> : vector<16xf32>
    %104 = vector.multi_reduction <add>, %103, %cst_40 [1] : vector<16x32xf32> to vector<16xf32>
    %105 = vector.shape_cast %104 : vector<16xf32> to vector<16x1xf32>
    %cst_41 = arith.constant 3.200000e+01 : f32
    %106 = vector.broadcast %cst_41 : f32 to vector<16x1xf32>
    %107 = arith.divf %105, %106 : vector<16x1xf32>
    %cst_42 = arith.constant 9.99999974E-6 : f32
    %108 = vector.broadcast %cst_42 : f32 to vector<16x1xf32>
    %109 = arith.addf %107, %108 : vector<16x1xf32>
    %110 = math.rsqrt %109 : vector<16x1xf32>
    %111 = vector.broadcast %110 : vector<16x1xf32> to vector<16x32xf32>
    %112 = arith.mulf %102, %111 : vector<16x32xf32>
    %c0_43 = arith.constant 0 : index
    %c0_44 = arith.constant 0 : index
    %113 = vector.load %arg8[%c0_43, %c0_44] : memref<1x32xf32, #tpu.memory_space<vmem>>, vector<1x32xf32>
    %114 = vector.broadcast %113 : vector<1x32xf32> to vector<16x32xf32>
    %115 = arith.mulf %112, %114 : vector<16x32xf32>
    %c0_45 = arith.constant 0 : index
    %c0_46 = arith.constant 0 : index
    %116 = vector.load %arg9[%c0_45, %c0_46] : memref<1x32xf32, #tpu.memory_space<vmem>>, vector<1x32xf32>
    %117 = vector.broadcast %116 : vector<1x32xf32> to vector<16x32xf32>
    %118 = arith.addf %115, %117 : vector<16x32xf32>
    %119 = arith.truncf %118 : vector<16x32xf32> to vector<16x32xbf16>
    %c0_47 = arith.constant 0 : index
    %c0_48 = arith.constant 0 : index
    %c0_49 = arith.constant 0 : index
    %120 = vector.load %arg10[%c0_47, %c0_48, %c0_49] : memref<1x16x32xbf16, #tpu.memory_space<vmem>>, vector<1x16x32xbf16>
    %121 = vector.shape_cast %120 : vector<1x16x32xbf16> to vector<16x32xbf16>
    %122 = vector.shape_cast %119 : vector<16x32xbf16> to vector<1x16x32xbf16>
    tpu.vector_store %arg10[%c0_47, %c0_48, %c0_49], %122 {strides = array<i32>} : memref<1x16x32xbf16, #tpu.memory_space<vmem>>, vector<1x16x32xbf16>,
    return
  }
  func.func @transform_0(%arg0: i32, %arg1: i32) -> (i32, i32, i32) {
    %c0_i32 = arith.constant 0 : i32
    %c0_i32_0 = arith.constant 0 : i32
    return %arg0, %arg1, %c0_i32 : i32, i32, i32
  }
  func.func @transform_1(%arg0: i32, %arg1: i32) -> (i32, i32, i32) {
    %c0_i32 = arith.constant 0 : i32
    %c0_i32_0 = arith.constant 0 : i32
    %c0_i32_1 = arith.constant 0 : i32
    return %arg0, %c0_i32, %c0_i32_0 : i32, i32, i32
  }
  func.func @transform_2(%arg0: i32, %arg1: i32) -> (i32, i32, i32) {
    %c0_i32 = arith.constant 0 : i32
    %c0_i32_0 = arith.constant 0 : i32
    %c0_i32_1 = arith.constant 0 : i32
    return %arg0, %c0_i32, %c0_i32_0 : i32, i32, i32
  }
  func.func @transform_3(%arg0: i32, %arg1: i32) -> (i32, i32) {
    %c0_i32 = arith.constant 0 : i32
    %c0_i32_0 = arith.constant 0 : i32
    %c0_i32_1 = arith.constant 0 : i32
    return %c0_i32, %c0_i32_0 : i32, i32
  }
  func.func @transform_4(%arg0: i32, %arg1: i32) -> (i32, i32) {
    %c0_i32 = arith.constant 0 : i32
    %c0_i32_0 = arith.constant 0 : i32
    %c0_i32_1 = arith.constant 0 : i32
    return %c0_i32, %c0_i32_0 : i32, i32
  }
  func.func @transform_5(%arg0: i32, %arg1: i32) -> (i32, i32, i32) {
    %c0_i32 = arith.constant 0 : i32
    %c0_i32_0 = arith.constant 0 : i32
    return %arg0, %arg1, %c0_i32 : i32, i32, i32
  }
  func.func @transform_6(%arg0: i32, %arg1: i32) -> (i32, i32) {
    %c0_i32 = arith.constant 0 : i32
    %c0_i32_0 = arith.constant 0 : i32
    %c0_i32_1 = arith.constant 0 : i32
    return %c0_i32, %c0_i32_0 : i32, i32
  }
  func.func @transform_7(%arg0: i32, %arg1: i32) -> (i32, i32) {
    %c0_i32 = arith.constant 0 : i32
    %c0_i32_0 = arith.constant 0 : i32
    %c0_i32_1 = arith.constant 0 : i32
    return %c0_i32, %c0_i32_0 : i32, i32
  }
  func.func @transform_8(%arg0: i32, %arg1: i32) -> (i32, i32, i32) {
    %c0_i32 = arith.constant 0 : i32
    %c0_i32_0 = arith.constant 0 : i32
    return %arg0, %arg1, %c0_i32 : i32, i32, i32
  }
}

module attributes {stable_mosaic.version = 11 : i64} {
  func.func @_ffn_res_ln_kernel(%arg0: i32, %arg1: memref<32x32xbf16, #tpu.memory_space<vmem>>, %arg2: memref<32x64xbf16, #tpu.memory_space<vmem>>, %arg3: memref<1x64xf32, #tpu.memory_space<vmem>>, %arg4: memref<64x32xbf16, #tpu.memory_space<vmem>>, %arg5: memref<1x32xf32, #tpu.memory_space<vmem>>, %arg6: memref<1x32xf32, #tpu.memory_space<vmem>>, %arg7: memref<1x32xf32, #tpu.memory_space<vmem>>, %arg8: memref<32x32xbf16, #tpu.memory_space<vmem>>) attributes {dimension_semantics = [#tpu.dimension_semantics<parallel>], iteration_bounds = array<i64: 1>, scalar_prefetch = 0 : i64, scratch_operands = 0 : i64, tpu.core_type = #tpu.core_type<tc>, window_params = [{transform_indices = @transform_0, window_bounds = array<i64: 32, 32>}, {pipeline_mode = #tpu.pipeline_mode<synchronous>, transform_indices = @transform_1, window_bounds = array<i64: 32, 64>}, {pipeline_mode = #tpu.pipeline_mode<synchronous>, transform_indices = @transform_2, window_bounds = array<i64: 1, 64>}, {pipeline_mode = #tpu.pipeline_mode<synchronous>, transform_indices = @transform_3, window_bounds = array<i64: 64, 32>}, {pipeline_mode = #tpu.pipeline_mode<synchronous>, transform_indices = @transform_4, window_bounds = array<i64: 1, 32>}, {pipeline_mode = #tpu.pipeline_mode<synchronous>, transform_indices = @transform_5, window_bounds = array<i64: 1, 32>}, {pipeline_mode = #tpu.pipeline_mode<synchronous>, transform_indices = @transform_6, window_bounds = array<i64: 1, 32>}, {transform_indices = @transform_7, window_bounds = array<i64: 32, 32>}]} {
    %c0 = arith.constant 0 : index
    %c0_0 = arith.constant 0 : index
    %0 = vector.load %arg1[%c0, %c0_0] : memref<32x32xbf16, #tpu.memory_space<vmem>>, vector<32x32xbf16>
    %c0_1 = arith.constant 0 : index
    %c0_2 = arith.constant 0 : index
    %1 = vector.load %arg2[%c0_1, %c0_2] : memref<32x64xbf16, #tpu.memory_space<vmem>>, vector<32x64xbf16>
    %cst = arith.constant dense<0.000000e+00> : vector<32x64xf32>
    %2 = tpu.matmul %0, %1, %cst {dimension_numbers = #tpu.dot_dimension_numbers<[1], [0], [0], [1], [0, 0, 1, 1], [], []>} : vector<32x32xbf16>, vector<32x64xbf16>, vector<32x64xf32> -> vector<32x64xf32>
    %c0_3 = arith.constant 0 : index
    %c0_4 = arith.constant 0 : index
    %3 = vector.load %arg3[%c0_3, %c0_4] : memref<1x64xf32, #tpu.memory_space<vmem>>, vector<1x64xf32>
    %4 = vector.broadcast %3 : vector<1x64xf32> to vector<32x64xf32>
    %5 = arith.addf %2, %4 : vector<32x64xf32>
    %cst_5 = arith.constant 0.000000e+00 : f32
    %6 = vector.broadcast %cst_5 : f32 to vector<32x64xf32>
    %7 = arith.maximumf %5, %6 : vector<32x64xf32>
    %8 = arith.truncf %7 : vector<32x64xf32> to vector<32x64xbf16>
    %c0_6 = arith.constant 0 : index
    %c0_7 = arith.constant 0 : index
    %9 = vector.load %arg4[%c0_6, %c0_7] : memref<64x32xbf16, #tpu.memory_space<vmem>>, vector<64x32xbf16>
    %cst_8 = arith.constant dense<0.000000e+00> : vector<32x32xf32>
    %10 = tpu.matmul %8, %9, %cst_8 {dimension_numbers = #tpu.dot_dimension_numbers<[1], [0], [0], [1], [0, 0, 1, 1], [], []>} : vector<32x64xbf16>, vector<64x32xbf16>, vector<32x32xf32> -> vector<32x32xf32>
    %c0_9 = arith.constant 0 : index
    %c0_10 = arith.constant 0 : index
    %11 = vector.load %arg5[%c0_9, %c0_10] : memref<1x32xf32, #tpu.memory_space<vmem>>, vector<1x32xf32>
    %12 = vector.broadcast %11 : vector<1x32xf32> to vector<32x32xf32>
    %13 = arith.addf %10, %12 : vector<32x32xf32>
    %14 = arith.extf %0 : vector<32x32xbf16> to vector<32x32xf32>
    %15 = arith.addf %13, %14 : vector<32x32xf32>
    %cst_11 = arith.constant dense<0.000000e+00> : vector<32xf32>
    %16 = vector.multi_reduction <add>, %15, %cst_11 [1] : vector<32x32xf32> to vector<32xf32>
    %17 = vector.shape_cast %16 : vector<32xf32> to vector<32x1xf32>
    %cst_12 = arith.constant 3.200000e+01 : f32
    %18 = vector.broadcast %cst_12 : f32 to vector<32x1xf32>
    %19 = arith.divf %17, %18 : vector<32x1xf32>
    %20 = vector.broadcast %19 : vector<32x1xf32> to vector<32x32xf32>
    %21 = arith.subf %15, %20 : vector<32x32xf32>
    %22 = arith.mulf %21, %21 : vector<32x32xf32>
    %cst_13 = arith.constant dense<0.000000e+00> : vector<32xf32>
    %23 = vector.multi_reduction <add>, %22, %cst_13 [1] : vector<32x32xf32> to vector<32xf32>
    %24 = vector.shape_cast %23 : vector<32xf32> to vector<32x1xf32>
    %cst_14 = arith.constant 3.200000e+01 : f32
    %25 = vector.broadcast %cst_14 : f32 to vector<32x1xf32>
    %26 = arith.divf %24, %25 : vector<32x1xf32>
    %cst_15 = arith.constant 9.99999974E-6 : f32
    %27 = vector.broadcast %cst_15 : f32 to vector<32x1xf32>
    %28 = arith.addf %26, %27 : vector<32x1xf32>
    %29 = math.rsqrt %28 : vector<32x1xf32>
    %30 = vector.broadcast %29 : vector<32x1xf32> to vector<32x32xf32>
    %31 = arith.mulf %21, %30 : vector<32x32xf32>
    %c0_16 = arith.constant 0 : index
    %c0_17 = arith.constant 0 : index
    %32 = vector.load %arg6[%c0_16, %c0_17] : memref<1x32xf32, #tpu.memory_space<vmem>>, vector<1x32xf32>
    %33 = vector.broadcast %32 : vector<1x32xf32> to vector<32x32xf32>
    %34 = arith.mulf %31, %33 : vector<32x32xf32>
    %c0_18 = arith.constant 0 : index
    %c0_19 = arith.constant 0 : index
    %35 = vector.load %arg7[%c0_18, %c0_19] : memref<1x32xf32, #tpu.memory_space<vmem>>, vector<1x32xf32>
    %36 = vector.broadcast %35 : vector<1x32xf32> to vector<32x32xf32>
    %37 = arith.addf %34, %36 : vector<32x32xf32>
    %38 = arith.truncf %37 : vector<32x32xf32> to vector<32x32xbf16>
    %c0_20 = arith.constant 0 : index
    %c0_21 = arith.constant 0 : index
    %39 = vector.load %arg8[%c0_20, %c0_21] : memref<32x32xbf16, #tpu.memory_space<vmem>>, vector<32x32xbf16>
    tpu.vector_store %arg8[%c0_20, %c0_21], %38 {strides = array<i32>} : memref<32x32xbf16, #tpu.memory_space<vmem>>, vector<32x32xbf16>,
    return
  }
  func.func @transform_0(%arg0: i32) -> (i32, i32) {
    %c0_i32 = arith.constant 0 : i32
    %c0_i32_0 = arith.constant 0 : i32
    return %arg0, %c0_i32 : i32, i32
  }
  func.func @transform_1(%arg0: i32) -> (i32, i32) {
    %c0_i32 = arith.constant 0 : i32
    %c0_i32_0 = arith.constant 0 : i32
    %c0_i32_1 = arith.constant 0 : i32
    return %c0_i32, %c0_i32_0 : i32, i32
  }
  func.func @transform_2(%arg0: i32) -> (i32, i32) {
    %c0_i32 = arith.constant 0 : i32
    %c0_i32_0 = arith.constant 0 : i32
    %c0_i32_1 = arith.constant 0 : i32
    return %c0_i32, %c0_i32_0 : i32, i32
  }
  func.func @transform_3(%arg0: i32) -> (i32, i32) {
    %c0_i32 = arith.constant 0 : i32
    %c0_i32_0 = arith.constant 0 : i32
    %c0_i32_1 = arith.constant 0 : i32
    return %c0_i32, %c0_i32_0 : i32, i32
  }
  func.func @transform_4(%arg0: i32) -> (i32, i32) {
    %c0_i32 = arith.constant 0 : i32
    %c0_i32_0 = arith.constant 0 : i32
    %c0_i32_1 = arith.constant 0 : i32
    return %c0_i32, %c0_i32_0 : i32, i32
  }
  func.func @transform_5(%arg0: i32) -> (i32, i32) {
    %c0_i32 = arith.constant 0 : i32
    %c0_i32_0 = arith.constant 0 : i32
    %c0_i32_1 = arith.constant 0 : i32
    return %c0_i32, %c0_i32_0 : i32, i32
  }
  func.func @transform_6(%arg0: i32) -> (i32, i32) {
    %c0_i32 = arith.constant 0 : i32
    %c0_i32_0 = arith.constant 0 : i32
    %c0_i32_1 = arith.constant 0 : i32
    return %c0_i32, %c0_i32_0 : i32, i32
  }
  func.func @transform_7(%arg0: i32) -> (i32, i32) {
    %c0_i32 = arith.constant 0 : i32
    %c0_i32_0 = arith.constant 0 : i32
    return %arg0, %c0_i32 : i32, i32
  }
}

module attributes {stable_mosaic.version = 11 : i64} {
  func.func @_proj_qkv_kernel(%arg0: i32, %arg1: memref<16x32xbf16, #tpu.memory_space<vmem>>, %arg2: memref<16x32xbf16, #tpu.memory_space<vmem>>, %arg3: memref<32x32xbf16, #tpu.memory_space<vmem>>, %arg4: memref<1x32xf32, #tpu.memory_space<vmem>>, %arg5: memref<32x32xbf16, #tpu.memory_space<vmem>>, %arg6: memref<1x32xf32, #tpu.memory_space<vmem>>, %arg7: memref<32x32xbf16, #tpu.memory_space<vmem>>, %arg8: memref<1x32xf32, #tpu.memory_space<vmem>>, %arg9: memref<16x32xbf16, #tpu.memory_space<vmem>>, %arg10: memref<16x32xbf16, #tpu.memory_space<vmem>>, %arg11: memref<16x32xbf16, #tpu.memory_space<vmem>>) attributes {dimension_semantics = [#tpu.dimension_semantics<parallel>], iteration_bounds = array<i64: 1>, scalar_prefetch = 0 : i64, scratch_operands = 0 : i64, tpu.core_type = #tpu.core_type<tc>, window_params = [{transform_indices = @transform_0, window_bounds = array<i64: 16, 32>}, {transform_indices = @transform_1, window_bounds = array<i64: 16, 32>}, {pipeline_mode = #tpu.pipeline_mode<synchronous>, transform_indices = @transform_2, window_bounds = array<i64: 32, 32>}, {pipeline_mode = #tpu.pipeline_mode<synchronous>, transform_indices = @transform_3, window_bounds = array<i64: 1, 32>}, {pipeline_mode = #tpu.pipeline_mode<synchronous>, transform_indices = @transform_4, window_bounds = array<i64: 32, 32>}, {pipeline_mode = #tpu.pipeline_mode<synchronous>, transform_indices = @transform_5, window_bounds = array<i64: 1, 32>}, {pipeline_mode = #tpu.pipeline_mode<synchronous>, transform_indices = @transform_6, window_bounds = array<i64: 32, 32>}, {pipeline_mode = #tpu.pipeline_mode<synchronous>, transform_indices = @transform_7, window_bounds = array<i64: 1, 32>}, {transform_indices = @transform_8, window_bounds = array<i64: 16, 32>}, {transform_indices = @transform_9, window_bounds = array<i64: 16, 32>}, {transform_indices = @transform_10, window_bounds = array<i64: 16, 32>}]} {
    %c0 = arith.constant 0 : index
    %c0_0 = arith.constant 0 : index
    %0 = vector.load %arg1[%c0, %c0_0] : memref<16x32xbf16, #tpu.memory_space<vmem>>, vector<16x32xbf16>
    %1 = arith.extf %0 : vector<16x32xbf16> to vector<16x32xf32>
    %c0_1 = arith.constant 0 : index
    %c0_2 = arith.constant 0 : index
    %2 = vector.load %arg2[%c0_1, %c0_2] : memref<16x32xbf16, #tpu.memory_space<vmem>>, vector<16x32xbf16>
    %3 = arith.extf %2 : vector<16x32xbf16> to vector<16x32xf32>
    %4 = arith.addf %1, %3 : vector<16x32xf32>
    %5 = arith.truncf %4 : vector<16x32xf32> to vector<16x32xbf16>
    %c0_3 = arith.constant 0 : index
    %c0_4 = arith.constant 0 : index
    %6 = vector.load %arg3[%c0_3, %c0_4] : memref<32x32xbf16, #tpu.memory_space<vmem>>, vector<32x32xbf16>
    %cst = arith.constant dense<0.000000e+00> : vector<16x32xf32>
    %7 = tpu.matmul %5, %6, %cst {dimension_numbers = #tpu.dot_dimension_numbers<[1], [0], [0], [1], [0, 0, 1, 1], [], []>} : vector<16x32xbf16>, vector<32x32xbf16>, vector<16x32xf32> -> vector<16x32xf32>
    %c0_5 = arith.constant 0 : index
    %c0_6 = arith.constant 0 : index
    %8 = vector.load %arg4[%c0_5, %c0_6] : memref<1x32xf32, #tpu.memory_space<vmem>>, vector<1x32xf32>
    %9 = vector.broadcast %8 : vector<1x32xf32> to vector<16x32xf32>
    %10 = arith.addf %7, %9 : vector<16x32xf32>
    %11 = arith.truncf %10 : vector<16x32xf32> to vector<16x32xbf16>
    %c0_7 = arith.constant 0 : index
    %c0_8 = arith.constant 0 : index
    %12 = vector.load %arg9[%c0_7, %c0_8] : memref<16x32xbf16, #tpu.memory_space<vmem>>, vector<16x32xbf16>
    tpu.vector_store %arg9[%c0_7, %c0_8], %11 {strides = array<i32>} : memref<16x32xbf16, #tpu.memory_space<vmem>>, vector<16x32xbf16>,
    %c0_9 = arith.constant 0 : index
    %c0_10 = arith.constant 0 : index
    %13 = vector.load %arg5[%c0_9, %c0_10] : memref<32x32xbf16, #tpu.memory_space<vmem>>, vector<32x32xbf16>
    %cst_11 = arith.constant dense<0.000000e+00> : vector<16x32xf32>
    %14 = tpu.matmul %5, %13, %cst_11 {dimension_numbers = #tpu.dot_dimension_numbers<[1], [0], [0], [1], [0, 0, 1, 1], [], []>} : vector<16x32xbf16>, vector<32x32xbf16>, vector<16x32xf32> -> vector<16x32xf32>
    %c0_12 = arith.constant 0 : index
    %c0_13 = arith.constant 0 : index
    %15 = vector.load %arg6[%c0_12, %c0_13] : memref<1x32xf32, #tpu.memory_space<vmem>>, vector<1x32xf32>
    %16 = vector.broadcast %15 : vector<1x32xf32> to vector<16x32xf32>
    %17 = arith.addf %14, %16 : vector<16x32xf32>
    %18 = arith.truncf %17 : vector<16x32xf32> to vector<16x32xbf16>
    %c0_14 = arith.constant 0 : index
    %c0_15 = arith.constant 0 : index
    %19 = vector.load %arg10[%c0_14, %c0_15] : memref<16x32xbf16, #tpu.memory_space<vmem>>, vector<16x32xbf16>
    tpu.vector_store %arg10[%c0_14, %c0_15], %18 {strides = array<i32>} : memref<16x32xbf16, #tpu.memory_space<vmem>>, vector<16x32xbf16>,
    %c0_16 = arith.constant 0 : index
    %c0_17 = arith.constant 0 : index
    %20 = vector.load %arg7[%c0_16, %c0_17] : memref<32x32xbf16, #tpu.memory_space<vmem>>, vector<32x32xbf16>
    %cst_18 = arith.constant dense<0.000000e+00> : vector<16x32xf32>
    %21 = tpu.matmul %0, %20, %cst_18 {dimension_numbers = #tpu.dot_dimension_numbers<[1], [0], [0], [1], [0, 0, 1, 1], [], []>} : vector<16x32xbf16>, vector<32x32xbf16>, vector<16x32xf32> -> vector<16x32xf32>
    %c0_19 = arith.constant 0 : index
    %c0_20 = arith.constant 0 : index
    %22 = vector.load %arg8[%c0_19, %c0_20] : memref<1x32xf32, #tpu.memory_space<vmem>>, vector<1x32xf32>
    %23 = vector.broadcast %22 : vector<1x32xf32> to vector<16x32xf32>
    %24 = arith.addf %21, %23 : vector<16x32xf32>
    %25 = arith.truncf %24 : vector<16x32xf32> to vector<16x32xbf16>
    %c0_21 = arith.constant 0 : index
    %c0_22 = arith.constant 0 : index
    %26 = vector.load %arg11[%c0_21, %c0_22] : memref<16x32xbf16, #tpu.memory_space<vmem>>, vector<16x32xbf16>
    tpu.vector_store %arg11[%c0_21, %c0_22], %25 {strides = array<i32>} : memref<16x32xbf16, #tpu.memory_space<vmem>>, vector<16x32xbf16>,
    return
  }
  func.func @transform_0(%arg0: i32) -> (i32, i32) {
    %c0_i32 = arith.constant 0 : i32
    %c0_i32_0 = arith.constant 0 : i32
    return %arg0, %c0_i32 : i32, i32
  }
  func.func @transform_1(%arg0: i32) -> (i32, i32) {
    %c0_i32 = arith.constant 0 : i32
    %c0_i32_0 = arith.constant 0 : i32
    return %arg0, %c0_i32 : i32, i32
  }
  func.func @transform_2(%arg0: i32) -> (i32, i32) {
    %c0_i32 = arith.constant 0 : i32
    %c0_i32_0 = arith.constant 0 : i32
    %c0_i32_1 = arith.constant 0 : i32
    return %c0_i32, %c0_i32_0 : i32, i32
  }
  func.func @transform_3(%arg0: i32) -> (i32, i32) {
    %c0_i32 = arith.constant 0 : i32
    %c0_i32_0 = arith.constant 0 : i32
    %c0_i32_1 = arith.constant 0 : i32
    return %c0_i32, %c0_i32_0 : i32, i32
  }
  func.func @transform_4(%arg0: i32) -> (i32, i32) {
    %c0_i32 = arith.constant 0 : i32
    %c0_i32_0 = arith.constant 0 : i32
    %c0_i32_1 = arith.constant 0 : i32
    return %c0_i32, %c0_i32_0 : i32, i32
  }
  func.func @transform_5(%arg0: i32) -> (i32, i32) {
    %c0_i32 = arith.constant 0 : i32
    %c0_i32_0 = arith.constant 0 : i32
    %c0_i32_1 = arith.constant 0 : i32
    return %c0_i32, %c0_i32_0 : i32, i32
  }
  func.func @transform_6(%arg0: i32) -> (i32, i32) {
    %c0_i32 = arith.constant 0 : i32
    %c0_i32_0 = arith.constant 0 : i32
    %c0_i32_1 = arith.constant 0 : i32
    return %c0_i32, %c0_i32_0 : i32, i32
  }
  func.func @transform_7(%arg0: i32) -> (i32, i32) {
    %c0_i32 = arith.constant 0 : i32
    %c0_i32_0 = arith.constant 0 : i32
    %c0_i32_1 = arith.constant 0 : i32
    return %c0_i32, %c0_i32_0 : i32, i32
  }
  func.func @transform_8(%arg0: i32) -> (i32, i32) {
    %c0_i32 = arith.constant 0 : i32
    %c0_i32_0 = arith.constant 0 : i32
    return %arg0, %c0_i32 : i32, i32
  }
  func.func @transform_9(%arg0: i32) -> (i32, i32) {
    %c0_i32 = arith.constant 0 : i32
    %c0_i32_0 = arith.constant 0 : i32
    return %arg0, %c0_i32 : i32, i32
  }
  func.func @transform_10(%arg0: i32) -> (i32, i32) {
    %c0_i32 = arith.constant 0 : i32
    %c0_i32_0 = arith.constant 0 : i32
    return %arg0, %c0_i32 : i32, i32
  }
}

module attributes {stable_mosaic.version = 11 : i64} {
  func.func @_proj_kv_kernel(%arg0: i32, %arg1: memref<32x32xbf16, #tpu.memory_space<vmem>>, %arg2: memref<32x32xbf16, #tpu.memory_space<vmem>>, %arg3: memref<32x32xbf16, #tpu.memory_space<vmem>>, %arg4: memref<1x32xf32, #tpu.memory_space<vmem>>, %arg5: memref<32x32xbf16, #tpu.memory_space<vmem>>, %arg6: memref<1x32xf32, #tpu.memory_space<vmem>>, %arg7: memref<32x32xbf16, #tpu.memory_space<vmem>>, %arg8: memref<32x32xbf16, #tpu.memory_space<vmem>>) attributes {dimension_semantics = [#tpu.dimension_semantics<parallel>], iteration_bounds = array<i64: 1>, scalar_prefetch = 0 : i64, scratch_operands = 0 : i64, tpu.core_type = #tpu.core_type<tc>, window_params = [{transform_indices = @transform_0, window_bounds = array<i64: 32, 32>}, {transform_indices = @transform_1, window_bounds = array<i64: 32, 32>}, {pipeline_mode = #tpu.pipeline_mode<synchronous>, transform_indices = @transform_2, window_bounds = array<i64: 32, 32>}, {pipeline_mode = #tpu.pipeline_mode<synchronous>, transform_indices = @transform_3, window_bounds = array<i64: 1, 32>}, {pipeline_mode = #tpu.pipeline_mode<synchronous>, transform_indices = @transform_4, window_bounds = array<i64: 32, 32>}, {pipeline_mode = #tpu.pipeline_mode<synchronous>, transform_indices = @transform_5, window_bounds = array<i64: 1, 32>}, {transform_indices = @transform_6, window_bounds = array<i64: 32, 32>}, {transform_indices = @transform_7, window_bounds = array<i64: 32, 32>}]} {
    %c0 = arith.constant 0 : index
    %c0_0 = arith.constant 0 : index
    %0 = vector.load %arg1[%c0, %c0_0] : memref<32x32xbf16, #tpu.memory_space<vmem>>, vector<32x32xbf16>
    %1 = arith.extf %0 : vector<32x32xbf16> to vector<32x32xf32>
    %c0_1 = arith.constant 0 : index
    %c0_2 = arith.constant 0 : index
    %2 = vector.load %arg2[%c0_1, %c0_2] : memref<32x32xbf16, #tpu.memory_space<vmem>>, vector<32x32xbf16>
    %3 = arith.extf %2 : vector<32x32xbf16> to vector<32x32xf32>
    %4 = arith.addf %1, %3 : vector<32x32xf32>
    %5 = arith.truncf %4 : vector<32x32xf32> to vector<32x32xbf16>
    %c0_3 = arith.constant 0 : index
    %c0_4 = arith.constant 0 : index
    %6 = vector.load %arg3[%c0_3, %c0_4] : memref<32x32xbf16, #tpu.memory_space<vmem>>, vector<32x32xbf16>
    %cst = arith.constant dense<0.000000e+00> : vector<32x32xf32>
    %7 = tpu.matmul %5, %6, %cst {dimension_numbers = #tpu.dot_dimension_numbers<[1], [0], [0], [1], [0, 0, 1, 1], [], []>} : vector<32x32xbf16>, vector<32x32xbf16>, vector<32x32xf32> -> vector<32x32xf32>
    %c0_5 = arith.constant 0 : index
    %c0_6 = arith.constant 0 : index
    %8 = vector.load %arg4[%c0_5, %c0_6] : memref<1x32xf32, #tpu.memory_space<vmem>>, vector<1x32xf32>
    %9 = vector.broadcast %8 : vector<1x32xf32> to vector<32x32xf32>
    %10 = arith.addf %7, %9 : vector<32x32xf32>
    %11 = arith.truncf %10 : vector<32x32xf32> to vector<32x32xbf16>
    %c0_7 = arith.constant 0 : index
    %c0_8 = arith.constant 0 : index
    %12 = vector.load %arg7[%c0_7, %c0_8] : memref<32x32xbf16, #tpu.memory_space<vmem>>, vector<32x32xbf16>
    tpu.vector_store %arg7[%c0_7, %c0_8], %11 {strides = array<i32>} : memref<32x32xbf16, #tpu.memory_space<vmem>>, vector<32x32xbf16>,
    %c0_9 = arith.constant 0 : index
    %c0_10 = arith.constant 0 : index
    %13 = vector.load %arg5[%c0_9, %c0_10] : memref<32x32xbf16, #tpu.memory_space<vmem>>, vector<32x32xbf16>
    %cst_11 = arith.constant dense<0.000000e+00> : vector<32x32xf32>
    %14 = tpu.matmul %0, %13, %cst_11 {dimension_numbers = #tpu.dot_dimension_numbers<[1], [0], [0], [1], [0, 0, 1, 1], [], []>} : vector<32x32xbf16>, vector<32x32xbf16>, vector<32x32xf32> -> vector<32x32xf32>
    %c0_12 = arith.constant 0 : index
    %c0_13 = arith.constant 0 : index
    %15 = vector.load %arg6[%c0_12, %c0_13] : memref<1x32xf32, #tpu.memory_space<vmem>>, vector<1x32xf32>
    %16 = vector.broadcast %15 : vector<1x32xf32> to vector<32x32xf32>
    %17 = arith.addf %14, %16 : vector<32x32xf32>
    %18 = arith.truncf %17 : vector<32x32xf32> to vector<32x32xbf16>
    %c0_14 = arith.constant 0 : index
    %c0_15 = arith.constant 0 : index
    %19 = vector.load %arg8[%c0_14, %c0_15] : memref<32x32xbf16, #tpu.memory_space<vmem>>, vector<32x32xbf16>
    tpu.vector_store %arg8[%c0_14, %c0_15], %18 {strides = array<i32>} : memref<32x32xbf16, #tpu.memory_space<vmem>>, vector<32x32xbf16>,
    return
  }
  func.func @transform_0(%arg0: i32) -> (i32, i32) {
    %c0_i32 = arith.constant 0 : i32
    %c0_i32_0 = arith.constant 0 : i32
    return %arg0, %c0_i32 : i32, i32
  }
  func.func @transform_1(%arg0: i32) -> (i32, i32) {
    %c0_i32 = arith.constant 0 : i32
    %c0_i32_0 = arith.constant 0 : i32
    return %arg0, %c0_i32 : i32, i32
  }
  func.func @transform_2(%arg0: i32) -> (i32, i32) {
    %c0_i32 = arith.constant 0 : i32
    %c0_i32_0 = arith.constant 0 : i32
    %c0_i32_1 = arith.constant 0 : i32
    return %c0_i32, %c0_i32_0 : i32, i32
  }
  func.func @transform_3(%arg0: i32) -> (i32, i32) {
    %c0_i32 = arith.constant 0 : i32
    %c0_i32_0 = arith.constant 0 : i32
    %c0_i32_1 = arith.constant 0 : i32
    return %c0_i32, %c0_i32_0 : i32, i32
  }
  func.func @transform_4(%arg0: i32) -> (i32, i32) {
    %c0_i32 = arith.constant 0 : i32
    %c0_i32_0 = arith.constant 0 : i32
    %c0_i32_1 = arith.constant 0 : i32
    return %c0_i32, %c0_i32_0 : i32, i32
  }
  func.func @transform_5(%arg0: i32) -> (i32, i32) {
    %c0_i32 = arith.constant 0 : i32
    %c0_i32_0 = arith.constant 0 : i32
    %c0_i32_1 = arith.constant 0 : i32
    return %c0_i32, %c0_i32_0 : i32, i32
  }
  func.func @transform_6(%arg0: i32) -> (i32, i32) {
    %c0_i32 = arith.constant 0 : i32
    %c0_i32_0 = arith.constant 0 : i32
    return %arg0, %c0_i32 : i32, i32
  }
  func.func @transform_7(%arg0: i32) -> (i32, i32) {
    %c0_i32 = arith.constant 0 : i32
    %c0_i32_0 = arith.constant 0 : i32
    return %arg0, %c0_i32 : i32, i32
  }
}

module attributes {stable_mosaic.version = 11 : i64} {
  func.func @_attn_out_ln_kernel(%arg0: i32, %arg1: i32, %arg2: memref<1x8x32xbf16, #tpu.memory_space<vmem>>, %arg3: memref<1x8x32xbf16, #tpu.memory_space<vmem>>, %arg4: memref<1x8x32xbf16, #tpu.memory_space<vmem>>, %arg5: memref<32x32xbf16, #tpu.memory_space<vmem>>, %arg6: memref<1x32xf32, #tpu.memory_space<vmem>>, %arg7: memref<1x8x32xbf16, #tpu.memory_space<vmem>>, %arg8: memref<1x32xf32, #tpu.memory_space<vmem>>, %arg9: memref<1x32xf32, #tpu.memory_space<vmem>>, %arg10: memref<1x8x32xbf16, #tpu.memory_space<vmem>>) attributes {dimension_semantics = [#tpu.dimension_semantics<parallel>, #tpu.dimension_semantics<parallel>], iteration_bounds = array<i64: 2, 1>, scalar_prefetch = 0 : i64, scratch_operands = 0 : i64, tpu.core_type = #tpu.core_type<tc>, window_params = [{transform_indices = @transform_0, window_bounds = array<i64: 1, 8, 32>}, {transform_indices = @transform_1, window_bounds = array<i64: 1, 8, 32>}, {transform_indices = @transform_2, window_bounds = array<i64: 1, 8, 32>}, {pipeline_mode = #tpu.pipeline_mode<synchronous>, transform_indices = @transform_3, window_bounds = array<i64: 32, 32>}, {pipeline_mode = #tpu.pipeline_mode<synchronous>, transform_indices = @transform_4, window_bounds = array<i64: 1, 32>}, {transform_indices = @transform_5, window_bounds = array<i64: 1, 8, 32>}, {pipeline_mode = #tpu.pipeline_mode<synchronous>, transform_indices = @transform_6, window_bounds = array<i64: 1, 32>}, {pipeline_mode = #tpu.pipeline_mode<synchronous>, transform_indices = @transform_7, window_bounds = array<i64: 1, 32>}, {transform_indices = @transform_8, window_bounds = array<i64: 1, 8, 32>}]} {
    %c0 = arith.constant 0 : index
    %c0_0 = arith.constant 0 : index
    %c0_1 = arith.constant 0 : index
    %0 = vector.load %arg2[%c0, %c0_0, %c0_1] : memref<1x8x32xbf16, #tpu.memory_space<vmem>>, vector<1x8x32xbf16>
    %1 = vector.shape_cast %0 : vector<1x8x32xbf16> to vector<8x32xbf16>
    %c0_2 = arith.constant 0 : index
    %c0_3 = arith.constant 0 : index
    %c0_4 = arith.constant 0 : index
    %2 = vector.load %arg3[%c0_2, %c0_3, %c0_4] : memref<1x8x32xbf16, #tpu.memory_space<vmem>>, vector<1x8x32xbf16>
    %3 = vector.shape_cast %2 : vector<1x8x32xbf16> to vector<8x32xbf16>
    %c0_5 = arith.constant 0 : index
    %c0_6 = arith.constant 0 : index
    %c0_7 = arith.constant 0 : index
    %4 = vector.load %arg4[%c0_5, %c0_6, %c0_7] : memref<1x8x32xbf16, #tpu.memory_space<vmem>>, vector<1x8x32xbf16>
    %5 = vector.shape_cast %4 : vector<1x8x32xbf16> to vector<8x32xbf16>
    %c0_8 = arith.constant 0 : index
    %c0_9 = arith.constant 0 : index
    %6 = vector.load %arg5[%c0_8, %c0_9] : memref<32x32xbf16, #tpu.memory_space<vmem>>, vector<32x32xbf16>
    %c0_10 = arith.constant 0 : index
    %c0_11 = arith.constant 0 : index
    %c0_12 = arith.constant 0 : index
    %7 = vector.load %arg7[%c0_10, %c0_11, %c0_12] : memref<1x8x32xbf16, #tpu.memory_space<vmem>>, vector<1x8x32xbf16>
    %8 = vector.shape_cast %7 : vector<1x8x32xbf16> to vector<8x32xbf16>
    %9 = arith.extf %8 : vector<8x32xbf16> to vector<8x32xf32>
    %c0_13 = arith.constant 0 : index
    %c0_14 = arith.constant 0 : index
    %10 = vector.load %arg6[%c0_13, %c0_14] : memref<1x32xf32, #tpu.memory_space<vmem>>, vector<1x32xf32>
    %11 = vector.broadcast %10 : vector<1x32xf32> to vector<8x32xf32>
    %12 = arith.addf %9, %11 : vector<8x32xf32>
    %13 = vector.extract_strided_slice %1 {offsets = [0, 0], sizes = [8, 8], strides = [1, 1]} : vector<8x32xbf16> to vector<8x8xbf16>
    %14 = vector.extract_strided_slice %3 {offsets = [0, 0], sizes = [8, 8], strides = [1, 1]} : vector<8x32xbf16> to vector<8x8xbf16>
    %15 = vector.extract_strided_slice %5 {offsets = [0, 0], sizes = [8, 8], strides = [1, 1]} : vector<8x32xbf16> to vector<8x8xbf16>
    %cst = arith.constant dense<0.000000e+00> : vector<8x8xf32>
    %16 = tpu.matmul %13, %14, %cst {dimension_numbers = #tpu.dot_dimension_numbers<[1], [1], [0], [0], [0, 0, 1, 0], [], []>} : vector<8x8xbf16>, vector<8x8xbf16>, vector<8x8xf32> -> vector<8x8xf32>
    %cst_15 = arith.constant 0.353553385 : f32
    %17 = vector.broadcast %cst_15 : f32 to vector<8x8xf32>
    %18 = arith.mulf %16, %17 : vector<8x8xf32>
    %cst_16 = arith.constant dense<0xFF800000> : vector<8xf32>
    %19 = vector.multi_reduction <maximumf>, %18, %cst_16 [1] : vector<8x8xf32> to vector<8xf32>
    %20 = vector.shape_cast %19 : vector<8xf32> to vector<8x1xf32>
    %21 = vector.broadcast %20 : vector<8x1xf32> to vector<8x8xf32>
    %22 = arith.subf %18, %21 : vector<8x8xf32>
    %23 = math.exp %22 : vector<8x8xf32>
    %cst_17 = arith.constant dense<0.000000e+00> : vector<8xf32>
    %24 = vector.multi_reduction <add>, %23, %cst_17 [1] : vector<8x8xf32> to vector<8xf32>
    %25 = vector.shape_cast %24 : vector<8xf32> to vector<8x1xf32>
    %26 = vector.broadcast %25 : vector<8x1xf32> to vector<8x8xf32>
    %27 = arith.divf %23, %26 : vector<8x8xf32>
    %28 = arith.truncf %27 : vector<8x8xf32> to vector<8x8xbf16>
    %cst_18 = arith.constant dense<0.000000e+00> : vector<8x8xf32>
    %29 = tpu.matmul %28, %15, %cst_18 {dimension_numbers = #tpu.dot_dimension_numbers<[1], [0], [0], [1], [0, 0, 1, 1], [], []>} : vector<8x8xbf16>, vector<8x8xbf16>, vector<8x8xf32> -> vector<8x8xf32>
    %30 = arith.truncf %29 : vector<8x8xf32> to vector<8x8xbf16>
    %31 = vector.extract_strided_slice %6 {offsets = [0, 0], sizes = [8, 32], strides = [1, 1]} : vector<32x32xbf16> to vector<8x32xbf16>
    %cst_19 = arith.constant dense<0.000000e+00> : vector<8x32xf32>
    %32 = tpu.matmul %30, %31, %cst_19 {dimension_numbers = #tpu.dot_dimension_numbers<[1], [0], [0], [1], [0, 0, 1, 1], [], []>} : vector<8x8xbf16>, vector<8x32xbf16>, vector<8x32xf32> -> vector<8x32xf32>
    %33 = arith.addf %12, %32 : vector<8x32xf32>
    %34 = vector.extract_strided_slice %1 {offsets = [0, 8], sizes = [8, 8], strides = [1, 1]} : vector<8x32xbf16> to vector<8x8xbf16>
    %35 = vector.extract_strided_slice %3 {offsets = [0, 8], sizes = [8, 8], strides = [1, 1]} : vector<8x32xbf16> to vector<8x8xbf16>
    %36 = vector.extract_strided_slice %5 {offsets = [0, 8], sizes = [8, 8], strides = [1, 1]} : vector<8x32xbf16> to vector<8x8xbf16>
    %cst_20 = arith.constant dense<0.000000e+00> : vector<8x8xf32>
    %37 = tpu.matmul %34, %35, %cst_20 {dimension_numbers = #tpu.dot_dimension_numbers<[1], [1], [0], [0], [0, 0, 1, 0], [], []>} : vector<8x8xbf16>, vector<8x8xbf16>, vector<8x8xf32> -> vector<8x8xf32>
    %cst_21 = arith.constant 0.353553385 : f32
    %38 = vector.broadcast %cst_21 : f32 to vector<8x8xf32>
    %39 = arith.mulf %37, %38 : vector<8x8xf32>
    %cst_22 = arith.constant dense<0xFF800000> : vector<8xf32>
    %40 = vector.multi_reduction <maximumf>, %39, %cst_22 [1] : vector<8x8xf32> to vector<8xf32>
    %41 = vector.shape_cast %40 : vector<8xf32> to vector<8x1xf32>
    %42 = vector.broadcast %41 : vector<8x1xf32> to vector<8x8xf32>
    %43 = arith.subf %39, %42 : vector<8x8xf32>
    %44 = math.exp %43 : vector<8x8xf32>
    %cst_23 = arith.constant dense<0.000000e+00> : vector<8xf32>
    %45 = vector.multi_reduction <add>, %44, %cst_23 [1] : vector<8x8xf32> to vector<8xf32>
    %46 = vector.shape_cast %45 : vector<8xf32> to vector<8x1xf32>
    %47 = vector.broadcast %46 : vector<8x1xf32> to vector<8x8xf32>
    %48 = arith.divf %44, %47 : vector<8x8xf32>
    %49 = arith.truncf %48 : vector<8x8xf32> to vector<8x8xbf16>
    %cst_24 = arith.constant dense<0.000000e+00> : vector<8x8xf32>
    %50 = tpu.matmul %49, %36, %cst_24 {dimension_numbers = #tpu.dot_dimension_numbers<[1], [0], [0], [1], [0, 0, 1, 1], [], []>} : vector<8x8xbf16>, vector<8x8xbf16>, vector<8x8xf32> -> vector<8x8xf32>
    %51 = arith.truncf %50 : vector<8x8xf32> to vector<8x8xbf16>
    %52 = vector.extract_strided_slice %6 {offsets = [8, 0], sizes = [8, 32], strides = [1, 1]} : vector<32x32xbf16> to vector<8x32xbf16>
    %cst_25 = arith.constant dense<0.000000e+00> : vector<8x32xf32>
    %53 = tpu.matmul %51, %52, %cst_25 {dimension_numbers = #tpu.dot_dimension_numbers<[1], [0], [0], [1], [0, 0, 1, 1], [], []>} : vector<8x8xbf16>, vector<8x32xbf16>, vector<8x32xf32> -> vector<8x32xf32>
    %54 = arith.addf %33, %53 : vector<8x32xf32>
    %55 = vector.extract_strided_slice %1 {offsets = [0, 16], sizes = [8, 8], strides = [1, 1]} : vector<8x32xbf16> to vector<8x8xbf16>
    %56 = vector.extract_strided_slice %3 {offsets = [0, 16], sizes = [8, 8], strides = [1, 1]} : vector<8x32xbf16> to vector<8x8xbf16>
    %57 = vector.extract_strided_slice %5 {offsets = [0, 16], sizes = [8, 8], strides = [1, 1]} : vector<8x32xbf16> to vector<8x8xbf16>
    %cst_26 = arith.constant dense<0.000000e+00> : vector<8x8xf32>
    %58 = tpu.matmul %55, %56, %cst_26 {dimension_numbers = #tpu.dot_dimension_numbers<[1], [1], [0], [0], [0, 0, 1, 0], [], []>} : vector<8x8xbf16>, vector<8x8xbf16>, vector<8x8xf32> -> vector<8x8xf32>
    %cst_27 = arith.constant 0.353553385 : f32
    %59 = vector.broadcast %cst_27 : f32 to vector<8x8xf32>
    %60 = arith.mulf %58, %59 : vector<8x8xf32>
    %cst_28 = arith.constant dense<0xFF800000> : vector<8xf32>
    %61 = vector.multi_reduction <maximumf>, %60, %cst_28 [1] : vector<8x8xf32> to vector<8xf32>
    %62 = vector.shape_cast %61 : vector<8xf32> to vector<8x1xf32>
    %63 = vector.broadcast %62 : vector<8x1xf32> to vector<8x8xf32>
    %64 = arith.subf %60, %63 : vector<8x8xf32>
    %65 = math.exp %64 : vector<8x8xf32>
    %cst_29 = arith.constant dense<0.000000e+00> : vector<8xf32>
    %66 = vector.multi_reduction <add>, %65, %cst_29 [1] : vector<8x8xf32> to vector<8xf32>
    %67 = vector.shape_cast %66 : vector<8xf32> to vector<8x1xf32>
    %68 = vector.broadcast %67 : vector<8x1xf32> to vector<8x8xf32>
    %69 = arith.divf %65, %68 : vector<8x8xf32>
    %70 = arith.truncf %69 : vector<8x8xf32> to vector<8x8xbf16>
    %cst_30 = arith.constant dense<0.000000e+00> : vector<8x8xf32>
    %71 = tpu.matmul %70, %57, %cst_30 {dimension_numbers = #tpu.dot_dimension_numbers<[1], [0], [0], [1], [0, 0, 1, 1], [], []>} : vector<8x8xbf16>, vector<8x8xbf16>, vector<8x8xf32> -> vector<8x8xf32>
    %72 = arith.truncf %71 : vector<8x8xf32> to vector<8x8xbf16>
    %73 = vector.extract_strided_slice %6 {offsets = [16, 0], sizes = [8, 32], strides = [1, 1]} : vector<32x32xbf16> to vector<8x32xbf16>
    %cst_31 = arith.constant dense<0.000000e+00> : vector<8x32xf32>
    %74 = tpu.matmul %72, %73, %cst_31 {dimension_numbers = #tpu.dot_dimension_numbers<[1], [0], [0], [1], [0, 0, 1, 1], [], []>} : vector<8x8xbf16>, vector<8x32xbf16>, vector<8x32xf32> -> vector<8x32xf32>
    %75 = arith.addf %54, %74 : vector<8x32xf32>
    %76 = vector.extract_strided_slice %1 {offsets = [0, 24], sizes = [8, 8], strides = [1, 1]} : vector<8x32xbf16> to vector<8x8xbf16>
    %77 = vector.extract_strided_slice %3 {offsets = [0, 24], sizes = [8, 8], strides = [1, 1]} : vector<8x32xbf16> to vector<8x8xbf16>
    %78 = vector.extract_strided_slice %5 {offsets = [0, 24], sizes = [8, 8], strides = [1, 1]} : vector<8x32xbf16> to vector<8x8xbf16>
    %cst_32 = arith.constant dense<0.000000e+00> : vector<8x8xf32>
    %79 = tpu.matmul %76, %77, %cst_32 {dimension_numbers = #tpu.dot_dimension_numbers<[1], [1], [0], [0], [0, 0, 1, 0], [], []>} : vector<8x8xbf16>, vector<8x8xbf16>, vector<8x8xf32> -> vector<8x8xf32>
    %cst_33 = arith.constant 0.353553385 : f32
    %80 = vector.broadcast %cst_33 : f32 to vector<8x8xf32>
    %81 = arith.mulf %79, %80 : vector<8x8xf32>
    %cst_34 = arith.constant dense<0xFF800000> : vector<8xf32>
    %82 = vector.multi_reduction <maximumf>, %81, %cst_34 [1] : vector<8x8xf32> to vector<8xf32>
    %83 = vector.shape_cast %82 : vector<8xf32> to vector<8x1xf32>
    %84 = vector.broadcast %83 : vector<8x1xf32> to vector<8x8xf32>
    %85 = arith.subf %81, %84 : vector<8x8xf32>
    %86 = math.exp %85 : vector<8x8xf32>
    %cst_35 = arith.constant dense<0.000000e+00> : vector<8xf32>
    %87 = vector.multi_reduction <add>, %86, %cst_35 [1] : vector<8x8xf32> to vector<8xf32>
    %88 = vector.shape_cast %87 : vector<8xf32> to vector<8x1xf32>
    %89 = vector.broadcast %88 : vector<8x1xf32> to vector<8x8xf32>
    %90 = arith.divf %86, %89 : vector<8x8xf32>
    %91 = arith.truncf %90 : vector<8x8xf32> to vector<8x8xbf16>
    %cst_36 = arith.constant dense<0.000000e+00> : vector<8x8xf32>
    %92 = tpu.matmul %91, %78, %cst_36 {dimension_numbers = #tpu.dot_dimension_numbers<[1], [0], [0], [1], [0, 0, 1, 1], [], []>} : vector<8x8xbf16>, vector<8x8xbf16>, vector<8x8xf32> -> vector<8x8xf32>
    %93 = arith.truncf %92 : vector<8x8xf32> to vector<8x8xbf16>
    %94 = vector.extract_strided_slice %6 {offsets = [24, 0], sizes = [8, 32], strides = [1, 1]} : vector<32x32xbf16> to vector<8x32xbf16>
    %cst_37 = arith.constant dense<0.000000e+00> : vector<8x32xf32>
    %95 = tpu.matmul %93, %94, %cst_37 {dimension_numbers = #tpu.dot_dimension_numbers<[1], [0], [0], [1], [0, 0, 1, 1], [], []>} : vector<8x8xbf16>, vector<8x32xbf16>, vector<8x32xf32> -> vector<8x32xf32>
    %96 = arith.addf %75, %95 : vector<8x32xf32>
    %cst_38 = arith.constant dense<0.000000e+00> : vector<8xf32>
    %97 = vector.multi_reduction <add>, %96, %cst_38 [1] : vector<8x32xf32> to vector<8xf32>
    %98 = vector.shape_cast %97 : vector<8xf32> to vector<8x1xf32>
    %cst_39 = arith.constant 3.200000e+01 : f32
    %99 = vector.broadcast %cst_39 : f32 to vector<8x1xf32>
    %100 = arith.divf %98, %99 : vector<8x1xf32>
    %101 = vector.broadcast %100 : vector<8x1xf32> to vector<8x32xf32>
    %102 = arith.subf %96, %101 : vector<8x32xf32>
    %103 = arith.mulf %102, %102 : vector<8x32xf32>
    %cst_40 = arith.constant dense<0.000000e+00> : vector<8xf32>
    %104 = vector.multi_reduction <add>, %103, %cst_40 [1] : vector<8x32xf32> to vector<8xf32>
    %105 = vector.shape_cast %104 : vector<8xf32> to vector<8x1xf32>
    %cst_41 = arith.constant 3.200000e+01 : f32
    %106 = vector.broadcast %cst_41 : f32 to vector<8x1xf32>
    %107 = arith.divf %105, %106 : vector<8x1xf32>
    %cst_42 = arith.constant 9.99999974E-6 : f32
    %108 = vector.broadcast %cst_42 : f32 to vector<8x1xf32>
    %109 = arith.addf %107, %108 : vector<8x1xf32>
    %110 = math.rsqrt %109 : vector<8x1xf32>
    %111 = vector.broadcast %110 : vector<8x1xf32> to vector<8x32xf32>
    %112 = arith.mulf %102, %111 : vector<8x32xf32>
    %c0_43 = arith.constant 0 : index
    %c0_44 = arith.constant 0 : index
    %113 = vector.load %arg8[%c0_43, %c0_44] : memref<1x32xf32, #tpu.memory_space<vmem>>, vector<1x32xf32>
    %114 = vector.broadcast %113 : vector<1x32xf32> to vector<8x32xf32>
    %115 = arith.mulf %112, %114 : vector<8x32xf32>
    %c0_45 = arith.constant 0 : index
    %c0_46 = arith.constant 0 : index
    %116 = vector.load %arg9[%c0_45, %c0_46] : memref<1x32xf32, #tpu.memory_space<vmem>>, vector<1x32xf32>
    %117 = vector.broadcast %116 : vector<1x32xf32> to vector<8x32xf32>
    %118 = arith.addf %115, %117 : vector<8x32xf32>
    %119 = arith.truncf %118 : vector<8x32xf32> to vector<8x32xbf16>
    %c0_47 = arith.constant 0 : index
    %c0_48 = arith.constant 0 : index
    %c0_49 = arith.constant 0 : index
    %120 = vector.load %arg10[%c0_47, %c0_48, %c0_49] : memref<1x8x32xbf16, #tpu.memory_space<vmem>>, vector<1x8x32xbf16>
    %121 = vector.shape_cast %120 : vector<1x8x32xbf16> to vector<8x32xbf16>
    %122 = vector.shape_cast %119 : vector<8x32xbf16> to vector<1x8x32xbf16>
    tpu.vector_store %arg10[%c0_47, %c0_48, %c0_49], %122 {strides = array<i32>} : memref<1x8x32xbf16, #tpu.memory_space<vmem>>, vector<1x8x32xbf16>,
    return
  }
  func.func @transform_0(%arg0: i32, %arg1: i32) -> (i32, i32, i32) {
    %c0_i32 = arith.constant 0 : i32
    %c0_i32_0 = arith.constant 0 : i32
    return %arg0, %arg1, %c0_i32 : i32, i32, i32
  }
  func.func @transform_1(%arg0: i32, %arg1: i32) -> (i32, i32, i32) {
    %c0_i32 = arith.constant 0 : i32
    %c0_i32_0 = arith.constant 0 : i32
    %c0_i32_1 = arith.constant 0 : i32
    return %arg0, %c0_i32, %c0_i32_0 : i32, i32, i32
  }
  func.func @transform_2(%arg0: i32, %arg1: i32) -> (i32, i32, i32) {
    %c0_i32 = arith.constant 0 : i32
    %c0_i32_0 = arith.constant 0 : i32
    %c0_i32_1 = arith.constant 0 : i32
    return %arg0, %c0_i32, %c0_i32_0 : i32, i32, i32
  }
  func.func @transform_3(%arg0: i32, %arg1: i32) -> (i32, i32) {
    %c0_i32 = arith.constant 0 : i32
    %c0_i32_0 = arith.constant 0 : i32
    %c0_i32_1 = arith.constant 0 : i32
    return %c0_i32, %c0_i32_0 : i32, i32
  }
  func.func @transform_4(%arg0: i32, %arg1: i32) -> (i32, i32) {
    %c0_i32 = arith.constant 0 : i32
    %c0_i32_0 = arith.constant 0 : i32
    %c0_i32_1 = arith.constant 0 : i32
    return %c0_i32, %c0_i32_0 : i32, i32
  }
  func.func @transform_5(%arg0: i32, %arg1: i32) -> (i32, i32, i32) {
    %c0_i32 = arith.constant 0 : i32
    %c0_i32_0 = arith.constant 0 : i32
    return %arg0, %arg1, %c0_i32 : i32, i32, i32
  }
  func.func @transform_6(%arg0: i32, %arg1: i32) -> (i32, i32) {
    %c0_i32 = arith.constant 0 : i32
    %c0_i32_0 = arith.constant 0 : i32
    %c0_i32_1 = arith.constant 0 : i32
    return %c0_i32, %c0_i32_0 : i32, i32
  }
  func.func @transform_7(%arg0: i32, %arg1: i32) -> (i32, i32) {
    %c0_i32 = arith.constant 0 : i32
    %c0_i32_0 = arith.constant 0 : i32
    %c0_i32_1 = arith.constant 0 : i32
    return %c0_i32, %c0_i32_0 : i32, i32
  }
  func.func @transform_8(%arg0: i32, %arg1: i32) -> (i32, i32, i32) {
    %c0_i32 = arith.constant 0 : i32
    %c0_i32_0 = arith.constant 0 : i32
    return %arg0, %arg1, %c0_i32 : i32, i32, i32
  }
}

module attributes {stable_mosaic.version = 11 : i64} {
  func.func @_proj_q_kernel(%arg0: i32, %arg1: memref<16x32xbf16, #tpu.memory_space<vmem>>, %arg2: memref<16x32xbf16, #tpu.memory_space<vmem>>, %arg3: memref<32x32xbf16, #tpu.memory_space<vmem>>, %arg4: memref<1x32xf32, #tpu.memory_space<vmem>>, %arg5: memref<16x32xbf16, #tpu.memory_space<vmem>>) attributes {dimension_semantics = [#tpu.dimension_semantics<parallel>], iteration_bounds = array<i64: 1>, scalar_prefetch = 0 : i64, scratch_operands = 0 : i64, tpu.core_type = #tpu.core_type<tc>, window_params = [{transform_indices = @transform_0, window_bounds = array<i64: 16, 32>}, {transform_indices = @transform_1, window_bounds = array<i64: 16, 32>}, {pipeline_mode = #tpu.pipeline_mode<synchronous>, transform_indices = @transform_2, window_bounds = array<i64: 32, 32>}, {pipeline_mode = #tpu.pipeline_mode<synchronous>, transform_indices = @transform_3, window_bounds = array<i64: 1, 32>}, {transform_indices = @transform_4, window_bounds = array<i64: 16, 32>}]} {
    %c0 = arith.constant 0 : index
    %c0_0 = arith.constant 0 : index
    %0 = vector.load %arg1[%c0, %c0_0] : memref<16x32xbf16, #tpu.memory_space<vmem>>, vector<16x32xbf16>
    %1 = arith.extf %0 : vector<16x32xbf16> to vector<16x32xf32>
    %c0_1 = arith.constant 0 : index
    %c0_2 = arith.constant 0 : index
    %2 = vector.load %arg2[%c0_1, %c0_2] : memref<16x32xbf16, #tpu.memory_space<vmem>>, vector<16x32xbf16>
    %3 = arith.extf %2 : vector<16x32xbf16> to vector<16x32xf32>
    %4 = arith.addf %1, %3 : vector<16x32xf32>
    %5 = arith.truncf %4 : vector<16x32xf32> to vector<16x32xbf16>
    %c0_3 = arith.constant 0 : index
    %c0_4 = arith.constant 0 : index
    %6 = vector.load %arg3[%c0_3, %c0_4] : memref<32x32xbf16, #tpu.memory_space<vmem>>, vector<32x32xbf16>
    %cst = arith.constant dense<0.000000e+00> : vector<16x32xf32>
    %7 = tpu.matmul %5, %6, %cst {dimension_numbers = #tpu.dot_dimension_numbers<[1], [0], [0], [1], [0, 0, 1, 1], [], []>} : vector<16x32xbf16>, vector<32x32xbf16>, vector<16x32xf32> -> vector<16x32xf32>
    %c0_5 = arith.constant 0 : index
    %c0_6 = arith.constant 0 : index
    %8 = vector.load %arg4[%c0_5, %c0_6] : memref<1x32xf32, #tpu.memory_space<vmem>>, vector<1x32xf32>
    %9 = vector.broadcast %8 : vector<1x32xf32> to vector<16x32xf32>
    %10 = arith.addf %7, %9 : vector<16x32xf32>
    %11 = arith.truncf %10 : vector<16x32xf32> to vector<16x32xbf16>
    %c0_7 = arith.constant 0 : index
    %c0_8 = arith.constant 0 : index
    %12 = vector.load %arg5[%c0_7, %c0_8] : memref<16x32xbf16, #tpu.memory_space<vmem>>, vector<16x32xbf16>
    tpu.vector_store %arg5[%c0_7, %c0_8], %11 {strides = array<i32>} : memref<16x32xbf16, #tpu.memory_space<vmem>>, vector<16x32xbf16>,
    return
  }
  func.func @transform_0(%arg0: i32) -> (i32, i32) {
    %c0_i32 = arith.constant 0 : i32
    %c0_i32_0 = arith.constant 0 : i32
    return %arg0, %c0_i32 : i32, i32
  }
  func.func @transform_1(%arg0: i32) -> (i32, i32) {
    %c0_i32 = arith.constant 0 : i32
    %c0_i32_0 = arith.constant 0 : i32
    return %arg0, %c0_i32 : i32, i32
  }
  func.func @transform_2(%arg0: i32) -> (i32, i32) {
    %c0_i32 = arith.constant 0 : i32
    %c0_i32_0 = arith.constant 0 : i32
    %c0_i32_1 = arith.constant 0 : i32
    return %c0_i32, %c0_i32_0 : i32, i32
  }
  func.func @transform_3(%arg0: i32) -> (i32, i32) {
    %c0_i32 = arith.constant 0 : i32
    %c0_i32_0 = arith.constant 0 : i32
    %c0_i32_1 = arith.constant 0 : i32
    return %c0_i32, %c0_i32_0 : i32, i32
  }
  func.func @transform_4(%arg0: i32) -> (i32, i32) {
    %c0_i32 = arith.constant 0 : i32
    %c0_i32_0 = arith.constant 0 : i32
    return %arg0, %c0_i32 : i32, i32
  }
}

module attributes {stable_mosaic.version = 11 : i64} {
  func.func @_ffn_res_ln_kernel(%arg0: i32, %arg1: memref<16x32xbf16, #tpu.memory_space<vmem>>, %arg2: memref<32x64xbf16, #tpu.memory_space<vmem>>, %arg3: memref<1x64xf32, #tpu.memory_space<vmem>>, %arg4: memref<64x32xbf16, #tpu.memory_space<vmem>>, %arg5: memref<1x32xf32, #tpu.memory_space<vmem>>, %arg6: memref<1x32xf32, #tpu.memory_space<vmem>>, %arg7: memref<1x32xf32, #tpu.memory_space<vmem>>, %arg8: memref<16x32xbf16, #tpu.memory_space<vmem>>) attributes {dimension_semantics = [#tpu.dimension_semantics<parallel>], iteration_bounds = array<i64: 1>, scalar_prefetch = 0 : i64, scratch_operands = 0 : i64, tpu.core_type = #tpu.core_type<tc>, window_params = [{transform_indices = @transform_0, window_bounds = array<i64: 16, 32>}, {pipeline_mode = #tpu.pipeline_mode<synchronous>, transform_indices = @transform_1, window_bounds = array<i64: 32, 64>}, {pipeline_mode = #tpu.pipeline_mode<synchronous>, transform_indices = @transform_2, window_bounds = array<i64: 1, 64>}, {pipeline_mode = #tpu.pipeline_mode<synchronous>, transform_indices = @transform_3, window_bounds = array<i64: 64, 32>}, {pipeline_mode = #tpu.pipeline_mode<synchronous>, transform_indices = @transform_4, window_bounds = array<i64: 1, 32>}, {pipeline_mode = #tpu.pipeline_mode<synchronous>, transform_indices = @transform_5, window_bounds = array<i64: 1, 32>}, {pipeline_mode = #tpu.pipeline_mode<synchronous>, transform_indices = @transform_6, window_bounds = array<i64: 1, 32>}, {transform_indices = @transform_7, window_bounds = array<i64: 16, 32>}]} {
    %c0 = arith.constant 0 : index
    %c0_0 = arith.constant 0 : index
    %0 = vector.load %arg1[%c0, %c0_0] : memref<16x32xbf16, #tpu.memory_space<vmem>>, vector<16x32xbf16>
    %c0_1 = arith.constant 0 : index
    %c0_2 = arith.constant 0 : index
    %1 = vector.load %arg2[%c0_1, %c0_2] : memref<32x64xbf16, #tpu.memory_space<vmem>>, vector<32x64xbf16>
    %cst = arith.constant dense<0.000000e+00> : vector<16x64xf32>
    %2 = tpu.matmul %0, %1, %cst {dimension_numbers = #tpu.dot_dimension_numbers<[1], [0], [0], [1], [0, 0, 1, 1], [], []>} : vector<16x32xbf16>, vector<32x64xbf16>, vector<16x64xf32> -> vector<16x64xf32>
    %c0_3 = arith.constant 0 : index
    %c0_4 = arith.constant 0 : index
    %3 = vector.load %arg3[%c0_3, %c0_4] : memref<1x64xf32, #tpu.memory_space<vmem>>, vector<1x64xf32>
    %4 = vector.broadcast %3 : vector<1x64xf32> to vector<16x64xf32>
    %5 = arith.addf %2, %4 : vector<16x64xf32>
    %cst_5 = arith.constant 0.000000e+00 : f32
    %6 = vector.broadcast %cst_5 : f32 to vector<16x64xf32>
    %7 = arith.maximumf %5, %6 : vector<16x64xf32>
    %8 = arith.truncf %7 : vector<16x64xf32> to vector<16x64xbf16>
    %c0_6 = arith.constant 0 : index
    %c0_7 = arith.constant 0 : index
    %9 = vector.load %arg4[%c0_6, %c0_7] : memref<64x32xbf16, #tpu.memory_space<vmem>>, vector<64x32xbf16>
    %cst_8 = arith.constant dense<0.000000e+00> : vector<16x32xf32>
    %10 = tpu.matmul %8, %9, %cst_8 {dimension_numbers = #tpu.dot_dimension_numbers<[1], [0], [0], [1], [0, 0, 1, 1], [], []>} : vector<16x64xbf16>, vector<64x32xbf16>, vector<16x32xf32> -> vector<16x32xf32>
    %c0_9 = arith.constant 0 : index
    %c0_10 = arith.constant 0 : index
    %11 = vector.load %arg5[%c0_9, %c0_10] : memref<1x32xf32, #tpu.memory_space<vmem>>, vector<1x32xf32>
    %12 = vector.broadcast %11 : vector<1x32xf32> to vector<16x32xf32>
    %13 = arith.addf %10, %12 : vector<16x32xf32>
    %14 = arith.extf %0 : vector<16x32xbf16> to vector<16x32xf32>
    %15 = arith.addf %13, %14 : vector<16x32xf32>
    %cst_11 = arith.constant dense<0.000000e+00> : vector<16xf32>
    %16 = vector.multi_reduction <add>, %15, %cst_11 [1] : vector<16x32xf32> to vector<16xf32>
    %17 = vector.shape_cast %16 : vector<16xf32> to vector<16x1xf32>
    %cst_12 = arith.constant 3.200000e+01 : f32
    %18 = vector.broadcast %cst_12 : f32 to vector<16x1xf32>
    %19 = arith.divf %17, %18 : vector<16x1xf32>
    %20 = vector.broadcast %19 : vector<16x1xf32> to vector<16x32xf32>
    %21 = arith.subf %15, %20 : vector<16x32xf32>
    %22 = arith.mulf %21, %21 : vector<16x32xf32>
    %cst_13 = arith.constant dense<0.000000e+00> : vector<16xf32>
    %23 = vector.multi_reduction <add>, %22, %cst_13 [1] : vector<16x32xf32> to vector<16xf32>
    %24 = vector.shape_cast %23 : vector<16xf32> to vector<16x1xf32>
    %cst_14 = arith.constant 3.200000e+01 : f32
    %25 = vector.broadcast %cst_14 : f32 to vector<16x1xf32>
    %26 = arith.divf %24, %25 : vector<16x1xf32>
    %cst_15 = arith.constant 9.99999974E-6 : f32
    %27 = vector.broadcast %cst_15 : f32 to vector<16x1xf32>
    %28 = arith.addf %26, %27 : vector<16x1xf32>
    %29 = math.rsqrt %28 : vector<16x1xf32>
    %30 = vector.broadcast %29 : vector<16x1xf32> to vector<16x32xf32>
    %31 = arith.mulf %21, %30 : vector<16x32xf32>
    %c0_16 = arith.constant 0 : index
    %c0_17 = arith.constant 0 : index
    %32 = vector.load %arg6[%c0_16, %c0_17] : memref<1x32xf32, #tpu.memory_space<vmem>>, vector<1x32xf32>
    %33 = vector.broadcast %32 : vector<1x32xf32> to vector<16x32xf32>
    %34 = arith.mulf %31, %33 : vector<16x32xf32>
    %c0_18 = arith.constant 0 : index
    %c0_19 = arith.constant 0 : index
    %35 = vector.load %arg7[%c0_18, %c0_19] : memref<1x32xf32, #tpu.memory_space<vmem>>, vector<1x32xf32>
    %36 = vector.broadcast %35 : vector<1x32xf32> to vector<16x32xf32>
    %37 = arith.addf %34, %36 : vector<16x32xf32>
    %38 = arith.truncf %37 : vector<16x32xf32> to vector<16x32xbf16>
    %c0_20 = arith.constant 0 : index
    %c0_21 = arith.constant 0 : index
    %39 = vector.load %arg8[%c0_20, %c0_21] : memref<16x32xbf16, #tpu.memory_space<vmem>>, vector<16x32xbf16>
    tpu.vector_store %arg8[%c0_20, %c0_21], %38 {strides = array<i32>} : memref<16x32xbf16, #tpu.memory_space<vmem>>, vector<16x32xbf16>,
    return
  }
  func.func @transform_0(%arg0: i32) -> (i32, i32) {
    %c0_i32 = arith.constant 0 : i32
    %c0_i32_0 = arith.constant 0 : i32
    return %arg0, %c0_i32 : i32, i32
  }
  func.func @transform_1(%arg0: i32) -> (i32, i32) {
    %c0_i32 = arith.constant 0 : i32
    %c0_i32_0 = arith.constant 0 : i32
    %c0_i32_1 = arith.constant 0 : i32
    return %c0_i32, %c0_i32_0 : i32, i32
  }
  func.func @transform_2(%arg0: i32) -> (i32, i32) {
    %c0_i32 = arith.constant 0 : i32
    %c0_i32_0 = arith.constant 0 : i32
    %c0_i32_1 = arith.constant 0 : i32
    return %c0_i32, %c0_i32_0 : i32, i32
  }
  func.func @transform_3(%arg0: i32) -> (i32, i32) {
    %c0_i32 = arith.constant 0 : i32
    %c0_i32_0 = arith.constant 0 : i32
    %c0_i32_1 = arith.constant 0 : i32
    return %c0_i32, %c0_i32_0 : i32, i32
  }
  func.func @transform_4(%arg0: i32) -> (i32, i32) {
    %c0_i32 = arith.constant 0 : i32
    %c0_i32_0 = arith.constant 0 : i32
    %c0_i32_1 = arith.constant 0 : i32
    return %c0_i32, %c0_i32_0 : i32, i32
  }
  func.func @transform_5(%arg0: i32) -> (i32, i32) {
    %c0_i32 = arith.constant 0 : i32
    %c0_i32_0 = arith.constant 0 : i32
    %c0_i32_1 = arith.constant 0 : i32
    return %c0_i32, %c0_i32_0 : i32, i32
  }
  func.func @transform_6(%arg0: i32) -> (i32, i32) {
    %c0_i32 = arith.constant 0 : i32
    %c0_i32_0 = arith.constant 0 : i32
    %c0_i32_1 = arith.constant 0 : i32
    return %c0_i32, %c0_i32_0 : i32, i32
  }
  func.func @transform_7(%arg0: i32) -> (i32, i32) {
    %c0_i32 = arith.constant 0 : i32
    %c0_i32_0 = arith.constant 0 : i32
    return %arg0, %c0_i32 : i32, i32
  }
}

module attributes {stable_mosaic.version = 11 : i64} {
  func.func @_attn_out_ln_kernel(%arg0: i32, %arg1: i32, %arg2: memref<1x8x32xbf16, #tpu.memory_space<vmem>>, %arg3: memref<1x16x32xbf16, #tpu.memory_space<vmem>>, %arg4: memref<1x16x32xbf16, #tpu.memory_space<vmem>>, %arg5: memref<32x32xbf16, #tpu.memory_space<vmem>>, %arg6: memref<1x32xf32, #tpu.memory_space<vmem>>, %arg7: memref<1x8x32xbf16, #tpu.memory_space<vmem>>, %arg8: memref<1x32xf32, #tpu.memory_space<vmem>>, %arg9: memref<1x32xf32, #tpu.memory_space<vmem>>, %arg10: memref<1x8x32xbf16, #tpu.memory_space<vmem>>) attributes {dimension_semantics = [#tpu.dimension_semantics<parallel>, #tpu.dimension_semantics<parallel>], iteration_bounds = array<i64: 2, 1>, scalar_prefetch = 0 : i64, scratch_operands = 0 : i64, tpu.core_type = #tpu.core_type<tc>, window_params = [{transform_indices = @transform_0, window_bounds = array<i64: 1, 8, 32>}, {transform_indices = @transform_1, window_bounds = array<i64: 1, 16, 32>}, {transform_indices = @transform_2, window_bounds = array<i64: 1, 16, 32>}, {pipeline_mode = #tpu.pipeline_mode<synchronous>, transform_indices = @transform_3, window_bounds = array<i64: 32, 32>}, {pipeline_mode = #tpu.pipeline_mode<synchronous>, transform_indices = @transform_4, window_bounds = array<i64: 1, 32>}, {transform_indices = @transform_5, window_bounds = array<i64: 1, 8, 32>}, {pipeline_mode = #tpu.pipeline_mode<synchronous>, transform_indices = @transform_6, window_bounds = array<i64: 1, 32>}, {pipeline_mode = #tpu.pipeline_mode<synchronous>, transform_indices = @transform_7, window_bounds = array<i64: 1, 32>}, {transform_indices = @transform_8, window_bounds = array<i64: 1, 8, 32>}]} {
    %c0 = arith.constant 0 : index
    %c0_0 = arith.constant 0 : index
    %c0_1 = arith.constant 0 : index
    %0 = vector.load %arg2[%c0, %c0_0, %c0_1] : memref<1x8x32xbf16, #tpu.memory_space<vmem>>, vector<1x8x32xbf16>
    %1 = vector.shape_cast %0 : vector<1x8x32xbf16> to vector<8x32xbf16>
    %c0_2 = arith.constant 0 : index
    %c0_3 = arith.constant 0 : index
    %c0_4 = arith.constant 0 : index
    %2 = vector.load %arg3[%c0_2, %c0_3, %c0_4] : memref<1x16x32xbf16, #tpu.memory_space<vmem>>, vector<1x16x32xbf16>
    %3 = vector.shape_cast %2 : vector<1x16x32xbf16> to vector<16x32xbf16>
    %c0_5 = arith.constant 0 : index
    %c0_6 = arith.constant 0 : index
    %c0_7 = arith.constant 0 : index
    %4 = vector.load %arg4[%c0_5, %c0_6, %c0_7] : memref<1x16x32xbf16, #tpu.memory_space<vmem>>, vector<1x16x32xbf16>
    %5 = vector.shape_cast %4 : vector<1x16x32xbf16> to vector<16x32xbf16>
    %c0_8 = arith.constant 0 : index
    %c0_9 = arith.constant 0 : index
    %6 = vector.load %arg5[%c0_8, %c0_9] : memref<32x32xbf16, #tpu.memory_space<vmem>>, vector<32x32xbf16>
    %c0_10 = arith.constant 0 : index
    %c0_11 = arith.constant 0 : index
    %c0_12 = arith.constant 0 : index
    %7 = vector.load %arg7[%c0_10, %c0_11, %c0_12] : memref<1x8x32xbf16, #tpu.memory_space<vmem>>, vector<1x8x32xbf16>
    %8 = vector.shape_cast %7 : vector<1x8x32xbf16> to vector<8x32xbf16>
    %9 = arith.extf %8 : vector<8x32xbf16> to vector<8x32xf32>
    %c0_13 = arith.constant 0 : index
    %c0_14 = arith.constant 0 : index
    %10 = vector.load %arg6[%c0_13, %c0_14] : memref<1x32xf32, #tpu.memory_space<vmem>>, vector<1x32xf32>
    %11 = vector.broadcast %10 : vector<1x32xf32> to vector<8x32xf32>
    %12 = arith.addf %9, %11 : vector<8x32xf32>
    %13 = vector.extract_strided_slice %1 {offsets = [0, 0], sizes = [8, 8], strides = [1, 1]} : vector<8x32xbf16> to vector<8x8xbf16>
    %14 = vector.extract_strided_slice %3 {offsets = [0, 0], sizes = [16, 8], strides = [1, 1]} : vector<16x32xbf16> to vector<16x8xbf16>
    %15 = vector.extract_strided_slice %5 {offsets = [0, 0], sizes = [16, 8], strides = [1, 1]} : vector<16x32xbf16> to vector<16x8xbf16>
    %cst = arith.constant dense<0.000000e+00> : vector<8x16xf32>
    %16 = tpu.matmul %13, %14, %cst {dimension_numbers = #tpu.dot_dimension_numbers<[1], [1], [0], [0], [0, 0, 1, 0], [], []>} : vector<8x8xbf16>, vector<16x8xbf16>, vector<8x16xf32> -> vector<8x16xf32>
    %cst_15 = arith.constant 0.353553385 : f32
    %17 = vector.broadcast %cst_15 : f32 to vector<8x16xf32>
    %18 = arith.mulf %16, %17 : vector<8x16xf32>
    %cst_16 = arith.constant dense<0xFF800000> : vector<8xf32>
    %19 = vector.multi_reduction <maximumf>, %18, %cst_16 [1] : vector<8x16xf32> to vector<8xf32>
    %20 = vector.shape_cast %19 : vector<8xf32> to vector<8x1xf32>
    %21 = vector.broadcast %20 : vector<8x1xf32> to vector<8x16xf32>
    %22 = arith.subf %18, %21 : vector<8x16xf32>
    %23 = math.exp %22 : vector<8x16xf32>
    %cst_17 = arith.constant dense<0.000000e+00> : vector<8xf32>
    %24 = vector.multi_reduction <add>, %23, %cst_17 [1] : vector<8x16xf32> to vector<8xf32>
    %25 = vector.shape_cast %24 : vector<8xf32> to vector<8x1xf32>
    %26 = vector.broadcast %25 : vector<8x1xf32> to vector<8x16xf32>
    %27 = arith.divf %23, %26 : vector<8x16xf32>
    %28 = arith.truncf %27 : vector<8x16xf32> to vector<8x16xbf16>
    %cst_18 = arith.constant dense<0.000000e+00> : vector<8x8xf32>
    %29 = tpu.matmul %28, %15, %cst_18 {dimension_numbers = #tpu.dot_dimension_numbers<[1], [0], [0], [1], [0, 0, 1, 1], [], []>} : vector<8x16xbf16>, vector<16x8xbf16>, vector<8x8xf32> -> vector<8x8xf32>
    %30 = arith.truncf %29 : vector<8x8xf32> to vector<8x8xbf16>
    %31 = vector.extract_strided_slice %6 {offsets = [0, 0], sizes = [8, 32], strides = [1, 1]} : vector<32x32xbf16> to vector<8x32xbf16>
    %cst_19 = arith.constant dense<0.000000e+00> : vector<8x32xf32>
    %32 = tpu.matmul %30, %31, %cst_19 {dimension_numbers = #tpu.dot_dimension_numbers<[1], [0], [0], [1], [0, 0, 1, 1], [], []>} : vector<8x8xbf16>, vector<8x32xbf16>, vector<8x32xf32> -> vector<8x32xf32>
    %33 = arith.addf %12, %32 : vector<8x32xf32>
    %34 = vector.extract_strided_slice %1 {offsets = [0, 8], sizes = [8, 8], strides = [1, 1]} : vector<8x32xbf16> to vector<8x8xbf16>
    %35 = vector.extract_strided_slice %3 {offsets = [0, 8], sizes = [16, 8], strides = [1, 1]} : vector<16x32xbf16> to vector<16x8xbf16>
    %36 = vector.extract_strided_slice %5 {offsets = [0, 8], sizes = [16, 8], strides = [1, 1]} : vector<16x32xbf16> to vector<16x8xbf16>
    %cst_20 = arith.constant dense<0.000000e+00> : vector<8x16xf32>
    %37 = tpu.matmul %34, %35, %cst_20 {dimension_numbers = #tpu.dot_dimension_numbers<[1], [1], [0], [0], [0, 0, 1, 0], [], []>} : vector<8x8xbf16>, vector<16x8xbf16>, vector<8x16xf32> -> vector<8x16xf32>
    %cst_21 = arith.constant 0.353553385 : f32
    %38 = vector.broadcast %cst_21 : f32 to vector<8x16xf32>
    %39 = arith.mulf %37, %38 : vector<8x16xf32>
    %cst_22 = arith.constant dense<0xFF800000> : vector<8xf32>
    %40 = vector.multi_reduction <maximumf>, %39, %cst_22 [1] : vector<8x16xf32> to vector<8xf32>
    %41 = vector.shape_cast %40 : vector<8xf32> to vector<8x1xf32>
    %42 = vector.broadcast %41 : vector<8x1xf32> to vector<8x16xf32>
    %43 = arith.subf %39, %42 : vector<8x16xf32>
    %44 = math.exp %43 : vector<8x16xf32>
    %cst_23 = arith.constant dense<0.000000e+00> : vector<8xf32>
    %45 = vector.multi_reduction <add>, %44, %cst_23 [1] : vector<8x16xf32> to vector<8xf32>
    %46 = vector.shape_cast %45 : vector<8xf32> to vector<8x1xf32>
    %47 = vector.broadcast %46 : vector<8x1xf32> to vector<8x16xf32>
    %48 = arith.divf %44, %47 : vector<8x16xf32>
    %49 = arith.truncf %48 : vector<8x16xf32> to vector<8x16xbf16>
    %cst_24 = arith.constant dense<0.000000e+00> : vector<8x8xf32>
    %50 = tpu.matmul %49, %36, %cst_24 {dimension_numbers = #tpu.dot_dimension_numbers<[1], [0], [0], [1], [0, 0, 1, 1], [], []>} : vector<8x16xbf16>, vector<16x8xbf16>, vector<8x8xf32> -> vector<8x8xf32>
    %51 = arith.truncf %50 : vector<8x8xf32> to vector<8x8xbf16>
    %52 = vector.extract_strided_slice %6 {offsets = [8, 0], sizes = [8, 32], strides = [1, 1]} : vector<32x32xbf16> to vector<8x32xbf16>
    %cst_25 = arith.constant dense<0.000000e+00> : vector<8x32xf32>
    %53 = tpu.matmul %51, %52, %cst_25 {dimension_numbers = #tpu.dot_dimension_numbers<[1], [0], [0], [1], [0, 0, 1, 1], [], []>} : vector<8x8xbf16>, vector<8x32xbf16>, vector<8x32xf32> -> vector<8x32xf32>
    %54 = arith.addf %33, %53 : vector<8x32xf32>
    %55 = vector.extract_strided_slice %1 {offsets = [0, 16], sizes = [8, 8], strides = [1, 1]} : vector<8x32xbf16> to vector<8x8xbf16>
    %56 = vector.extract_strided_slice %3 {offsets = [0, 16], sizes = [16, 8], strides = [1, 1]} : vector<16x32xbf16> to vector<16x8xbf16>
    %57 = vector.extract_strided_slice %5 {offsets = [0, 16], sizes = [16, 8], strides = [1, 1]} : vector<16x32xbf16> to vector<16x8xbf16>
    %cst_26 = arith.constant dense<0.000000e+00> : vector<8x16xf32>
    %58 = tpu.matmul %55, %56, %cst_26 {dimension_numbers = #tpu.dot_dimension_numbers<[1], [1], [0], [0], [0, 0, 1, 0], [], []>} : vector<8x8xbf16>, vector<16x8xbf16>, vector<8x16xf32> -> vector<8x16xf32>
    %cst_27 = arith.constant 0.353553385 : f32
    %59 = vector.broadcast %cst_27 : f32 to vector<8x16xf32>
    %60 = arith.mulf %58, %59 : vector<8x16xf32>
    %cst_28 = arith.constant dense<0xFF800000> : vector<8xf32>
    %61 = vector.multi_reduction <maximumf>, %60, %cst_28 [1] : vector<8x16xf32> to vector<8xf32>
    %62 = vector.shape_cast %61 : vector<8xf32> to vector<8x1xf32>
    %63 = vector.broadcast %62 : vector<8x1xf32> to vector<8x16xf32>
    %64 = arith.subf %60, %63 : vector<8x16xf32>
    %65 = math.exp %64 : vector<8x16xf32>
    %cst_29 = arith.constant dense<0.000000e+00> : vector<8xf32>
    %66 = vector.multi_reduction <add>, %65, %cst_29 [1] : vector<8x16xf32> to vector<8xf32>
    %67 = vector.shape_cast %66 : vector<8xf32> to vector<8x1xf32>
    %68 = vector.broadcast %67 : vector<8x1xf32> to vector<8x16xf32>
    %69 = arith.divf %65, %68 : vector<8x16xf32>
    %70 = arith.truncf %69 : vector<8x16xf32> to vector<8x16xbf16>
    %cst_30 = arith.constant dense<0.000000e+00> : vector<8x8xf32>
    %71 = tpu.matmul %70, %57, %cst_30 {dimension_numbers = #tpu.dot_dimension_numbers<[1], [0], [0], [1], [0, 0, 1, 1], [], []>} : vector<8x16xbf16>, vector<16x8xbf16>, vector<8x8xf32> -> vector<8x8xf32>
    %72 = arith.truncf %71 : vector<8x8xf32> to vector<8x8xbf16>
    %73 = vector.extract_strided_slice %6 {offsets = [16, 0], sizes = [8, 32], strides = [1, 1]} : vector<32x32xbf16> to vector<8x32xbf16>
    %cst_31 = arith.constant dense<0.000000e+00> : vector<8x32xf32>
    %74 = tpu.matmul %72, %73, %cst_31 {dimension_numbers = #tpu.dot_dimension_numbers<[1], [0], [0], [1], [0, 0, 1, 1], [], []>} : vector<8x8xbf16>, vector<8x32xbf16>, vector<8x32xf32> -> vector<8x32xf32>
    %75 = arith.addf %54, %74 : vector<8x32xf32>
    %76 = vector.extract_strided_slice %1 {offsets = [0, 24], sizes = [8, 8], strides = [1, 1]} : vector<8x32xbf16> to vector<8x8xbf16>
    %77 = vector.extract_strided_slice %3 {offsets = [0, 24], sizes = [16, 8], strides = [1, 1]} : vector<16x32xbf16> to vector<16x8xbf16>
    %78 = vector.extract_strided_slice %5 {offsets = [0, 24], sizes = [16, 8], strides = [1, 1]} : vector<16x32xbf16> to vector<16x8xbf16>
    %cst_32 = arith.constant dense<0.000000e+00> : vector<8x16xf32>
    %79 = tpu.matmul %76, %77, %cst_32 {dimension_numbers = #tpu.dot_dimension_numbers<[1], [1], [0], [0], [0, 0, 1, 0], [], []>} : vector<8x8xbf16>, vector<16x8xbf16>, vector<8x16xf32> -> vector<8x16xf32>
    %cst_33 = arith.constant 0.353553385 : f32
    %80 = vector.broadcast %cst_33 : f32 to vector<8x16xf32>
    %81 = arith.mulf %79, %80 : vector<8x16xf32>
    %cst_34 = arith.constant dense<0xFF800000> : vector<8xf32>
    %82 = vector.multi_reduction <maximumf>, %81, %cst_34 [1] : vector<8x16xf32> to vector<8xf32>
    %83 = vector.shape_cast %82 : vector<8xf32> to vector<8x1xf32>
    %84 = vector.broadcast %83 : vector<8x1xf32> to vector<8x16xf32>
    %85 = arith.subf %81, %84 : vector<8x16xf32>
    %86 = math.exp %85 : vector<8x16xf32>
    %cst_35 = arith.constant dense<0.000000e+00> : vector<8xf32>
    %87 = vector.multi_reduction <add>, %86, %cst_35 [1] : vector<8x16xf32> to vector<8xf32>
    %88 = vector.shape_cast %87 : vector<8xf32> to vector<8x1xf32>
    %89 = vector.broadcast %88 : vector<8x1xf32> to vector<8x16xf32>
    %90 = arith.divf %86, %89 : vector<8x16xf32>
    %91 = arith.truncf %90 : vector<8x16xf32> to vector<8x16xbf16>
    %cst_36 = arith.constant dense<0.000000e+00> : vector<8x8xf32>
    %92 = tpu.matmul %91, %78, %cst_36 {dimension_numbers = #tpu.dot_dimension_numbers<[1], [0], [0], [1], [0, 0, 1, 1], [], []>} : vector<8x16xbf16>, vector<16x8xbf16>, vector<8x8xf32> -> vector<8x8xf32>
    %93 = arith.truncf %92 : vector<8x8xf32> to vector<8x8xbf16>
    %94 = vector.extract_strided_slice %6 {offsets = [24, 0], sizes = [8, 32], strides = [1, 1]} : vector<32x32xbf16> to vector<8x32xbf16>
    %cst_37 = arith.constant dense<0.000000e+00> : vector<8x32xf32>
    %95 = tpu.matmul %93, %94, %cst_37 {dimension_numbers = #tpu.dot_dimension_numbers<[1], [0], [0], [1], [0, 0, 1, 1], [], []>} : vector<8x8xbf16>, vector<8x32xbf16>, vector<8x32xf32> -> vector<8x32xf32>
    %96 = arith.addf %75, %95 : vector<8x32xf32>
    %cst_38 = arith.constant dense<0.000000e+00> : vector<8xf32>
    %97 = vector.multi_reduction <add>, %96, %cst_38 [1] : vector<8x32xf32> to vector<8xf32>
    %98 = vector.shape_cast %97 : vector<8xf32> to vector<8x1xf32>
    %cst_39 = arith.constant 3.200000e+01 : f32
    %99 = vector.broadcast %cst_39 : f32 to vector<8x1xf32>
    %100 = arith.divf %98, %99 : vector<8x1xf32>
    %101 = vector.broadcast %100 : vector<8x1xf32> to vector<8x32xf32>
    %102 = arith.subf %96, %101 : vector<8x32xf32>
    %103 = arith.mulf %102, %102 : vector<8x32xf32>
    %cst_40 = arith.constant dense<0.000000e+00> : vector<8xf32>
    %104 = vector.multi_reduction <add>, %103, %cst_40 [1] : vector<8x32xf32> to vector<8xf32>
    %105 = vector.shape_cast %104 : vector<8xf32> to vector<8x1xf32>
    %cst_41 = arith.constant 3.200000e+01 : f32
    %106 = vector.broadcast %cst_41 : f32 to vector<8x1xf32>
    %107 = arith.divf %105, %106 : vector<8x1xf32>
    %cst_42 = arith.constant 9.99999974E-6 : f32
    %108 = vector.broadcast %cst_42 : f32 to vector<8x1xf32>
    %109 = arith.addf %107, %108 : vector<8x1xf32>
    %110 = math.rsqrt %109 : vector<8x1xf32>
    %111 = vector.broadcast %110 : vector<8x1xf32> to vector<8x32xf32>
    %112 = arith.mulf %102, %111 : vector<8x32xf32>
    %c0_43 = arith.constant 0 : index
    %c0_44 = arith.constant 0 : index
    %113 = vector.load %arg8[%c0_43, %c0_44] : memref<1x32xf32, #tpu.memory_space<vmem>>, vector<1x32xf32>
    %114 = vector.broadcast %113 : vector<1x32xf32> to vector<8x32xf32>
    %115 = arith.mulf %112, %114 : vector<8x32xf32>
    %c0_45 = arith.constant 0 : index
    %c0_46 = arith.constant 0 : index
    %116 = vector.load %arg9[%c0_45, %c0_46] : memref<1x32xf32, #tpu.memory_space<vmem>>, vector<1x32xf32>
    %117 = vector.broadcast %116 : vector<1x32xf32> to vector<8x32xf32>
    %118 = arith.addf %115, %117 : vector<8x32xf32>
    %119 = arith.truncf %118 : vector<8x32xf32> to vector<8x32xbf16>
    %c0_47 = arith.constant 0 : index
    %c0_48 = arith.constant 0 : index
    %c0_49 = arith.constant 0 : index
    %120 = vector.load %arg10[%c0_47, %c0_48, %c0_49] : memref<1x8x32xbf16, #tpu.memory_space<vmem>>, vector<1x8x32xbf16>
    %121 = vector.shape_cast %120 : vector<1x8x32xbf16> to vector<8x32xbf16>
    %122 = vector.shape_cast %119 : vector<8x32xbf16> to vector<1x8x32xbf16>
    tpu.vector_store %arg10[%c0_47, %c0_48, %c0_49], %122 {strides = array<i32>} : memref<1x8x32xbf16, #tpu.memory_space<vmem>>, vector<1x8x32xbf16>,
    return
  }
  func.func @transform_0(%arg0: i32, %arg1: i32) -> (i32, i32, i32) {
    %c0_i32 = arith.constant 0 : i32
    %c0_i32_0 = arith.constant 0 : i32
    return %arg0, %arg1, %c0_i32 : i32, i32, i32
  }
  func.func @transform_1(%arg0: i32, %arg1: i32) -> (i32, i32, i32) {
    %c0_i32 = arith.constant 0 : i32
    %c0_i32_0 = arith.constant 0 : i32
    %c0_i32_1 = arith.constant 0 : i32
    return %arg0, %c0_i32, %c0_i32_0 : i32, i32, i32
  }
  func.func @transform_2(%arg0: i32, %arg1: i32) -> (i32, i32, i32) {
    %c0_i32 = arith.constant 0 : i32
    %c0_i32_0 = arith.constant 0 : i32
    %c0_i32_1 = arith.constant 0 : i32
    return %arg0, %c0_i32, %c0_i32_0 : i32, i32, i32
  }
  func.func @transform_3(%arg0: i32, %arg1: i32) -> (i32, i32) {
    %c0_i32 = arith.constant 0 : i32
    %c0_i32_0 = arith.constant 0 : i32
    %c0_i32_1 = arith.constant 0 : i32
    return %c0_i32, %c0_i32_0 : i32, i32
  }
  func.func @transform_4(%arg0: i32, %arg1: i32) -> (i32, i32) {
    %c0_i32 = arith.constant 0 : i32
    %c0_i32_0 = arith.constant 0 : i32
    %c0_i32_1 = arith.constant 0 : i32
    return %c0_i32, %c0_i32_0 : i32, i32
  }
  func.func @transform_5(%arg0: i32, %arg1: i32) -> (i32, i32, i32) {
    %c0_i32 = arith.constant 0 : i32
    %c0_i32_0 = arith.constant 0 : i32
    return %arg0, %arg1, %c0_i32 : i32, i32, i32
  }
  func.func @transform_6(%arg0: i32, %arg1: i32) -> (i32, i32) {
    %c0_i32 = arith.constant 0 : i32
    %c0_i32_0 = arith.constant 0 : i32
    %c0_i32_1 = arith.constant 0 : i32
    return %c0_i32, %c0_i32_0 : i32, i32
  }
  func.func @transform_7(%arg0: i32, %arg1: i32) -> (i32, i32) {
    %c0_i32 = arith.constant 0 : i32
    %c0_i32_0 = arith.constant 0 : i32
    %c0_i32_1 = arith.constant 0 : i32
    return %c0_i32, %c0_i32_0 : i32, i32
  }
  func.func @transform_8(%arg0: i32, %arg1: i32) -> (i32, i32, i32) {
    %c0_i32 = arith.constant 0 : i32
    %c0_i32_0 = arith.constant 0 : i32
    return %arg0, %arg1, %c0_i32 : i32, i32, i32
  }
}

module attributes {stable_mosaic.version = 11 : i64} {
  func.func @_layernorm_kernel(%arg0: i32, %arg1: memref<16x32xbf16, #tpu.memory_space<vmem>>, %arg2: memref<1x32xf32, #tpu.memory_space<vmem>>, %arg3: memref<1x32xf32, #tpu.memory_space<vmem>>, %arg4: memref<16x32xbf16, #tpu.memory_space<vmem>>) attributes {dimension_semantics = [#tpu.dimension_semantics<parallel>], iteration_bounds = array<i64: 1>, scalar_prefetch = 0 : i64, scratch_operands = 0 : i64, tpu.core_type = #tpu.core_type<tc>, window_params = [{transform_indices = @transform_0, window_bounds = array<i64: 16, 32>}, {pipeline_mode = #tpu.pipeline_mode<synchronous>, transform_indices = @transform_1, window_bounds = array<i64: 1, 32>}, {pipeline_mode = #tpu.pipeline_mode<synchronous>, transform_indices = @transform_2, window_bounds = array<i64: 1, 32>}, {transform_indices = @transform_3, window_bounds = array<i64: 16, 32>}]} {
    %c0 = arith.constant 0 : index
    %c0_0 = arith.constant 0 : index
    %0 = vector.load %arg1[%c0, %c0_0] : memref<16x32xbf16, #tpu.memory_space<vmem>>, vector<16x32xbf16>
    %1 = arith.extf %0 : vector<16x32xbf16> to vector<16x32xf32>
    %cst = arith.constant dense<0.000000e+00> : vector<16xf32>
    %2 = vector.multi_reduction <add>, %1, %cst [1] : vector<16x32xf32> to vector<16xf32>
    %3 = vector.shape_cast %2 : vector<16xf32> to vector<16x1xf32>
    %cst_1 = arith.constant 3.200000e+01 : f32
    %4 = vector.broadcast %cst_1 : f32 to vector<16x1xf32>
    %5 = arith.divf %3, %4 : vector<16x1xf32>
    %6 = vector.broadcast %5 : vector<16x1xf32> to vector<16x32xf32>
    %7 = arith.subf %1, %6 : vector<16x32xf32>
    %8 = arith.mulf %7, %7 : vector<16x32xf32>
    %cst_2 = arith.constant dense<0.000000e+00> : vector<16xf32>
    %9 = vector.multi_reduction <add>, %8, %cst_2 [1] : vector<16x32xf32> to vector<16xf32>
    %10 = vector.shape_cast %9 : vector<16xf32> to vector<16x1xf32>
    %cst_3 = arith.constant 3.200000e+01 : f32
    %11 = vector.broadcast %cst_3 : f32 to vector<16x1xf32>
    %12 = arith.divf %10, %11 : vector<16x1xf32>
    %cst_4 = arith.constant 9.99999974E-6 : f32
    %13 = vector.broadcast %cst_4 : f32 to vector<16x1xf32>
    %14 = arith.addf %12, %13 : vector<16x1xf32>
    %15 = math.rsqrt %14 : vector<16x1xf32>
    %16 = vector.broadcast %15 : vector<16x1xf32> to vector<16x32xf32>
    %17 = arith.mulf %7, %16 : vector<16x32xf32>
    %c0_5 = arith.constant 0 : index
    %c0_6 = arith.constant 0 : index
    %18 = vector.load %arg2[%c0_5, %c0_6] : memref<1x32xf32, #tpu.memory_space<vmem>>, vector<1x32xf32>
    %19 = vector.broadcast %18 : vector<1x32xf32> to vector<16x32xf32>
    %20 = arith.mulf %17, %19 : vector<16x32xf32>
    %c0_7 = arith.constant 0 : index
    %c0_8 = arith.constant 0 : index
    %21 = vector.load %arg3[%c0_7, %c0_8] : memref<1x32xf32, #tpu.memory_space<vmem>>, vector<1x32xf32>
    %22 = vector.broadcast %21 : vector<1x32xf32> to vector<16x32xf32>
    %23 = arith.addf %20, %22 : vector<16x32xf32>
    %24 = arith.truncf %23 : vector<16x32xf32> to vector<16x32xbf16>
    %c0_9 = arith.constant 0 : index
    %c0_10 = arith.constant 0 : index
    %25 = vector.load %arg4[%c0_9, %c0_10] : memref<16x32xbf16, #tpu.memory_space<vmem>>, vector<16x32xbf16>
    tpu.vector_store %arg4[%c0_9, %c0_10], %24 {strides = array<i32>} : memref<16x32xbf16, #tpu.memory_space<vmem>>, vector<16x32xbf16>,
    return
  }
  func.func @transform_0(%arg0: i32) -> (i32, i32) {
    %c0_i32 = arith.constant 0 : i32
    %c0_i32_0 = arith.constant 0 : i32
    return %arg0, %c0_i32 : i32, i32
  }
  func.func @transform_1(%arg0: i32) -> (i32, i32) {
    %c0_i32 = arith.constant 0 : i32
    %c0_i32_0 = arith.constant 0 : i32
    %c0_i32_1 = arith.constant 0 : i32
    return %c0_i32, %c0_i32_0 : i32, i32
  }
  func.func @transform_2(%arg0: i32) -> (i32, i32) {
    %c0_i32 = arith.constant 0 : i32
    %c0_i32_0 = arith.constant 0 : i32
    %c0_i32_1 = arith.constant 0 : i32
    return %c0_i32, %c0_i32_0 : i32, i32
  }
  func.func @transform_3(%arg0: i32) -> (i32, i32) {
    %c0_i32 = arith.constant 0 : i32
    %c0_i32_0 = arith.constant 0 : i32
    return %arg0, %c0_i32 : i32, i32
  }
}

module attributes {stable_mosaic.version = 11 : i64} {
  func.func @_heads_kernel(%arg0: i32, %arg1: memref<32x32xbf16, #tpu.memory_space<vmem>>, %arg2: memref<32x128xbf16, #tpu.memory_space<vmem>>, %arg3: memref<1x128xf32, #tpu.memory_space<vmem>>, %arg4: memref<32x32xbf16, #tpu.memory_space<vmem>>, %arg5: memref<1x32xf32, #tpu.memory_space<vmem>>, %arg6: memref<32x32xbf16, #tpu.memory_space<vmem>>, %arg7: memref<1x32xf32, #tpu.memory_space<vmem>>, %arg8: memref<32x128xbf16, #tpu.memory_space<vmem>>, %arg9: memref<1x128xf32, #tpu.memory_space<vmem>>, %arg10: memref<32x128xf32, #tpu.memory_space<vmem>>, %arg11: memref<32x128xf32, #tpu.memory_space<vmem>>) attributes {dimension_semantics = [#tpu.dimension_semantics<parallel>], iteration_bounds = array<i64: 1>, scalar_prefetch = 0 : i64, scratch_operands = 0 : i64, tpu.core_type = #tpu.core_type<tc>, window_params = [{transform_indices = @transform_0, window_bounds = array<i64: 32, 32>}, {pipeline_mode = #tpu.pipeline_mode<synchronous>, transform_indices = @transform_1, window_bounds = array<i64: 32, 128>}, {pipeline_mode = #tpu.pipeline_mode<synchronous>, transform_indices = @transform_2, window_bounds = array<i64: 1, 128>}, {pipeline_mode = #tpu.pipeline_mode<synchronous>, transform_indices = @transform_3, window_bounds = array<i64: 32, 32>}, {pipeline_mode = #tpu.pipeline_mode<synchronous>, transform_indices = @transform_4, window_bounds = array<i64: 1, 32>}, {pipeline_mode = #tpu.pipeline_mode<synchronous>, transform_indices = @transform_5, window_bounds = array<i64: 32, 32>}, {pipeline_mode = #tpu.pipeline_mode<synchronous>, transform_indices = @transform_6, window_bounds = array<i64: 1, 32>}, {pipeline_mode = #tpu.pipeline_mode<synchronous>, transform_indices = @transform_7, window_bounds = array<i64: 32, 128>}, {pipeline_mode = #tpu.pipeline_mode<synchronous>, transform_indices = @transform_8, window_bounds = array<i64: 1, 128>}, {transform_indices = @transform_9, window_bounds = array<i64: 32, 128>}, {transform_indices = @transform_10, window_bounds = array<i64: 32, 128>}]} {
    %c0 = arith.constant 0 : index
    %c0_0 = arith.constant 0 : index
    %0 = vector.load %arg1[%c0, %c0_0] : memref<32x32xbf16, #tpu.memory_space<vmem>>, vector<32x32xbf16>
    %c0_1 = arith.constant 0 : index
    %c0_2 = arith.constant 0 : index
    %1 = vector.load %arg2[%c0_1, %c0_2] : memref<32x128xbf16, #tpu.memory_space<vmem>>, vector<32x128xbf16>
    %cst = arith.constant dense<0.000000e+00> : vector<32x128xf32>
    %2 = tpu.matmul %0, %1, %cst {dimension_numbers = #tpu.dot_dimension_numbers<[1], [0], [0], [1], [0, 0, 1, 1], [], []>} : vector<32x32xbf16>, vector<32x128xbf16>, vector<32x128xf32> -> vector<32x128xf32>
    %c0_3 = arith.constant 0 : index
    %c0_4 = arith.constant 0 : index
    %3 = vector.load %arg3[%c0_3, %c0_4] : memref<1x128xf32, #tpu.memory_space<vmem>>, vector<1x128xf32>
    %4 = vector.broadcast %3 : vector<1x128xf32> to vector<32x128xf32>
    %5 = arith.addf %2, %4 : vector<32x128xf32>
    %c0_5 = arith.constant 0 : index
    %c0_6 = arith.constant 0 : index
    %6 = vector.load %arg10[%c0_5, %c0_6] : memref<32x128xf32, #tpu.memory_space<vmem>>, vector<32x128xf32>
    tpu.vector_store %arg10[%c0_5, %c0_6], %5 {strides = array<i32>} : memref<32x128xf32, #tpu.memory_space<vmem>>, vector<32x128xf32>,
    %c0_7 = arith.constant 0 : index
    %c0_8 = arith.constant 0 : index
    %7 = vector.load %arg4[%c0_7, %c0_8] : memref<32x32xbf16, #tpu.memory_space<vmem>>, vector<32x32xbf16>
    %cst_9 = arith.constant dense<0.000000e+00> : vector<32x32xf32>
    %8 = tpu.matmul %0, %7, %cst_9 {dimension_numbers = #tpu.dot_dimension_numbers<[1], [0], [0], [1], [0, 0, 1, 1], [], []>} : vector<32x32xbf16>, vector<32x32xbf16>, vector<32x32xf32> -> vector<32x32xf32>
    %c0_10 = arith.constant 0 : index
    %c0_11 = arith.constant 0 : index
    %9 = vector.load %arg5[%c0_10, %c0_11] : memref<1x32xf32, #tpu.memory_space<vmem>>, vector<1x32xf32>
    %10 = vector.broadcast %9 : vector<1x32xf32> to vector<32x32xf32>
    %11 = arith.addf %8, %10 : vector<32x32xf32>
    %cst_12 = arith.constant 0.000000e+00 : f32
    %12 = vector.broadcast %cst_12 : f32 to vector<32x32xf32>
    %13 = arith.maximumf %11, %12 : vector<32x32xf32>
    %14 = arith.truncf %13 : vector<32x32xf32> to vector<32x32xbf16>
    %c0_13 = arith.constant 0 : index
    %c0_14 = arith.constant 0 : index
    %15 = vector.load %arg6[%c0_13, %c0_14] : memref<32x32xbf16, #tpu.memory_space<vmem>>, vector<32x32xbf16>
    %cst_15 = arith.constant dense<0.000000e+00> : vector<32x32xf32>
    %16 = tpu.matmul %14, %15, %cst_15 {dimension_numbers = #tpu.dot_dimension_numbers<[1], [0], [0], [1], [0, 0, 1, 1], [], []>} : vector<32x32xbf16>, vector<32x32xbf16>, vector<32x32xf32> -> vector<32x32xf32>
    %c0_16 = arith.constant 0 : index
    %c0_17 = arith.constant 0 : index
    %17 = vector.load %arg7[%c0_16, %c0_17] : memref<1x32xf32, #tpu.memory_space<vmem>>, vector<1x32xf32>
    %18 = vector.broadcast %17 : vector<1x32xf32> to vector<32x32xf32>
    %19 = arith.addf %16, %18 : vector<32x32xf32>
    %cst_18 = arith.constant 0.000000e+00 : f32
    %20 = vector.broadcast %cst_18 : f32 to vector<32x32xf32>
    %21 = arith.maximumf %19, %20 : vector<32x32xf32>
    %22 = arith.truncf %21 : vector<32x32xf32> to vector<32x32xbf16>
    %c0_19 = arith.constant 0 : index
    %c0_20 = arith.constant 0 : index
    %23 = vector.load %arg8[%c0_19, %c0_20] : memref<32x128xbf16, #tpu.memory_space<vmem>>, vector<32x128xbf16>
    %cst_21 = arith.constant dense<0.000000e+00> : vector<32x128xf32>
    %24 = tpu.matmul %22, %23, %cst_21 {dimension_numbers = #tpu.dot_dimension_numbers<[1], [0], [0], [1], [0, 0, 1, 1], [], []>} : vector<32x32xbf16>, vector<32x128xbf16>, vector<32x128xf32> -> vector<32x128xf32>
    %c0_22 = arith.constant 0 : index
    %c0_23 = arith.constant 0 : index
    %25 = vector.load %arg9[%c0_22, %c0_23] : memref<1x128xf32, #tpu.memory_space<vmem>>, vector<1x128xf32>
    %26 = vector.broadcast %25 : vector<1x128xf32> to vector<32x128xf32>
    %27 = arith.addf %24, %26 : vector<32x128xf32>
    %28 = arith.negf %27 : vector<32x128xf32>
    %29 = math.exp %28 : vector<32x128xf32>
    %cst_24 = arith.constant 1.000000e+00 : f32
    %30 = vector.broadcast %cst_24 : f32 to vector<32x128xf32>
    %31 = arith.addf %30, %29 : vector<32x128xf32>
    %32 = arith.divf %30, %31 : vector<32x128xf32>
    %c0_25 = arith.constant 0 : index
    %c0_26 = arith.constant 0 : index
    %33 = vector.load %arg11[%c0_25, %c0_26] : memref<32x128xf32, #tpu.memory_space<vmem>>, vector<32x128xf32>
    tpu.vector_store %arg11[%c0_25, %c0_26], %32 {strides = array<i32>} : memref<32x128xf32, #tpu.memory_space<vmem>>, vector<32x128xf32>,
    return
  }
  func.func @transform_0(%arg0: i32) -> (i32, i32) {
    %c0_i32 = arith.constant 0 : i32
    %c0_i32_0 = arith.constant 0 : i32
    return %arg0, %c0_i32 : i32, i32
  }
  func.func @transform_1(%arg0: i32) -> (i32, i32) {
    %c0_i32 = arith.constant 0 : i32
    %c0_i32_0 = arith.constant 0 : i32
    %c0_i32_1 = arith.constant 0 : i32
    return %c0_i32, %c0_i32_0 : i32, i32
  }
  func.func @transform_2(%arg0: i32) -> (i32, i32) {
    %c0_i32 = arith.constant 0 : i32
    %c0_i32_0 = arith.constant 0 : i32
    %c0_i32_1 = arith.constant 0 : i32
    return %c0_i32, %c0_i32_0 : i32, i32
  }
  func.func @transform_3(%arg0: i32) -> (i32, i32) {
    %c0_i32 = arith.constant 0 : i32
    %c0_i32_0 = arith.constant 0 : i32
    %c0_i32_1 = arith.constant 0 : i32
    return %c0_i32, %c0_i32_0 : i32, i32
  }
  func.func @transform_4(%arg0: i32) -> (i32, i32) {
    %c0_i32 = arith.constant 0 : i32
    %c0_i32_0 = arith.constant 0 : i32
    %c0_i32_1 = arith.constant 0 : i32
    return %c0_i32, %c0_i32_0 : i32, i32
  }
  func.func @transform_5(%arg0: i32) -> (i32, i32) {
    %c0_i32 = arith.constant 0 : i32
    %c0_i32_0 = arith.constant 0 : i32
    %c0_i32_1 = arith.constant 0 : i32
    return %c0_i32, %c0_i32_0 : i32, i32
  }
  func.func @transform_6(%arg0: i32) -> (i32, i32) {
    %c0_i32 = arith.constant 0 : i32
    %c0_i32_0 = arith.constant 0 : i32
    %c0_i32_1 = arith.constant 0 : i32
    return %c0_i32, %c0_i32_0 : i32, i32
  }
  func.func @transform_7(%arg0: i32) -> (i32, i32) {
    %c0_i32 = arith.constant 0 : i32
    %c0_i32_0 = arith.constant 0 : i32
    %c0_i32_1 = arith.constant 0 : i32
    return %c0_i32, %c0_i32_0 : i32, i32
  }
  func.func @transform_8(%arg0: i32) -> (i32, i32) {
    %c0_i32 = arith.constant 0 : i32
    %c0_i32_0 = arith.constant 0 : i32
    %c0_i32_1 = arith.constant 0 : i32
    return %c0_i32, %c0_i32_0 : i32, i32
  }
  func.func @transform_9(%arg0: i32) -> (i32, i32) {
    %c0_i32 = arith.constant 0 : i32
    %c0_i32_0 = arith.constant 0 : i32
    return %arg0, %c0_i32 : i32, i32
  }
  func.func @transform_10(%arg0: i32) -> (i32, i32) {
    %c0_i32 = arith.constant 0 : i32
    %c0_i32_0 = arith.constant 0 : i32
    return %arg0, %c0_i32 : i32, i32
  }
}

</mosaic_0001>

<llo_original>
// kernel: _lambda_.22
$region0: #{_lambda_.22}
  #allocation0 [shape = 'u32[]', space=smem, size = 0x4, offset = 0x4, fixed_abs, tag = 'smem constant byte address 0x4 - core index']
  #allocation1 [shape = 'u32[144,128]{1,0:T(1,128)}', space=vmem, size = 0x12000, scoped, tag = 'internal scratch']
  %s0 = inlined_call_operand.vmem [shape: bf16[32,192], index: 0, kind: input, shape index: {}]
  %s1 = inlined_call_operand.vmem [shape: bf16[192,16], index: 1, kind: input, shape index: {}]
  %s2 = inlined_call_operand.vmem [shape: f32[1,16], index: 2, kind: input, shape index: {}]
  %s3 = inlined_call_operand.vmem [shape: bf16[16,32], index: 3, kind: input, shape index: {}]
  %s4 = inlined_call_operand.vmem [shape: f32[1,32], index: 4, kind: input, shape index: {}]
  %s5 = inlined_call_operand.vmem [shape: bf16[32,32], index: 5, kind: output, shape index: {}]
  %s6 = sld [smem:[#allocation0]]
  $region30: #{_lambda_.22} parent=0
    _
  %s8 = ssub.s32 1, %s6
  %s9 = scalar_select 0, %s8, %s6
  // Predicated region
  $region2: #{_lambda_.22} parent=0 // pred_check
    _
  $region3: #{_lambda_.22} parent=0 // pred_check_branch
    %11 = sbr.rel (0) target = $region5
  $region4: #{_lambda_.22} parent=0 // pred_region
    _
  $region5: #{_lambda_.22} parent=0 // pred_fallthru
    _
  // Predicated region
  $region6: #{_lambda_.22} parent=0 // pred_check
    _
  $region7: #{_lambda_.22} parent=0 // pred_check_branch
    %13 = sbr.rel (0) target = $region9
  $region8: #{_lambda_.22} parent=0 // pred_region
    _
  $region9: #{_lambda_.22} parent=0 // pred_fallthru
    _
  // Predicated region
  $region10: #{_lambda_.22} parent=0 // pred_check
    _
  $region11: #{_lambda_.22} parent=0 // pred_check_branch
    %15 = sbr.rel (0) target = $region13
  $region12: #{_lambda_.22} parent=0 // pred_region
    _
  $region13: #{_lambda_.22} parent=0 // pred_fallthru
    _
  // Predicated region
  $region14: #{_lambda_.22} parent=0 // pred_check
    _
  $region15: #{_lambda_.22} parent=0 // pred_check_branch
    %17 = sbr.rel (0) target = $region17
  $region16: #{_lambda_.22} parent=0 // pred_region
    _
  $region17: #{_lambda_.22} parent=0 // pred_fallthru
    _
  // Predicated region
  $region18: #{_lambda_.22} parent=0 // pred_check
    _
  $region19: #{_lambda_.22} parent=0 // pred_check_branch
    %19 = sbr.rel (0) target = $region21
  $region20: #{_lambda_.22} parent=0 // pred_region
    _
  $region21: #{_lambda_.22} parent=0 // pred_fallthru
    _
  %v21 = vld [vmem:[%s0] sm:$0xff]
  %v22 = vld [vmem:[%s0 + $0x8] sm:$0xff]
  %v23 = vld [vmem:[%s0 + $0x10] sm:$0xff]
  %v24 = vld [vmem:[%s0 + $0x18] sm:$0xff]
  %v25 = vld [vmem:[%s1] sm:$0xf]
  %v26 = vld [vmem:[%s1 + $0x4] sm:$0xf]
  %v27 = vld [vmem:[%s1 + $0x8] sm:$0xf]
  %v28 = vld [vmem:[%s1 + $0xc] sm:$0xf]
  %v29 = vld [vmem:[%s1 + $0x10] sm:$0xf]
  %v30 = vld [vmem:[%s1 + $0x14] sm:$0xf]
  %v31 = vld [vmem:[%s1 + $0x18] sm:$0xf]
  %v32 = vld [vmem:[%s1 + $0x1c] sm:$0xf]
  %v33 = vld [vmem:[%s1 + $0x20] sm:$0xf]
  %v34 = vld [vmem:[%s1 + $0x24] sm:$0xf]
  %v35 = vld [vmem:[%s1 + $0x28] sm:$0xf]
  %v36 = vld [vmem:[%s1 + $0x2c] sm:$0xf]
  %v37 = vld [vmem:[%s1 + $0x30] sm:$0xf]
  %v38 = vld [vmem:[%s1 + $0x34] sm:$0xf]
  %v39 = vld [vmem:[%s1 + $0x38] sm:$0xf]
  %v40 = vld [vmem:[%s1 + $0x3c] sm:$0xf]
  %v41 = vld [vmem:[%s1 + $0x40] sm:$0xf]
  %v42 = vld [vmem:[%s1 + $0x44] sm:$0xf]
  %v43 = vld [vmem:[%s1 + $0x48] sm:$0xf]
  %v44 = vld [vmem:[%s1 + $0x4c] sm:$0xf]
  %v45 = vld [vmem:[%s1 + $0x50] sm:$0xf]
  %v46 = vld [vmem:[%s1 + $0x54] sm:$0xf]
  %v47 = vld [vmem:[%s1 + $0x58] sm:$0xf]
  %v48 = vld [vmem:[%s1 + $0x5c] sm:$0xf]
  %v49 = vld [vmem:[%s2] sm:$0x1]
  %v51 = vlaneseq
  %v52 = vshrl.u32 %v51, 7
  %v53 = vsub.s32 0, %v52
  %v54 = vrot.slane %v49, %v53
  %v60 = vunpack.c.l.b16 %v21
  %v61 = vunpack.c.h.b16 %v21
  %v62 = vunpack.c.l.b16 %v22
  %v63 = vunpack.c.h.b16 %v22
  %v64 = vunpack.c.l.b16 %v23
  %v65 = vunpack.c.h.b16 %v23
  %v66 = vunpack.c.l.b16 %v24
  %v67 = vunpack.c.h.b16 %v24
  %v68 = vpack.c.b16 %v62, %v60
  %v69 = vpack.c.b16 %v63, %v61
  %v70 = vpack.c.b16 %v66, %v64
  %v71 = vpack.c.b16 %v67, %v65
  %v98 = vunpack.c.l.b16 %v25
  %v99 = vunpack.c.l.b16 %v26
  %v100 = vunpack.c.l.b16 %v27
  %v101 = vunpack.c.l.b16 %v28
  %v102 = vunpack.c.l.b16 %v29
  %v103 = vunpack.c.l.b16 %v30
  %v104 = vunpack.c.l.b16 %v31
  %v105 = vunpack.c.l.b16 %v32
  %v106 = vunpack.c.l.b16 %v33
  %v107 = vunpack.c.l.b16 %v34
  %v108 = vunpack.c.l.b16 %v35
  %v109 = vunpack.c.l.b16 %v36
  %v110 = vunpack.c.l.b16 %v37
  %v111 = vunpack.c.l.b16 %v38
  %v112 = vunpack.c.l.b16 %v39
  %v113 = vunpack.c.l.b16 %v40
  %v114 = vunpack.c.l.b16 %v41
  %v115 = vunpack.c.l.b16 %v42
  %v116 = vunpack.c.l.b16 %v43
  %v117 = vunpack.c.l.b16 %v44
  %v118 = vunpack.c.l.b16 %v45
  %v119 = vunpack.c.l.b16 %v46
  %v120 = vunpack.c.l.b16 %v47
  %v121 = vunpack.c.l.b16 %v48
  %v122 = vpack.c.b16 %v99, %v98
  %v123 = vpack.c.b16 %v101, %v100
  %v124 = vpack.c.b16 %v103, %v102
  %v125 = vpack.c.b16 %v105, %v104
  %v126 = vpack.c.b16 %v107, %v106
  %v127 = vpack.c.b16 %v109, %v108
  %v128 = vpack.c.b16 %v111, %v110
  %v129 = vpack.c.b16 %v113, %v112
  %v130 = vpack.c.b16 %v115, %v114
  %v131 = vpack.c.b16 %v117, %v116
  %v132 = vpack.c.b16 %v119, %v118
  %v133 = vpack.c.b16 %v121, %v120
  %vm146 = vcmask 523264
  %v148 = vsel %vm146, %v69, 0
  %v151 = vsel %vm146, %v71, 0
  %153 = vmatprep.subr.bf16.mxu0 0
  %154 = vmatpush1.bf16.msra.mxu0 %v122
  %155 = vmatprep.subr.bf16.mxu0 0
  %156 = vmatpush1.bf16.msra.mxu0 %v123
  %157 = vmatprep.subr.bf16.mxu0 0
  %158 = vmatpush1.bf16.msra.mxu0 %v124
  %159 = vmatprep.subr.bf16.mxu0 0
  %160 = vmatpush1.bf16.msra.mxu0 %v125
  %161 = vmatprep.subr.bf16.mxu0 0
  %162 = vmatpush1.bf16.msra.mxu0 %v126
  %163 = vmatprep.subr.bf16.mxu0 0
  %164 = vmatpush1.bf16.msra.mxu0 %v127
  %165 = vmatprep.subr.bf16.mxu0 0
  %166 = vmatpush1.bf16.msra.mxu0 %v128
  %167 = vmatprep.subr.bf16.mxu0 0
  %168 = vmatpush1.bf16.msra.mxu0 %v129
  %169 = vmatprep.subr.bf16.mxu0 0
  %170 = vmatpush1.bf16.msra.mxu0 %v130
  %171 = vmatprep.subr.bf16.mxu0 0
  %172 = vmatpush1.bf16.msra.mxu0 %v131
  %173 = vmatprep.subr.bf16.mxu0 0
  %174 = vmatpush1.bf16.msra.mxu0 %v132
  %175 = vmatprep.subr.bf16.mxu0 0
  %176 = vmatpush1.bf16.msra.mxu0 %v133
  %177 = vmatprep.subr.bf16.mxu0 0
  %178 = vmatpush1.bf16.msra.mxu0 0
  %179 = vmatprep.subr.bf16.mxu0 0
  %180 = vmatpush1.bf16.msra.mxu0 0
  %181 = vmatprep.subr.bf16.mxu0 0
  %182 = vmatpush1.bf16.msra.mxu0 0
  %183 = vmatprep.subr.bf16.mxu0 0
  %184 = vmatpush1.bf16.msra.mxu0 0
  %185 = vmatprep.mubr.bf16.mxu0 %v148
  %186 = vmatmul.mubr.bf16.gmra.mrb[0].mxu0 %v68
  %v187 = vpop.f32.mrb[0].mxu0
  %v188 = vadd.f32 %v54, %v187
  %v189 = vpop.f32.mrb[0].mxu0
  %v190 = vpop.f32.mrb[0].mxu0
  %v191 = vadd.f32 %v54, %v190
  %v192 = vpop.f32.mrb[0].mxu0
  %193 = vmatprep.mubr.bf16.mxu0 %v151
  %194 = vmatmul.mubr.bf16.gmra.mrb[0].mxu0 %v70
  %v195 = vpop.f32.mrb[0].mxu0
  %v196 = vadd.f32 %v54, %v195
  %v197 = vpop.f32.mrb[0].mxu0
  %v198 = vpop.f32.mrb[0].mxu0
  %v199 = vadd.f32 %v54, %v198
  %v200 = vpop.f32.mrb[0].mxu0
  %201 = vdwg.mxu0
  %v202 = vmax.f32 %v188, 0.0
  %v203 = vmax.f32 %v191, 0.0
  %v204 = vmax.f32 %v196, 0.0
  %v205 = vmax.f32 %v199, 0.0
  %v206 = vpack.c.bf16 %v203, %v202
  %v207 = vpack.c.bf16 %v205, %v204
  %v208 = vld [vmem:[%s3] sm:$0xf]
  %v209 = vld [vmem:[%s3 + $0x4] sm:$0xf]
  %v210 = vld [vmem:[%s4] sm:$0x1]
  %v212 = vlaneseq
  %v213 = vshrl.u32 %v212, 7
  %v214 = vsub.s32 0, %v213
  %v215 = vrot.slane %v210, %v214
  %v219 = vunpack.c.l.b16 %v208
  %v220 = vunpack.c.l.b16 %v209
  %v221 = vpack.c.b16 %v220, %v219
  %vm223 = vcmask 130048
  %v225 = vsel %vm223, %v206, 0
  %v228 = vsel %vm223, %v207, 0
  %230 = vmatprep.subr.bf16.mxu0 0
  %231 = vmatpush1.bf16.msra.mxu0 %v221
  %232 = vmatprep.subr.bf16.mxu0 0
  %233 = vmatpush1.bf16.msra.mxu0 0
  %234 = vmatprep.subr.bf16.mxu0 0
  %235 = vmatpush1.bf16.msra.mxu0 0
  %236 = vmatprep.subr.bf16.mxu0 0
  %237 = vmatpush1.bf16.msra.mxu0 0
  %238 = vmatprep.subr.bf16.mxu0 0
  %239 = vmatpush1.bf16.msra.mxu0 0
  %240 = vmatprep.subr.bf16.mxu0 0
  %241 = vmatpush1.bf16.msra.mxu0 0
  %242 = vmatprep.subr.bf16.mxu0 0
  %243 = vmatpush1.bf16.msra.mxu0 0
  %244 = vmatprep.subr.bf16.mxu0 0
  %245 = vmatpush1.bf16.msra.mxu0 0
  %246 = vmatprep.subr.bf16.mxu0 0
  %247 = vmatpush1.bf16.msra.mxu0 0
  %248 = vmatprep.subr.bf16.mxu0 0
  %249 = vmatpush1.bf16.msra.mxu0 0
  %250 = vmatprep.subr.bf16.mxu0 0
  %251 = vmatpush1.bf16.msra.mxu0 0
  %252 = vmatprep.subr.bf16.mxu0 0
  %253 = vmatpush1.bf16.msra.mxu0 0
  %254 = vmatprep.subr.bf16.mxu0 0
  %255 = vmatpush1.bf16.msra.mxu0 0
  %256 = vmatprep.subr.bf16.mxu0 0
  %257 = vmatpush1.bf16.msra.mxu0 0
  %258 = vmatprep.subr.bf16.mxu0 0
  %259 = vmatpush1.bf16.msra.mxu0 0
  %260 = vmatprep.subr.bf16.mxu0 0
  %261 = vmatpush1.bf16.msra.mxu0 0
  %262 = vmatprep.mubr.bf16.mxu0 0
  %263 = vmatmul.mubr.bf16.gmra.mrb[0].mxu0 %v225
  %v264 = vpop.f32.mrb[0].mxu0
  %v265 = vadd.f32 %v215, %v264
  %v266 = vpop.f32.mrb[0].mxu0
  %v267 = vpop.f32.mrb[0].mxu0
  %v268 = vadd.f32 %v215, %v267
  %v269 = vpop.f32.mrb[0].mxu0
  %270 = vmatprep.mubr.bf16.mxu0 0
  %271 = vmatmul.mubr.bf16.gmra.mrb[0].mxu0 %v228
  %v272 = vpop.f32.mrb[0].mxu0
  %v273 = vadd.f32 %v215, %v272
  %v274 = vpop.f32.mrb[0].mxu0
  %v275 = vpop.f32.mrb[0].mxu0
  %v276 = vadd.f32 %v215, %v275
  %v277 = vpop.f32.mrb[0].mxu0
  %278 = vdwg.mxu0
  %v279 = vpack.c.bf16 %v268, %v265
  %v280 = vpack.c.bf16 %v276, %v273
  %v283 = vunpack.c.l.b16 %v279
  %v284 = vunpack.c.h.b16 %v279
  %v285 = vunpack.c.l.b16 %v280
  %v286 = vunpack.c.h.b16 %v280
  %v287 = vpack.c.b16 %v283, %v283
  %v288 = vpack.c.b16 %v284, %v284
  %v289 = vpack.c.b16 %v285, %v285
  %v290 = vpack.c.b16 %v286, %v286
  %vm295 = vcmask 257024
  %296 = vst.msk [vmem:[%s5] sm:$0xf] %vm295, %v287
  %297 = vst.msk [vmem:[%s5 + $0x4] sm:$0xf] %vm295, %v288
  %298 = vst.msk [vmem:[%s5 + $0x8] sm:$0xf] %vm295, %v289
  %299 = vst.msk [vmem:[%s5 + $0xc] sm:$0xf] %vm295, %v290
  // Predicated region
  $region22: #{_lambda_.22} parent=0 // pred_check
    _
  $region23: #{_lambda_.22} parent=0 // pred_check_branch
    %301 = sbr.rel (0) target = $region25
  $region24: #{_lambda_.22} parent=0 // pred_region
    _
  $region25: #{_lambda_.22} parent=0 // pred_fallthru
    _
  // Predicated region
  $region26: #{_lambda_.22} parent=0 // pred_check
    _
  $region27: #{_lambda_.22} parent=0 // pred_check_branch
    %303 = sbr.rel (0) target = $region29
  $region28: #{_lambda_.22} parent=0 // pred_region
    _
  $region29: #{_lambda_.22} parent=0 // pred_fallthru
    _

// kernel: _lambda_.23
$region0: #{_lambda_.23}
  #allocation0 [shape = 'u32[]', space=smem, size = 0x4, offset = 0x4, fixed_abs, tag = 'smem constant byte address 0x4 - core index']
  #allocation1 [shape = 'u32[144,128]{1,0:T(1,128)}', space=vmem, size = 0x12000, scoped, tag = 'internal scratch']
  %s0 = inlined_call_operand.vmem [shape: bf16[32,32], index: 0, kind: input, shape index: {}]
  %s1 = inlined_call_operand.vmem [shape: bf16[32,32], index: 1, kind: input, shape index: {}]
  %s2 = inlined_call_operand.vmem [shape: bf16[32,32], index: 2, kind: input, shape index: {}]
  %s3 = inlined_call_operand.vmem [shape: f32[1,32], index: 3, kind: input, shape index: {}]
  %s4 = inlined_call_operand.vmem [shape: bf16[32,32], index: 4, kind: input, shape index: {}]
  %s5 = inlined_call_operand.vmem [shape: f32[1,32], index: 5, kind: input, shape index: {}]
  %s6 = inlined_call_operand.vmem [shape: bf16[32,32], index: 6, kind: input, shape index: {}]
  %s7 = inlined_call_operand.vmem [shape: f32[1,32], index: 7, kind: input, shape index: {}]
  %s8 = inlined_call_operand.vmem [shape: bf16[32,32], index: 8, kind: output, shape index: {0}]
  %s9 = inlined_call_operand.vmem [shape: bf16[32,32], index: 9, kind: output, shape index: {1}]
  %s10 = inlined_call_operand.vmem [shape: bf16[32,32], index: 10, kind: output, shape index: {2}]
  %11 = xla_tuple %s8, %s9, %s10
  %s12 = sld [smem:[#allocation0]]
  $region58: #{_lambda_.23} parent=0
    _
  %s14 = ssub.s32 1, %s12
  %s15 = scalar_select 0, %s14, %s12
  // Predicated region
  $region2: #{_lambda_.23} parent=0 // pred_check
    _
  $region3: #{_lambda_.23} parent=0 // pred_check_branch
    %17 = sbr.rel (0) target = $region5
  $region4: #{_lambda_.23} parent=0 // pred_region
    _
  $region5: #{_lambda_.23} parent=0 // pred_fallthru
    _
  // Predicated region
  $region6: #{_lambda_.23} parent=0 // pred_check
    _
  $region7: #{_lambda_.23} parent=0 // pred_check_branch
    %19 = sbr.rel (0) target = $region9
  $region8: #{_lambda_.23} parent=0 // pred_region
    _
  $region9: #{_lambda_.23} parent=0 // pred_fallthru
    _
  // Predicated region
  $region10: #{_lambda_.23} parent=0 // pred_check
    _
  $region11: #{_lambda_.23} parent=0 // pred_check_branch
    %21 = sbr.rel (0) target = $region13
  $region12: #{_lambda_.23} parent=0 // pred_region
    _
  $region13: #{_lambda_.23} parent=0 // pred_fallthru
    _
  // Predicated region
  $region14: #{_lambda_.23} parent=0 // pred_check
    _
  $region15: #{_lambda_.23} parent=0 // pred_check_branch
    %23 = sbr.rel (0) target = $region17
  $region16: #{_lambda_.23} parent=0 // pred_region
    _
  $region17: #{_lambda_.23} parent=0 // pred_fallthru
    _
  // Predicated region
  $region18: #{_lambda_.23} parent=0 // pred_check
    _
  $region19: #{_lambda_.23} parent=0 // pred_check_branch
    %25 = sbr.rel (0) target = $region21
  $region20: #{_lambda_.23} parent=0 // pred_region
    _
  $region21: #{_lambda_.23} parent=0 // pred_fallthru
    _
  // Predicated region
  $region22: #{_lambda_.23} parent=0 // pred_check
    _
  $region23: #{_lambda_.23} parent=0 // pred_check_branch
    %27 = sbr.rel (0) target = $region25
  $region24: #{_lambda_.23} parent=0 // pred_region
    _
  $region25: #{_lambda_.23} parent=0 // pred_fallthru
    _
  // Predicated region
  $region26: #{_lambda_.23} parent=0 // pred_check
    _
  $region27: #{_lambda_.23} parent=0 // pred_check_branch
    %29 = sbr.rel (0) target = $region29
  $region28: #{_lambda_.23} parent=0 // pred_region
    _
  $region29: #{_lambda_.23} parent=0 // pred_fallthru
    _
  // Predicated region
  $region30: #{_lambda_.23} parent=0 // pred_check
    _
  $region31: #{_lambda_.23} parent=0 // pred_check_branch
    %31 = sbr.rel (0) target = $region33
  $region32: #{_lambda_.23} parent=0 // pred_region
    _
  $region33: #{_lambda_.23} parent=0 // pred_fallthru
    _
  %v33 = vld [vmem:[%s0] sm:$0xf]
  %v34 = vld [vmem:[%s0 + $0x4] sm:$0xf]
  %v35 = vld [vmem:[%s0 + $0x8] sm:$0xf]
  %v36 = vld [vmem:[%s0 + $0xc] sm:$0xf]
  %v37 = vunpack.c.l.bf16 %v33
  %v38 = vunpack.c.l.bf16 %v34
  %v39 = vunpack.c.l.bf16 %v35
  %v40 = vunpack.c.l.bf16 %v36
  %v41 = vld [vmem:[%s1] sm:$0xf]
  %v42 = vld [vmem:[%s1 + $0x4] sm:$0xf]
  %v43 = vld [vmem:[%s1 + $0x8] sm:$0xf]
  %v44 = vld [vmem:[%s1 + $0xc] sm:$0xf]
  %v45 = vunpack.c.l.bf16 %v41
  %v46 = vunpack.c.l.bf16 %v42
  %v47 = vunpack.c.l.bf16 %v43
  %v48 = vunpack.c.l.bf16 %v44
  %v49 = vadd.f32 %v37, %v45
  %v50 = vadd.f32 %v38, %v46
  %v51 = vadd.f32 %v39, %v47
  %v52 = vadd.f32 %v40, %v48
  %v53 = vpack.c.bf16 %v50, %v49
  %v54 = vpack.c.bf16 %v52, %v51
  %v55 = vld [vmem:[%s2] sm:$0xf]
  %v56 = vld [vmem:[%s2 + $0x4] sm:$0xf]
  %v57 = vld [vmem:[%s2 + $0x8] sm:$0xf]
  %v58 = vld [vmem:[%s2 + $0xc] sm:$0xf]
  %v59 = vld [vmem:[%s3] sm:$0x1]
  %v61 = vlaneseq
  %v62 = vshrl.u32 %v61, 7
  %v63 = vsub.s32 0, %v62
  %v64 = vrot.slane %v59, %v63
  %v70 = vunpack.c.l.b16 %v55
  %v71 = vunpack.c.l.b16 %v56
  %v72 = vunpack.c.l.b16 %v57
  %v73 = vunpack.c.l.b16 %v58
  %v74 = vpack.c.b16 %v71, %v70
  %v75 = vpack.c.b16 %v73, %v72
  %vm78 = vcmask 261120
  %v80 = vsel %vm78, %v53, 0
  %v83 = vsel %vm78, %v54, 0
  %85 = vmatprep.subr.bf16.mxu0 0
  %86 = vmatpush1.bf16.msra.mxu0 %v74
  %87 = vmatprep.subr.bf16.mxu0 0
  %88 = vmatpush1.bf16.msra.mxu0 %v75
  %89 = vmatprep.subr.bf16.mxu0 0
  %90 = vmatpush1.bf16.msra.mxu0 0
  %91 = vmatprep.subr.bf16.mxu0 0
  %92 = vmatpush1.bf16.msra.mxu0 0
  %93 = vmatprep.subr.bf16.mxu0 0
  %94 = vmatpush1.bf16.msra.mxu0 0
  %95 = vmatprep.subr.bf16.mxu0 0
  %96 = vmatpush1.bf16.msra.mxu0 0
  %97 = vmatprep.subr.bf16.mxu0 0
  %98 = vmatpush1.bf16.msra.mxu0 0
  %99 = vmatprep.subr.bf16.mxu0 0
  %100 = vmatpush1.bf16.msra.mxu0 0
  %101 = vmatprep.subr.bf16.mxu0 0
  %102 = vmatpush1.bf16.msra.mxu0 0
  %103 = vmatprep.subr.bf16.mxu0 0
  %104 = vmatpush1.bf16.msra.mxu0 0
  %105 = vmatprep.subr.bf16.mxu0 0
  %106 = vmatpush1.bf16.msra.mxu0 0
  %107 = vmatprep.subr.bf16.mxu0 0
  %108 = vmatpush1.bf16.msra.mxu0 0
  %109 = vmatprep.subr.bf16.mxu0 0
  %110 = vmatpush1.bf16.msra.mxu0 0
  %111 = vmatprep.subr.bf16.mxu0 0
  %112 = vmatpush1.bf16.msra.mxu0 0
  %113 = vmatprep.subr.bf16.mxu0 0
  %114 = vmatpush1.bf16.msra.mxu0 0
  %115 = vmatprep.subr.bf16.mxu0 0
  %116 = vmatpush1.bf16.msra.mxu0 0
  %117 = vmatprep.mubr.bf16.mxu0 0
  %118 = vmatmul.mubr.bf16.gmra.mrb[0].mxu0 %v80
  %v119 = vpop.f32.mrb[0].mxu0
  %v120 = vadd.f32 %v64, %v119
  %v121 = vpop.f32.mrb[0].mxu0
  %v122 = vpop.f32.mrb[0].mxu0
  %v123 = vadd.f32 %v64, %v122
  %v124 = vpop.f32.mrb[0].mxu0
  %125 = vmatprep.mubr.bf16.mxu0 0
  %126 = vmatmul.mubr.bf16.gmra.mrb[0].mxu0 %v83
  %v127 = vpop.f32.mrb[0].mxu0
  %v128 = vadd.f32 %v64, %v127
  %v129 = vpop.f32.mrb[0].mxu0
  %v130 = vpop.f32.mrb[0].mxu0
  %v131 = vadd.f32 %v64, %v130
  %v132 = vpop.f32.mrb[0].mxu0
  %133 = vdwg.mxu0
  %v134 = vpack.c.bf16 %v123, %v120
  %v135 = vpack.c.bf16 %v131, %v128
  %v138 = vunpack.c.l.b16 %v134
  %v139 = vunpack.c.h.b16 %v134
  %v140 = vunpack.c.l.b16 %v135
  %v141 = vunpack.c.h.b16 %v135
  %v142 = vpack.c.b16 %v138, %v138
  %v143 = vpack.c.b16 %v139, %v139
  %v144 = vpack.c.b16 %v140, %v140
  %v145 = vpack.c.b16 %v141, %v141
  %vm150 = vcmask 257024
  %151 = vst.msk [vmem:[%s8] sm:$0xf] %vm150, %v142
  %152 = vst.msk [vmem:[%s8 + $0x4] sm:$0xf] %vm150, %v143
  %153 = vst.msk [vmem:[%s8 + $0x8] sm:$0xf] %vm150, %v144
  %154 = vst.msk [vmem:[%s8 + $0xc] sm:$0xf] %vm150, %v145
  %v155 = vld [vmem:[%s4] sm:$0xf]
  %v156 = vld [vmem:[%s4 + $0x4] sm:$0xf]
  %v157 = vld [vmem:[%s4 + $0x8] sm:$0xf]
  %v158 = vld [vmem:[%s4 + $0xc] sm:$0xf]
  %v159 = vld [vmem:[%s5] sm:$0x1]
  %v161 = vlaneseq
  %v162 = vshrl.u32 %v161, 7
  %v163 = vsub.s32 0, %v162
  %v164 = vrot.slane %v159, %v163
  %v170 = vunpack.c.l.b16 %v155
  %v171 = vunpack.c.l.b16 %v156
  %v172 = vunpack.c.l.b16 %v157
  %v173 = vunpack.c.l.b16 %v158
  %v174 = vpack.c.b16 %v171, %v170
  %v175 = vpack.c.b16 %v173, %v172
  %178 = vmatprep.subr.bf16.mxu0 0
  %179 = vmatpush1.bf16.msra.mxu0 %v174
  %180 = vmatprep.subr.bf16.mxu0 0
  %181 = vmatpush1.bf16.msra.mxu0 %v175
  %182 = vmatprep.subr.bf16.mxu0 0
  %183 = vmatpush1.bf16.msra.mxu0 0
  %184 = vmatprep.subr.bf16.mxu0 0
  %185 = vmatpush1.bf16.msra.mxu0 0
  %186 = vmatprep.subr.bf16.mxu0 0
  %187 = vmatpush1.bf16.msra.mxu0 0
  %188 = vmatprep.subr.bf16.mxu0 0
  %189 = vmatpush1.bf16.msra.mxu0 0
  %190 = vmatprep.subr.bf16.mxu0 0
  %191 = vmatpush1.bf16.msra.mxu0 0
  %192 = vmatprep.subr.bf16.mxu0 0
  %193 = vmatpush1.bf16.msra.mxu0 0
  %194 = vmatprep.subr.bf16.mxu0 0
  %195 = vmatpush1.bf16.msra.mxu0 0
  %196 = vmatprep.subr.bf16.mxu0 0
  %197 = vmatpush1.bf16.msra.mxu0 0
  %198 = vmatprep.subr.bf16.mxu0 0
  %199 = vmatpush1.bf16.msra.mxu0 0
  %200 = vmatprep.subr.bf16.mxu0 0
  %201 = vmatpush1.bf16.msra.mxu0 0
  %202 = vmatprep.subr.bf16.mxu0 0
  %203 = vmatpush1.bf16.msra.mxu0 0
  %204 = vmatprep.subr.bf16.mxu0 0
  %205 = vmatpush1.bf16.msra.mxu0 0
  %206 = vmatprep.subr.bf16.mxu0 0
  %207 = vmatpush1.bf16.msra.mxu0 0
  %208 = vmatprep.subr.bf16.mxu0 0
  %209 = vmatpush1.bf16.msra.mxu0 0
  %210 = vmatprep.mubr.bf16.mxu0 0
  %211 = vmatmul.mubr.bf16.gmra.mrb[0].mxu0 %v80
  %v212 = vpop.f32.mrb[0].mxu0
  %v213 = vadd.f32 %v164, %v212
  %v214 = vpop.f32.mrb[0].mxu0
  %v215 = vpop.f32.mrb[0].mxu0
  %v216 = vadd.f32 %v164, %v215
  %v217 = vpop.f32.mrb[0].mxu0
  %218 = vmatprep.mubr.bf16.mxu0 0
  %219 = vmatmul.mubr.bf16.gmra.mrb[0].mxu0 %v83
  %v220 = vpop.f32.mrb[0].mxu0
  %v221 = vadd.f32 %v164, %v220
  %v222 = vpop.f32.mrb[0].mxu0
  %v223 = vpop.f32.mrb[0].mxu0
  %v224 = vadd.f32 %v164, %v223
  %v225 = vpop.f32.mrb[0].mxu0
  %226 = vdwg.mxu0
  %v227 = vpack.c.bf16 %v216, %v213
  %v228 = vpack.c.bf16 %v224, %v221
  %v231 = vunpack.c.l.b16 %v227
  %v232 = vunpack.c.h.b16 %v227
  %v233 = vunpack.c.l.b16 %v228
  %v234 = vunpack.c.h.b16 %v228
  %v235 = vpack.c.b16 %v231, %v231
  %v236 = vpack.c.b16 %v232, %v232
  %v237 = vpack.c.b16 %v233, %v233
  %v238 = vpack.c.b16 %v234, %v234
  %243 = vst.msk [vmem:[%s9] sm:$0xf] %vm150, %v235
  %244 = vst.msk [vmem:[%s9 + $0x4] sm:$0xf] %vm150, %v236
  %245 = vst.msk [vmem:[%s9 + $0x8] sm:$0xf] %vm150, %v237
  %246 = vst.msk [vmem:[%s9 + $0xc] sm:$0xf] %vm150, %v238
  %v247 = vld [vmem:[%s6] sm:$0xf]
  %v248 = vld [vmem:[%s6 + $0x4] sm:$0xf]
  %v249 = vld [vmem:[%s6 + $0x8] sm:$0xf]
  %v250 = vld [vmem:[%s6 + $0xc] sm:$0xf]
  %v251 = vld [vmem:[%s7] sm:$0x1]
  %v253 = vlaneseq
  %v254 = vshrl.u32 %v253, 7
  %v255 = vsub.s32 0, %v254
  %v256 = vrot.slane %v251, %v255
  %v262 = vunpack.c.l.b16 %v33
  %v263 = vunpack.c.l.b16 %v34
  %v264 = vunpack.c.l.b16 %v35
  %v265 = vunpack.c.l.b16 %v36
  %v266 = vpack.c.b16 %v263, %v262
  %v267 = vpack.c.b16 %v265, %v264
  %v272 = vunpack.c.l.b16 %v247
  %v273 = vunpack.c.l.b16 %v248
  %v274 = vunpack.c.l.b16 %v249
  %v275 = vunpack.c.l.b16 %v250
  %v276 = vpack.c.b16 %v273, %v272
  %v277 = vpack.c.b16 %v275, %v274
  %v281 = vsel %vm78, %v266, 0
  %v284 = vsel %vm78, %v267, 0
  %286 = vmatprep.subr.bf16.mxu0 0
  %287 = vmatpush1.bf16.msra.mxu0 %v276
  %288 = vmatprep.subr.bf16.mxu0 0
  %289 = vmatpush1.bf16.msra.mxu0 %v277
  %290 = vmatprep.subr.bf16.mxu0 0
  %291 = vmatpush1.bf16.msra.mxu0 0
  %292 = vmatprep.subr.bf16.mxu0 0
  %293 = vmatpush1.bf16.msra.mxu0 0
  %294 = vmatprep.subr.bf16.mxu0 0
  %295 = vmatpush1.bf16.msra.mxu0 0
  %296 = vmatprep.subr.bf16.mxu0 0
  %297 = vmatpush1.bf16.msra.mxu0 0
  %298 = vmatprep.subr.bf16.mxu0 0
  %299 = vmatpush1.bf16.msra.mxu0 0
  %300 = vmatprep.subr.bf16.mxu0 0
  %301 = vmatpush1.bf16.msra.mxu0 0
  %302 = vmatprep.subr.bf16.mxu0 0
  %303 = vmatpush1.bf16.msra.mxu0 0
  %304 = vmatprep.subr.bf16.mxu0 0
  %305 = vmatpush1.bf16.msra.mxu0 0
  %306 = vmatprep.subr.bf16.mxu0 0
  %307 = vmatpush1.bf16.msra.mxu0 0
  %308 = vmatprep.subr.bf16.mxu0 0
  %309 = vmatpush1.bf16.msra.mxu0 0
  %310 = vmatprep.subr.bf16.mxu0 0
  %311 = vmatpush1.bf16.msra.mxu0 0
  %312 = vmatprep.subr.bf16.mxu0 0
  %313 = vmatpush1.bf16.msra.mxu0 0
  %314 = vmatprep.subr.bf16.mxu0 0
  %315 = vmatpush1.bf16.msra.mxu0 0
  %316 = vmatprep.subr.bf16.mxu0 0
  %317 = vmatpush1.bf16.msra.mxu0 0
  %318 = vmatprep.mubr.bf16.mxu0 0
  %319 = vmatmul.mubr.bf16.gmra.mrb[0].mxu0 %v281
  %v320 = vpop.f32.mrb[0].mxu0
  %v321 = vadd.f32 %v256, %v320
  %v322 = vpop.f32.mrb[0].mxu0
  %v323 = vpop.f32.mrb[0].mxu0
  %v324 = vadd.f32 %v256, %v323
  %v325 = vpop.f32.mrb[0].mxu0
  %326 = vmatprep.mubr.bf16.mxu0 0
  %327 = vmatmul.mubr.bf16.gmra.mrb[0].mxu0 %v284
  %v328 = vpop.f32.mrb[0].mxu0
  %v329 = vadd.f32 %v256, %v328
  %v330 = vpop.f32.mrb[0].mxu0
  %v331 = vpop.f32.mrb[0].mxu0
  %v332 = vadd.f32 %v256, %v331
  %v333 = vpop.f32.mrb[0].mxu0
  %334 = vdwg.mxu0
  %v335 = vpack.c.bf16 %v324, %v321
  %v336 = vpack.c.bf16 %v332, %v329
  %v339 = vunpack.c.l.b16 %v335
  %v340 = vunpack.c.h.b16 %v335
  %v341 = vunpack.c.l.b16 %v336
  %v342 = vunpack.c.h.b16 %v336
  %v343 = vpack.c.b16 %v339, %v339
  %v344 = vpack.c.b16 %v340, %v340
  %v345 = vpack.c.b16 %v341, %v341
  %v346 = vpack.c.b16 %v342, %v342
  %351 = vst.msk [vmem:[%s10] sm:$0xf] %vm150, %v343
  %352 = vst.msk [vmem:[%s10 + $0x4] sm:$0xf] %vm150, %v344
  %353 = vst.msk [vmem:[%s10 + $0x8] sm:$0xf] %vm150, %v345
  %354 = vst.msk [vmem:[%s10 + $0xc] sm:$0xf] %vm150, %v346
  // Predicated region
  $region34: #{_lambda_.23} parent=0 // pred_check
    _
  $region35: #{_lambda_.23} parent=0 // pred_check_branch
    %356 = sbr.rel (0) target = $region37
  $region36: #{_lambda_.23} parent=0 // pred_region
    _
  $region37: #{_lambda_.23} parent=0 // pred_fallthru
    _
  // Predicated region
  $region38: #{_lambda_.23} parent=0 // pred_check
    _
  $region39: #{_lambda_.23} parent=0 // pred_check_branch
    %358 = sbr.rel (0) target = $region41
  $region40: #{_lambda_.23} parent=0 // pred_region
    _
  $region41: #{_lambda_.23} parent=0 // pred_fallthru
    _
  // Predicated region
  $region42: #{_lambda_.23} parent=0 // pred_check
    _
  $region43: #{_lambda_.23} parent=0 // pred_check_branch
    %360 = sbr.rel (0) target = $region45
  $region44: #{_lambda_.23} parent=0 // pred_region
    _
  $region45: #{_lambda_.23} parent=0 // pred_fallthru
    _
  // Predicated region
  $region46: #{_lambda_.23} parent=0 // pred_check
    _
  $region47: #{_lambda_.23} parent=0 // pred_check_branch
    %362 = sbr.rel (0) target = $region49
  $region48: #{_lambda_.23} parent=0 // pred_region
    _
  $region49: #{_lambda_.23} parent=0 // pred_fallthru
    _
  // Predicated region
  $region50: #{_lambda_.23} parent=0 // pred_check
    _
  $region51: #{_lambda_.23} parent=0 // pred_check_branch
    %364 = sbr.rel (0) target = $region53
  $region52: #{_lambda_.23} parent=0 // pred_region
    _
  $region53: #{_lambda_.23} parent=0 // pred_fallthru
    _
  // Predicated region
  $region54: #{_lambda_.23} parent=0 // pred_check
    _
  $region55: #{_lambda_.23} parent=0 // pred_check_branch
    %366 = sbr.rel (0) target = $region57
  $region56: #{_lambda_.23} parent=0 // pred_region
    _
  $region57: #{_lambda_.23} parent=0 // pred_fallthru
    _

// kernel: _lambda_.29
$region0: #{_lambda_.29}
  #allocation0 [shape = 'u32[]', space=smem, size = 0x4, offset = 0x4, fixed_abs, tag = 'smem constant byte address 0x4 - core index']
  #allocation1 [shape = 'u32[144,128]{1,0:T(1,128)}', space=vmem, size = 0x12000, scoped, tag = 'internal scratch']
  %s0 = inlined_call_operand.vmem [shape: bf16[16,32], index: 0, kind: input, shape index: {}]
  %s1 = inlined_call_operand.vmem [shape: bf16[16,32], index: 1, kind: input, shape index: {}]
  %s2 = inlined_call_operand.vmem [shape: bf16[32,32], index: 2, kind: input, shape index: {}]
  %s3 = inlined_call_operand.vmem [shape: f32[1,32], index: 3, kind: input, shape index: {}]
  %s4 = inlined_call_operand.vmem [shape: bf16[32,32], index: 4, kind: input, shape index: {}]
  %s5 = inlined_call_operand.vmem [shape: f32[1,32], index: 5, kind: input, shape index: {}]
  %s6 = inlined_call_operand.vmem [shape: bf16[32,32], index: 6, kind: input, shape index: {}]
  %s7 = inlined_call_operand.vmem [shape: f32[1,32], index: 7, kind: input, shape index: {}]
  %s8 = inlined_call_operand.vmem [shape: bf16[16,32], index: 8, kind: output, shape index: {0}]
  %s9 = inlined_call_operand.vmem [shape: bf16[16,32], index: 9, kind: output, shape index: {1}]
  %s10 = inlined_call_operand.vmem [shape: bf16[16,32], index: 10, kind: output, shape index: {2}]
  %11 = xla_tuple %s8, %s9, %s10
  %s12 = sld [smem:[#allocation0]]
  $region58: #{_lambda_.29} parent=0
    _
  %s14 = ssub.s32 1, %s12
  %s15 = scalar_select 0, %s14, %s12
  // Predicated region
  $region2: #{_lambda_.29} parent=0 // pred_check
    _
  $region3: #{_lambda_.29} parent=0 // pred_check_branch
    %17 = sbr.rel (0) target = $region5
  $region4: #{_lambda_.29} parent=0 // pred_region
    _
  $region5: #{_lambda_.29} parent=0 // pred_fallthru
    _
  // Predicated region
  $region6: #{_lambda_.29} parent=0 // pred_check
    _
  $region7: #{_lambda_.29} parent=0 // pred_check_branch
    %19 = sbr.rel (0) target = $region9
  $region8: #{_lambda_.29} parent=0 // pred_region
    _
  $region9: #{_lambda_.29} parent=0 // pred_fallthru
    _
  // Predicated region
  $region10: #{_lambda_.29} parent=0 // pred_check
    _
  $region11: #{_lambda_.29} parent=0 // pred_check_branch
    %21 = sbr.rel (0) target = $region13
  $region12: #{_lambda_.29} parent=0 // pred_region
    _
  $region13: #{_lambda_.29} parent=0 // pred_fallthru
    _
  // Predicated region
  $region14: #{_lambda_.29} parent=0 // pred_check
    _
  $region15: #{_lambda_.29} parent=0 // pred_check_branch
    %23 = sbr.rel (0) target = $region17
  $region16: #{_lambda_.29} parent=0 // pred_region
    _
  $region17: #{_lambda_.29} parent=0 // pred_fallthru
    _
  // Predicated region
  $region18: #{_lambda_.29} parent=0 // pred_check
    _
  $region19: #{_lambda_.29} parent=0 // pred_check_branch
    %25 = sbr.rel (0) target = $region21
  $region20: #{_lambda_.29} parent=0 // pred_region
    _
  $region21: #{_lambda_.29} parent=0 // pred_fallthru
    _
  // Predicated region
  $region22: #{_lambda_.29} parent=0 // pred_check
    _
  $region23: #{_lambda_.29} parent=0 // pred_check_branch
    %27 = sbr.rel (0) target = $region25
  $region24: #{_lambda_.29} parent=0 // pred_region
    _
  $region25: #{_lambda_.29} parent=0 // pred_fallthru
    _
  // Predicated region
  $region26: #{_lambda_.29} parent=0 // pred_check
    _
  $region27: #{_lambda_.29} parent=0 // pred_check_branch
    %29 = sbr.rel (0) target = $region29
  $region28: #{_lambda_.29} parent=0 // pred_region
    _
  $region29: #{_lambda_.29} parent=0 // pred_fallthru
    _
  // Predicated region
  $region30: #{_lambda_.29} parent=0 // pred_check
    _
  $region31: #{_lambda_.29} parent=0 // pred_check_branch
    %31 = sbr.rel (0) target = $region33
  $region32: #{_lambda_.29} parent=0 // pred_region
    _
  $region33: #{_lambda_.29} parent=0 // pred_fallthru
    _
  %v33 = vld [vmem:[%s0] sm:$0xf]
  %v34 = vld [vmem:[%s0 + $0x4] sm:$0xf]
  %v35 = vunpack.c.l.bf16 %v33
  %v36 = vunpack.c.l.bf16 %v34
  %v37 = vld [vmem:[%s1] sm:$0xf]
  %v38 = vld [vmem:[%s1 + $0x4] sm:$0xf]
  %v39 = vunpack.c.l.bf16 %v37
  %v40 = vunpack.c.l.bf16 %v38
  %v41 = vadd.f32 %v35, %v39
  %v42 = vadd.f32 %v36, %v40
  %v43 = vpack.c.bf16 %v42, %v41
  %v44 = vld [vmem:[%s2] sm:$0xf]
  %v45 = vld [vmem:[%s2 + $0x4] sm:$0xf]
  %v46 = vld [vmem:[%s2 + $0x8] sm:$0xf]
  %v47 = vld [vmem:[%s2 + $0xc] sm:$0xf]
  %v48 = vld [vmem:[%s3] sm:$0x1]
  %v50 = vlaneseq
  %v51 = vshrl.u32 %v50, 7
  %v52 = vsub.s32 0, %v51
  %v53 = vrot.slane %v48, %v52
  %v59 = vunpack.c.l.b16 %v44
  %v60 = vunpack.c.l.b16 %v45
  %v61 = vunpack.c.l.b16 %v46
  %v62 = vunpack.c.l.b16 %v47
  %v63 = vpack.c.b16 %v60, %v59
  %v64 = vpack.c.b16 %v62, %v61
  %vm67 = vcmask 261120
  %v69 = vsel %vm67, %v43, 0
  %71 = vmatprep.subr.bf16.mxu0 0
  %72 = vmatpush1.bf16.msra.mxu0 %v63
  %73 = vmatprep.subr.bf16.mxu0 0
  %74 = vmatpush1.bf16.msra.mxu0 %v64
  %75 = vmatprep.subr.bf16.mxu0 0
  %76 = vmatpush1.bf16.msra.mxu0 0
  %77 = vmatprep.subr.bf16.mxu0 0
  %78 = vmatpush1.bf16.msra.mxu0 0
  %79 = vmatprep.subr.bf16.mxu0 0
  %80 = vmatpush1.bf16.msra.mxu0 0
  %81 = vmatprep.subr.bf16.mxu0 0
  %82 = vmatpush1.bf16.msra.mxu0 0
  %83 = vmatprep.subr.bf16.mxu0 0
  %84 = vmatpush1.bf16.msra.mxu0 0
  %85 = vmatprep.subr.bf16.mxu0 0
  %86 = vmatpush1.bf16.msra.mxu0 0
  %87 = vmatprep.subr.bf16.mxu0 0
  %88 = vmatpush1.bf16.msra.mxu0 0
  %89 = vmatprep.subr.bf16.mxu0 0
  %90 = vmatpush1.bf16.msra.mxu0 0
  %91 = vmatprep.subr.bf16.mxu0 0
  %92 = vmatpush1.bf16.msra.mxu0 0
  %93 = vmatprep.subr.bf16.mxu0 0
  %94 = vmatpush1.bf16.msra.mxu0 0
  %95 = vmatprep.subr.bf16.mxu0 0
  %96 = vmatpush1.bf16.msra.mxu0 0
  %97 = vmatprep.subr.bf16.mxu0 0
  %98 = vmatpush1.bf16.msra.mxu0 0
  %99 = vmatprep.subr.bf16.mxu0 0
  %100 = vmatpush1.bf16.msra.mxu0 0
  %101 = vmatprep.subr.bf16.mxu0 0
  %102 = vmatpush1.bf16.msra.mxu0 0
  %103 = vmatprep.mubr.bf16.mxu0 0
  %104 = vmatmul.mubr.bf16.gmra.mrb[0].mxu0 %v69
  %v105 = vpop.f32.mrb[0].mxu0
  %v106 = vadd.f32 %v53, %v105
  %v107 = vpop.f32.mrb[0].mxu0
  %v108 = vpop.f32.mrb[0].mxu0
  %v109 = vadd.f32 %v53, %v108
  %v110 = vpop.f32.mrb[0].mxu0
  %111 = vdwg.mxu0
  %v112 = vpack.c.bf16 %v109, %v106
  %v114 = vunpack.c.l.b16 %v112
  %v115 = vunpack.c.h.b16 %v112
  %v116 = vpack.c.b16 %v114, %v114
  %v117 = vpack.c.b16 %v115, %v115
  %vm120 = vcmask 257024
  %121 = vst.msk [vmem:[%s8] sm:$0xf] %vm120, %v116
  %122 = vst.msk [vmem:[%s8 + $0x4] sm:$0xf] %vm120, %v117
  %v123 = vld [vmem:[%s4] sm:$0xf]
  %v124 = vld [vmem:[%s4 + $0x4] sm:$0xf]
  %v125 = vld [vmem:[%s4 + $0x8] sm:$0xf]
  %v126 = vld [vmem:[%s4 + $0xc] sm:$0xf]
  %v127 = vld [vmem:[%s5] sm:$0x1]
  %v129 = vlaneseq
  %v130 = vshrl.u32 %v129, 7
  %v131 = vsub.s32 0, %v130
  %v132 = vrot.slane %v127, %v131
  %v138 = vunpack.c.l.b16 %v123
  %v139 = vunpack.c.l.b16 %v124
  %v140 = vunpack.c.l.b16 %v125
  %v141 = vunpack.c.l.b16 %v126
  %v142 = vpack.c.b16 %v139, %v138
  %v143 = vpack.c.b16 %v141, %v140
  %146 = vmatprep.subr.bf16.mxu0 0
  %147 = vmatpush1.bf16.msra.mxu0 %v142
  %148 = vmatprep.subr.bf16.mxu0 0
  %149 = vmatpush1.bf16.msra.mxu0 %v143
  %150 = vmatprep.subr.bf16.mxu0 0
  %151 = vmatpush1.bf16.msra.mxu0 0
  %152 = vmatprep.subr.bf16.mxu0 0
  %153 = vmatpush1.bf16.msra.mxu0 0
  %154 = vmatprep.subr.bf16.mxu0 0
  %155 = vmatpush1.bf16.msra.mxu0 0
  %156 = vmatprep.subr.bf16.mxu0 0
  %157 = vmatpush1.bf16.msra.mxu0 0
  %158 = vmatprep.subr.bf16.mxu0 0
  %159 = vmatpush1.bf16.msra.mxu0 0
  %160 = vmatprep.subr.bf16.mxu0 0
  %161 = vmatpush1.bf16.msra.mxu0 0
  %162 = vmatprep.subr.bf16.mxu0 0
  %163 = vmatpush1.bf16.msra.mxu0 0
  %164 = vmatprep.subr.bf16.mxu0 0
  %165 = vmatpush1.bf16.msra.mxu0 0
  %166 = vmatprep.subr.bf16.mxu0 0
  %167 = vmatpush1.bf16.msra.mxu0 0
  %168 = vmatprep.subr.bf16.mxu0 0
  %169 = vmatpush1.bf16.msra.mxu0 0
  %170 = vmatprep.subr.bf16.mxu0 0
  %171 = vmatpush1.bf16.msra.mxu0 0
  %172 = vmatprep.subr.bf16.mxu0 0
  %173 = vmatpush1.bf16.msra.mxu0 0
  %174 = vmatprep.subr.bf16.mxu0 0
  %175 = vmatpush1.bf16.msra.mxu0 0
  %176 = vmatprep.subr.bf16.mxu0 0
  %177 = vmatpush1.bf16.msra.mxu0 0
  %178 = vmatprep.mubr.bf16.mxu0 0
  %179 = vmatmul.mubr.bf16.gmra.mrb[0].mxu0 %v69
  %v180 = vpop.f32.mrb[0].mxu0
  %v181 = vadd.f32 %v132, %v180
  %v182 = vpop.f32.mrb[0].mxu0
  %v183 = vpop.f32.mrb[0].mxu0
  %v184 = vadd.f32 %v132, %v183
  %v185 = vpop.f32.mrb[0].mxu0
  %186 = vdwg.mxu0
  %v187 = vpack.c.bf16 %v184, %v181
  %v189 = vunpack.c.l.b16 %v187
  %v190 = vunpack.c.h.b16 %v187
  %v191 = vpack.c.b16 %v189, %v189
  %v192 = vpack.c.b16 %v190, %v190
  %195 = vst.msk [vmem:[%s9] sm:$0xf] %vm120, %v191
  %196 = vst.msk [vmem:[%s9 + $0x4] sm:$0xf] %vm120, %v192
  %v197 = vld [vmem:[%s6] sm:$0xf]
  %v198 = vld [vmem:[%s6 + $0x4] sm:$0xf]
  %v199 = vld [vmem:[%s6 + $0x8] sm:$0xf]
  %v200 = vld [vmem:[%s6 + $0xc] sm:$0xf]
  %v201 = vld [vmem:[%s7] sm:$0x1]
  %v203 = vlaneseq
  %v204 = vshrl.u32 %v203, 7
  %v205 = vsub.s32 0, %v204
  %v206 = vrot.slane %v201, %v205
  %v210 = vunpack.c.l.b16 %v33
  %v211 = vunpack.c.l.b16 %v34
  %v212 = vpack.c.b16 %v211, %v210
  %v217 = vunpack.c.l.b16 %v197
  %v218 = vunpack.c.l.b16 %v198
  %v219 = vunpack.c.l.b16 %v199
  %v220 = vunpack.c.l.b16 %v200
  %v221 = vpack.c.b16 %v218, %v217
  %v222 = vpack.c.b16 %v220, %v219
  %v226 = vsel %vm67, %v212, 0
  %228 = vmatprep.subr.bf16.mxu0 0
  %229 = vmatpush1.bf16.msra.mxu0 %v221
  %230 = vmatprep.subr.bf16.mxu0 0
  %231 = vmatpush1.bf16.msra.mxu0 %v222
  %232 = vmatprep.subr.bf16.mxu0 0
  %233 = vmatpush1.bf16.msra.mxu0 0
  %234 = vmatprep.subr.bf16.mxu0 0
  %235 = vmatpush1.bf16.msra.mxu0 0
  %236 = vmatprep.subr.bf16.mxu0 0
  %237 = vmatpush1.bf16.msra.mxu0 0
  %238 = vmatprep.subr.bf16.mxu0 0
  %239 = vmatpush1.bf16.msra.mxu0 0
  %240 = vmatprep.subr.bf16.mxu0 0
  %241 = vmatpush1.bf16.msra.mxu0 0
  %242 = vmatprep.subr.bf16.mxu0 0
  %243 = vmatpush1.bf16.msra.mxu0 0
  %244 = vmatprep.subr.bf16.mxu0 0
  %245 = vmatpush1.bf16.msra.mxu0 0
  %246 = vmatprep.subr.bf16.mxu0 0
  %247 = vmatpush1.bf16.msra.mxu0 0
  %248 = vmatprep.subr.bf16.mxu0 0
  %249 = vmatpush1.bf16.msra.mxu0 0
  %250 = vmatprep.subr.bf16.mxu0 0
  %251 = vmatpush1.bf16.msra.mxu0 0
  %252 = vmatprep.subr.bf16.mxu0 0
  %253 = vmatpush1.bf16.msra.mxu0 0
  %254 = vmatprep.subr.bf16.mxu0 0
  %255 = vmatpush1.bf16.msra.mxu0 0
  %256 = vmatprep.subr.bf16.mxu0 0
  %257 = vmatpush1.bf16.msra.mxu0 0
  %258 = vmatprep.subr.bf16.mxu0 0
  %259 = vmatpush1.bf16.msra.mxu0 0
  %260 = vmatprep.mubr.bf16.mxu0 0
  %261 = vmatmul.mubr.bf16.gmra.mrb[0].mxu0 %v226
  %v262 = vpop.f32.mrb[0].mxu0
  %v263 = vadd.f32 %v206, %v262
  %v264 = vpop.f32.mrb[0].mxu0
  %v265 = vpop.f32.mrb[0].mxu0
  %v266 = vadd.f32 %v206, %v265
  %v267 = vpop.f32.mrb[0].mxu0
  %268 = vdwg.mxu0
  %v269 = vpack.c.bf16 %v266, %v263
  %v271 = vunpack.c.l.b16 %v269
  %v272 = vunpack.c.h.b16 %v269
  %v273 = vpack.c.b16 %v271, %v271
  %v274 = vpack.c.b16 %v272, %v272
  %277 = vst.msk [vmem:[%s10] sm:$0xf] %vm120, %v273
  %278 = vst.msk [vmem:[%s10 + $0x4] sm:$0xf] %vm120, %v274
  // Predicated region
  $region34: #{_lambda_.29} parent=0 // pred_check
    _
  $region35: #{_lambda_.29} parent=0 // pred_check_branch
    %280 = sbr.rel (0) target = $region37
  $region36: #{_lambda_.29} parent=0 // pred_region
    _
  $region37: #{_lambda_.29} parent=0 // pred_fallthru
    _
  // Predicated region
  $region38: #{_lambda_.29} parent=0 // pred_check
    _
  $region39: #{_lambda_.29} parent=0 // pred_check_branch
    %282 = sbr.rel (0) target = $region41
  $region40: #{_lambda_.29} parent=0 // pred_region
    _
  $region41: #{_lambda_.29} parent=0 // pred_fallthru
    _
  // Predicated region
  $region42: #{_lambda_.29} parent=0 // pred_check
    _
  $region43: #{_lambda_.29} parent=0 // pred_check_branch
    %284 = sbr.rel (0) target = $region45
  $region44: #{_lambda_.29} parent=0 // pred_region
    _
  $region45: #{_lambda_.29} parent=0 // pred_fallthru
    _
  // Predicated region
  $region46: #{_lambda_.29} parent=0 // pred_check
    _
  $region47: #{_lambda_.29} parent=0 // pred_check_branch
    %286 = sbr.rel (0) target = $region49
  $region48: #{_lambda_.29} parent=0 // pred_region
    _
  $region49: #{_lambda_.29} parent=0 // pred_fallthru
    _
  // Predicated region
  $region50: #{_lambda_.29} parent=0 // pred_check
    _
  $region51: #{_lambda_.29} parent=0 // pred_check_branch
    %288 = sbr.rel (0) target = $region53
  $region52: #{_lambda_.29} parent=0 // pred_region
    _
  $region53: #{_lambda_.29} parent=0 // pred_fallthru
    _
  // Predicated region
  $region54: #{_lambda_.29} parent=0 // pred_check
    _
  $region55: #{_lambda_.29} parent=0 // pred_check_branch
    %290 = sbr.rel (0) target = $region57
  $region56: #{_lambda_.29} parent=0 // pred_region
    _
  $region57: #{_lambda_.29} parent=0 // pred_fallthru
    _

// kernel: _lambda_.25
$region0: #{_lambda_.25}
  #allocation0 [shape = 'u32[]', space=smem, size = 0x4, offset = 0x4, fixed_abs, tag = 'smem constant byte address 0x4 - core index']
  #allocation1 [shape = 'u32[144,128]{1,0:T(1,128)}', space=vmem, size = 0x12000, scoped, tag = 'internal scratch']
  %s0 = inlined_call_operand.vmem [shape: bf16[32,32], index: 0, kind: input, shape index: {}]
  %s1 = inlined_call_operand.vmem [shape: bf16[32,64], index: 1, kind: input, shape index: {}]
  %s2 = inlined_call_operand.vmem [shape: f32[1,64], index: 2, kind: input, shape index: {}]
  %s3 = inlined_call_operand.vmem [shape: bf16[64,32], index: 3, kind: input, shape index: {}]
  %s4 = inlined_call_operand.vmem [shape: f32[1,32], index: 4, kind: input, shape index: {}]
  %s5 = inlined_call_operand.vmem [shape: f32[1,32], index: 5, kind: input, shape index: {}]
  %s6 = inlined_call_operand.vmem [shape: f32[1,32], index: 6, kind: input, shape index: {}]
  %s7 = inlined_call_operand.vmem [shape: bf16[32,32], index: 7, kind: output, shape index: {}]
  %s8 = sld [smem:[#allocation0]]
  $region38: #{_lambda_.25} parent=0
    _
  %s10 = ssub.s32 1, %s8
  %s11 = scalar_select 0, %s10, %s8
  // Predicated region
  $region2: #{_lambda_.25} parent=0 // pred_check
    _
  $region3: #{_lambda_.25} parent=0 // pred_check_branch
    %13 = sbr.rel (0) target = $region5
  $region4: #{_lambda_.25} parent=0 // pred_region
    _
  $region5: #{_lambda_.25} parent=0 // pred_fallthru
    _
  // Predicated region
  $region6: #{_lambda_.25} parent=0 // pred_check
    _
  $region7: #{_lambda_.25} parent=0 // pred_check_branch
    %15 = sbr.rel (0) target = $region9
  $region8: #{_lambda_.25} parent=0 // pred_region
    _
  $region9: #{_lambda_.25} parent=0 // pred_fallthru
    _
  // Predicated region
  $region10: #{_lambda_.25} parent=0 // pred_check
    _
  $region11: #{_lambda_.25} parent=0 // pred_check_branch
    %17 = sbr.rel (0) target = $region13
  $region12: #{_lambda_.25} parent=0 // pred_region
    _
  $region13: #{_lambda_.25} parent=0 // pred_fallthru
    _
  // Predicated region
  $region14: #{_lambda_.25} parent=0 // pred_check
    _
  $region15: #{_lambda_.25} parent=0 // pred_check_branch
    %19 = sbr.rel (0) target = $region17
  $region16: #{_lambda_.25} parent=0 // pred_region
    _
  $region17: #{_lambda_.25} parent=0 // pred_fallthru
    _
  // Predicated region
  $region18: #{_lambda_.25} parent=0 // pred_check
    _
  $region19: #{_lambda_.25} parent=0 // pred_check_branch
    %21 = sbr.rel (0) target = $region21
  $region20: #{_lambda_.25} parent=0 // pred_region
    _
  $region21: #{_lambda_.25} parent=0 // pred_fallthru
    _
  // Predicated region
  $region22: #{_lambda_.25} parent=0 // pred_check
    _
  $region23: #{_lambda_.25} parent=0 // pred_check_branch
    %23 = sbr.rel (0) target = $region25
  $region24: #{_lambda_.25} parent=0 // pred_region
    _
  $region25: #{_lambda_.25} parent=0 // pred_fallthru
    _
  // Predicated region
  $region26: #{_lambda_.25} parent=0 // pred_check
    _
  $region27: #{_lambda_.25} parent=0 // pred_check_branch
    %25 = sbr.rel (0) target = $region29
  $region28: #{_lambda_.25} parent=0 // pred_region
    _
  $region29: #{_lambda_.25} parent=0 // pred_fallthru
    _
  %v27 = vld [vmem:[%s0] sm:$0xf]
  %v28 = vld [vmem:[%s0 + $0x4] sm:$0xf]
  %v29 = vld [vmem:[%s0 + $0x8] sm:$0xf]
  %v30 = vld [vmem:[%s0 + $0xc] sm:$0xf]
  %v31 = vld [vmem:[%s1] sm:$0xf]
  %v32 = vld [vmem:[%s1 + $0x4] sm:$0xf]
  %v33 = vld [vmem:[%s1 + $0x8] sm:$0xf]
  %v34 = vld [vmem:[%s1 + $0xc] sm:$0xf]
  %v35 = vld [vmem:[%s2] sm:$0x1]
  %v37 = vlaneseq
  %v38 = vshrl.u32 %v37, 7
  %v39 = vsub.s32 0, %v38
  %v40 = vrot.slane %v35, %v39
  %v46 = vunpack.c.l.b16 %v27
  %v47 = vunpack.c.l.b16 %v28
  %v48 = vunpack.c.l.b16 %v29
  %v49 = vunpack.c.l.b16 %v30
  %v50 = vpack.c.b16 %v47, %v46
  %v51 = vpack.c.b16 %v49, %v48
  %v56 = vunpack.c.l.b16 %v31
  %v57 = vunpack.c.l.b16 %v32
  %v58 = vunpack.c.l.b16 %v33
  %v59 = vunpack.c.l.b16 %v34
  %v60 = vpack.c.b16 %v57, %v56
  %v61 = vpack.c.b16 %v59, %v58
  %vm64 = vcmask 261120
  %v66 = vsel %vm64, %v50, 0
  %v69 = vsel %vm64, %v51, 0
  %71 = vmatprep.subr.bf16.mxu0 0
  %72 = vmatpush1.bf16.msra.mxu0 %v60
  %73 = vmatprep.subr.bf16.mxu0 0
  %74 = vmatpush1.bf16.msra.mxu0 %v61
  %75 = vmatprep.subr.bf16.mxu0 0
  %76 = vmatpush1.bf16.msra.mxu0 0
  %77 = vmatprep.subr.bf16.mxu0 0
  %78 = vmatpush1.bf16.msra.mxu0 0
  %79 = vmatprep.subr.bf16.mxu0 0
  %80 = vmatpush1.bf16.msra.mxu0 0
  %81 = vmatprep.subr.bf16.mxu0 0
  %82 = vmatpush1.bf16.msra.mxu0 0
  %83 = vmatprep.subr.bf16.mxu0 0
  %84 = vmatpush1.bf16.msra.mxu0 0
  %85 = vmatprep.subr.bf16.mxu0 0
  %86 = vmatpush1.bf16.msra.mxu0 0
  %87 = vmatprep.subr.bf16.mxu0 0
  %88 = vmatpush1.bf16.msra.mxu0 0
  %89 = vmatprep.subr.bf16.mxu0 0
  %90 = vmatpush1.bf16.msra.mxu0 0
  %91 = vmatprep.subr.bf16.mxu0 0
  %92 = vmatpush1.bf16.msra.mxu0 0
  %93 = vmatprep.subr.bf16.mxu0 0
  %94 = vmatpush1.bf16.msra.mxu0 0
  %95 = vmatprep.subr.bf16.mxu0 0
  %96 = vmatpush1.bf16.msra.mxu0 0
  %97 = vmatprep.subr.bf16.mxu0 0
  %98 = vmatpush1.bf16.msra.mxu0 0
  %99 = vmatprep.subr.bf16.mxu0 0
  %100 = vmatpush1.bf16.msra.mxu0 0
  %101 = vmatprep.subr.bf16.mxu0 0
  %102 = vmatpush1.bf16.msra.mxu0 0
  %103 = vmatprep.mubr.bf16.mxu0 0
  %104 = vmatmul.mubr.bf16.gmra.mrb[0].mxu0 %v66
  %v105 = vpop.f32.mrb[0].mxu0
  %v106 = vadd.f32 %v40, %v105
  %v107 = vpop.f32.mrb[0].mxu0
  %v108 = vpop.f32.mrb[0].mxu0
  %v109 = vadd.f32 %v40, %v108
  %v110 = vpop.f32.mrb[0].mxu0
  %111 = vmatprep.mubr.bf16.mxu0 0
  %112 = vmatmul.mubr.bf16.gmra.mrb[0].mxu0 %v69
  %v113 = vpop.f32.mrb[0].mxu0
  %v114 = vadd.f32 %v40, %v113
  %v115 = vpop.f32.mrb[0].mxu0
  %v116 = vpop.f32.mrb[0].mxu0
  %v117 = vadd.f32 %v40, %v116
  %v118 = vpop.f32.mrb[0].mxu0
  %119 = vdwg.mxu0
  %v120 = vmax.f32 %v106, 0.0
  %v121 = vmax.f32 %v109, 0.0
  %v122 = vmax.f32 %v114, 0.0
  %v123 = vmax.f32 %v117, 0.0
  %v124 = vpack.c.bf16 %v121, %v120
  %v125 = vpack.c.bf16 %v123, %v122
  %v126 = vld [vmem:[%s3] sm:$0xf]
  %v127 = vld [vmem:[%s3 + $0x4] sm:$0xf]
  %v128 = vld [vmem:[%s3 + $0x8] sm:$0xf]
  %v129 = vld [vmem:[%s3 + $0xc] sm:$0xf]
  %v130 = vld [vmem:[%s3 + $0x10] sm:$0xf]
  %v131 = vld [vmem:[%s3 + $0x14] sm:$0xf]
  %v132 = vld [vmem:[%s3 + $0x18] sm:$0xf]
  %v133 = vld [vmem:[%s3 + $0x1c] sm:$0xf]
  %v134 = vld [vmem:[%s4] sm:$0x1]
  %v136 = vlaneseq
  %v137 = vshrl.u32 %v136, 7
  %v138 = vsub.s32 0, %v137
  %v139 = vrot.slane %v134, %v138
  %v149 = vunpack.c.l.b16 %v126
  %v150 = vunpack.c.l.b16 %v127
  %v151 = vunpack.c.l.b16 %v128
  %v152 = vunpack.c.l.b16 %v129
  %v153 = vunpack.c.l.b16 %v130
  %v154 = vunpack.c.l.b16 %v131
  %v155 = vunpack.c.l.b16 %v132
  %v156 = vunpack.c.l.b16 %v133
  %v157 = vpack.c.b16 %v150, %v149
  %v158 = vpack.c.b16 %v152, %v151
  %v159 = vpack.c.b16 %v154, %v153
  %v160 = vpack.c.b16 %v156, %v155
  %vm165 = vcmask 523264
  %v167 = vsel %vm165, %v124, 0
  %v170 = vsel %vm165, %v125, 0
  %172 = vmatprep.subr.bf16.mxu0 0
  %173 = vmatpush1.bf16.msra.mxu0 %v157
  %174 = vmatprep.subr.bf16.mxu0 0
  %175 = vmatpush1.bf16.msra.mxu0 %v158
  %176 = vmatprep.subr.bf16.mxu0 0
  %177 = vmatpush1.bf16.msra.mxu0 %v159
  %178 = vmatprep.subr.bf16.mxu0 0
  %179 = vmatpush1.bf16.msra.mxu0 %v160
  %180 = vmatprep.subr.bf16.mxu0 0
  %181 = vmatpush1.bf16.msra.mxu0 0
  %182 = vmatprep.subr.bf16.mxu0 0
  %183 = vmatpush1.bf16.msra.mxu0 0
  %184 = vmatprep.subr.bf16.mxu0 0
  %185 = vmatpush1.bf16.msra.mxu0 0
  %186 = vmatprep.subr.bf16.mxu0 0
  %187 = vmatpush1.bf16.msra.mxu0 0
  %188 = vmatprep.subr.bf16.mxu0 0
  %189 = vmatpush1.bf16.msra.mxu0 0
  %190 = vmatprep.subr.bf16.mxu0 0
  %191 = vmatpush1.bf16.msra.mxu0 0
  %192 = vmatprep.subr.bf16.mxu0 0
  %193 = vmatpush1.bf16.msra.mxu0 0
  %194 = vmatprep.subr.bf16.mxu0 0
  %195 = vmatpush1.bf16.msra.mxu0 0
  %196 = vmatprep.subr.bf16.mxu0 0
  %197 = vmatpush1.bf16.msra.mxu0 0
  %198 = vmatprep.subr.bf16.mxu0 0
  %199 = vmatpush1.bf16.msra.mxu0 0
  %200 = vmatprep.subr.bf16.mxu0 0
  %201 = vmatpush1.bf16.msra.mxu0 0
  %202 = vmatprep.subr.bf16.mxu0 0
  %203 = vmatpush1.bf16.msra.mxu0 0
  %204 = vmatprep.mubr.bf16.mxu0 0
  %205 = vmatmul.mubr.bf16.gmra.mrb[0].mxu0 %v167
  %v206 = vpop.f32.mrb[0].mxu0
  %v207 = vadd.f32 %v139, %v206
  %v208 = vpop.f32.mrb[0].mxu0
  %v209 = vpop.f32.mrb[0].mxu0
  %v210 = vadd.f32 %v139, %v209
  %v211 = vpop.f32.mrb[0].mxu0
  %212 = vmatprep.mubr.bf16.mxu0 0
  %213 = vmatmul.mubr.bf16.gmra.mrb[0].mxu0 %v170
  %v214 = vpop.f32.mrb[0].mxu0
  %v215 = vadd.f32 %v139, %v214
  %v216 = vpop.f32.mrb[0].mxu0
  %v217 = vpop.f32.mrb[0].mxu0
  %v218 = vadd.f32 %v139, %v217
  %v219 = vpop.f32.mrb[0].mxu0
  %220 = vdwg.mxu0
  %v221 = vunpack.c.l.bf16 %v27
  %v222 = vunpack.c.l.bf16 %v28
  %v223 = vunpack.c.l.bf16 %v29
  %v224 = vunpack.c.l.bf16 %v30
  %v225 = vadd.f32 %v207, %v221
  %v226 = vadd.f32 %v210, %v222
  %v227 = vadd.f32 %v215, %v223
  %v228 = vadd.f32 %v218, %v224
  %v229 = vsel %vm64, %v225, 0.0
  %230 = vadd.xlane.f32.xlu0 %v229
  %v231 = vpop.xlane.xlu0 %230
  %v232 = vsel %vm64, %v226, 0.0
  %233 = vadd.xlane.f32.xlu0 %v232
  %v234 = vpop.xlane.xlu0 %233
  %v235 = vsel %vm64, %v227, 0.0
  %236 = vadd.xlane.f32.xlu0 %v235
  %v237 = vpop.xlane.xlu0 %236
  %v238 = vsel %vm64, %v228, 0.0
  %239 = vadd.xlane.f32.xlu0 %v238
  %v240 = vpop.xlane.xlu0 %239
  %v241 = vrcp.pop 32.0
  %v242 = vmul.f32 %v231, %v241
  %v243 = vmul.f32 %v234, %v241
  %v244 = vmul.f32 %v237, %v241
  %v245 = vmul.f32 %v240, %v241
  %v246 = vsub.f32 %v225, %v242
  %v247 = vsub.f32 %v226, %v243
  %v248 = vsub.f32 %v227, %v244
  %v249 = vsub.f32 %v228, %v245
  %v250 = vmul.f32 %v246, %v246
  %v251 = vmul.f32 %v247, %v247
  %v252 = vmul.f32 %v248, %v248
  %v253 = vmul.f32 %v249, %v249
  %v254 = vsel %vm64, %v250, 0.0
  %255 = vadd.xlane.f32.xlu0 %v254
  %v256 = vpop.xlane.xlu0 %255
  %v257 = vsel %vm64, %v251, 0.0
  %258 = vadd.xlane.f32.xlu0 %v257
  %v259 = vpop.xlane.xlu0 %258
  %v260 = vsel %vm64, %v252, 0.0
  %261 = vadd.xlane.f32.xlu0 %v260
  %v262 = vpop.xlane.xlu0 %261
  %v263 = vsel %vm64, %v253, 0.0
  %264 = vadd.xlane.f32.xlu0 %v263
  %v265 = vpop.xlane.xlu0 %264
  %v266 = vmul.f32 %v256, %v241
  %v267 = vmul.f32 %v259, %v241
  %v268 = vmul.f32 %v262, %v241
  %v269 = vmul.f32 %v265, %v241
  %v270 = vadd.f32 %v266, 1e-05
  %v271 = vadd.f32 %v267, 1e-05
  %v272 = vadd.f32 %v268, 1e-05
  %v273 = vadd.f32 %v269, 1e-05
  %v274 = vrsqrt.pop %v270
  %v275 = vrsqrt.pop %v271
  %v276 = vrsqrt.pop %v272
  %v277 = vrsqrt.pop %v273
  %v278 = vmul.f32 %v246, %v274
  %v279 = vmul.f32 %v247, %v275
  %v280 = vmul.f32 %v248, %v276
  %v281 = vmul.f32 %v249, %v277
  %v282 = vld [vmem:[%s5] sm:$0x1]
  %v284 = vlaneseq
  %v285 = vshrl.u32 %v284, 7
  %v286 = vsub.s32 0, %v285
  %v287 = vrot.slane %v282, %v286
  %v289 = vmul.f32 %v278, %v287
  %v290 = vmul.f32 %v279, %v287
  %v291 = vmul.f32 %v280, %v287
  %v292 = vmul.f32 %v281, %v287
  %v293 = vld [vmem:[%s6] sm:$0x1]
  %v295 = vlaneseq
  %v296 = vshrl.u32 %v295, 7
  %v297 = vsub.s32 0, %v296
  %v298 = vrot.slane %v293, %v297
  %v300 = vadd.f32 %v289, %v298
  %v301 = vadd.f32 %v290, %v298
  %v302 = vadd.f32 %v291, %v298
  %v303 = vadd.f32 %v292, %v298
  %v304 = vpack.c.bf16 %v301, %v300
  %v305 = vpack.c.bf16 %v303, %v302
  %v308 = vunpack.c.l.b16 %v304
  %v309 = vunpack.c.h.b16 %v304
  %v310 = vunpack.c.l.b16 %v305
  %v311 = vunpack.c.h.b16 %v305
  %v312 = vpack.c.b16 %v308, %v308
  %v313 = vpack.c.b16 %v309, %v309
  %v314 = vpack.c.b16 %v310, %v310
  %v315 = vpack.c.b16 %v311, %v311
  %vm320 = vcmask 257024
  %321 = vst.msk [vmem:[%s7] sm:$0xf] %vm320, %v312
  %322 = vst.msk [vmem:[%s7 + $0x4] sm:$0xf] %vm320, %v313
  %323 = vst.msk [vmem:[%s7 + $0x8] sm:$0xf] %vm320, %v314
  %324 = vst.msk [vmem:[%s7 + $0xc] sm:$0xf] %vm320, %v315
  // Predicated region
  $region30: #{_lambda_.25} parent=0 // pred_check
    _
  $region31: #{_lambda_.25} parent=0 // pred_check_branch
    %326 = sbr.rel (0) target = $region33
  $region32: #{_lambda_.25} parent=0 // pred_region
    _
  $region33: #{_lambda_.25} parent=0 // pred_fallthru
    _
  // Predicated region
  $region34: #{_lambda_.25} parent=0 // pred_check
    _
  $region35: #{_lambda_.25} parent=0 // pred_check_branch
    %328 = sbr.rel (0) target = $region37
  $region36: #{_lambda_.25} parent=0 // pred_region
    _
  $region37: #{_lambda_.25} parent=0 // pred_fallthru
    _

// kernel: _lambda_.24
$region0: #{_lambda_.24}
  #allocation0 [shape = 'u32[]', space=smem, size = 0x4, offset = 0x4, fixed_abs, tag = 'smem constant byte address 0x4 - core index']
  #allocation1 [shape = 'u32[144,128]{1,0:T(1,128)}', space=vmem, size = 0x12000, scoped, tag = 'internal scratch']
  %s0 = inlined_call_operand.vmem [shape: bf16[2,16,32], index: 0, kind: input, shape index: {}]
  %s1 = inlined_call_operand.vmem [shape: bf16[2,16,32], index: 1, kind: input, shape index: {}]
  %s2 = inlined_call_operand.vmem [shape: bf16[2,16,32], index: 2, kind: input, shape index: {}]
  %s3 = inlined_call_operand.vmem [shape: bf16[32,32], index: 3, kind: input, shape index: {}]
  %s4 = inlined_call_operand.vmem [shape: f32[1,32], index: 4, kind: input, shape index: {}]
  %s5 = inlined_call_operand.vmem [shape: bf16[2,16,32], index: 5, kind: input, shape index: {}]
  %s6 = inlined_call_operand.vmem [shape: f32[1,32], index: 6, kind: input, shape index: {}]
  %s7 = inlined_call_operand.vmem [shape: f32[1,32], index: 7, kind: input, shape index: {}]
  %s8 = inlined_call_operand.vmem [shape: bf16[2,16,32], index: 8, kind: output, shape index: {}]
  %s9 = sld [smem:[#allocation0]]
  $region65: #{_lambda_.24} parent=0
    _
  %s11 = ssub.s32 1, %s9
  %s12 = scalar_select 0, %s11, %s9
  loop: start=0, step=1, limit=4
  $region2: #{_lambda_.24} parent=0 // loop_pre_header
    _
  $region3: #{_lambda_.24} parent=0 // loop_header
    %s14 = sphi 0, %s18
    %p15 = scmp.ge.s32.totalorder %s14, 4
    %s21 = sphi 0, %s33
    %s22 = sphi 0, %s29
    %s23 = sphi 0, %s21
    %s24 = sphi 0, %s22
    %s25 = sphi 0, %s23
    %s26 = sphi 0, %s24
    %s38 = sphi 0, %s40
    %s41 = sphi 0, %s38
    %s42 = sphi 0, %s41
    %s58 = sphi 0, %s42
    %s64 = sphi 0, %s66
    %s67 = sphi 0, %s64
    %s68 = sphi 0, %s67
    %s84 = sphi 0, %s68
    %s90 = sphi 0, %s92
    %s93 = sphi 0, %s90
    %s94 = sphi 0, %s93
    %s110 = sphi 0, %s94
    %s114 = sphi 0, %s114
    %s116 = sphi 0, %s114
    %s117 = sphi 0, %s116
    %s131 = sphi 0, %s117
    %s135 = sphi 0, %s135
    %s137 = sphi 0, %s135
    %s138 = sphi 0, %s137
    %s152 = sphi 0, %s138
    %s160 = sphi 0, %s162
    %s163 = sphi 0, %s160
    %s164 = sphi 0, %s163
    %s180 = sphi 0, %s164
    %s184 = sphi 0, %s184
    %s186 = sphi 0, %s184
    %s187 = sphi 0, %s186
    %s201 = sphi 0, %s187
    %s205 = sphi 0, %s205
    %s207 = sphi 0, %s205
    %s208 = sphi 0, %s207
    %s222 = sphi 0, %s208
    %s230 = sphi 0, %s232
    %s233 = sphi 0, %s230
    %s234 = sphi 0, %s233
    %s250 = sphi 0, %s234
  $region4: #{_lambda_.24} parent=0 // loop_header_branch
    %17 = sbr.rel (%p15) target = $region8
  $region5: #{_lambda_.24} parent=0 // loop_body
    %s19 = ssub.s32 %s14, 1
    %s20 = ssub.s32 %s14, 2
    %s27 = sadd.s32 1, %s22
    %p28 = scmp.ge.s32.totalorder %s27, 1
    %s29 = scalar_select %p28, 0, %s27
    %s30 = sadd.s32 1, %s21
    %s31 = scalar_select %p28, %s30, %s21
    %p32 = scmp.ge.s32.totalorder %s31, 2
    %s33 = scalar_select %p32, 0, %s31
    %s34 = ssub.s32 %s21, %s33
    %s35 = ssub.s32 %s22, %s29
    %s36 = sor.u32 %s34, %s35
    %p37 = scmp.eq.s32.totalorder %s36, 0
    %s39 = sadd.s32 %s38, 1
    %s40 = scalar_select %p37, %s38, %s39
    %p43 = pneg %p37
    %p44 = scmp.eq.s32.totalorder %s14, 1
    %p45 = por %p43, %p44
    %p46 = scmp.ne.s32.totalorder %s38, %s41
    %p47 = scmp.eq.s32.totalorder %s14, 0
    %p48 = por %p46, %p47
    %p49 = scmp.ne.s32.totalorder %s38, %s41
    %p50 = scmp.eq.s32.totalorder %s19, 1
    %p51 = por %p49, %p50
    %p52 = scmp.ne.s32.totalorder %s41, %s42
    %p53 = scmp.eq.s32.totalorder %s19, 0
    %p54 = por %p52, %p53
    %p55 = scmp.ne.s32.totalorder %s41, %s42
    %p56 = scmp.eq.s32.totalorder %s20, 1
    %p57 = por %p55, %p56
    %p59 = scmp.ne.s32.totalorder %s42, %s58
    %p60 = scmp.eq.s32.totalorder %s20, 0
    %p61 = por %p59, %p60
    %s62 = ssub.s32 %s21, %s33
    %p63 = scmp.eq.s32.totalorder %s62, 0
    %s65 = sadd.s32 %s64, 1
    %s66 = scalar_select %p63, %s64, %s65
    %p69 = pneg %p63
    %p70 = scmp.eq.s32.totalorder %s14, 1
    %p71 = por %p69, %p70
    %p72 = scmp.ne.s32.totalorder %s64, %s67
    %p73 = scmp.eq.s32.totalorder %s14, 0
    %p74 = por %p72, %p73
    %p75 = scmp.ne.s32.totalorder %s64, %s67
    %p76 = scmp.eq.s32.totalorder %s19, 1
    %p77 = por %p75, %p76
    %p78 = scmp.ne.s32.totalorder %s67, %s68
    %p79 = scmp.eq.s32.totalorder %s19, 0
    %p80 = por %p78, %p79
    %p81 = scmp.ne.s32.totalorder %s67, %s68
    %p82 = scmp.eq.s32.totalorder %s20, 1
    %p83 = por %p81, %p82
    %p85 = scmp.ne.s32.totalorder %s68, %s84
    %p86 = scmp.eq.s32.totalorder %s20, 0
    %p87 = por %p85, %p86
    %s88 = ssub.s32 %s21, %s33
    %p89 = scmp.eq.s32.totalorder %s88, 0
    %s91 = sadd.s32 %s90, 1
    %s92 = scalar_select %p89, %s90, %s91
    %p95 = pneg %p89
    %p96 = scmp.eq.s32.totalorder %s14, 1
    %p97 = por %p95, %p96
    %p98 = scmp.ne.s32.totalorder %s90, %s93
    %p99 = scmp.eq.s32.totalorder %s14, 0
    %p100 = por %p98, %p99
    %p101 = scmp.ne.s32.totalorder %s90, %s93
    %p102 = scmp.eq.s32.totalorder %s19, 1
    %p103 = por %p101, %p102
    %p104 = scmp.ne.s32.totalorder %s93, %s94
    %p105 = scmp.eq.s32.totalorder %s19, 0
    %p106 = por %p104, %p105
    %p107 = scmp.ne.s32.totalorder %s93, %s94
    %p108 = scmp.eq.s32.totalorder %s20, 1
    %p109 = por %p107, %p108
    %p111 = scmp.ne.s32.totalorder %s94, %s110
    %p112 = scmp.eq.s32.totalorder %s20, 0
    %p113 = por %p111, %p112
    %s115 = sadd.s32 %s114, 1
    %p118 = scmp.eq.s32.totalorder %s14, 1
    %p119 = scmp.ne.s32.totalorder %s114, %s116
    %p120 = scmp.eq.s32.totalorder %s14, 0
    %p121 = por %p119, %p120
    %p122 = scmp.ne.s32.totalorder %s114, %s116
    %p123 = scmp.eq.s32.totalorder %s19, 1
    %p124 = por %p122, %p123
    %p125 = scmp.ne.s32.totalorder %s116, %s117
    %p126 = scmp.eq.s32.totalorder %s19, 0
    %p127 = por %p125, %p126
    %p128 = scmp.ne.s32.totalorder %s116, %s117
    %p129 = scmp.eq.s32.totalorder %s20, 1
    %p130 = por %p128, %p129
    %p132 = scmp.ne.s32.totalorder %s117, %s131
    %p133 = scmp.eq.s32.totalorder %s20, 0
    %p134 = por %p132, %p133
    %s136 = sadd.s32 %s135, 1
    %p139 = scmp.eq.s32.totalorder %s14, 1
    %p140 = scmp.ne.s32.totalorder %s135, %s137
    %p141 = scmp.eq.s32.totalorder %s14, 0
    %p142 = por %p140, %p141
    %p143 = scmp.ne.s32.totalorder %s135, %s137
    %p144 = scmp.eq.s32.totalorder %s19, 1
    %p145 = por %p143, %p144
    %p146 = scmp.ne.s32.totalorder %s137, %s138
    %p147 = scmp.eq.s32.totalorder %s19, 0
    %p148 = por %p146, %p147
    %p149 = scmp.ne.s32.totalorder %s137, %s138
    %p150 = scmp.eq.s32.totalorder %s20, 1
    %p151 = por %p149, %p150
    %p153 = scmp.ne.s32.totalorder %s138, %s152
    %p154 = scmp.eq.s32.totalorder %s20, 0
    %p155 = por %p153, %p154
    %s156 = ssub.s32 %s21, %s33
    %s157 = ssub.s32 %s22, %s29
    %s158 = sor.u32 %s156, %s157
    %p159 = scmp.eq.s32.totalorder %s158, 0
    %s161 = sadd.s32 %s160, 1
    %s162 = scalar_select %p159, %s160, %s161
    %p165 = pneg %p159
    %p166 = scmp.eq.s32.totalorder %s14, 1
    %p167 = por %p165, %p166
    %p168 = scmp.ne.s32.totalorder %s160, %s163
    %p169 = scmp.eq.s32.totalorder %s14, 0
    %p170 = por %p168, %p169
    %p171 = scmp.ne.s32.totalorder %s160, %s163
    %p172 = scmp.eq.s32.totalorder %s19, 1
    %p173 = por %p171, %p172
    %p174 = scmp.ne.s32.totalorder %s163, %s164
    %p175 = scmp.eq.s32.totalorder %s19, 0
    %p176 = por %p174, %p175
    %p177 = scmp.ne.s32.totalorder %s163, %s164
    %p178 = scmp.eq.s32.totalorder %s20, 1
    %p179 = por %p177, %p178
    %p181 = scmp.ne.s32.totalorder %s164, %s180
    %p182 = scmp.eq.s32.totalorder %s20, 0
    %p183 = por %p181, %p182
    %s185 = sadd.s32 %s184, 1
    %p188 = scmp.eq.s32.totalorder %s14, 1
    %p189 = scmp.ne.s32.totalorder %s184, %s186
    %p190 = scmp.eq.s32.totalorder %s14, 0
    %p191 = por %p189, %p190
    %p192 = scmp.ne.s32.totalorder %s184, %s186
    %p193 = scmp.eq.s32.totalorder %s19, 1
    %p194 = por %p192, %p193
    %p195 = scmp.ne.s32.totalorder %s186, %s187
    %p196 = scmp.eq.s32.totalorder %s19, 0
    %p197 = por %p195, %p196
    %p198 = scmp.ne.s32.totalorder %s186, %s187
    %p199 = scmp.eq.s32.totalorder %s20, 1
    %p200 = por %p198, %p199
    %p202 = scmp.ne.s32.totalorder %s187, %s201
    %p203 = scmp.eq.s32.totalorder %s20, 0
    %p204 = por %p202, %p203
    %s206 = sadd.s32 %s205, 1
    %p209 = scmp.eq.s32.totalorder %s14, 1
    %p210 = scmp.ne.s32.totalorder %s205, %s207
    %p211 = scmp.eq.s32.totalorder %s14, 0
    %p212 = por %p210, %p211
    %p213 = scmp.ne.s32.totalorder %s205, %s207
    %p214 = scmp.eq.s32.totalorder %s19, 1
    %p215 = por %p213, %p214
    %p216 = scmp.ne.s32.totalorder %s207, %s208
    %p217 = scmp.eq.s32.totalorder %s19, 0
    %p218 = por %p216, %p217
    %p219 = scmp.ne.s32.totalorder %s207, %s208
    %p220 = scmp.eq.s32.totalorder %s20, 1
    %p221 = por %p219, %p220
    %p223 = scmp.ne.s32.totalorder %s208, %s222
    %p224 = scmp.eq.s32.totalorder %s20, 0
    %p225 = por %p223, %p224
    %s226 = ssub.s32 %s21, %s33
    %s227 = ssub.s32 %s22, %s29
    %s228 = sor.u32 %s226, %s227
    %p229 = scmp.eq.s32.totalorder %s228, 0
    %s231 = sadd.s32 %s230, 1
    %s232 = scalar_select %p229, %s230, %s231
    %p235 = pneg %p229
    %p236 = scmp.eq.s32.totalorder %s14, 1
    %p237 = por %p235, %p236
    %p238 = scmp.ne.s32.totalorder %s230, %s233
    %p239 = scmp.eq.s32.totalorder %s14, 0
    %p240 = por %p238, %p239
    %p241 = scmp.ne.s32.totalorder %s230, %s233
    %p242 = scmp.eq.s32.totalorder %s19, 1
    %p243 = por %p241, %p242
    %p244 = scmp.ne.s32.totalorder %s233, %s234
    %p245 = scmp.eq.s32.totalorder %s19, 0
    %p246 = por %p244, %p245
    %p247 = scmp.ne.s32.totalorder %s233, %s234
    %p248 = scmp.eq.s32.totalorder %s20, 1
    %p249 = por %p247, %p248
    %p251 = scmp.ne.s32.totalorder %s234, %s250
    %p252 = scmp.eq.s32.totalorder %s20, 0
    %p253 = por %p251, %p252
    %p254 = scmp.le.s32.totalorder 1, %s14
    %p255 = scmp.lt.s32.totalorder %s14, 3
    %p256 = pnand %p254, %p255
    %p257 = pneg %p256
    // Predicated region
    $region9: #{_lambda_.24} parent=5 // pred_check
      _
    $region10: #{_lambda_.24} parent=5 // pred_check_branch
      %259 = sbr.rel (%p256) target = $region12
    $region11: #{_lambda_.24} parent=5 // pred_region
      %s260 = ssub.s32 %s14, 1
      // Predicated region
      $region13: #{_lambda_.24} parent=11 // pred_check
        %p261 = pneg %p127
      $region14: #{_lambda_.24} parent=11 // pred_check_branch
        %263 = sbr.rel (%p261) target = $region16
      $region15: #{_lambda_.24} parent=11 // pred_region
        _
      $region16: #{_lambda_.24} parent=11 // pred_fallthru
        _
      // Predicated region
      $region17: #{_lambda_.24} parent=11 // pred_check
        %p264 = pneg %p148
      $region18: #{_lambda_.24} parent=11 // pred_check_branch
        %266 = sbr.rel (%p264) target = $region20
      $region19: #{_lambda_.24} parent=11 // pred_region
        _
      $region20: #{_lambda_.24} parent=11 // pred_fallthru
        _
      // Predicated region
      $region21: #{_lambda_.24} parent=11 // pred_check
        %p267 = pneg %p197
      $region22: #{_lambda_.24} parent=11 // pred_check_branch
        %269 = sbr.rel (%p267) target = $region24
      $region23: #{_lambda_.24} parent=11 // pred_region
        _
      $region24: #{_lambda_.24} parent=11 // pred_fallthru
        _
      // Predicated region
      $region25: #{_lambda_.24} parent=11 // pred_check
        %p270 = pneg %p218
      $region26: #{_lambda_.24} parent=11 // pred_check_branch
        %272 = sbr.rel (%p270) target = $region28
      $region27: #{_lambda_.24} parent=11 // pred_region
        _
      $region28: #{_lambda_.24} parent=11 // pred_fallthru
        _
    $region12: #{_lambda_.24} parent=5 // pred_fallthru
      _
    %p273 = scmp.lt.s32.totalorder %s14, 2
    // Predicated region
    $region29: #{_lambda_.24} parent=5 // pred_check
      %p274 = pneg %p273
    $region30: #{_lambda_.24} parent=5 // pred_check_branch
      %276 = sbr.rel (%p274) target = $region32
    $region31: #{_lambda_.24} parent=5 // pred_region
      // Predicated region
      $region33: #{_lambda_.24} parent=31 // pred_check
        %p277 = pneg %p48
      $region34: #{_lambda_.24} parent=31 // pred_check_branch
        %279 = sbr.rel (%p277) target = $region36
      $region35: #{_lambda_.24} parent=31 // pred_region
        %s280 = smul.u32 2, %s22
        %p281 = scmp.lt.s32.totalorder %s21, 1
        %s282 = scalar_select %p281, %s21, 1
        %p283 = scmp.lt.s32.totalorder %s280, 1
        %s284 = scalar_select %p283, %s280, 1
        %s285 = smul.addr %s282, 2
        %s286 = sadd.s32 %s284, %s285
        %s287 = smul.addr %s286, 4
        %s288 = scalar_lea.vmem %s0, %s287
        %s289 = smul.u32 2, %s22
      $region36: #{_lambda_.24} parent=31 // pred_fallthru
        _
      // Predicated region
      $region37: #{_lambda_.24} parent=31 // pred_check
        %p290 = pneg %p74
      $region38: #{_lambda_.24} parent=31 // pred_check_branch
        %292 = sbr.rel (%p290) target = $region40
      $region39: #{_lambda_.24} parent=31 // pred_region
        %p293 = scmp.lt.s32.totalorder %s21, 1
        %s294 = scalar_select %p293, %s21, 1
        %s295 = smul.addr %s294, 2
        %s296 = smul.addr %s295, 4
        %s297 = scalar_lea.vmem %s1, %s296
      $region40: #{_lambda_.24} parent=31 // pred_fallthru
        _
      // Predicated region
      $region41: #{_lambda_.24} parent=31 // pred_check
        %p298 = pneg %p100
      $region42: #{_lambda_.24} parent=31 // pred_check_branch
        %300 = sbr.rel (%p298) target = $region44
      $region43: #{_lambda_.24} parent=31 // pred_region
        %p301 = scmp.lt.s32.totalorder %s21, 1
        %s302 = scalar_select %p301, %s21, 1
        %s303 = smul.addr %s302, 2
        %s304 = smul.addr %s303, 4
        %s305 = scalar_lea.vmem %s2, %s304
      $region44: #{_lambda_.24} parent=31 // pred_fallthru
        _
      // Predicated region
      $region45: #{_lambda_.24} parent=31 // pred_check
        %p306 = pneg %p170
      $region46: #{_lambda_.24} parent=31 // pred_check_branch
        %308 = sbr.rel (%p306) target = $region48
      $region47: #{_lambda_.24} parent=31 // pred_region
        %s309 = smul.u32 2, %s22
        %p310 = scmp.lt.s32.totalorder %s21, 1
        %s311 = scalar_select %p310, %s21, 1
        %p312 = scmp.lt.s32.totalorder %s309, 1
        %s313 = scalar_select %p312, %s309, 1
        %s314 = smul.addr %s311, 2
        %s315 = sadd.s32 %s313, %s314
        %s316 = smul.addr %s315, 4
        %s317 = scalar_lea.vmem %s5, %s316
        %s318 = smul.u32 2, %s22
      $region48: #{_lambda_.24} parent=31 // pred_fallthru
        _
    $region32: #{_lambda_.24} parent=5 // pred_fallthru
      _
    %p319 = scmp.le.s32.totalorder 1, %s14
    %p320 = scmp.lt.s32.totalorder %s14, 3
    %p321 = pnand %p319, %p320
    %p322 = pneg %p321
    // Predicated region
    $region49: #{_lambda_.24} parent=5 // pred_check
      _
    $region50: #{_lambda_.24} parent=5 // pred_check_branch
      %324 = sbr.rel (%p321) target = $region52
    $region51: #{_lambda_.24} parent=5 // pred_region
      %s325 = ssub.s32 %s14, 1
      %s326 = smul.u32 2, %s24
      %p327 = scmp.lt.s32.totalorder %s23, 1
      %s328 = scalar_select %p327, %s23, 1
      %p329 = scmp.lt.s32.totalorder %s326, 1
      %s330 = scalar_select %p329, %s326, 1
      %s331 = smul.addr %s328, 2
      %s332 = sadd.s32 %s330, %s331
      %s333 = smul.addr %s332, 4
      %s334 = scalar_lea.vmem %s0, %s333
      %p335 = pneg %p54
      %p336 = pneg %p51
      %p337 = scmp.lt.s32.totalorder %s23, 1
      %s338 = scalar_select %p337, %s23, 1
      %s339 = smul.addr %s338, 2
      %s340 = smul.addr %s339, 4
      %s341 = scalar_lea.vmem %s1, %s340
      %p342 = pneg %p80
      %p343 = pneg %p77
      %p344 = scmp.lt.s32.totalorder %s23, 1
      %s345 = scalar_select %p344, %s23, 1
      %s346 = smul.addr %s345, 2
      %s347 = smul.addr %s346, 4
      %s348 = scalar_lea.vmem %s2, %s347
      %p349 = pneg %p106
      %p350 = pneg %p103
      %p351 = pneg %p127
      %p352 = pneg %p124
      %p353 = pneg %p148
      %p354 = pneg %p145
      %s355 = smul.u32 2, %s24
      %p356 = scmp.lt.s32.totalorder %s23, 1
      %s357 = scalar_select %p356, %s23, 1
      %p358 = scmp.lt.s32.totalorder %s355, 1
      %s359 = scalar_select %p358, %s355, 1
      %s360 = smul.addr %s357, 2
      %s361 = sadd.s32 %s359, %s360
      %s362 = smul.addr %s361, 4
      %s363 = scalar_lea.vmem %s5, %s362
      %p364 = pneg %p176
      %p365 = pneg %p173
      %p366 = pneg %p197
      %p367 = pneg %p194
      %p368 = pneg %p218
      %p369 = pneg %p215
      %p370 = pneg %p246
      %p371 = pneg %p243
      %s372 = smul.u32 2, %s24
      %p373 = scmp.lt.s32.totalorder %s23, 1
      %s374 = scalar_select %p373, %s23, 1
      %p375 = scmp.lt.s32.totalorder %s372, 1
      %s376 = scalar_select %p375, %s372, 1
      %s377 = smul.addr %s374, 2
      %s378 = sadd.s32 %s376, %s377
      %s379 = smul.addr %s378, 4
      %s380 = scalar_lea.vmem %s8, %s379
      %s381 = smul.u32 2, %s24
      %p382 = scmp.lt.s32.totalorder %s23, 1
      %s383 = scalar_select %p382, %s23, 1
      %p384 = scmp.lt.s32.totalorder %s381, 1
      %s385 = scalar_select %p384, %s381, 1
      %s386 = smul.addr %s383, 2
      %s387 = sadd.s32 %s385, %s386
      %s388 = smul.addr %s387, 4
      %s389 = scalar_lea.vmem %s0, %s388
      %s390 = smul.u32 2, %s24
      %p391 = scmp.lt.s32.totalorder %s23, 1
      %s392 = scalar_select %p391, %s23, 1
      %s393 = smul.addr %s392, 2
      %s394 = smul.addr %s393, 4
      %s395 = scalar_lea.vmem %s1, %s394
      %p396 = scmp.lt.s32.totalorder %s23, 1
      %s397 = scalar_select %p396, %s23, 1
      %s398 = smul.addr %s397, 2
      %s399 = smul.addr %s398, 4
      %s400 = scalar_lea.vmem %s2, %s399
      %s401 = smul.u32 2, %s24
      %p402 = scmp.lt.s32.totalorder %s23, 1
      %s403 = scalar_select %p402, %s23, 1
      %p404 = scmp.lt.s32.totalorder %s401, 1
      %s405 = scalar_select %p404, %s401, 1
      %s406 = smul.addr %s403, 2
      %s407 = sadd.s32 %s405, %s406
      %s408 = smul.addr %s407, 4
      %s409 = scalar_lea.vmem %s5, %s408
      %s410 = smul.u32 2, %s24
      %s411 = smul.u32 2, %s24
      %p412 = scmp.lt.s32.totalorder %s23, 1
      %s413 = scalar_select %p412, %s23, 1
      %p414 = scmp.lt.s32.totalorder %s411, 1
      %s415 = scalar_select %p414, %s411, 1
      %s416 = smul.addr %s413, 2
      %s417 = sadd.s32 %s415, %s416
      %s418 = smul.addr %s417, 4
      %s419 = scalar_lea.vmem %s8, %s418
      %s420 = smul.u32 2, %s24
      %v422 = vld [vmem:[%s389] sm:$0xf]
      %v423 = vld [vmem:[%s389 + $0x4] sm:$0xf]
      %v424 = vld [vmem:[%s395] sm:$0xf]
      %v425 = vld [vmem:[%s395 + $0x4] sm:$0xf]
      %v426 = vld [vmem:[%s400] sm:$0xf]
      %v427 = vld [vmem:[%s400 + $0x4] sm:$0xf]
      %v428 = vld [vmem:[%s3] sm:$0xf]
      %v429 = vld [vmem:[%s3 + $0x4] sm:$0xf]
      %v430 = vld [vmem:[%s3 + $0x8] sm:$0xf]
      %v431 = vld [vmem:[%s3 + $0xc] sm:$0xf]
      %v432 = vld [vmem:[%s409] sm:$0xf]
      %v433 = vld [vmem:[%s409 + $0x4] sm:$0xf]
      %v434 = vunpack.c.l.bf16 %v432
      %v435 = vunpack.c.l.bf16 %v433
      %v436 = vld [vmem:[%s4] sm:$0x1]
      %v438 = vlaneseq
      %v439 = vshrl.u32 %v438, 7
      %v440 = vsub.s32 0, %v439
      %v441 = vrot.slane %v436, %v440
      %v443 = vadd.f32 %v434, %v441
      %v444 = vadd.f32 %v435, %v441
      %v447 = vunpack.c.l.b16 %v422
      %v448 = vunpack.c.l.b16 %v423
      %v449 = vpack.c.b16 %v448, %v447
      %v452 = vunpack.c.l.b16 %v424
      %v453 = vunpack.c.l.b16 %v425
      %v454 = vpack.c.b16 %v453, %v452
      %vm455 = vcmask 64512
      %v457 = vsel %vm455, %v449, 0
      %v460 = vsel %vm455, %v454, 0
      %462 = vmatprep.subr.bf16.mxu0 0
      %463 = vmatpush1.bf16.xpose.msra.mxu0 %v460
      %464 = vmatprep.subr.bf16.mxu0 0
      %465 = vmatpush1.bf16.xpose.msra.mxu0 0
      %466 = vmatprep.subr.bf16.mxu0 0
      %467 = vmatpush1.bf16.xpose.msra.mxu0 0
      %468 = vmatprep.subr.bf16.mxu0 0
      %469 = vmatpush1.bf16.xpose.msra.mxu0 0
      %470 = vmatprep.subr.bf16.mxu0 0
      %471 = vmatpush1.bf16.xpose.msra.mxu0 0
      %472 = vmatprep.subr.bf16.mxu0 0
      %473 = vmatpush1.bf16.xpose.msra.mxu0 0
      %474 = vmatprep.subr.bf16.mxu0 0
      %475 = vmatpush1.bf16.xpose.msra.mxu0 0
      %476 = vmatprep.subr.bf16.mxu0 0
      %477 = vmatpush1.bf16.xpose.msra.mxu0 0
      %478 = vmatprep.subr.bf16.mxu0 0
      %479 = vmatpush1.bf16.xpose.msra.mxu0 0
      %480 = vmatprep.subr.bf16.mxu0 0
      %481 = vmatpush1.bf16.xpose.msra.mxu0 0
      %482 = vmatprep.subr.bf16.mxu0 0
      %483 = vmatpush1.bf16.xpose.msra.mxu0 0
      %484 = vmatprep.subr.bf16.mxu0 0
      %485 = vmatpush1.bf16.xpose.msra.mxu0 0
      %486 = vmatprep.subr.bf16.mxu0 0
      %487 = vmatpush1.bf16.xpose.msra.mxu0 0
      %488 = vmatprep.subr.bf16.mxu0 0
      %489 = vmatpush1.bf16.xpose.msra.mxu0 0
      %490 = vmatprep.subr.bf16.mxu0 0
      %491 = vmatpush1.bf16.xpose.msra.mxu0 0
      %492 = vmatprep.subr.bf16.mxu0 0
      %493 = vmatpush1.bf16.xpose.msra.mxu0 0
      %494 = vmatprep.mubr.bf16.mxu0 0
      %495 = vmatmul.mubr.bf16.gmra.mrb[0].mxu0 %v457
      %v496 = vpop.f32.mrb[0].mxu0
      %v497 = vadd.f32 0.0, %v496
      %v498 = vpop.f32.mrb[0].mxu0
      %v499 = vpop.f32.mrb[0].mxu0
      %v500 = vadd.f32 0.0, %v499
      %v501 = vpop.f32.mrb[0].mxu0
      %502 = vdwg.mxu0
      %v503 = vmul.f32 %v497, 0.35355338
      %v504 = vmul.f32 %v500, 0.35355338
      %vm505 = vcmask 130048
      %v506 = vsel %vm505, %v503, -inf
      %507 = vmax.xlane.f32.xlu0 %v506
      %v508 = vpop.xlane.xlu0 %507
      %v509 = vsel %vm505, %v504, -inf
      %510 = vmax.xlane.f32.xlu0 %v509
      %v511 = vpop.xlane.xlu0 %510
      %v512 = vsub.f32 %v503, %v508
      %v513 = vsub.f32 %v504, %v511
      %v514 = vmul.f32 %v512, 1.442695
      %v515 = vpow.pop %v514
      %v516 = vmul.f32 %v513, 1.442695
      %v517 = vpow.pop %v516
      %v518 = vsel %vm505, %v515, 0.0
      %519 = vadd.xlane.f32.xlu0 %v518
      %v520 = vpop.xlane.xlu0 %519
      %v521 = vsel %vm505, %v517, 0.0
      %522 = vadd.xlane.f32.xlu0 %v521
      %v523 = vpop.xlane.xlu0 %522
      %v524 = vrcp.pop %v520
      %v525 = vmul.f32 %v515, %v524
      %v526 = vrcp.pop %v523
      %v527 = vmul.f32 %v517, %v526
      %v528 = vpack.c.bf16 %v527, %v525
      %v531 = vunpack.c.l.b16 %v426
      %v532 = vunpack.c.l.b16 %v427
      %v533 = vpack.c.b16 %v532, %v531
      %v536 = vsel %vm505, %v528, 0
      %538 = vmatprep.subr.bf16.mxu0 0
      %539 = vmatpush1.bf16.msra.mxu0 %v533
      %540 = vmatprep.subr.bf16.mxu0 0
      %541 = vmatpush1.bf16.msra.mxu0 0
      %542 = vmatprep.subr.bf16.mxu0 0
      %543 = vmatpush1.bf16.msra.mxu0 0
      %544 = vmatprep.subr.bf16.mxu0 0
      %545 = vmatpush1.bf16.msra.mxu0 0
      %546 = vmatprep.subr.bf16.mxu0 0
      %547 = vmatpush1.bf16.msra.mxu0 0
      %548 = vmatprep.subr.bf16.mxu0 0
      %549 = vmatpush1.bf16.msra.mxu0 0
      %550 = vmatprep.subr.bf16.mxu0 0
      %551 = vmatpush1.bf16.msra.mxu0 0
      %552 = vmatprep.subr.bf16.mxu0 0
      %553 = vmatpush1.bf16.msra.mxu0 0
      %554 = vmatprep.subr.bf16.mxu0 0
      %555 = vmatpush1.bf16.msra.mxu0 0
      %556 = vmatprep.subr.bf16.mxu0 0
      %557 = vmatpush1.bf16.msra.mxu0 0
      %558 = vmatprep.subr.bf16.mxu0 0
      %559 = vmatpush1.bf16.msra.mxu0 0
      %560 = vmatprep.subr.bf16.mxu0 0
      %561 = vmatpush1.bf16.msra.mxu0 0
      %562 = vmatprep.subr.bf16.mxu0 0
      %563 = vmatpush1.bf16.msra.mxu0 0
      %564 = vmatprep.subr.bf16.mxu0 0
      %565 = vmatpush1.bf16.msra.mxu0 0
      %566 = vmatprep.subr.bf16.mxu0 0
      %567 = vmatpush1.bf16.msra.mxu0 0
      %568 = vmatprep.subr.bf16.mxu0 0
      %569 = vmatpush1.bf16.msra.mxu0 0
      %570 = vmatprep.mubr.bf16.mxu0 0
      %571 = vmatmul.mubr.bf16.gmra.mrb[0].mxu0 %v536
      %v572 = vpop.f32.mrb[0].mxu0
      %v573 = vadd.f32 0.0, %v572
      %v574 = vpop.f32.mrb[0].mxu0
      %v575 = vpop.f32.mrb[0].mxu0
      %v576 = vadd.f32 0.0, %v575
      %v577 = vpop.f32.mrb[0].mxu0
      %578 = vdwg.mxu0
      %v579 = vpack.c.bf16 %v576, %v573
      %v581 = vsel %vm455, %v579, 0
      %vm583 = vcmask 1043456
      %v585 = vsel %vm583, %v428, 0
      %587 = vmatprep.subr.bf16.mxu0 0
      %588 = vmatpush1.bf16.msra.mxu0 %v585
      %589 = vmatprep.subr.bf16.mxu0 0
      %590 = vmatpush1.bf16.msra.mxu0 0
      %591 = vmatprep.subr.bf16.mxu0 0
      %592 = vmatpush1.bf16.msra.mxu0 0
      %593 = vmatprep.subr.bf16.mxu0 0
      %594 = vmatpush1.bf16.msra.mxu0 0
      %595 = vmatprep.subr.bf16.mxu0 0
      %596 = vmatpush1.bf16.msra.mxu0 0
      %597 = vmatprep.subr.bf16.mxu0 0
      %598 = vmatpush1.bf16.msra.mxu0 0
      %599 = vmatprep.subr.bf16.mxu0 0
      %600 = vmatpush1.bf16.msra.mxu0 0
      %601 = vmatprep.subr.bf16.mxu0 0
      %602 = vmatpush1.bf16.msra.mxu0 0
      %603 = vmatprep.subr.bf16.mxu0 0
      %604 = vmatpush1.bf16.msra.mxu0 0
      %605 = vmatprep.subr.bf16.mxu0 0
      %606 = vmatpush1.bf16.msra.mxu0 0
      %607 = vmatprep.subr.bf16.mxu0 0
      %608 = vmatpush1.bf16.msra.mxu0 0
      %609 = vmatprep.subr.bf16.mxu0 0
      %610 = vmatpush1.bf16.msra.mxu0 0
      %611 = vmatprep.subr.bf16.mxu0 0
      %612 = vmatpush1.bf16.msra.mxu0 0
      %613 = vmatprep.subr.bf16.mxu0 0
      %614 = vmatpush1.bf16.msra.mxu0 0
      %615 = vmatprep.subr.bf16.mxu0 0
      %616 = vmatpush1.bf16.msra.mxu0 0
      %617 = vmatprep.subr.bf16.mxu0 0
      %618 = vmatpush1.bf16.msra.mxu0 0
      %619 = vmatprep.mubr.bf16.mxu0 0
      %620 = vmatmul.mubr.bf16.gmra.mrb[0].mxu0 %v581
      %v621 = vpop.f32.mrb[0].mxu0
      %v622 = vadd.f32 0.0, %v621
      %v623 = vpop.f32.mrb[0].mxu0
      %v624 = vpop.f32.mrb[0].mxu0
      %v625 = vadd.f32 0.0, %v624
      %v626 = vpop.f32.mrb[0].mxu0
      %627 = vdwg.mxu0
      %v628 = vadd.f32 %v443, %v622
      %v629 = vadd.f32 %v444, %v625
      %630 = vrot.lane.b32.xlu0 %v449, 120
      %v631 = vpop.permute.xlu0 %630
      %632 = vrot.lane.b32.xlu0 %v454, 120
      %v633 = vpop.permute.xlu0 %632
      %v635 = vsel %vm455, %v631, 0
      %v638 = vsel %vm455, %v633, 0
      %640 = vmatprep.subr.bf16.mxu0 0
      %641 = vmatpush1.bf16.xpose.msra.mxu0 %v638
      %642 = vmatprep.subr.bf16.mxu0 0
      %643 = vmatpush1.bf16.xpose.msra.mxu0 0
      %644 = vmatprep.subr.bf16.mxu0 0
      %645 = vmatpush1.bf16.xpose.msra.mxu0 0
      %646 = vmatprep.subr.bf16.mxu0 0
      %647 = vmatpush1.bf16.xpose.msra.mxu0 0
      %648 = vmatprep.subr.bf16.mxu0 0
      %649 = vmatpush1.bf16.xpose.msra.mxu0 0
      %650 = vmatprep.subr.bf16.mxu0 0
      %651 = vmatpush1.bf16.xpose.msra.mxu0 0
      %652 = vmatprep.subr.bf16.mxu0 0
      %653 = vmatpush1.bf16.xpose.msra.mxu0 0
      %654 = vmatprep.subr.bf16.mxu0 0
      %655 = vmatpush1.bf16.xpose.msra.mxu0 0
      %656 = vmatprep.subr.bf16.mxu0 0
      %657 = vmatpush1.bf16.xpose.msra.mxu0 0
      %658 = vmatprep.subr.bf16.mxu0 0
      %659 = vmatpush1.bf16.xpose.msra.mxu0 0
      %660 = vmatprep.subr.bf16.mxu0 0
      %661 = vmatpush1.bf16.xpose.msra.mxu0 0
      %662 = vmatprep.subr.bf16.mxu0 0
      %663 = vmatpush1.bf16.xpose.msra.mxu0 0
      %664 = vmatprep.subr.bf16.mxu0 0
      %665 = vmatpush1.bf16.xpose.msra.mxu0 0
      %666 = vmatprep.subr.bf16.mxu0 0
      %667 = vmatpush1.bf16.xpose.msra.mxu0 0
      %668 = vmatprep.subr.bf16.mxu0 0
      %669 = vmatpush1.bf16.xpose.msra.mxu0 0
      %670 = vmatprep.subr.bf16.mxu0 0
      %671 = vmatpush1.bf16.xpose.msra.mxu0 0
      %672 = vmatprep.mubr.bf16.mxu0 0
      %673 = vmatmul.mubr.bf16.gmra.mrb[0].mxu0 %v635
      %v674 = vpop.f32.mrb[0].mxu0
      %v675 = vadd.f32 0.0, %v674
      %v676 = vpop.f32.mrb[0].mxu0
      %v677 = vpop.f32.mrb[0].mxu0
      %v678 = vadd.f32 0.0, %v677
      %v679 = vpop.f32.mrb[0].mxu0
      %680 = vdwg.mxu0
      %v681 = vmul.f32 %v675, 0.35355338
      %v682 = vmul.f32 %v678, 0.35355338
      %v683 = vsel %vm505, %v681, -inf
      %684 = vmax.xlane.f32.xlu0 %v683
      %v685 = vpop.xlane.xlu0 %684
      %v686 = vsel %vm505, %v682, -inf
      %687 = vmax.xlane.f32.xlu0 %v686
      %v688 = vpop.xlane.xlu0 %687
      %v689 = vsub.f32 %v681, %v685
      %v690 = vsub.f32 %v682, %v688
      %v691 = vmul.f32 %v689, 1.442695
      %v692 = vpow.pop %v691
      %v693 = vmul.f32 %v690, 1.442695
      %v694 = vpow.pop %v693
      %v695 = vsel %vm505, %v692, 0.0
      %696 = vadd.xlane.f32.xlu0 %v695
      %v697 = vpop.xlane.xlu0 %696
      %v698 = vsel %vm505, %v694, 0.0
      %699 = vadd.xlane.f32.xlu0 %v698
      %v700 = vpop.xlane.xlu0 %699
      %v701 = vrcp.pop %v697
      %v702 = vmul.f32 %v692, %v701
      %v703 = vrcp.pop %v700
      %v704 = vmul.f32 %v694, %v703
      %v705 = vpack.c.bf16 %v704, %v702
      %706 = vrot.lane.b32.xlu0 %v533, 120
      %v707 = vpop.permute.xlu0 %706
      %v710 = vsel %vm505, %v705, 0
      %712 = vmatprep.subr.bf16.mxu0 0
      %713 = vmatpush1.bf16.msra.mxu0 %v707
      %714 = vmatprep.subr.bf16.mxu0 0
      %715 = vmatpush1.bf16.msra.mxu0 0
      %716 = vmatprep.subr.bf16.mxu0 0
      %717 = vmatpush1.bf16.msra.mxu0 0
      %718 = vmatprep.subr.bf16.mxu0 0
      %719 = vmatpush1.bf16.msra.mxu0 0
      %720 = vmatprep.subr.bf16.mxu0 0
      %721 = vmatpush1.bf16.msra.mxu0 0
      %722 = vmatprep.subr.bf16.mxu0 0
      %723 = vmatpush1.bf16.msra.mxu0 0
      %724 = vmatprep.subr.bf16.mxu0 0
      %725 = vmatpush1.bf16.msra.mxu0 0
      %726 = vmatprep.subr.bf16.mxu0 0
      %727 = vmatpush1.bf16.msra.mxu0 0
      %728 = vmatprep.subr.bf16.mxu0 0
      %729 = vmatpush1.bf16.msra.mxu0 0
      %730 = vmatprep.subr.bf16.mxu0 0
      %731 = vmatpush1.bf16.msra.mxu0 0
      %732 = vmatprep.subr.bf16.mxu0 0
      %733 = vmatpush1.bf16.msra.mxu0 0
      %734 = vmatprep.subr.bf16.mxu0 0
      %735 = vmatpush1.bf16.msra.mxu0 0
      %736 = vmatprep.subr.bf16.mxu0 0
      %737 = vmatpush1.bf16.msra.mxu0 0
      %738 = vmatprep.subr.bf16.mxu0 0
      %739 = vmatpush1.bf16.msra.mxu0 0
      %740 = vmatprep.subr.bf16.mxu0 0
      %741 = vmatpush1.bf16.msra.mxu0 0
      %742 = vmatprep.subr.bf16.mxu0 0
      %743 = vmatpush1.bf16.msra.mxu0 0
      %744 = vmatprep.mubr.bf16.mxu0 0
      %745 = vmatmul.mubr.bf16.gmra.mrb[0].mxu0 %v710
      %v746 = vpop.f32.mrb[0].mxu0
      %v747 = vadd.f32 0.0, %v746
      %v748 = vpop.f32.mrb[0].mxu0
      %v749 = vpop.f32.mrb[0].mxu0
      %v750 = vadd.f32 0.0, %v749
      %v751 = vpop.f32.mrb[0].mxu0
      %752 = vdwg.mxu0
      %v753 = vpack.c.bf16 %v750, %v747
      %v755 = vsel %vm455, %v753, 0
      %v758 = vsel %vm583, %v429, 0
      %760 = vmatprep.subr.bf16.mxu0 0
      %761 = vmatpush1.bf16.msra.mxu0 %v758
      %762 = vmatprep.subr.bf16.mxu0 0
      %763 = vmatpush1.bf16.msra.mxu0 0
      %764 = vmatprep.subr.bf16.mxu0 0
      %765 = vmatpush1.bf16.msra.mxu0 0
      %766 = vmatprep.subr.bf16.mxu0 0
      %767 = vmatpush1.bf16.msra.mxu0 0
      %768 = vmatprep.subr.bf16.mxu0 0
      %769 = vmatpush1.bf16.msra.mxu0 0
      %770 = vmatprep.subr.bf16.mxu0 0
      %771 = vmatpush1.bf16.msra.mxu0 0
      %772 = vmatprep.subr.bf16.mxu0 0
      %773 = vmatpush1.bf16.msra.mxu0 0
      %774 = vmatprep.subr.bf16.mxu0 0
      %775 = vmatpush1.bf16.msra.mxu0 0
      %776 = vmatprep.subr.bf16.mxu0 0
      %777 = vmatpush1.bf16.msra.mxu0 0
      %778 = vmatprep.subr.bf16.mxu0 0
      %779 = vmatpush1.bf16.msra.mxu0 0
      %780 = vmatprep.subr.bf16.mxu0 0
      %781 = vmatpush1.bf16.msra.mxu0 0
      %782 = vmatprep.subr.bf16.mxu0 0
      %783 = vmatpush1.bf16.msra.mxu0 0
      %784 = vmatprep.subr.bf16.mxu0 0
      %785 = vmatpush1.bf16.msra.mxu0 0
      %786 = vmatprep.subr.bf16.mxu0 0
      %787 = vmatpush1.bf16.msra.mxu0 0
      %788 = vmatprep.subr.bf16.mxu0 0
      %789 = vmatpush1.bf16.msra.mxu0 0
      %790 = vmatprep.subr.bf16.mxu0 0
      %791 = vmatpush1.bf16.msra.mxu0 0
      %792 = vmatprep.mubr.bf16.mxu0 0
      %793 = vmatmul.mubr.bf16.gmra.mrb[0].mxu0 %v755
      %v794 = vpop.f32.mrb[0].mxu0
      %v795 = vadd.f32 0.0, %v794
      %v796 = vpop.f32.mrb[0].mxu0
      %v797 = vpop.f32.mrb[0].mxu0
      %v798 = vadd.f32 0.0, %v797
      %v799 = vpop.f32.mrb[0].mxu0
      %800 = vdwg.mxu0
      %v801 = vadd.f32 %v628, %v795
      %v802 = vadd.f32 %v629, %v798
      %803 = vrot.lane.b32.xlu0 %v449, 112
      %v804 = vpop.permute.xlu0 %803
      %805 = vrot.lane.b32.xlu0 %v454, 112
      %v806 = vpop.permute.xlu0 %805
      %v808 = vsel %vm455, %v804, 0
      %v811 = vsel %vm455, %v806, 0
      %813 = vmatprep.subr.bf16.mxu0 0
      %814 = vmatpush1.bf16.xpose.msra.mxu0 %v811
      %815 = vmatprep.subr.bf16.mxu0 0
      %816 = vmatpush1.bf16.xpose.msra.mxu0 0
      %817 = vmatprep.subr.bf16.mxu0 0
      %818 = vmatpush1.bf16.xpose.msra.mxu0 0
      %819 = vmatprep.subr.bf16.mxu0 0
      %820 = vmatpush1.bf16.xpose.msra.mxu0 0
      %821 = vmatprep.subr.bf16.mxu0 0
      %822 = vmatpush1.bf16.xpose.msra.mxu0 0
      %823 = vmatprep.subr.bf16.mxu0 0
      %824 = vmatpush1.bf16.xpose.msra.mxu0 0
      %825 = vmatprep.subr.bf16.mxu0 0
      %826 = vmatpush1.bf16.xpose.msra.mxu0 0
      %827 = vmatprep.subr.bf16.mxu0 0
      %828 = vmatpush1.bf16.xpose.msra.mxu0 0
      %829 = vmatprep.subr.bf16.mxu0 0
      %830 = vmatpush1.bf16.xpose.msra.mxu0 0
      %831 = vmatprep.subr.bf16.mxu0 0
      %832 = vmatpush1.bf16.xpose.msra.mxu0 0
      %833 = vmatprep.subr.bf16.mxu0 0
      %834 = vmatpush1.bf16.xpose.msra.mxu0 0
      %835 = vmatprep.subr.bf16.mxu0 0
      %836 = vmatpush1.bf16.xpose.msra.mxu0 0
      %837 = vmatprep.subr.bf16.mxu0 0
      %838 = vmatpush1.bf16.xpose.msra.mxu0 0
      %839 = vmatprep.subr.bf16.mxu0 0
      %840 = vmatpush1.bf16.xpose.msra.mxu0 0
      %841 = vmatprep.subr.bf16.mxu0 0
      %842 = vmatpush1.bf16.xpose.msra.mxu0 0
      %843 = vmatprep.subr.bf16.mxu0 0
      %844 = vmatpush1.bf16.xpose.msra.mxu0 0
      %845 = vmatprep.mubr.bf16.mxu0 0
      %846 = vmatmul.mubr.bf16.gmra.mrb[0].mxu0 %v808
      %v847 = vpop.f32.mrb[0].mxu0
      %v848 = vadd.f32 0.0, %v847
      %v849 = vpop.f32.mrb[0].mxu0
      %v850 = vpop.f32.mrb[0].mxu0
      %v851 = vadd.f32 0.0, %v850
      %v852 = vpop.f32.mrb[0].mxu0
      %853 = vdwg.mxu0
      %v854 = vmul.f32 %v848, 0.35355338
      %v855 = vmul.f32 %v851, 0.35355338
      %v856 = vsel %vm505, %v854, -inf
      %857 = vmax.xlane.f32.xlu0 %v856
      %v858 = vpop.xlane.xlu0 %857
      %v859 = vsel %vm505, %v855, -inf
      %860 = vmax.xlane.f32.xlu0 %v859
      %v861 = vpop.xlane.xlu0 %860
      %v862 = vsub.f32 %v854, %v858
      %v863 = vsub.f32 %v855, %v861
      %v864 = vmul.f32 %v862, 1.442695
      %v865 = vpow.pop %v864
      %v866 = vmul.f32 %v863, 1.442695
      %v867 = vpow.pop %v866
      %v868 = vsel %vm505, %v865, 0.0
      %869 = vadd.xlane.f32.xlu0 %v868
      %v870 = vpop.xlane.xlu0 %869
      %v871 = vsel %vm505, %v867, 0.0
      %872 = vadd.xlane.f32.xlu0 %v871
      %v873 = vpop.xlane.xlu0 %872
      %v874 = vrcp.pop %v870
      %v875 = vmul.f32 %v865, %v874
      %v876 = vrcp.pop %v873
      %v877 = vmul.f32 %v867, %v876
      %v878 = vpack.c.bf16 %v877, %v875
      %879 = vrot.lane.b32.xlu0 %v533, 112
      %v880 = vpop.permute.xlu0 %879
      %v883 = vsel %vm505, %v878, 0
      %885 = vmatprep.subr.bf16.mxu0 0
      %886 = vmatpush1.bf16.msra.mxu0 %v880
      %887 = vmatprep.subr.bf16.mxu0 0
      %888 = vmatpush1.bf16.msra.mxu0 0
      %889 = vmatprep.subr.bf16.mxu0 0
      %890 = vmatpush1.bf16.msra.mxu0 0
      %891 = vmatprep.subr.bf16.mxu0 0
      %892 = vmatpush1.bf16.msra.mxu0 0
      %893 = vmatprep.subr.bf16.mxu0 0
      %894 = vmatpush1.bf16.msra.mxu0 0
      %895 = vmatprep.subr.bf16.mxu0 0
      %896 = vmatpush1.bf16.msra.mxu0 0
      %897 = vmatprep.subr.bf16.mxu0 0
      %898 = vmatpush1.bf16.msra.mxu0 0
      %899 = vmatprep.subr.bf16.mxu0 0
      %900 = vmatpush1.bf16.msra.mxu0 0
      %901 = vmatprep.subr.bf16.mxu0 0
      %902 = vmatpush1.bf16.msra.mxu0 0
      %903 = vmatprep.subr.bf16.mxu0 0
      %904 = vmatpush1.bf16.msra.mxu0 0
      %905 = vmatprep.subr.bf16.mxu0 0
      %906 = vmatpush1.bf16.msra.mxu0 0
      %907 = vmatprep.subr.bf16.mxu0 0
      %908 = vmatpush1.bf16.msra.mxu0 0
      %909 = vmatprep.subr.bf16.mxu0 0
      %910 = vmatpush1.bf16.msra.mxu0 0
      %911 = vmatprep.subr.bf16.mxu0 0
      %912 = vmatpush1.bf16.msra.mxu0 0
      %913 = vmatprep.subr.bf16.mxu0 0
      %914 = vmatpush1.bf16.msra.mxu0 0
      %915 = vmatprep.subr.bf16.mxu0 0
      %916 = vmatpush1.bf16.msra.mxu0 0
      %917 = vmatprep.mubr.bf16.mxu0 0
      %918 = vmatmul.mubr.bf16.gmra.mrb[0].mxu0 %v883
      %v919 = vpop.f32.mrb[0].mxu0
      %v920 = vadd.f32 0.0, %v919
      %v921 = vpop.f32.mrb[0].mxu0
      %v922 = vpop.f32.mrb[0].mxu0
      %v923 = vadd.f32 0.0, %v922
      %v924 = vpop.f32.mrb[0].mxu0
      %925 = vdwg.mxu0
      %v926 = vpack.c.bf16 %v923, %v920
      %v928 = vsel %vm455, %v926, 0
      %v931 = vsel %vm583, %v430, 0
      %933 = vmatprep.subr.bf16.mxu0 0
      %934 = vmatpush1.bf16.msra.mxu0 %v931
      %935 = vmatprep.subr.bf16.mxu0 0
      %936 = vmatpush1.bf16.msra.mxu0 0
      %937 = vmatprep.subr.bf16.mxu0 0
      %938 = vmatpush1.bf16.msra.mxu0 0
      %939 = vmatprep.subr.bf16.mxu0 0
      %940 = vmatpush1.bf16.msra.mxu0 0
      %941 = vmatprep.subr.bf16.mxu0 0
      %942 = vmatpush1.bf16.msra.mxu0 0
      %943 = vmatprep.subr.bf16.mxu0 0
      %944 = vmatpush1.bf16.msra.mxu0 0
      %945 = vmatprep.subr.bf16.mxu0 0
      %946 = vmatpush1.bf16.msra.mxu0 0
      %947 = vmatprep.subr.bf16.mxu0 0
      %948 = vmatpush1.bf16.msra.mxu0 0
      %949 = vmatprep.subr.bf16.mxu0 0
      %950 = vmatpush1.bf16.msra.mxu0 0
      %951 = vmatprep.subr.bf16.mxu0 0
      %952 = vmatpush1.bf16.msra.mxu0 0
      %953 = vmatprep.subr.bf16.mxu0 0
      %954 = vmatpush1.bf16.msra.mxu0 0
      %955 = vmatprep.subr.bf16.mxu0 0
      %956 = vmatpush1.bf16.msra.mxu0 0
      %957 = vmatprep.subr.bf16.mxu0 0
      %958 = vmatpush1.bf16.msra.mxu0 0
      %959 = vmatprep.subr.bf16.mxu0 0
      %960 = vmatpush1.bf16.msra.mxu0 0
      %961 = vmatprep.subr.bf16.mxu0 0
      %962 = vmatpush1.bf16.msra.mxu0 0
      %963 = vmatprep.subr.bf16.mxu0 0
      %964 = vmatpush1.bf16.msra.mxu0 0
      %965 = vmatprep.mubr.bf16.mxu0 0
      %966 = vmatmul.mubr.bf16.gmra.mrb[0].mxu0 %v928
      %v967 = vpop.f32.mrb[0].mxu0
      %v968 = vadd.f32 0.0, %v967
      %v969 = vpop.f32.mrb[0].mxu0
      %v970 = vpop.f32.mrb[0].mxu0
      %v971 = vadd.f32 0.0, %v970
      %v972 = vpop.f32.mrb[0].mxu0
      %973 = vdwg.mxu0
      %v974 = vadd.f32 %v801, %v968
      %v975 = vadd.f32 %v802, %v971
      %976 = vrot.lane.b32.xlu0 %v449, 104
      %v977 = vpop.permute.xlu0 %976
      %978 = vrot.lane.b32.xlu0 %v454, 104
      %v979 = vpop.permute.xlu0 %978
      %v981 = vsel %vm455, %v977, 0
      %v984 = vsel %vm455, %v979, 0
      %986 = vmatprep.subr.bf16.mxu0 0
      %987 = vmatpush1.bf16.xpose.msra.mxu0 %v984
      %988 = vmatprep.subr.bf16.mxu0 0
      %989 = vmatpush1.bf16.xpose.msra.mxu0 0
      %990 = vmatprep.subr.bf16.mxu0 0
      %991 = vmatpush1.bf16.xpose.msra.mxu0 0
      %992 = vmatprep.subr.bf16.mxu0 0
      %993 = vmatpush1.bf16.xpose.msra.mxu0 0
      %994 = vmatprep.subr.bf16.mxu0 0
      %995 = vmatpush1.bf16.xpose.msra.mxu0 0
      %996 = vmatprep.subr.bf16.mxu0 0
      %997 = vmatpush1.bf16.xpose.msra.mxu0 0
      %998 = vmatprep.subr.bf16.mxu0 0
      %999 = vmatpush1.bf16.xpose.msra.mxu0 0
      %1000 = vmatprep.subr.bf16.mxu0 0
      %1001 = vmatpush1.bf16.xpose.msra.mxu0 0
      %1002 = vmatprep.subr.bf16.mxu0 0
      %1003 = vmatpush1.bf16.xpose.msra.mxu0 0
      %1004 = vmatprep.subr.bf16.mxu0 0
      %1005 = vmatpush1.bf16.xpose.msra.mxu0 0
      %1006 = vmatprep.subr.bf16.mxu0 0
      %1007 = vmatpush1.bf16.xpose.msra.mxu0 0
      %1008 = vmatprep.subr.bf16.mxu0 0
      %1009 = vmatpush1.bf16.xpose.msra.mxu0 0
      %1010 = vmatprep.subr.bf16.mxu0 0
      %1011 = vmatpush1.bf16.xpose.msra.mxu0 0
      %1012 = vmatprep.subr.bf16.mxu0 0
      %1013 = vmatpush1.bf16.xpose.msra.mxu0 0
      %1014 = vmatprep.subr.bf16.mxu0 0
      %1015 = vmatpush1.bf16.xpose.msra.mxu0 0
      %1016 = vmatprep.subr.bf16.mxu0 0
      %1017 = vmatpush1.bf16.xpose.msra.mxu0 0
      %1018 = vmatprep.mubr.bf16.mxu0 0
      %1019 = vmatmul.mubr.bf16.gmra.mrb[0].mxu0 %v981
      %v1020 = vpop.f32.mrb[0].mxu0
      %v1021 = vadd.f32 0.0, %v1020
      %v1022 = vpop.f32.mrb[0].mxu0
      %v1023 = vpop.f32.mrb[0].mxu0
      %v1024 = vadd.f32 0.0, %v1023
      %v1025 = vpop.f32.mrb[0].mxu0
      %1026 = vdwg.mxu0
      %v1027 = vmul.f32 %v1021, 0.35355338
      %v1028 = vmul.f32 %v1024, 0.35355338
      %v1029 = vsel %vm505, %v1027, -inf
      %1030 = vmax.xlane.f32.xlu0 %v1029
      %v1031 = vpop.xlane.xlu0 %1030
      %v1032 = vsel %vm505, %v1028, -inf
      %1033 = vmax.xlane.f32.xlu0 %v1032
      %v1034 = vpop.xlane.xlu0 %1033
      %v1035 = vsub.f32 %v1027, %v1031
      %v1036 = vsub.f32 %v1028, %v1034
      %v1037 = vmul.f32 %v1035, 1.442695
      %v1038 = vpow.pop %v1037
      %v1039 = vmul.f32 %v1036, 1.442695
      %v1040 = vpow.pop %v1039
      %v1041 = vsel %vm505, %v1038, 0.0
      %1042 = vadd.xlane.f32.xlu0 %v1041
      %v1043 = vpop.xlane.xlu0 %1042
      %v1044 = vsel %vm505, %v1040, 0.0
      %1045 = vadd.xlane.f32.xlu0 %v1044
      %v1046 = vpop.xlane.xlu0 %1045
      %v1047 = vrcp.pop %v1043
      %v1048 = vmul.f32 %v1038, %v1047
      %v1049 = vrcp.pop %v1046
      %v1050 = vmul.f32 %v1040, %v1049
      %v1051 = vpack.c.bf16 %v1050, %v1048
      %1052 = vrot.lane.b32.xlu0 %v533, 104
      %v1053 = vpop.permute.xlu0 %1052
      %v1056 = vsel %vm505, %v1051, 0
      %1058 = vmatprep.subr.bf16.mxu0 0
      %1059 = vmatpush1.bf16.msra.mxu0 %v1053
      %1060 = vmatprep.subr.bf16.mxu0 0
      %1061 = vmatpush1.bf16.msra.mxu0 0
      %1062 = vmatprep.subr.bf16.mxu0 0
      %1063 = vmatpush1.bf16.msra.mxu0 0
      %1064 = vmatprep.subr.bf16.mxu0 0
      %1065 = vmatpush1.bf16.msra.mxu0 0
      %1066 = vmatprep.subr.bf16.mxu0 0
      %1067 = vmatpush1.bf16.msra.mxu0 0
      %1068 = vmatprep.subr.bf16.mxu0 0
      %1069 = vmatpush1.bf16.msra.mxu0 0
      %1070 = vmatprep.subr.bf16.mxu0 0
      %1071 = vmatpush1.bf16.msra.mxu0 0
      %1072 = vmatprep.subr.bf16.mxu0 0
      %1073 = vmatpush1.bf16.msra.mxu0 0
      %1074 = vmatprep.subr.bf16.mxu0 0
      %1075 = vmatpush1.bf16.msra.mxu0 0
      %1076 = vmatprep.subr.bf16.mxu0 0
      %1077 = vmatpush1.bf16.msra.mxu0 0
      %1078 = vmatprep.subr.bf16.mxu0 0
      %1079 = vmatpush1.bf16.msra.mxu0 0
      %1080 = vmatprep.subr.bf16.mxu0 0
      %1081 = vmatpush1.bf16.msra.mxu0 0
      %1082 = vmatprep.subr.bf16.mxu0 0
      %1083 = vmatpush1.bf16.msra.mxu0 0
      %1084 = vmatprep.subr.bf16.mxu0 0
      %1085 = vmatpush1.bf16.msra.mxu0 0
      %1086 = vmatprep.subr.bf16.mxu0 0
      %1087 = vmatpush1.bf16.msra.mxu0 0
      %1088 = vmatprep.subr.bf16.mxu0 0
      %1089 = vmatpush1.bf16.msra.mxu0 0
      %1090 = vmatprep.mubr.bf16.mxu0 0
      %1091 = vmatmul.mubr.bf16.gmra.mrb[0].mxu0 %v1056
      %v1092 = vpop.f32.mrb[0].mxu0
      %v1093 = vadd.f32 0.0, %v1092
      %v1094 = vpop.f32.mrb[0].mxu0
      %v1095 = vpop.f32.mrb[0].mxu0
      %v1096 = vadd.f32 0.0, %v1095
      %v1097 = vpop.f32.mrb[0].mxu0
      %1098 = vdwg.mxu0
      %v1099 = vpack.c.bf16 %v1096, %v1093
      %v1101 = vsel %vm455, %v1099, 0
      %v1104 = vsel %vm583, %v431, 0
      %1106 = vmatprep.subr.bf16.mxu0 0
      %1107 = vmatpush1.bf16.msra.mxu0 %v1104
      %1108 = vmatprep.subr.bf16.mxu0 0
      %1109 = vmatpush1.bf16.msra.mxu0 0
      %1110 = vmatprep.subr.bf16.mxu0 0
      %1111 = vmatpush1.bf16.msra.mxu0 0
      %1112 = vmatprep.subr.bf16.mxu0 0
      %1113 = vmatpush1.bf16.msra.mxu0 0
      %1114 = vmatprep.subr.bf16.mxu0 0
      %1115 = vmatpush1.bf16.msra.mxu0 0
      %1116 = vmatprep.subr.bf16.mxu0 0
      %1117 = vmatpush1.bf16.msra.mxu0 0
      %1118 = vmatprep.subr.bf16.mxu0 0
      %1119 = vmatpush1.bf16.msra.mxu0 0
      %1120 = vmatprep.subr.bf16.mxu0 0
      %1121 = vmatpush1.bf16.msra.mxu0 0
      %1122 = vmatprep.subr.bf16.mxu0 0
      %1123 = vmatpush1.bf16.msra.mxu0 0
      %1124 = vmatprep.subr.bf16.mxu0 0
      %1125 = vmatpush1.bf16.msra.mxu0 0
      %1126 = vmatprep.subr.bf16.mxu0 0
      %1127 = vmatpush1.bf16.msra.mxu0 0
      %1128 = vmatprep.subr.bf16.mxu0 0
      %1129 = vmatpush1.bf16.msra.mxu0 0
      %1130 = vmatprep.subr.bf16.mxu0 0
      %1131 = vmatpush1.bf16.msra.mxu0 0
      %1132 = vmatprep.subr.bf16.mxu0 0
      %1133 = vmatpush1.bf16.msra.mxu0 0
      %1134 = vmatprep.subr.bf16.mxu0 0
      %1135 = vmatpush1.bf16.msra.mxu0 0
      %1136 = vmatprep.subr.bf16.mxu0 0
      %1137 = vmatpush1.bf16.msra.mxu0 0
      %1138 = vmatprep.mubr.bf16.mxu0 0
      %1139 = vmatmul.mubr.bf16.gmra.mrb[0].mxu0 %v1101
      %v1140 = vpop.f32.mrb[0].mxu0
      %v1141 = vadd.f32 0.0, %v1140
      %v1142 = vpop.f32.mrb[0].mxu0
      %v1143 = vpop.f32.mrb[0].mxu0
      %v1144 = vadd.f32 0.0, %v1143
      %v1145 = vpop.f32.mrb[0].mxu0
      %1146 = vdwg.mxu0
      %v1147 = vadd.f32 %v974, %v1141
      %v1148 = vadd.f32 %v975, %v1144
      %vm1149 = vcmask 261120
      %v1150 = vsel %vm1149, %v1147, 0.0
      %1151 = vadd.xlane.f32.xlu0 %v1150
      %v1152 = vpop.xlane.xlu0 %1151
      %v1153 = vsel %vm1149, %v1148, 0.0
      %1154 = vadd.xlane.f32.xlu0 %v1153
      %v1155 = vpop.xlane.xlu0 %1154
      %v1156 = vrcp.pop 32.0
      %v1157 = vmul.f32 %v1152, %v1156
      %v1158 = vmul.f32 %v1155, %v1156
      %v1159 = vsub.f32 %v1147, %v1157
      %v1160 = vsub.f32 %v1148, %v1158
      %v1161 = vmul.f32 %v1159, %v1159
      %v1162 = vmul.f32 %v1160, %v1160
      %v1163 = vsel %vm1149, %v1161, 0.0
      %1164 = vadd.xlane.f32.xlu0 %v1163
      %v1165 = vpop.xlane.xlu0 %1164
      %v1166 = vsel %vm1149, %v1162, 0.0
      %1167 = vadd.xlane.f32.xlu0 %v1166
      %v1168 = vpop.xlane.xlu0 %1167
      %v1169 = vmul.f32 %v1165, %v1156
      %v1170 = vmul.f32 %v1168, %v1156
      %v1171 = vadd.f32 %v1169, 1e-05
      %v1172 = vadd.f32 %v1170, 1e-05
      %v1173 = vrsqrt.pop %v1171
      %v1174 = vrsqrt.pop %v1172
      %v1175 = vmul.f32 %v1159, %v1173
      %v1176 = vmul.f32 %v1160, %v1174
      %v1177 = vld [vmem:[%s6] sm:$0x1]
      %v1179 = vlaneseq
      %v1180 = vshrl.u32 %v1179, 7
      %v1181 = vsub.s32 0, %v1180
      %v1182 = vrot.slane %v1177, %v1181
      %v1184 = vmul.f32 %v1175, %v1182
      %v1185 = vmul.f32 %v1176, %v1182
      %v1186 = vld [vmem:[%s7] sm:$0x1]
      %v1188 = vlaneseq
      %v1189 = vshrl.u32 %v1188, 7
      %v1190 = vsub.s32 0, %v1189
      %v1191 = vrot.slane %v1186, %v1190
      %v1193 = vadd.f32 %v1184, %v1191
      %v1194 = vadd.f32 %v1185, %v1191
      %v1195 = vpack.c.bf16 %v1194, %v1193
      %v1197 = vunpack.c.l.b16 %v1195
      %v1198 = vunpack.c.h.b16 %v1195
      %v1199 = vpack.c.b16 %v1197, %v1197
      %v1200 = vpack.c.b16 %v1198, %v1198
      %vm1203 = vcmask 257024
      %1204 = vst.msk [vmem:[%s419] sm:$0xf] %vm1203, %v1199
      %1205 = vst.msk [vmem:[%s419 + $0x4] sm:$0xf] %vm1203, %v1200
      %s1206 = smul.u32 2, %s24
      %p1207 = scmp.lt.s32.totalorder %s23, 1
      %s1208 = scalar_select %p1207, %s23, 1
      %p1209 = scmp.lt.s32.totalorder %s1206, 1
      %s1210 = scalar_select %p1209, %s1206, 1
      %s1211 = smul.addr %s1208, 2
      %s1212 = sadd.s32 %s1210, %s1211
      %s1213 = smul.addr %s1212, 4
      %s1214 = scalar_lea.vmem %s8, %s1213
      // Predicated region
      $region53: #{_lambda_.24} parent=51 // pred_check
        %p1215 = pneg %p243
      $region54: #{_lambda_.24} parent=51 // pred_check_branch
        %1217 = sbr.rel (%p1215) target = $region56
      $region55: #{_lambda_.24} parent=51 // pred_region
        %s1218 = smul.u32 2, %s24
      $region56: #{_lambda_.24} parent=51 // pred_fallthru
        _
    $region52: #{_lambda_.24} parent=5 // pred_fallthru
      _
    %p1219 = scmp.le.s32.totalorder 2, %s14
    // Predicated region
    $region57: #{_lambda_.24} parent=5 // pred_check
      %p1220 = pneg %p1219
    $region58: #{_lambda_.24} parent=5 // pred_check_branch
      %1222 = sbr.rel (%p1220) target = $region60
    $region59: #{_lambda_.24} parent=5 // pred_region
      %s1223 = ssub.s32 %s14, 2
      // Predicated region
      $region61: #{_lambda_.24} parent=59 // pred_check
        %p1224 = pneg %p249
      $region62: #{_lambda_.24} parent=59 // pred_check_branch
        %1226 = sbr.rel (%p1224) target = $region64
      $region63: #{_lambda_.24} parent=59 // pred_region
        %s1227 = smul.u32 2, %s26
        %p1228 = scmp.lt.s32.totalorder %s25, 1
        %s1229 = scalar_select %p1228, %s25, 1
        %p1230 = scmp.lt.s32.totalorder %s1227, 1
        %s1231 = scalar_select %p1230, %s1227, 1
        %s1232 = smul.addr %s1229, 2
        %s1233 = sadd.s32 %s1231, %s1232
        %s1234 = smul.addr %s1233, 4
        %s1235 = scalar_lea.vmem %s8, %s1234
      $region64: #{_lambda_.24} parent=59 // pred_fallthru
        _
    $region60: #{_lambda_.24} parent=5 // pred_fallthru
      _
  $region6: #{_lambda_.24} parent=0 // loop_footer
    %s18 = sadd.s32 1, %s14
  $region7: #{_lambda_.24} parent=0 // loop_footer_branch
    %13 = sbr.rel target = $region3
  $region8: #{_lambda_.24} parent=0 // loop_exit
    _

// kernel: _lambda_.39
$region0: #{_lambda_.39}
  #allocation0 [shape = 'u32[]', space=smem, size = 0x4, offset = 0x4, fixed_abs, tag = 'smem constant byte address 0x4 - core index']
  #allocation1 [shape = 'u32[144,128]{1,0:T(1,128)}', space=vmem, size = 0x12000, scoped, tag = 'internal scratch']
  %s0 = inlined_call_operand.vmem [shape: bf16[32,32], index: 0, kind: input, shape index: {}]
  %s1 = inlined_call_operand.vmem [shape: bf16[32,32], index: 1, kind: input, shape index: {}]
  %s2 = inlined_call_operand.vmem [shape: bf16[32,32], index: 2, kind: input, shape index: {}]
  %s3 = inlined_call_operand.vmem [shape: f32[1,32], index: 3, kind: input, shape index: {}]
  %s4 = inlined_call_operand.vmem [shape: bf16[32,32], index: 4, kind: input, shape index: {}]
  %s5 = inlined_call_operand.vmem [shape: f32[1,32], index: 5, kind: input, shape index: {}]
  %s6 = inlined_call_operand.vmem [shape: bf16[32,32], index: 6, kind: output, shape index: {0}]
  %s7 = inlined_call_operand.vmem [shape: bf16[32,32], index: 7, kind: output, shape index: {1}]
  %8 = xla_tuple %s6, %s7
  %s9 = sld [smem:[#allocation0]]
  $region42: #{_lambda_.39} parent=0
    _
  %s11 = ssub.s32 1, %s9
  %s12 = scalar_select 0, %s11, %s9
  // Predicated region
  $region2: #{_lambda_.39} parent=0 // pred_check
    _
  $region3: #{_lambda_.39} parent=0 // pred_check_branch
    %14 = sbr.rel (0) target = $region5
  $region4: #{_lambda_.39} parent=0 // pred_region
    _
  $region5: #{_lambda_.39} parent=0 // pred_fallthru
    _
  // Predicated region
  $region6: #{_lambda_.39} parent=0 // pred_check
    _
  $region7: #{_lambda_.39} parent=0 // pred_check_branch
    %16 = sbr.rel (0) target = $region9
  $region8: #{_lambda_.39} parent=0 // pred_region
    _
  $region9: #{_lambda_.39} parent=0 // pred_fallthru
    _
  // Predicated region
  $region10: #{_lambda_.39} parent=0 // pred_check
    _
  $region11: #{_lambda_.39} parent=0 // pred_check_branch
    %18 = sbr.rel (0) target = $region13
  $region12: #{_lambda_.39} parent=0 // pred_region
    _
  $region13: #{_lambda_.39} parent=0 // pred_fallthru
    _
  // Predicated region
  $region14: #{_lambda_.39} parent=0 // pred_check
    _
  $region15: #{_lambda_.39} parent=0 // pred_check_branch
    %20 = sbr.rel (0) target = $region17
  $region16: #{_lambda_.39} parent=0 // pred_region
    _
  $region17: #{_lambda_.39} parent=0 // pred_fallthru
    _
  // Predicated region
  $region18: #{_lambda_.39} parent=0 // pred_check
    _
  $region19: #{_lambda_.39} parent=0 // pred_check_branch
    %22 = sbr.rel (0) target = $region21
  $region20: #{_lambda_.39} parent=0 // pred_region
    _
  $region21: #{_lambda_.39} parent=0 // pred_fallthru
    _
  // Predicated region
  $region22: #{_lambda_.39} parent=0 // pred_check
    _
  $region23: #{_lambda_.39} parent=0 // pred_check_branch
    %24 = sbr.rel (0) target = $region25
  $region24: #{_lambda_.39} parent=0 // pred_region
    _
  $region25: #{_lambda_.39} parent=0 // pred_fallthru
    _
  %v26 = vld [vmem:[%s0] sm:$0xf]
  %v27 = vld [vmem:[%s0 + $0x4] sm:$0xf]
  %v28 = vld [vmem:[%s0 + $0x8] sm:$0xf]
  %v29 = vld [vmem:[%s0 + $0xc] sm:$0xf]
  %v30 = vunpack.c.l.bf16 %v26
  %v31 = vunpack.c.l.bf16 %v27
  %v32 = vunpack.c.l.bf16 %v28
  %v33 = vunpack.c.l.bf16 %v29
  %v34 = vld [vmem:[%s1] sm:$0xf]
  %v35 = vld [vmem:[%s1 + $0x4] sm:$0xf]
  %v36 = vld [vmem:[%s1 + $0x8] sm:$0xf]
  %v37 = vld [vmem:[%s1 + $0xc] sm:$0xf]
  %v38 = vunpack.c.l.bf16 %v34
  %v39 = vunpack.c.l.bf16 %v35
  %v40 = vunpack.c.l.bf16 %v36
  %v41 = vunpack.c.l.bf16 %v37
  %v42 = vadd.f32 %v30, %v38
  %v43 = vadd.f32 %v31, %v39
  %v44 = vadd.f32 %v32, %v40
  %v45 = vadd.f32 %v33, %v41
  %v46 = vpack.c.bf16 %v43, %v42
  %v47 = vpack.c.bf16 %v45, %v44
  %v48 = vld [vmem:[%s2] sm:$0xf]
  %v49 = vld [vmem:[%s2 + $0x4] sm:$0xf]
  %v50 = vld [vmem:[%s2 + $0x8] sm:$0xf]
  %v51 = vld [vmem:[%s2 + $0xc] sm:$0xf]
  %v52 = vld [vmem:[%s3] sm:$0x1]
  %v54 = vlaneseq
  %v55 = vshrl.u32 %v54, 7
  %v56 = vsub.s32 0, %v55
  %v57 = vrot.slane %v52, %v56
  %v63 = vunpack.c.l.b16 %v48
  %v64 = vunpack.c.l.b16 %v49
  %v65 = vunpack.c.l.b16 %v50
  %v66 = vunpack.c.l.b16 %v51
  %v67 = vpack.c.b16 %v64, %v63
  %v68 = vpack.c.b16 %v66, %v65
  %vm71 = vcmask 261120
  %v73 = vsel %vm71, %v46, 0
  %v76 = vsel %vm71, %v47, 0
  %78 = vmatprep.subr.bf16.mxu0 0
  %79 = vmatpush1.bf16.msra.mxu0 %v67
  %80 = vmatprep.subr.bf16.mxu0 0
  %81 = vmatpush1.bf16.msra.mxu0 %v68
  %82 = vmatprep.subr.bf16.mxu0 0
  %83 = vmatpush1.bf16.msra.mxu0 0
  %84 = vmatprep.subr.bf16.mxu0 0
  %85 = vmatpush1.bf16.msra.mxu0 0
  %86 = vmatprep.subr.bf16.mxu0 0
  %87 = vmatpush1.bf16.msra.mxu0 0
  %88 = vmatprep.subr.bf16.mxu0 0
  %89 = vmatpush1.bf16.msra.mxu0 0
  %90 = vmatprep.subr.bf16.mxu0 0
  %91 = vmatpush1.bf16.msra.mxu0 0
  %92 = vmatprep.subr.bf16.mxu0 0
  %93 = vmatpush1.bf16.msra.mxu0 0
  %94 = vmatprep.subr.bf16.mxu0 0
  %95 = vmatpush1.bf16.msra.mxu0 0
  %96 = vmatprep.subr.bf16.mxu0 0
  %97 = vmatpush1.bf16.msra.mxu0 0
  %98 = vmatprep.subr.bf16.mxu0 0
  %99 = vmatpush1.bf16.msra.mxu0 0
  %100 = vmatprep.subr.bf16.mxu0 0
  %101 = vmatpush1.bf16.msra.mxu0 0
  %102 = vmatprep.subr.bf16.mxu0 0
  %103 = vmatpush1.bf16.msra.mxu0 0
  %104 = vmatprep.subr.bf16.mxu0 0
  %105 = vmatpush1.bf16.msra.mxu0 0
  %106 = vmatprep.subr.bf16.mxu0 0
  %107 = vmatpush1.bf16.msra.mxu0 0
  %108 = vmatprep.subr.bf16.mxu0 0
  %109 = vmatpush1.bf16.msra.mxu0 0
  %110 = vmatprep.mubr.bf16.mxu0 0
  %111 = vmatmul.mubr.bf16.gmra.mrb[0].mxu0 %v73
  %v112 = vpop.f32.mrb[0].mxu0
  %v113 = vadd.f32 %v57, %v112
  %v114 = vpop.f32.mrb[0].mxu0
  %v115 = vpop.f32.mrb[0].mxu0
  %v116 = vadd.f32 %v57, %v115
  %v117 = vpop.f32.mrb[0].mxu0
  %118 = vmatprep.mubr.bf16.mxu0 0
  %119 = vmatmul.mubr.bf16.gmra.mrb[0].mxu0 %v76
  %v120 = vpop.f32.mrb[0].mxu0
  %v121 = vadd.f32 %v57, %v120
  %v122 = vpop.f32.mrb[0].mxu0
  %v123 = vpop.f32.mrb[0].mxu0
  %v124 = vadd.f32 %v57, %v123
  %v125 = vpop.f32.mrb[0].mxu0
  %126 = vdwg.mxu0
  %v127 = vpack.c.bf16 %v116, %v113
  %v128 = vpack.c.bf16 %v124, %v121
  %v131 = vunpack.c.l.b16 %v127
  %v132 = vunpack.c.h.b16 %v127
  %v133 = vunpack.c.l.b16 %v128
  %v134 = vunpack.c.h.b16 %v128
  %v135 = vpack.c.b16 %v131, %v131
  %v136 = vpack.c.b16 %v132, %v132
  %v137 = vpack.c.b16 %v133, %v133
  %v138 = vpack.c.b16 %v134, %v134
  %vm143 = vcmask 257024
  %144 = vst.msk [vmem:[%s6] sm:$0xf] %vm143, %v135
  %145 = vst.msk [vmem:[%s6 + $0x4] sm:$0xf] %vm143, %v136
  %146 = vst.msk [vmem:[%s6 + $0x8] sm:$0xf] %vm143, %v137
  %147 = vst.msk [vmem:[%s6 + $0xc] sm:$0xf] %vm143, %v138
  %v148 = vld [vmem:[%s4] sm:$0xf]
  %v149 = vld [vmem:[%s4 + $0x4] sm:$0xf]
  %v150 = vld [vmem:[%s4 + $0x8] sm:$0xf]
  %v151 = vld [vmem:[%s4 + $0xc] sm:$0xf]
  %v152 = vld [vmem:[%s5] sm:$0x1]
  %v154 = vlaneseq
  %v155 = vshrl.u32 %v154, 7
  %v156 = vsub.s32 0, %v155
  %v157 = vrot.slane %v152, %v156
  %v163 = vunpack.c.l.b16 %v26
  %v164 = vunpack.c.l.b16 %v27
  %v165 = vunpack.c.l.b16 %v28
  %v166 = vunpack.c.l.b16 %v29
  %v167 = vpack.c.b16 %v164, %v163
  %v168 = vpack.c.b16 %v166, %v165
  %v173 = vunpack.c.l.b16 %v148
  %v174 = vunpack.c.l.b16 %v149
  %v175 = vunpack.c.l.b16 %v150
  %v176 = vunpack.c.l.b16 %v151
  %v177 = vpack.c.b16 %v174, %v173
  %v178 = vpack.c.b16 %v176, %v175
  %v182 = vsel %vm71, %v167, 0
  %v185 = vsel %vm71, %v168, 0
  %187 = vmatprep.subr.bf16.mxu0 0
  %188 = vmatpush1.bf16.msra.mxu0 %v177
  %189 = vmatprep.subr.bf16.mxu0 0
  %190 = vmatpush1.bf16.msra.mxu0 %v178
  %191 = vmatprep.subr.bf16.mxu0 0
  %192 = vmatpush1.bf16.msra.mxu0 0
  %193 = vmatprep.subr.bf16.mxu0 0
  %194 = vmatpush1.bf16.msra.mxu0 0
  %195 = vmatprep.subr.bf16.mxu0 0
  %196 = vmatpush1.bf16.msra.mxu0 0
  %197 = vmatprep.subr.bf16.mxu0 0
  %198 = vmatpush1.bf16.msra.mxu0 0
  %199 = vmatprep.subr.bf16.mxu0 0
  %200 = vmatpush1.bf16.msra.mxu0 0
  %201 = vmatprep.subr.bf16.mxu0 0
  %202 = vmatpush1.bf16.msra.mxu0 0
  %203 = vmatprep.subr.bf16.mxu0 0
  %204 = vmatpush1.bf16.msra.mxu0 0
  %205 = vmatprep.subr.bf16.mxu0 0
  %206 = vmatpush1.bf16.msra.mxu0 0
  %207 = vmatprep.subr.bf16.mxu0 0
  %208 = vmatpush1.bf16.msra.mxu0 0
  %209 = vmatprep.subr.bf16.mxu0 0
  %210 = vmatpush1.bf16.msra.mxu0 0
  %211 = vmatprep.subr.bf16.mxu0 0
  %212 = vmatpush1.bf16.msra.mxu0 0
  %213 = vmatprep.subr.bf16.mxu0 0
  %214 = vmatpush1.bf16.msra.mxu0 0
  %215 = vmatprep.subr.bf16.mxu0 0
  %216 = vmatpush1.bf16.msra.mxu0 0
  %217 = vmatprep.subr.bf16.mxu0 0
  %218 = vmatpush1.bf16.msra.mxu0 0
  %219 = vmatprep.mubr.bf16.mxu0 0
  %220 = vmatmul.mubr.bf16.gmra.mrb[0].mxu0 %v182
  %v221 = vpop.f32.mrb[0].mxu0
  %v222 = vadd.f32 %v157, %v221
  %v223 = vpop.f32.mrb[0].mxu0
  %v224 = vpop.f32.mrb[0].mxu0
  %v225 = vadd.f32 %v157, %v224
  %v226 = vpop.f32.mrb[0].mxu0
  %227 = vmatprep.mubr.bf16.mxu0 0
  %228 = vmatmul.mubr.bf16.gmra.mrb[0].mxu0 %v185
  %v229 = vpop.f32.mrb[0].mxu0
  %v230 = vadd.f32 %v157, %v229
  %v231 = vpop.f32.mrb[0].mxu0
  %v232 = vpop.f32.mrb[0].mxu0
  %v233 = vadd.f32 %v157, %v232
  %v234 = vpop.f32.mrb[0].mxu0
  %235 = vdwg.mxu0
  %v236 = vpack.c.bf16 %v225, %v222
  %v237 = vpack.c.bf16 %v233, %v230
  %v240 = vunpack.c.l.b16 %v236
  %v241 = vunpack.c.h.b16 %v236
  %v242 = vunpack.c.l.b16 %v237
  %v243 = vunpack.c.h.b16 %v237
  %v244 = vpack.c.b16 %v240, %v240
  %v245 = vpack.c.b16 %v241, %v241
  %v246 = vpack.c.b16 %v242, %v242
  %v247 = vpack.c.b16 %v243, %v243
  %252 = vst.msk [vmem:[%s7] sm:$0xf] %vm143, %v244
  %253 = vst.msk [vmem:[%s7 + $0x4] sm:$0xf] %vm143, %v245
  %254 = vst.msk [vmem:[%s7 + $0x8] sm:$0xf] %vm143, %v246
  %255 = vst.msk [vmem:[%s7 + $0xc] sm:$0xf] %vm143, %v247
  // Predicated region
  $region26: #{_lambda_.39} parent=0 // pred_check
    _
  $region27: #{_lambda_.39} parent=0 // pred_check_branch
    %257 = sbr.rel (0) target = $region29
  $region28: #{_lambda_.39} parent=0 // pred_region
    _
  $region29: #{_lambda_.39} parent=0 // pred_fallthru
    _
  // Predicated region
  $region30: #{_lambda_.39} parent=0 // pred_check
    _
  $region31: #{_lambda_.39} parent=0 // pred_check_branch
    %259 = sbr.rel (0) target = $region33
  $region32: #{_lambda_.39} parent=0 // pred_region
    _
  $region33: #{_lambda_.39} parent=0 // pred_fallthru
    _
  // Predicated region
  $region34: #{_lambda_.39} parent=0 // pred_check
    _
  $region35: #{_lambda_.39} parent=0 // pred_check_branch
    %261 = sbr.rel (0) target = $region37
  $region36: #{_lambda_.39} parent=0 // pred_region
    _
  $region37: #{_lambda_.39} parent=0 // pred_fallthru
    _
  // Predicated region
  $region38: #{_lambda_.39} parent=0 // pred_check
    _
  $region39: #{_lambda_.39} parent=0 // pred_check_branch
    %263 = sbr.rel (0) target = $region41
  $region40: #{_lambda_.39} parent=0 // pred_region
    _
  $region41: #{_lambda_.39} parent=0 // pred_fallthru
    _

// kernel: _lambda_.31
$region0: #{_lambda_.31}
  #allocation0 [shape = 'u32[]', space=smem, size = 0x4, offset = 0x4, fixed_abs, tag = 'smem constant byte address 0x4 - core index']
  #allocation1 [shape = 'u32[144,128]{1,0:T(1,128)}', space=vmem, size = 0x12000, scoped, tag = 'internal scratch']
  %s0 = inlined_call_operand.vmem [shape: bf16[16,32], index: 0, kind: input, shape index: {}]
  %s1 = inlined_call_operand.vmem [shape: bf16[16,32], index: 1, kind: input, shape index: {}]
  %s2 = inlined_call_operand.vmem [shape: bf16[32,32], index: 2, kind: input, shape index: {}]
  %s3 = inlined_call_operand.vmem [shape: f32[1,32], index: 3, kind: input, shape index: {}]
  %s4 = inlined_call_operand.vmem [shape: bf16[16,32], index: 4, kind: output, shape index: {}]
  %s5 = sld [smem:[#allocation0]]
  $region26: #{_lambda_.31} parent=0
    _
  %s7 = ssub.s32 1, %s5
  %s8 = scalar_select 0, %s7, %s5
  // Predicated region
  $region2: #{_lambda_.31} parent=0 // pred_check
    _
  $region3: #{_lambda_.31} parent=0 // pred_check_branch
    %10 = sbr.rel (0) target = $region5
  $region4: #{_lambda_.31} parent=0 // pred_region
    _
  $region5: #{_lambda_.31} parent=0 // pred_fallthru
    _
  // Predicated region
  $region6: #{_lambda_.31} parent=0 // pred_check
    _
  $region7: #{_lambda_.31} parent=0 // pred_check_branch
    %12 = sbr.rel (0) target = $region9
  $region8: #{_lambda_.31} parent=0 // pred_region
    _
  $region9: #{_lambda_.31} parent=0 // pred_fallthru
    _
  // Predicated region
  $region10: #{_lambda_.31} parent=0 // pred_check
    _
  $region11: #{_lambda_.31} parent=0 // pred_check_branch
    %14 = sbr.rel (0) target = $region13
  $region12: #{_lambda_.31} parent=0 // pred_region
    _
  $region13: #{_lambda_.31} parent=0 // pred_fallthru
    _
  // Predicated region
  $region14: #{_lambda_.31} parent=0 // pred_check
    _
  $region15: #{_lambda_.31} parent=0 // pred_check_branch
    %16 = sbr.rel (0) target = $region17
  $region16: #{_lambda_.31} parent=0 // pred_region
    _
  $region17: #{_lambda_.31} parent=0 // pred_fallthru
    _
  %v18 = vld [vmem:[%s0] sm:$0xf]
  %v19 = vld [vmem:[%s0 + $0x4] sm:$0xf]
  %v20 = vunpack.c.l.bf16 %v18
  %v21 = vunpack.c.l.bf16 %v19
  %v22 = vld [vmem:[%s1] sm:$0xf]
  %v23 = vld [vmem:[%s1 + $0x4] sm:$0xf]
  %v24 = vunpack.c.l.bf16 %v22
  %v25 = vunpack.c.l.bf16 %v23
  %v26 = vadd.f32 %v20, %v24
  %v27 = vadd.f32 %v21, %v25
  %v28 = vpack.c.bf16 %v27, %v26
  %v29 = vld [vmem:[%s2] sm:$0xf]
  %v30 = vld [vmem:[%s2 + $0x4] sm:$0xf]
  %v31 = vld [vmem:[%s2 + $0x8] sm:$0xf]
  %v32 = vld [vmem:[%s2 + $0xc] sm:$0xf]
  %v33 = vld [vmem:[%s3] sm:$0x1]
  %v35 = vlaneseq
  %v36 = vshrl.u32 %v35, 7
  %v37 = vsub.s32 0, %v36
  %v38 = vrot.slane %v33, %v37
  %v44 = vunpack.c.l.b16 %v29
  %v45 = vunpack.c.l.b16 %v30
  %v46 = vunpack.c.l.b16 %v31
  %v47 = vunpack.c.l.b16 %v32
  %v48 = vpack.c.b16 %v45, %v44
  %v49 = vpack.c.b16 %v47, %v46
  %vm52 = vcmask 261120
  %v54 = vsel %vm52, %v28, 0
  %56 = vmatprep.subr.bf16.mxu0 0
  %57 = vmatpush1.bf16.msra.mxu0 %v48
  %58 = vmatprep.subr.bf16.mxu0 0
  %59 = vmatpush1.bf16.msra.mxu0 %v49
  %60 = vmatprep.subr.bf16.mxu0 0
  %61 = vmatpush1.bf16.msra.mxu0 0
  %62 = vmatprep.subr.bf16.mxu0 0
  %63 = vmatpush1.bf16.msra.mxu0 0
  %64 = vmatprep.subr.bf16.mxu0 0
  %65 = vmatpush1.bf16.msra.mxu0 0
  %66 = vmatprep.subr.bf16.mxu0 0
  %67 = vmatpush1.bf16.msra.mxu0 0
  %68 = vmatprep.subr.bf16.mxu0 0
  %69 = vmatpush1.bf16.msra.mxu0 0
  %70 = vmatprep.subr.bf16.mxu0 0
  %71 = vmatpush1.bf16.msra.mxu0 0
  %72 = vmatprep.subr.bf16.mxu0 0
  %73 = vmatpush1.bf16.msra.mxu0 0
  %74 = vmatprep.subr.bf16.mxu0 0
  %75 = vmatpush1.bf16.msra.mxu0 0
  %76 = vmatprep.subr.bf16.mxu0 0
  %77 = vmatpush1.bf16.msra.mxu0 0
  %78 = vmatprep.subr.bf16.mxu0 0
  %79 = vmatpush1.bf16.msra.mxu0 0
  %80 = vmatprep.subr.bf16.mxu0 0
  %81 = vmatpush1.bf16.msra.mxu0 0
  %82 = vmatprep.subr.bf16.mxu0 0
  %83 = vmatpush1.bf16.msra.mxu0 0
  %84 = vmatprep.subr.bf16.mxu0 0
  %85 = vmatpush1.bf16.msra.mxu0 0
  %86 = vmatprep.subr.bf16.mxu0 0
  %87 = vmatpush1.bf16.msra.mxu0 0
  %88 = vmatprep.mubr.bf16.mxu0 0
  %89 = vmatmul.mubr.bf16.gmra.mrb[0].mxu0 %v54
  %v90 = vpop.f32.mrb[0].mxu0
  %v91 = vadd.f32 %v38, %v90
  %v92 = vpop.f32.mrb[0].mxu0
  %v93 = vpop.f32.mrb[0].mxu0
  %v94 = vadd.f32 %v38, %v93
  %v95 = vpop.f32.mrb[0].mxu0
  %96 = vdwg.mxu0
  %v97 = vpack.c.bf16 %v94, %v91
  %v99 = vunpack.c.l.b16 %v97
  %v100 = vunpack.c.h.b16 %v97
  %v101 = vpack.c.b16 %v99, %v99
  %v102 = vpack.c.b16 %v100, %v100
  %vm105 = vcmask 257024
  %106 = vst.msk [vmem:[%s4] sm:$0xf] %vm105, %v101
  %107 = vst.msk [vmem:[%s4 + $0x4] sm:$0xf] %vm105, %v102
  // Predicated region
  $region18: #{_lambda_.31} parent=0 // pred_check
    _
  $region19: #{_lambda_.31} parent=0 // pred_check_branch
    %109 = sbr.rel (0) target = $region21
  $region20: #{_lambda_.31} parent=0 // pred_region
    _
  $region21: #{_lambda_.31} parent=0 // pred_fallthru
    _
  // Predicated region
  $region22: #{_lambda_.31} parent=0 // pred_check
    _
  $region23: #{_lambda_.31} parent=0 // pred_check_branch
    %111 = sbr.rel (0) target = $region25
  $region24: #{_lambda_.31} parent=0 // pred_region
    _
  $region25: #{_lambda_.31} parent=0 // pred_fallthru
    _

// kernel: _lambda_.34
$region0: #{_lambda_.34}
  #allocation0 [shape = 'u32[]', space=smem, size = 0x4, offset = 0x4, fixed_abs, tag = 'smem constant byte address 0x4 - core index']
  #allocation1 [shape = 'u32[144,128]{1,0:T(1,128)}', space=vmem, size = 0x12000, scoped, tag = 'internal scratch']
  %s0 = inlined_call_operand.vmem [shape: bf16[16,32], index: 0, kind: input, shape index: {}]
  %s1 = inlined_call_operand.vmem [shape: bf16[32,64], index: 1, kind: input, shape index: {}]
  %s2 = inlined_call_operand.vmem [shape: f32[1,64], index: 2, kind: input, shape index: {}]
  %s3 = inlined_call_operand.vmem [shape: bf16[64,32], index: 3, kind: input, shape index: {}]
  %s4 = inlined_call_operand.vmem [shape: f32[1,32], index: 4, kind: input, shape index: {}]
  %s5 = inlined_call_operand.vmem [shape: f32[1,32], index: 5, kind: input, shape index: {}]
  %s6 = inlined_call_operand.vmem [shape: f32[1,32], index: 6, kind: input, shape index: {}]
  %s7 = inlined_call_operand.vmem [shape: bf16[16,32], index: 7, kind: output, shape index: {}]
  %s8 = sld [smem:[#allocation0]]
  $region38: #{_lambda_.34} parent=0
    _
  %s10 = ssub.s32 1, %s8
  %s11 = scalar_select 0, %s10, %s8
  // Predicated region
  $region2: #{_lambda_.34} parent=0 // pred_check
    _
  $region3: #{_lambda_.34} parent=0 // pred_check_branch
    %13 = sbr.rel (0) target = $region5
  $region4: #{_lambda_.34} parent=0 // pred_region
    _
  $region5: #{_lambda_.34} parent=0 // pred_fallthru
    _
  // Predicated region
  $region6: #{_lambda_.34} parent=0 // pred_check
    _
  $region7: #{_lambda_.34} parent=0 // pred_check_branch
    %15 = sbr.rel (0) target = $region9
  $region8: #{_lambda_.34} parent=0 // pred_region
    _
  $region9: #{_lambda_.34} parent=0 // pred_fallthru
    _
  // Predicated region
  $region10: #{_lambda_.34} parent=0 // pred_check
    _
  $region11: #{_lambda_.34} parent=0 // pred_check_branch
    %17 = sbr.rel (0) target = $region13
  $region12: #{_lambda_.34} parent=0 // pred_region
    _
  $region13: #{_lambda_.34} parent=0 // pred_fallthru
    _
  // Predicated region
  $region14: #{_lambda_.34} parent=0 // pred_check
    _
  $region15: #{_lambda_.34} parent=0 // pred_check_branch
    %19 = sbr.rel (0) target = $region17
  $region16: #{_lambda_.34} parent=0 // pred_region
    _
  $region17: #{_lambda_.34} parent=0 // pred_fallthru
    _
  // Predicated region
  $region18: #{_lambda_.34} parent=0 // pred_check
    _
  $region19: #{_lambda_.34} parent=0 // pred_check_branch
    %21 = sbr.rel (0) target = $region21
  $region20: #{_lambda_.34} parent=0 // pred_region
    _
  $region21: #{_lambda_.34} parent=0 // pred_fallthru
    _
  // Predicated region
  $region22: #{_lambda_.34} parent=0 // pred_check
    _
  $region23: #{_lambda_.34} parent=0 // pred_check_branch
    %23 = sbr.rel (0) target = $region25
  $region24: #{_lambda_.34} parent=0 // pred_region
    _
  $region25: #{_lambda_.34} parent=0 // pred_fallthru
    _
  // Predicated region
  $region26: #{_lambda_.34} parent=0 // pred_check
    _
  $region27: #{_lambda_.34} parent=0 // pred_check_branch
    %25 = sbr.rel (0) target = $region29
  $region28: #{_lambda_.34} parent=0 // pred_region
    _
  $region29: #{_lambda_.34} parent=0 // pred_fallthru
    _
  %v27 = vld [vmem:[%s0] sm:$0xf]
  %v28 = vld [vmem:[%s0 + $0x4] sm:$0xf]
  %v29 = vld [vmem:[%s1] sm:$0xf]
  %v30 = vld [vmem:[%s1 + $0x4] sm:$0xf]
  %v31 = vld [vmem:[%s1 + $0x8] sm:$0xf]
  %v32 = vld [vmem:[%s1 + $0xc] sm:$0xf]
  %v33 = vld [vmem:[%s2] sm:$0x1]
  %v35 = vlaneseq
  %v36 = vshrl.u32 %v35, 7
  %v37 = vsub.s32 0, %v36
  %v38 = vrot.slane %v33, %v37
  %v42 = vunpack.c.l.b16 %v27
  %v43 = vunpack.c.l.b16 %v28
  %v44 = vpack.c.b16 %v43, %v42
  %v49 = vunpack.c.l.b16 %v29
  %v50 = vunpack.c.l.b16 %v30
  %v51 = vunpack.c.l.b16 %v31
  %v52 = vunpack.c.l.b16 %v32
  %v53 = vpack.c.b16 %v50, %v49
  %v54 = vpack.c.b16 %v52, %v51
  %vm57 = vcmask 261120
  %v59 = vsel %vm57, %v44, 0
  %61 = vmatprep.subr.bf16.mxu0 0
  %62 = vmatpush1.bf16.msra.mxu0 %v53
  %63 = vmatprep.subr.bf16.mxu0 0
  %64 = vmatpush1.bf16.msra.mxu0 %v54
  %65 = vmatprep.subr.bf16.mxu0 0
  %66 = vmatpush1.bf16.msra.mxu0 0
  %67 = vmatprep.subr.bf16.mxu0 0
  %68 = vmatpush1.bf16.msra.mxu0 0
  %69 = vmatprep.subr.bf16.mxu0 0
  %70 = vmatpush1.bf16.msra.mxu0 0
  %71 = vmatprep.subr.bf16.mxu0 0
  %72 = vmatpush1.bf16.msra.mxu0 0
  %73 = vmatprep.subr.bf16.mxu0 0
  %74 = vmatpush1.bf16.msra.mxu0 0
  %75 = vmatprep.subr.bf16.mxu0 0
  %76 = vmatpush1.bf16.msra.mxu0 0
  %77 = vmatprep.subr.bf16.mxu0 0
  %78 = vmatpush1.bf16.msra.mxu0 0
  %79 = vmatprep.subr.bf16.mxu0 0
  %80 = vmatpush1.bf16.msra.mxu0 0
  %81 = vmatprep.subr.bf16.mxu0 0
  %82 = vmatpush1.bf16.msra.mxu0 0
  %83 = vmatprep.subr.bf16.mxu0 0
  %84 = vmatpush1.bf16.msra.mxu0 0
  %85 = vmatprep.subr.bf16.mxu0 0
  %86 = vmatpush1.bf16.msra.mxu0 0
  %87 = vmatprep.subr.bf16.mxu0 0
  %88 = vmatpush1.bf16.msra.mxu0 0
  %89 = vmatprep.subr.bf16.mxu0 0
  %90 = vmatpush1.bf16.msra.mxu0 0
  %91 = vmatprep.subr.bf16.mxu0 0
  %92 = vmatpush1.bf16.msra.mxu0 0
  %93 = vmatprep.mubr.bf16.mxu0 0
  %94 = vmatmul.mubr.bf16.gmra.mrb[0].mxu0 %v59
  %v95 = vpop.f32.mrb[0].mxu0
  %v96 = vadd.f32 %v38, %v95
  %v97 = vpop.f32.mrb[0].mxu0
  %v98 = vpop.f32.mrb[0].mxu0
  %v99 = vadd.f32 %v38, %v98
  %v100 = vpop.f32.mrb[0].mxu0
  %101 = vdwg.mxu0
  %v102 = vmax.f32 %v96, 0.0
  %v103 = vmax.f32 %v99, 0.0
  %v104 = vpack.c.bf16 %v103, %v102
  %v105 = vld [vmem:[%s3] sm:$0xf]
  %v106 = vld [vmem:[%s3 + $0x4] sm:$0xf]
  %v107 = vld [vmem:[%s3 + $0x8] sm:$0xf]
  %v108 = vld [vmem:[%s3 + $0xc] sm:$0xf]
  %v109 = vld [vmem:[%s3 + $0x10] sm:$0xf]
  %v110 = vld [vmem:[%s3 + $0x14] sm:$0xf]
  %v111 = vld [vmem:[%s3 + $0x18] sm:$0xf]
  %v112 = vld [vmem:[%s3 + $0x1c] sm:$0xf]
  %v113 = vld [vmem:[%s4] sm:$0x1]
  %v115 = vlaneseq
  %v116 = vshrl.u32 %v115, 7
  %v117 = vsub.s32 0, %v116
  %v118 = vrot.slane %v113, %v117
  %v128 = vunpack.c.l.b16 %v105
  %v129 = vunpack.c.l.b16 %v106
  %v130 = vunpack.c.l.b16 %v107
  %v131 = vunpack.c.l.b16 %v108
  %v132 = vunpack.c.l.b16 %v109
  %v133 = vunpack.c.l.b16 %v110
  %v134 = vunpack.c.l.b16 %v111
  %v135 = vunpack.c.l.b16 %v112
  %v136 = vpack.c.b16 %v129, %v128
  %v137 = vpack.c.b16 %v131, %v130
  %v138 = vpack.c.b16 %v133, %v132
  %v139 = vpack.c.b16 %v135, %v134
  %vm144 = vcmask 523264
  %v146 = vsel %vm144, %v104, 0
  %148 = vmatprep.subr.bf16.mxu0 0
  %149 = vmatpush1.bf16.msra.mxu0 %v136
  %150 = vmatprep.subr.bf16.mxu0 0
  %151 = vmatpush1.bf16.msra.mxu0 %v137
  %152 = vmatprep.subr.bf16.mxu0 0
  %153 = vmatpush1.bf16.msra.mxu0 %v138
  %154 = vmatprep.subr.bf16.mxu0 0
  %155 = vmatpush1.bf16.msra.mxu0 %v139
  %156 = vmatprep.subr.bf16.mxu0 0
  %157 = vmatpush1.bf16.msra.mxu0 0
  %158 = vmatprep.subr.bf16.mxu0 0
  %159 = vmatpush1.bf16.msra.mxu0 0
  %160 = vmatprep.subr.bf16.mxu0 0
  %161 = vmatpush1.bf16.msra.mxu0 0
  %162 = vmatprep.subr.bf16.mxu0 0
  %163 = vmatpush1.bf16.msra.mxu0 0
  %164 = vmatprep.subr.bf16.mxu0 0
  %165 = vmatpush1.bf16.msra.mxu0 0
  %166 = vmatprep.subr.bf16.mxu0 0
  %167 = vmatpush1.bf16.msra.mxu0 0
  %168 = vmatprep.subr.bf16.mxu0 0
  %169 = vmatpush1.bf16.msra.mxu0 0
  %170 = vmatprep.subr.bf16.mxu0 0
  %171 = vmatpush1.bf16.msra.mxu0 0
  %172 = vmatprep.subr.bf16.mxu0 0
  %173 = vmatpush1.bf16.msra.mxu0 0
  %174 = vmatprep.subr.bf16.mxu0 0
  %175 = vmatpush1.bf16.msra.mxu0 0
  %176 = vmatprep.subr.bf16.mxu0 0
  %177 = vmatpush1.bf16.msra.mxu0 0
  %178 = vmatprep.subr.bf16.mxu0 0
  %179 = vmatpush1.bf16.msra.mxu0 0
  %180 = vmatprep.mubr.bf16.mxu0 0
  %181 = vmatmul.mubr.bf16.gmra.mrb[0].mxu0 %v146
  %v182 = vpop.f32.mrb[0].mxu0
  %v183 = vadd.f32 %v118, %v182
  %v184 = vpop.f32.mrb[0].mxu0
  %v185 = vpop.f32.mrb[0].mxu0
  %v186 = vadd.f32 %v118, %v185
  %v187 = vpop.f32.mrb[0].mxu0
  %188 = vdwg.mxu0
  %v189 = vunpack.c.l.bf16 %v27
  %v190 = vunpack.c.l.bf16 %v28
  %v191 = vadd.f32 %v183, %v189
  %v192 = vadd.f32 %v186, %v190
  %v193 = vsel %vm57, %v191, 0.0
  %194 = vadd.xlane.f32.xlu0 %v193
  %v195 = vpop.xlane.xlu0 %194
  %v196 = vsel %vm57, %v192, 0.0
  %197 = vadd.xlane.f32.xlu0 %v196
  %v198 = vpop.xlane.xlu0 %197
  %v199 = vrcp.pop 32.0
  %v200 = vmul.f32 %v195, %v199
  %v201 = vmul.f32 %v198, %v199
  %v202 = vsub.f32 %v191, %v200
  %v203 = vsub.f32 %v192, %v201
  %v204 = vmul.f32 %v202, %v202
  %v205 = vmul.f32 %v203, %v203
  %v206 = vsel %vm57, %v204, 0.0
  %207 = vadd.xlane.f32.xlu0 %v206
  %v208 = vpop.xlane.xlu0 %207
  %v209 = vsel %vm57, %v205, 0.0
  %210 = vadd.xlane.f32.xlu0 %v209
  %v211 = vpop.xlane.xlu0 %210
  %v212 = vmul.f32 %v208, %v199
  %v213 = vmul.f32 %v211, %v199
  %v214 = vadd.f32 %v212, 1e-05
  %v215 = vadd.f32 %v213, 1e-05
  %v216 = vrsqrt.pop %v214
  %v217 = vrsqrt.pop %v215
  %v218 = vmul.f32 %v202, %v216
  %v219 = vmul.f32 %v203, %v217
  %v220 = vld [vmem:[%s5] sm:$0x1]
  %v222 = vlaneseq
  %v223 = vshrl.u32 %v222, 7
  %v224 = vsub.s32 0, %v223
  %v225 = vrot.slane %v220, %v224
  %v227 = vmul.f32 %v218, %v225
  %v228 = vmul.f32 %v219, %v225
  %v229 = vld [vmem:[%s6] sm:$0x1]
  %v231 = vlaneseq
  %v232 = vshrl.u32 %v231, 7
  %v233 = vsub.s32 0, %v232
  %v234 = vrot.slane %v229, %v233
  %v236 = vadd.f32 %v227, %v234
  %v237 = vadd.f32 %v228, %v234
  %v238 = vpack.c.bf16 %v237, %v236
  %v240 = vunpack.c.l.b16 %v238
  %v241 = vunpack.c.h.b16 %v238
  %v242 = vpack.c.b16 %v240, %v240
  %v243 = vpack.c.b16 %v241, %v241
  %vm246 = vcmask 257024
  %247 = vst.msk [vmem:[%s7] sm:$0xf] %vm246, %v242
  %248 = vst.msk [vmem:[%s7 + $0x4] sm:$0xf] %vm246, %v243
  // Predicated region
  $region30: #{_lambda_.34} parent=0 // pred_check
    _
  $region31: #{_lambda_.34} parent=0 // pred_check_branch
    %250 = sbr.rel (0) target = $region33
  $region32: #{_lambda_.34} parent=0 // pred_region
    _
  $region33: #{_lambda_.34} parent=0 // pred_fallthru
    _
  // Predicated region
  $region34: #{_lambda_.34} parent=0 // pred_check
    _
  $region35: #{_lambda_.34} parent=0 // pred_check_branch
    %252 = sbr.rel (0) target = $region37
  $region36: #{_lambda_.34} parent=0 // pred_region
    _
  $region37: #{_lambda_.34} parent=0 // pred_fallthru
    _

// kernel: _lambda_.30
$region0: #{_lambda_.30}
  #allocation0 [shape = 'u32[]', space=smem, size = 0x4, offset = 0x4, fixed_abs, tag = 'smem constant byte address 0x4 - core index']
  #allocation1 [shape = 'u32[144,128]{1,0:T(1,128)}', space=vmem, size = 0x12000, scoped, tag = 'internal scratch']
  %s0 = inlined_call_operand.vmem [shape: bf16[2,8,32], index: 0, kind: input, shape index: {}]
  %s1 = inlined_call_operand.vmem [shape: bf16[2,8,32], index: 1, kind: input, shape index: {}]
  %s2 = inlined_call_operand.vmem [shape: bf16[2,8,32], index: 2, kind: input, shape index: {}]
  %s3 = inlined_call_operand.vmem [shape: bf16[32,32], index: 3, kind: input, shape index: {}]
  %s4 = inlined_call_operand.vmem [shape: f32[1,32], index: 4, kind: input, shape index: {}]
  %s5 = inlined_call_operand.vmem [shape: bf16[2,8,32], index: 5, kind: input, shape index: {}]
  %s6 = inlined_call_operand.vmem [shape: f32[1,32], index: 6, kind: input, shape index: {}]
  %s7 = inlined_call_operand.vmem [shape: f32[1,32], index: 7, kind: input, shape index: {}]
  %s8 = inlined_call_operand.vmem [shape: bf16[2,8,32], index: 8, kind: output, shape index: {}]
  %s9 = sld [smem:[#allocation0]]
  $region65: #{_lambda_.30} parent=0
    _
  %s11 = ssub.s32 1, %s9
  %s12 = scalar_select 0, %s11, %s9
  loop: start=0, step=1, limit=4
  $region2: #{_lambda_.30} parent=0 // loop_pre_header
    _
  $region3: #{_lambda_.30} parent=0 // loop_header
    %s14 = sphi 0, %s18
    %p15 = scmp.ge.s32.totalorder %s14, 4
    %s21 = sphi 0, %s33
    %s22 = sphi 0, %s29
    %s23 = sphi 0, %s21
    %s24 = sphi 0, %s22
    %s25 = sphi 0, %s23
    %s26 = sphi 0, %s24
    %s38 = sphi 0, %s40
    %s41 = sphi 0, %s38
    %s42 = sphi 0, %s41
    %s58 = sphi 0, %s42
    %s64 = sphi 0, %s66
    %s67 = sphi 0, %s64
    %s68 = sphi 0, %s67
    %s84 = sphi 0, %s68
    %s90 = sphi 0, %s92
    %s93 = sphi 0, %s90
    %s94 = sphi 0, %s93
    %s110 = sphi 0, %s94
    %s114 = sphi 0, %s114
    %s116 = sphi 0, %s114
    %s117 = sphi 0, %s116
    %s131 = sphi 0, %s117
    %s135 = sphi 0, %s135
    %s137 = sphi 0, %s135
    %s138 = sphi 0, %s137
    %s152 = sphi 0, %s138
    %s160 = sphi 0, %s162
    %s163 = sphi 0, %s160
    %s164 = sphi 0, %s163
    %s180 = sphi 0, %s164
    %s184 = sphi 0, %s184
    %s186 = sphi 0, %s184
    %s187 = sphi 0, %s186
    %s201 = sphi 0, %s187
    %s205 = sphi 0, %s205
    %s207 = sphi 0, %s205
    %s208 = sphi 0, %s207
    %s222 = sphi 0, %s208
    %s230 = sphi 0, %s232
    %s233 = sphi 0, %s230
    %s234 = sphi 0, %s233
    %s250 = sphi 0, %s234
  $region4: #{_lambda_.30} parent=0 // loop_header_branch
    %17 = sbr.rel (%p15) target = $region8
  $region5: #{_lambda_.30} parent=0 // loop_body
    %s19 = ssub.s32 %s14, 1
    %s20 = ssub.s32 %s14, 2
    %s27 = sadd.s32 1, %s22
    %p28 = scmp.ge.s32.totalorder %s27, 1
    %s29 = scalar_select %p28, 0, %s27
    %s30 = sadd.s32 1, %s21
    %s31 = scalar_select %p28, %s30, %s21
    %p32 = scmp.ge.s32.totalorder %s31, 2
    %s33 = scalar_select %p32, 0, %s31
    %s34 = ssub.s32 %s21, %s33
    %s35 = ssub.s32 %s22, %s29
    %s36 = sor.u32 %s34, %s35
    %p37 = scmp.eq.s32.totalorder %s36, 0
    %s39 = sadd.s32 %s38, 1
    %s40 = scalar_select %p37, %s38, %s39
    %p43 = pneg %p37
    %p44 = scmp.eq.s32.totalorder %s14, 1
    %p45 = por %p43, %p44
    %p46 = scmp.ne.s32.totalorder %s38, %s41
    %p47 = scmp.eq.s32.totalorder %s14, 0
    %p48 = por %p46, %p47
    %p49 = scmp.ne.s32.totalorder %s38, %s41
    %p50 = scmp.eq.s32.totalorder %s19, 1
    %p51 = por %p49, %p50
    %p52 = scmp.ne.s32.totalorder %s41, %s42
    %p53 = scmp.eq.s32.totalorder %s19, 0
    %p54 = por %p52, %p53
    %p55 = scmp.ne.s32.totalorder %s41, %s42
    %p56 = scmp.eq.s32.totalorder %s20, 1
    %p57 = por %p55, %p56
    %p59 = scmp.ne.s32.totalorder %s42, %s58
    %p60 = scmp.eq.s32.totalorder %s20, 0
    %p61 = por %p59, %p60
    %s62 = ssub.s32 %s21, %s33
    %p63 = scmp.eq.s32.totalorder %s62, 0
    %s65 = sadd.s32 %s64, 1
    %s66 = scalar_select %p63, %s64, %s65
    %p69 = pneg %p63
    %p70 = scmp.eq.s32.totalorder %s14, 1
    %p71 = por %p69, %p70
    %p72 = scmp.ne.s32.totalorder %s64, %s67
    %p73 = scmp.eq.s32.totalorder %s14, 0
    %p74 = por %p72, %p73
    %p75 = scmp.ne.s32.totalorder %s64, %s67
    %p76 = scmp.eq.s32.totalorder %s19, 1
    %p77 = por %p75, %p76
    %p78 = scmp.ne.s32.totalorder %s67, %s68
    %p79 = scmp.eq.s32.totalorder %s19, 0
    %p80 = por %p78, %p79
    %p81 = scmp.ne.s32.totalorder %s67, %s68
    %p82 = scmp.eq.s32.totalorder %s20, 1
    %p83 = por %p81, %p82
    %p85 = scmp.ne.s32.totalorder %s68, %s84
    %p86 = scmp.eq.s32.totalorder %s20, 0
    %p87 = por %p85, %p86
    %s88 = ssub.s32 %s21, %s33
    %p89 = scmp.eq.s32.totalorder %s88, 0
    %s91 = sadd.s32 %s90, 1
    %s92 = scalar_select %p89, %s90, %s91
    %p95 = pneg %p89
    %p96 = scmp.eq.s32.totalorder %s14, 1
    %p97 = por %p95, %p96
    %p98 = scmp.ne.s32.totalorder %s90, %s93
    %p99 = scmp.eq.s32.totalorder %s14, 0
    %p100 = por %p98, %p99
    %p101 = scmp.ne.s32.totalorder %s90, %s93
    %p102 = scmp.eq.s32.totalorder %s19, 1
    %p103 = por %p101, %p102
    %p104 = scmp.ne.s32.totalorder %s93, %s94
    %p105 = scmp.eq.s32.totalorder %s19, 0
    %p106 = por %p104, %p105
    %p107 = scmp.ne.s32.totalorder %s93, %s94
    %p108 = scmp.eq.s32.totalorder %s20, 1
    %p109 = por %p107, %p108
    %p111 = scmp.ne.s32.totalorder %s94, %s110
    %p112 = scmp.eq.s32.totalorder %s20, 0
    %p113 = por %p111, %p112
    %s115 = sadd.s32 %s114, 1
    %p118 = scmp.eq.s32.totalorder %s14, 1
    %p119 = scmp.ne.s32.totalorder %s114, %s116
    %p120 = scmp.eq.s32.totalorder %s14, 0
    %p121 = por %p119, %p120
    %p122 = scmp.ne.s32.totalorder %s114, %s116
    %p123 = scmp.eq.s32.totalorder %s19, 1
    %p124 = por %p122, %p123
    %p125 = scmp.ne.s32.totalorder %s116, %s117
    %p126 = scmp.eq.s32.totalorder %s19, 0
    %p127 = por %p125, %p126
    %p128 = scmp.ne.s32.totalorder %s116, %s117
    %p129 = scmp.eq.s32.totalorder %s20, 1
    %p130 = por %p128, %p129
    %p132 = scmp.ne.s32.totalorder %s117, %s131
    %p133 = scmp.eq.s32.totalorder %s20, 0
    %p134 = por %p132, %p133
    %s136 = sadd.s32 %s135, 1
    %p139 = scmp.eq.s32.totalorder %s14, 1
    %p140 = scmp.ne.s32.totalorder %s135, %s137
    %p141 = scmp.eq.s32.totalorder %s14, 0
    %p142 = por %p140, %p141
    %p143 = scmp.ne.s32.totalorder %s135, %s137
    %p144 = scmp.eq.s32.totalorder %s19, 1
    %p145 = por %p143, %p144
    %p146 = scmp.ne.s32.totalorder %s137, %s138
    %p147 = scmp.eq.s32.totalorder %s19, 0
    %p148 = por %p146, %p147
    %p149 = scmp.ne.s32.totalorder %s137, %s138
    %p150 = scmp.eq.s32.totalorder %s20, 1
    %p151 = por %p149, %p150
    %p153 = scmp.ne.s32.totalorder %s138, %s152
    %p154 = scmp.eq.s32.totalorder %s20, 0
    %p155 = por %p153, %p154
    %s156 = ssub.s32 %s21, %s33
    %s157 = ssub.s32 %s22, %s29
    %s158 = sor.u32 %s156, %s157
    %p159 = scmp.eq.s32.totalorder %s158, 0
    %s161 = sadd.s32 %s160, 1
    %s162 = scalar_select %p159, %s160, %s161
    %p165 = pneg %p159
    %p166 = scmp.eq.s32.totalorder %s14, 1
    %p167 = por %p165, %p166
    %p168 = scmp.ne.s32.totalorder %s160, %s163
    %p169 = scmp.eq.s32.totalorder %s14, 0
    %p170 = por %p168, %p169
    %p171 = scmp.ne.s32.totalorder %s160, %s163
    %p172 = scmp.eq.s32.totalorder %s19, 1
    %p173 = por %p171, %p172
    %p174 = scmp.ne.s32.totalorder %s163, %s164
    %p175 = scmp.eq.s32.totalorder %s19, 0
    %p176 = por %p174, %p175
    %p177 = scmp.ne.s32.totalorder %s163, %s164
    %p178 = scmp.eq.s32.totalorder %s20, 1
    %p179 = por %p177, %p178
    %p181 = scmp.ne.s32.totalorder %s164, %s180
    %p182 = scmp.eq.s32.totalorder %s20, 0
    %p183 = por %p181, %p182
    %s185 = sadd.s32 %s184, 1
    %p188 = scmp.eq.s32.totalorder %s14, 1
    %p189 = scmp.ne.s32.totalorder %s184, %s186
    %p190 = scmp.eq.s32.totalorder %s14, 0
    %p191 = por %p189, %p190
    %p192 = scmp.ne.s32.totalorder %s184, %s186
    %p193 = scmp.eq.s32.totalorder %s19, 1
    %p194 = por %p192, %p193
    %p195 = scmp.ne.s32.totalorder %s186, %s187
    %p196 = scmp.eq.s32.totalorder %s19, 0
    %p197 = por %p195, %p196
    %p198 = scmp.ne.s32.totalorder %s186, %s187
    %p199 = scmp.eq.s32.totalorder %s20, 1
    %p200 = por %p198, %p199
    %p202 = scmp.ne.s32.totalorder %s187, %s201
    %p203 = scmp.eq.s32.totalorder %s20, 0
    %p204 = por %p202, %p203
    %s206 = sadd.s32 %s205, 1
    %p209 = scmp.eq.s32.totalorder %s14, 1
    %p210 = scmp.ne.s32.totalorder %s205, %s207
    %p211 = scmp.eq.s32.totalorder %s14, 0
    %p212 = por %p210, %p211
    %p213 = scmp.ne.s32.totalorder %s205, %s207
    %p214 = scmp.eq.s32.totalorder %s19, 1
    %p215 = por %p213, %p214
    %p216 = scmp.ne.s32.totalorder %s207, %s208
    %p217 = scmp.eq.s32.totalorder %s19, 0
    %p218 = por %p216, %p217
    %p219 = scmp.ne.s32.totalorder %s207, %s208
    %p220 = scmp.eq.s32.totalorder %s20, 1
    %p221 = por %p219, %p220
    %p223 = scmp.ne.s32.totalorder %s208, %s222
    %p224 = scmp.eq.s32.totalorder %s20, 0
    %p225 = por %p223, %p224
    %s226 = ssub.s32 %s21, %s33
    %s227 = ssub.s32 %s22, %s29
    %s228 = sor.u32 %s226, %s227
    %p229 = scmp.eq.s32.totalorder %s228, 0
    %s231 = sadd.s32 %s230, 1
    %s232 = scalar_select %p229, %s230, %s231
    %p235 = pneg %p229
    %p236 = scmp.eq.s32.totalorder %s14, 1
    %p237 = por %p235, %p236
    %p238 = scmp.ne.s32.totalorder %s230, %s233
    %p239 = scmp.eq.s32.totalorder %s14, 0
    %p240 = por %p238, %p239
    %p241 = scmp.ne.s32.totalorder %s230, %s233
    %p242 = scmp.eq.s32.totalorder %s19, 1
    %p243 = por %p241, %p242
    %p244 = scmp.ne.s32.totalorder %s233, %s234
    %p245 = scmp.eq.s32.totalorder %s19, 0
    %p246 = por %p244, %p245
    %p247 = scmp.ne.s32.totalorder %s233, %s234
    %p248 = scmp.eq.s32.totalorder %s20, 1
    %p249 = por %p247, %p248
    %p251 = scmp.ne.s32.totalorder %s234, %s250
    %p252 = scmp.eq.s32.totalorder %s20, 0
    %p253 = por %p251, %p252
    %p254 = scmp.le.s32.totalorder 1, %s14
    %p255 = scmp.lt.s32.totalorder %s14, 3
    %p256 = pnand %p254, %p255
    %p257 = pneg %p256
    // Predicated region
    $region9: #{_lambda_.30} parent=5 // pred_check
      _
    $region10: #{_lambda_.30} parent=5 // pred_check_branch
      %259 = sbr.rel (%p256) target = $region12
    $region11: #{_lambda_.30} parent=5 // pred_region
      %s260 = ssub.s32 %s14, 1
      // Predicated region
      $region13: #{_lambda_.30} parent=11 // pred_check
        %p261 = pneg %p127
      $region14: #{_lambda_.30} parent=11 // pred_check_branch
        %263 = sbr.rel (%p261) target = $region16
      $region15: #{_lambda_.30} parent=11 // pred_region
        _
      $region16: #{_lambda_.30} parent=11 // pred_fallthru
        _
      // Predicated region
      $region17: #{_lambda_.30} parent=11 // pred_check
        %p264 = pneg %p148
      $region18: #{_lambda_.30} parent=11 // pred_check_branch
        %266 = sbr.rel (%p264) target = $region20
      $region19: #{_lambda_.30} parent=11 // pred_region
        _
      $region20: #{_lambda_.30} parent=11 // pred_fallthru
        _
      // Predicated region
      $region21: #{_lambda_.30} parent=11 // pred_check
        %p267 = pneg %p197
      $region22: #{_lambda_.30} parent=11 // pred_check_branch
        %269 = sbr.rel (%p267) target = $region24
      $region23: #{_lambda_.30} parent=11 // pred_region
        _
      $region24: #{_lambda_.30} parent=11 // pred_fallthru
        _
      // Predicated region
      $region25: #{_lambda_.30} parent=11 // pred_check
        %p270 = pneg %p218
      $region26: #{_lambda_.30} parent=11 // pred_check_branch
        %272 = sbr.rel (%p270) target = $region28
      $region27: #{_lambda_.30} parent=11 // pred_region
        _
      $region28: #{_lambda_.30} parent=11 // pred_fallthru
        _
    $region12: #{_lambda_.30} parent=5 // pred_fallthru
      _
    %p273 = scmp.lt.s32.totalorder %s14, 2
    // Predicated region
    $region29: #{_lambda_.30} parent=5 // pred_check
      %p274 = pneg %p273
    $region30: #{_lambda_.30} parent=5 // pred_check_branch
      %276 = sbr.rel (%p274) target = $region32
    $region31: #{_lambda_.30} parent=5 // pred_region
      // Predicated region
      $region33: #{_lambda_.30} parent=31 // pred_check
        %p277 = pneg %p48
      $region34: #{_lambda_.30} parent=31 // pred_check_branch
        %279 = sbr.rel (%p277) target = $region36
      $region35: #{_lambda_.30} parent=31 // pred_region
        %p280 = scmp.lt.s32.totalorder %s21, 1
        %s281 = scalar_select %p280, %s21, 1
        %p282 = scmp.lt.s32.totalorder %s22, 0
        %s283 = scalar_select %p282, %s22, 0
        %s284 = sadd.s32 %s283, %s281
        %s285 = smul.addr %s284, 4
        %s286 = scalar_lea.vmem %s0, %s285
      $region36: #{_lambda_.30} parent=31 // pred_fallthru
        _
      // Predicated region
      $region37: #{_lambda_.30} parent=31 // pred_check
        %p287 = pneg %p74
      $region38: #{_lambda_.30} parent=31 // pred_check_branch
        %289 = sbr.rel (%p287) target = $region40
      $region39: #{_lambda_.30} parent=31 // pred_region
        %p290 = scmp.lt.s32.totalorder %s21, 1
        %s291 = scalar_select %p290, %s21, 1
        %s292 = smul.addr %s291, 4
        %s293 = scalar_lea.vmem %s1, %s292
      $region40: #{_lambda_.30} parent=31 // pred_fallthru
        _
      // Predicated region
      $region41: #{_lambda_.30} parent=31 // pred_check
        %p294 = pneg %p100
      $region42: #{_lambda_.30} parent=31 // pred_check_branch
        %296 = sbr.rel (%p294) target = $region44
      $region43: #{_lambda_.30} parent=31 // pred_region
        %p297 = scmp.lt.s32.totalorder %s21, 1
        %s298 = scalar_select %p297, %s21, 1
        %s299 = smul.addr %s298, 4
        %s300 = scalar_lea.vmem %s2, %s299
      $region44: #{_lambda_.30} parent=31 // pred_fallthru
        _
      // Predicated region
      $region45: #{_lambda_.30} parent=31 // pred_check
        %p301 = pneg %p170
      $region46: #{_lambda_.30} parent=31 // pred_check_branch
        %303 = sbr.rel (%p301) target = $region48
      $region47: #{_lambda_.30} parent=31 // pred_region
        %p304 = scmp.lt.s32.totalorder %s21, 1
        %s305 = scalar_select %p304, %s21, 1
        %p306 = scmp.lt.s32.totalorder %s22, 0
        %s307 = scalar_select %p306, %s22, 0
        %s308 = sadd.s32 %s307, %s305
        %s309 = smul.addr %s308, 4
        %s310 = scalar_lea.vmem %s5, %s309
      $region48: #{_lambda_.30} parent=31 // pred_fallthru
        _
    $region32: #{_lambda_.30} parent=5 // pred_fallthru
      _
    %p311 = scmp.le.s32.totalorder 1, %s14
    %p312 = scmp.lt.s32.totalorder %s14, 3
    %p313 = pnand %p311, %p312
    %p314 = pneg %p313
    // Predicated region
    $region49: #{_lambda_.30} parent=5 // pred_check
      _
    $region50: #{_lambda_.30} parent=5 // pred_check_branch
      %316 = sbr.rel (%p313) target = $region52
    $region51: #{_lambda_.30} parent=5 // pred_region
      %s317 = ssub.s32 %s14, 1
      %p318 = scmp.lt.s32.totalorder %s23, 1
      %s319 = scalar_select %p318, %s23, 1
      %p320 = scmp.lt.s32.totalorder %s24, 0
      %s321 = scalar_select %p320, %s24, 0
      %s322 = sadd.s32 %s321, %s319
      %s323 = smul.addr %s322, 4
      %s324 = scalar_lea.vmem %s0, %s323
      %p325 = pneg %p54
      %p326 = pneg %p51
      %p327 = scmp.lt.s32.totalorder %s23, 1
      %s328 = scalar_select %p327, %s23, 1
      %s329 = smul.addr %s328, 4
      %s330 = scalar_lea.vmem %s1, %s329
      %p331 = pneg %p80
      %p332 = pneg %p77
      %p333 = scmp.lt.s32.totalorder %s23, 1
      %s334 = scalar_select %p333, %s23, 1
      %s335 = smul.addr %s334, 4
      %s336 = scalar_lea.vmem %s2, %s335
      %p337 = pneg %p106
      %p338 = pneg %p103
      %p339 = pneg %p127
      %p340 = pneg %p124
      %p341 = pneg %p148
      %p342 = pneg %p145
      %p343 = scmp.lt.s32.totalorder %s23, 1
      %s344 = scalar_select %p343, %s23, 1
      %p345 = scmp.lt.s32.totalorder %s24, 0
      %s346 = scalar_select %p345, %s24, 0
      %s347 = sadd.s32 %s346, %s344
      %s348 = smul.addr %s347, 4
      %s349 = scalar_lea.vmem %s5, %s348
      %p350 = pneg %p176
      %p351 = pneg %p173
      %p352 = pneg %p197
      %p353 = pneg %p194
      %p354 = pneg %p218
      %p355 = pneg %p215
      %p356 = pneg %p246
      %p357 = pneg %p243
      %p358 = scmp.lt.s32.totalorder %s23, 1
      %s359 = scalar_select %p358, %s23, 1
      %p360 = scmp.lt.s32.totalorder %s24, 0
      %s361 = scalar_select %p360, %s24, 0
      %s362 = sadd.s32 %s361, %s359
      %s363 = smul.addr %s362, 4
      %s364 = scalar_lea.vmem %s8, %s363
      %p365 = scmp.lt.s32.totalorder %s23, 1
      %s366 = scalar_select %p365, %s23, 1
      %p367 = scmp.lt.s32.totalorder %s24, 0
      %s368 = scalar_select %p367, %s24, 0
      %s369 = sadd.s32 %s368, %s366
      %s370 = smul.addr %s369, 4
      %s371 = scalar_lea.vmem %s0, %s370
      %p372 = scmp.lt.s32.totalorder %s23, 1
      %s373 = scalar_select %p372, %s23, 1
      %s374 = smul.addr %s373, 4
      %s375 = scalar_lea.vmem %s1, %s374
      %p376 = scmp.lt.s32.totalorder %s23, 1
      %s377 = scalar_select %p376, %s23, 1
      %s378 = smul.addr %s377, 4
      %s379 = scalar_lea.vmem %s2, %s378
      %p380 = scmp.lt.s32.totalorder %s23, 1
      %s381 = scalar_select %p380, %s23, 1
      %p382 = scmp.lt.s32.totalorder %s24, 0
      %s383 = scalar_select %p382, %s24, 0
      %s384 = sadd.s32 %s383, %s381
      %s385 = smul.addr %s384, 4
      %s386 = scalar_lea.vmem %s5, %s385
      %p387 = scmp.lt.s32.totalorder %s23, 1
      %s388 = scalar_select %p387, %s23, 1
      %p389 = scmp.lt.s32.totalorder %s24, 0
      %s390 = scalar_select %p389, %s24, 0
      %s391 = sadd.s32 %s390, %s388
      %s392 = smul.addr %s391, 4
      %s393 = scalar_lea.vmem %s8, %s392
      %v395 = vld [vmem:[%s371] sm:$0xf]
      %v396 = vld [vmem:[%s375] sm:$0xf]
      %v397 = vld [vmem:[%s379] sm:$0xf]
      %v398 = vld [vmem:[%s3] sm:$0xf]
      %v399 = vld [vmem:[%s3 + $0x4] sm:$0xf]
      %v400 = vld [vmem:[%s3 + $0x8] sm:$0xf]
      %v401 = vld [vmem:[%s3 + $0xc] sm:$0xf]
      %v402 = vld [vmem:[%s386] sm:$0xf]
      %v403 = vunpack.c.l.bf16 %v402
      %v404 = vld [vmem:[%s4] sm:$0x1]
      %v406 = vlaneseq
      %v407 = vshrl.u32 %v406, 7
      %v408 = vsub.s32 0, %v407
      %v409 = vrot.slane %v404, %v408
      %v411 = vadd.f32 %v403, %v409
      %vm412 = vcmask 64512
      %v414 = vsel %vm412, %v395, 0
      %v417 = vsel %vm412, %v396, 0
      %419 = vmatprep.subr.bf16.mxu0 0
      %420 = vmatpush1.bf16.xpose.msra.mxu0 %v417
      %421 = vmatprep.subr.bf16.mxu0 0
      %422 = vmatpush1.bf16.xpose.msra.mxu0 0
      %423 = vmatprep.subr.bf16.mxu0 0
      %424 = vmatpush1.bf16.xpose.msra.mxu0 0
      %425 = vmatprep.subr.bf16.mxu0 0
      %426 = vmatpush1.bf16.xpose.msra.mxu0 0
      %427 = vmatprep.subr.bf16.mxu0 0
      %428 = vmatpush1.bf16.xpose.msra.mxu0 0
      %429 = vmatprep.subr.bf16.mxu0 0
      %430 = vmatpush1.bf16.xpose.msra.mxu0 0
      %431 = vmatprep.subr.bf16.mxu0 0
      %432 = vmatpush1.bf16.xpose.msra.mxu0 0
      %433 = vmatprep.subr.bf16.mxu0 0
      %434 = vmatpush1.bf16.xpose.msra.mxu0 0
      %435 = vmatprep.subr.bf16.mxu0 0
      %436 = vmatpush1.bf16.xpose.msra.mxu0 0
      %437 = vmatprep.subr.bf16.mxu0 0
      %438 = vmatpush1.bf16.xpose.msra.mxu0 0
      %439 = vmatprep.subr.bf16.mxu0 0
      %440 = vmatpush1.bf16.xpose.msra.mxu0 0
      %441 = vmatprep.subr.bf16.mxu0 0
      %442 = vmatpush1.bf16.xpose.msra.mxu0 0
      %443 = vmatprep.subr.bf16.mxu0 0
      %444 = vmatpush1.bf16.xpose.msra.mxu0 0
      %445 = vmatprep.subr.bf16.mxu0 0
      %446 = vmatpush1.bf16.xpose.msra.mxu0 0
      %447 = vmatprep.subr.bf16.mxu0 0
      %448 = vmatpush1.bf16.xpose.msra.mxu0 0
      %449 = vmatprep.subr.bf16.mxu0 0
      %450 = vmatpush1.bf16.xpose.msra.mxu0 0
      %451 = vmatprep.mubr.bf16.mxu0 0
      %452 = vmatmul.mubr.bf16.gmra.mrb[0].mxu0 %v414
      %v453 = vpop.f32.mrb[0].mxu0
      %v454 = vadd.f32 0.0, %v453
      %v455 = vpop.f32.mrb[0].mxu0
      %v456 = vpop.f32.mrb[0].mxu0
      %v457 = vpop.f32.mrb[0].mxu0
      %458 = vdwg.mxu0
      %v459 = vmul.f32 %v454, 0.35355338
      %v460 = vsel %vm412, %v459, -inf
      %461 = vmax.xlane.f32.xlu0 %v460
      %v462 = vpop.xlane.xlu0 %461
      %v463 = vsub.f32 %v459, %v462
      %v464 = vmul.f32 %v463, 1.442695
      %v465 = vpow.pop %v464
      %v466 = vsel %vm412, %v465, 0.0
      %467 = vadd.xlane.f32.xlu0 %v466
      %v468 = vpop.xlane.xlu0 %467
      %v469 = vrcp.pop %v468
      %v470 = vmul.f32 %v465, %v469
      %v471 = vpack.c.bf16 %v470, %v470
      %v473 = vsel %vm412, %v471, 0
      %vm475 = vcmask 1043456
      %v477 = vsel %vm475, %v397, 0
      %479 = vmatprep.subr.bf16.mxu0 0
      %480 = vmatpush1.bf16.msra.mxu0 %v477
      %481 = vmatprep.subr.bf16.mxu0 0
      %482 = vmatpush1.bf16.msra.mxu0 0
      %483 = vmatprep.subr.bf16.mxu0 0
      %484 = vmatpush1.bf16.msra.mxu0 0
      %485 = vmatprep.subr.bf16.mxu0 0
      %486 = vmatpush1.bf16.msra.mxu0 0
      %487 = vmatprep.subr.bf16.mxu0 0
      %488 = vmatpush1.bf16.msra.mxu0 0
      %489 = vmatprep.subr.bf16.mxu0 0
      %490 = vmatpush1.bf16.msra.mxu0 0
      %491 = vmatprep.subr.bf16.mxu0 0
      %492 = vmatpush1.bf16.msra.mxu0 0
      %493 = vmatprep.subr.bf16.mxu0 0
      %494 = vmatpush1.bf16.msra.mxu0 0
      %495 = vmatprep.subr.bf16.mxu0 0
      %496 = vmatpush1.bf16.msra.mxu0 0
      %497 = vmatprep.subr.bf16.mxu0 0
      %498 = vmatpush1.bf16.msra.mxu0 0
      %499 = vmatprep.subr.bf16.mxu0 0
      %500 = vmatpush1.bf16.msra.mxu0 0
      %501 = vmatprep.subr.bf16.mxu0 0
      %502 = vmatpush1.bf16.msra.mxu0 0
      %503 = vmatprep.subr.bf16.mxu0 0
      %504 = vmatpush1.bf16.msra.mxu0 0
      %505 = vmatprep.subr.bf16.mxu0 0
      %506 = vmatpush1.bf16.msra.mxu0 0
      %507 = vmatprep.subr.bf16.mxu0 0
      %508 = vmatpush1.bf16.msra.mxu0 0
      %509 = vmatprep.subr.bf16.mxu0 0
      %510 = vmatpush1.bf16.msra.mxu0 0
      %511 = vmatprep.mubr.bf16.mxu0 0
      %512 = vmatmul.mubr.bf16.gmra.mrb[0].mxu0 %v473
      %v513 = vpop.f32.mrb[0].mxu0
      %v514 = vadd.f32 0.0, %v513
      %v515 = vpop.f32.mrb[0].mxu0
      %v516 = vpop.f32.mrb[0].mxu0
      %v517 = vpop.f32.mrb[0].mxu0
      %518 = vdwg.mxu0
      %v519 = vpack.c.bf16 %v514, %v514
      %v521 = vsel %vm412, %v519, 0
      %v524 = vsel %vm475, %v398, 0
      %526 = vmatprep.subr.bf16.mxu0 0
      %527 = vmatpush1.bf16.msra.mxu0 %v524
      %528 = vmatprep.subr.bf16.mxu0 0
      %529 = vmatpush1.bf16.msra.mxu0 0
      %530 = vmatprep.subr.bf16.mxu0 0
      %531 = vmatpush1.bf16.msra.mxu0 0
      %532 = vmatprep.subr.bf16.mxu0 0
      %533 = vmatpush1.bf16.msra.mxu0 0
      %534 = vmatprep.subr.bf16.mxu0 0
      %535 = vmatpush1.bf16.msra.mxu0 0
      %536 = vmatprep.subr.bf16.mxu0 0
      %537 = vmatpush1.bf16.msra.mxu0 0
      %538 = vmatprep.subr.bf16.mxu0 0
      %539 = vmatpush1.bf16.msra.mxu0 0
      %540 = vmatprep.subr.bf16.mxu0 0
      %541 = vmatpush1.bf16.msra.mxu0 0
      %542 = vmatprep.subr.bf16.mxu0 0
      %543 = vmatpush1.bf16.msra.mxu0 0
      %544 = vmatprep.subr.bf16.mxu0 0
      %545 = vmatpush1.bf16.msra.mxu0 0
      %546 = vmatprep.subr.bf16.mxu0 0
      %547 = vmatpush1.bf16.msra.mxu0 0
      %548 = vmatprep.subr.bf16.mxu0 0
      %549 = vmatpush1.bf16.msra.mxu0 0
      %550 = vmatprep.subr.bf16.mxu0 0
      %551 = vmatpush1.bf16.msra.mxu0 0
      %552 = vmatprep.subr.bf16.mxu0 0
      %553 = vmatpush1.bf16.msra.mxu0 0
      %554 = vmatprep.subr.bf16.mxu0 0
      %555 = vmatpush1.bf16.msra.mxu0 0
      %556 = vmatprep.subr.bf16.mxu0 0
      %557 = vmatpush1.bf16.msra.mxu0 0
      %558 = vmatprep.mubr.bf16.mxu0 0
      %559 = vmatmul.mubr.bf16.gmra.mrb[0].mxu0 %v521
      %v560 = vpop.f32.mrb[0].mxu0
      %v561 = vadd.f32 0.0, %v560
      %v562 = vpop.f32.mrb[0].mxu0
      %v563 = vpop.f32.mrb[0].mxu0
      %v564 = vpop.f32.mrb[0].mxu0
      %565 = vdwg.mxu0
      %v566 = vadd.f32 %v411, %v561
      %v568 = vunpack.c.l.b16 %v395
      %v569 = vpack.c.b16 %v568, %v568
      %570 = vrot.lane.b32.xlu0 %v569, 120
      %v571 = vpop.permute.xlu0 %570
      %v573 = vunpack.c.l.b16 %v396
      %v574 = vpack.c.b16 %v573, %v573
      %575 = vrot.lane.b32.xlu0 %v574, 120
      %v576 = vpop.permute.xlu0 %575
      %v578 = vsel %vm412, %v571, 0
      %v581 = vsel %vm412, %v576, 0
      %583 = vmatprep.subr.bf16.mxu0 0
      %584 = vmatpush1.bf16.xpose.msra.mxu0 %v581
      %585 = vmatprep.subr.bf16.mxu0 0
      %586 = vmatpush1.bf16.xpose.msra.mxu0 0
      %587 = vmatprep.subr.bf16.mxu0 0
      %588 = vmatpush1.bf16.xpose.msra.mxu0 0
      %589 = vmatprep.subr.bf16.mxu0 0
      %590 = vmatpush1.bf16.xpose.msra.mxu0 0
      %591 = vmatprep.subr.bf16.mxu0 0
      %592 = vmatpush1.bf16.xpose.msra.mxu0 0
      %593 = vmatprep.subr.bf16.mxu0 0
      %594 = vmatpush1.bf16.xpose.msra.mxu0 0
      %595 = vmatprep.subr.bf16.mxu0 0
      %596 = vmatpush1.bf16.xpose.msra.mxu0 0
      %597 = vmatprep.subr.bf16.mxu0 0
      %598 = vmatpush1.bf16.xpose.msra.mxu0 0
      %599 = vmatprep.subr.bf16.mxu0 0
      %600 = vmatpush1.bf16.xpose.msra.mxu0 0
      %601 = vmatprep.subr.bf16.mxu0 0
      %602 = vmatpush1.bf16.xpose.msra.mxu0 0
      %603 = vmatprep.subr.bf16.mxu0 0
      %604 = vmatpush1.bf16.xpose.msra.mxu0 0
      %605 = vmatprep.subr.bf16.mxu0 0
      %606 = vmatpush1.bf16.xpose.msra.mxu0 0
      %607 = vmatprep.subr.bf16.mxu0 0
      %608 = vmatpush1.bf16.xpose.msra.mxu0 0
      %609 = vmatprep.subr.bf16.mxu0 0
      %610 = vmatpush1.bf16.xpose.msra.mxu0 0
      %611 = vmatprep.subr.bf16.mxu0 0
      %612 = vmatpush1.bf16.xpose.msra.mxu0 0
      %613 = vmatprep.subr.bf16.mxu0 0
      %614 = vmatpush1.bf16.xpose.msra.mxu0 0
      %615 = vmatprep.mubr.bf16.mxu0 0
      %616 = vmatmul.mubr.bf16.gmra.mrb[0].mxu0 %v578
      %v617 = vpop.f32.mrb[0].mxu0
      %v618 = vadd.f32 0.0, %v617
      %v619 = vpop.f32.mrb[0].mxu0
      %v620 = vpop.f32.mrb[0].mxu0
      %v621 = vpop.f32.mrb[0].mxu0
      %622 = vdwg.mxu0
      %v623 = vmul.f32 %v618, 0.35355338
      %v624 = vsel %vm412, %v623, -inf
      %625 = vmax.xlane.f32.xlu0 %v624
      %v626 = vpop.xlane.xlu0 %625
      %v627 = vsub.f32 %v623, %v626
      %v628 = vmul.f32 %v627, 1.442695
      %v629 = vpow.pop %v628
      %v630 = vsel %vm412, %v629, 0.0
      %631 = vadd.xlane.f32.xlu0 %v630
      %v632 = vpop.xlane.xlu0 %631
      %v633 = vrcp.pop %v632
      %v634 = vmul.f32 %v629, %v633
      %v635 = vpack.c.bf16 %v634, %v634
      %v637 = vunpack.c.l.b16 %v397
      %v638 = vpack.c.b16 %v637, %v637
      %639 = vrot.lane.b32.xlu0 %v638, 120
      %v640 = vpop.permute.xlu0 %639
      %v642 = vsel %vm412, %v635, 0
      %v645 = vsel %vm475, %v640, 0
      %647 = vmatprep.subr.bf16.mxu0 0
      %648 = vmatpush1.bf16.msra.mxu0 %v645
      %649 = vmatprep.subr.bf16.mxu0 0
      %650 = vmatpush1.bf16.msra.mxu0 0
      %651 = vmatprep.subr.bf16.mxu0 0
      %652 = vmatpush1.bf16.msra.mxu0 0
      %653 = vmatprep.subr.bf16.mxu0 0
      %654 = vmatpush1.bf16.msra.mxu0 0
      %655 = vmatprep.subr.bf16.mxu0 0
      %656 = vmatpush1.bf16.msra.mxu0 0
      %657 = vmatprep.subr.bf16.mxu0 0
      %658 = vmatpush1.bf16.msra.mxu0 0
      %659 = vmatprep.subr.bf16.mxu0 0
      %660 = vmatpush1.bf16.msra.mxu0 0
      %661 = vmatprep.subr.bf16.mxu0 0
      %662 = vmatpush1.bf16.msra.mxu0 0
      %663 = vmatprep.subr.bf16.mxu0 0
      %664 = vmatpush1.bf16.msra.mxu0 0
      %665 = vmatprep.subr.bf16.mxu0 0
      %666 = vmatpush1.bf16.msra.mxu0 0
      %667 = vmatprep.subr.bf16.mxu0 0
      %668 = vmatpush1.bf16.msra.mxu0 0
      %669 = vmatprep.subr.bf16.mxu0 0
      %670 = vmatpush1.bf16.msra.mxu0 0
      %671 = vmatprep.subr.bf16.mxu0 0
      %672 = vmatpush1.bf16.msra.mxu0 0
      %673 = vmatprep.subr.bf16.mxu0 0
      %674 = vmatpush1.bf16.msra.mxu0 0
      %675 = vmatprep.subr.bf16.mxu0 0
      %676 = vmatpush1.bf16.msra.mxu0 0
      %677 = vmatprep.subr.bf16.mxu0 0
      %678 = vmatpush1.bf16.msra.mxu0 0
      %679 = vmatprep.mubr.bf16.mxu0 0
      %680 = vmatmul.mubr.bf16.gmra.mrb[0].mxu0 %v642
      %v681 = vpop.f32.mrb[0].mxu0
      %v682 = vadd.f32 0.0, %v681
      %v683 = vpop.f32.mrb[0].mxu0
      %v684 = vpop.f32.mrb[0].mxu0
      %v685 = vpop.f32.mrb[0].mxu0
      %686 = vdwg.mxu0
      %v687 = vpack.c.bf16 %v682, %v682
      %v689 = vsel %vm412, %v687, 0
      %v692 = vsel %vm475, %v399, 0
      %694 = vmatprep.subr.bf16.mxu0 0
      %695 = vmatpush1.bf16.msra.mxu0 %v692
      %696 = vmatprep.subr.bf16.mxu0 0
      %697 = vmatpush1.bf16.msra.mxu0 0
      %698 = vmatprep.subr.bf16.mxu0 0
      %699 = vmatpush1.bf16.msra.mxu0 0
      %700 = vmatprep.subr.bf16.mxu0 0
      %701 = vmatpush1.bf16.msra.mxu0 0
      %702 = vmatprep.subr.bf16.mxu0 0
      %703 = vmatpush1.bf16.msra.mxu0 0
      %704 = vmatprep.subr.bf16.mxu0 0
      %705 = vmatpush1.bf16.msra.mxu0 0
      %706 = vmatprep.subr.bf16.mxu0 0
      %707 = vmatpush1.bf16.msra.mxu0 0
      %708 = vmatprep.subr.bf16.mxu0 0
      %709 = vmatpush1.bf16.msra.mxu0 0
      %710 = vmatprep.subr.bf16.mxu0 0
      %711 = vmatpush1.bf16.msra.mxu0 0
      %712 = vmatprep.subr.bf16.mxu0 0
      %713 = vmatpush1.bf16.msra.mxu0 0
      %714 = vmatprep.subr.bf16.mxu0 0
      %715 = vmatpush1.bf16.msra.mxu0 0
      %716 = vmatprep.subr.bf16.mxu0 0
      %717 = vmatpush1.bf16.msra.mxu0 0
      %718 = vmatprep.subr.bf16.mxu0 0
      %719 = vmatpush1.bf16.msra.mxu0 0
      %720 = vmatprep.subr.bf16.mxu0 0
      %721 = vmatpush1.bf16.msra.mxu0 0
      %722 = vmatprep.subr.bf16.mxu0 0
      %723 = vmatpush1.bf16.msra.mxu0 0
      %724 = vmatprep.subr.bf16.mxu0 0
      %725 = vmatpush1.bf16.msra.mxu0 0
      %726 = vmatprep.mubr.bf16.mxu0 0
      %727 = vmatmul.mubr.bf16.gmra.mrb[0].mxu0 %v689
      %v728 = vpop.f32.mrb[0].mxu0
      %v729 = vadd.f32 0.0, %v728
      %v730 = vpop.f32.mrb[0].mxu0
      %v731 = vpop.f32.mrb[0].mxu0
      %v732 = vpop.f32.mrb[0].mxu0
      %733 = vdwg.mxu0
      %v734 = vadd.f32 %v566, %v729
      %735 = vrot.lane.b32.xlu0 %v569, 112
      %v736 = vpop.permute.xlu0 %735
      %737 = vrot.lane.b32.xlu0 %v574, 112
      %v738 = vpop.permute.xlu0 %737
      %v740 = vsel %vm412, %v736, 0
      %v743 = vsel %vm412, %v738, 0
      %745 = vmatprep.subr.bf16.mxu0 0
      %746 = vmatpush1.bf16.xpose.msra.mxu0 %v743
      %747 = vmatprep.subr.bf16.mxu0 0
      %748 = vmatpush1.bf16.xpose.msra.mxu0 0
      %749 = vmatprep.subr.bf16.mxu0 0
      %750 = vmatpush1.bf16.xpose.msra.mxu0 0
      %751 = vmatprep.subr.bf16.mxu0 0
      %752 = vmatpush1.bf16.xpose.msra.mxu0 0
      %753 = vmatprep.subr.bf16.mxu0 0
      %754 = vmatpush1.bf16.xpose.msra.mxu0 0
      %755 = vmatprep.subr.bf16.mxu0 0
      %756 = vmatpush1.bf16.xpose.msra.mxu0 0
      %757 = vmatprep.subr.bf16.mxu0 0
      %758 = vmatpush1.bf16.xpose.msra.mxu0 0
      %759 = vmatprep.subr.bf16.mxu0 0
      %760 = vmatpush1.bf16.xpose.msra.mxu0 0
      %761 = vmatprep.subr.bf16.mxu0 0
      %762 = vmatpush1.bf16.xpose.msra.mxu0 0
      %763 = vmatprep.subr.bf16.mxu0 0
      %764 = vmatpush1.bf16.xpose.msra.mxu0 0
      %765 = vmatprep.subr.bf16.mxu0 0
      %766 = vmatpush1.bf16.xpose.msra.mxu0 0
      %767 = vmatprep.subr.bf16.mxu0 0
      %768 = vmatpush1.bf16.xpose.msra.mxu0 0
      %769 = vmatprep.subr.bf16.mxu0 0
      %770 = vmatpush1.bf16.xpose.msra.mxu0 0
      %771 = vmatprep.subr.bf16.mxu0 0
      %772 = vmatpush1.bf16.xpose.msra.mxu0 0
      %773 = vmatprep.subr.bf16.mxu0 0
      %774 = vmatpush1.bf16.xpose.msra.mxu0 0
      %775 = vmatprep.subr.bf16.mxu0 0
      %776 = vmatpush1.bf16.xpose.msra.mxu0 0
      %777 = vmatprep.mubr.bf16.mxu0 0
      %778 = vmatmul.mubr.bf16.gmra.mrb[0].mxu0 %v740
      %v779 = vpop.f32.mrb[0].mxu0
      %v780 = vadd.f32 0.0, %v779
      %v781 = vpop.f32.mrb[0].mxu0
      %v782 = vpop.f32.mrb[0].mxu0
      %v783 = vpop.f32.mrb[0].mxu0
      %784 = vdwg.mxu0
      %v785 = vmul.f32 %v780, 0.35355338
      %v786 = vsel %vm412, %v785, -inf
      %787 = vmax.xlane.f32.xlu0 %v786
      %v788 = vpop.xlane.xlu0 %787
      %v789 = vsub.f32 %v785, %v788
      %v790 = vmul.f32 %v789, 1.442695
      %v791 = vpow.pop %v790
      %v792 = vsel %vm412, %v791, 0.0
      %793 = vadd.xlane.f32.xlu0 %v792
      %v794 = vpop.xlane.xlu0 %793
      %v795 = vrcp.pop %v794
      %v796 = vmul.f32 %v791, %v795
      %v797 = vpack.c.bf16 %v796, %v796
      %798 = vrot.lane.b32.xlu0 %v638, 112
      %v799 = vpop.permute.xlu0 %798
      %v801 = vsel %vm412, %v797, 0
      %v804 = vsel %vm475, %v799, 0
      %806 = vmatprep.subr.bf16.mxu0 0
      %807 = vmatpush1.bf16.msra.mxu0 %v804
      %808 = vmatprep.subr.bf16.mxu0 0
      %809 = vmatpush1.bf16.msra.mxu0 0
      %810 = vmatprep.subr.bf16.mxu0 0
      %811 = vmatpush1.bf16.msra.mxu0 0
      %812 = vmatprep.subr.bf16.mxu0 0
      %813 = vmatpush1.bf16.msra.mxu0 0
      %814 = vmatprep.subr.bf16.mxu0 0
      %815 = vmatpush1.bf16.msra.mxu0 0
      %816 = vmatprep.subr.bf16.mxu0 0
      %817 = vmatpush1.bf16.msra.mxu0 0
      %818 = vmatprep.subr.bf16.mxu0 0
      %819 = vmatpush1.bf16.msra.mxu0 0
      %820 = vmatprep.subr.bf16.mxu0 0
      %821 = vmatpush1.bf16.msra.mxu0 0
      %822 = vmatprep.subr.bf16.mxu0 0
      %823 = vmatpush1.bf16.msra.mxu0 0
      %824 = vmatprep.subr.bf16.mxu0 0
      %825 = vmatpush1.bf16.msra.mxu0 0
      %826 = vmatprep.subr.bf16.mxu0 0
      %827 = vmatpush1.bf16.msra.mxu0 0
      %828 = vmatprep.subr.bf16.mxu0 0
      %829 = vmatpush1.bf16.msra.mxu0 0
      %830 = vmatprep.subr.bf16.mxu0 0
      %831 = vmatpush1.bf16.msra.mxu0 0
      %832 = vmatprep.subr.bf16.mxu0 0
      %833 = vmatpush1.bf16.msra.mxu0 0
      %834 = vmatprep.subr.bf16.mxu0 0
      %835 = vmatpush1.bf16.msra.mxu0 0
      %836 = vmatprep.subr.bf16.mxu0 0
      %837 = vmatpush1.bf16.msra.mxu0 0
      %838 = vmatprep.mubr.bf16.mxu0 0
      %839 = vmatmul.mubr.bf16.gmra.mrb[0].mxu0 %v801
      %v840 = vpop.f32.mrb[0].mxu0
      %v841 = vadd.f32 0.0, %v840
      %v842 = vpop.f32.mrb[0].mxu0
      %v843 = vpop.f32.mrb[0].mxu0
      %v844 = vpop.f32.mrb[0].mxu0
      %845 = vdwg.mxu0
      %v846 = vpack.c.bf16 %v841, %v841
      %v848 = vsel %vm412, %v846, 0
      %v851 = vsel %vm475, %v400, 0
      %853 = vmatprep.subr.bf16.mxu0 0
      %854 = vmatpush1.bf16.msra.mxu0 %v851
      %855 = vmatprep.subr.bf16.mxu0 0
      %856 = vmatpush1.bf16.msra.mxu0 0
      %857 = vmatprep.subr.bf16.mxu0 0
      %858 = vmatpush1.bf16.msra.mxu0 0
      %859 = vmatprep.subr.bf16.mxu0 0
      %860 = vmatpush1.bf16.msra.mxu0 0
      %861 = vmatprep.subr.bf16.mxu0 0
      %862 = vmatpush1.bf16.msra.mxu0 0
      %863 = vmatprep.subr.bf16.mxu0 0
      %864 = vmatpush1.bf16.msra.mxu0 0
      %865 = vmatprep.subr.bf16.mxu0 0
      %866 = vmatpush1.bf16.msra.mxu0 0
      %867 = vmatprep.subr.bf16.mxu0 0
      %868 = vmatpush1.bf16.msra.mxu0 0
      %869 = vmatprep.subr.bf16.mxu0 0
      %870 = vmatpush1.bf16.msra.mxu0 0
      %871 = vmatprep.subr.bf16.mxu0 0
      %872 = vmatpush1.bf16.msra.mxu0 0
      %873 = vmatprep.subr.bf16.mxu0 0
      %874 = vmatpush1.bf16.msra.mxu0 0
      %875 = vmatprep.subr.bf16.mxu0 0
      %876 = vmatpush1.bf16.msra.mxu0 0
      %877 = vmatprep.subr.bf16.mxu0 0
      %878 = vmatpush1.bf16.msra.mxu0 0
      %879 = vmatprep.subr.bf16.mxu0 0
      %880 = vmatpush1.bf16.msra.mxu0 0
      %881 = vmatprep.subr.bf16.mxu0 0
      %882 = vmatpush1.bf16.msra.mxu0 0
      %883 = vmatprep.subr.bf16.mxu0 0
      %884 = vmatpush1.bf16.msra.mxu0 0
      %885 = vmatprep.mubr.bf16.mxu0 0
      %886 = vmatmul.mubr.bf16.gmra.mrb[0].mxu0 %v848
      %v887 = vpop.f32.mrb[0].mxu0
      %v888 = vadd.f32 0.0, %v887
      %v889 = vpop.f32.mrb[0].mxu0
      %v890 = vpop.f32.mrb[0].mxu0
      %v891 = vpop.f32.mrb[0].mxu0
      %892 = vdwg.mxu0
      %v893 = vadd.f32 %v734, %v888
      %894 = vrot.lane.b32.xlu0 %v569, 104
      %v895 = vpop.permute.xlu0 %894
      %896 = vrot.lane.b32.xlu0 %v574, 104
      %v897 = vpop.permute.xlu0 %896
      %v899 = vsel %vm412, %v895, 0
      %v902 = vsel %vm412, %v897, 0
      %904 = vmatprep.subr.bf16.mxu0 0
      %905 = vmatpush1.bf16.xpose.msra.mxu0 %v902
      %906 = vmatprep.subr.bf16.mxu0 0
      %907 = vmatpush1.bf16.xpose.msra.mxu0 0
      %908 = vmatprep.subr.bf16.mxu0 0
      %909 = vmatpush1.bf16.xpose.msra.mxu0 0
      %910 = vmatprep.subr.bf16.mxu0 0
      %911 = vmatpush1.bf16.xpose.msra.mxu0 0
      %912 = vmatprep.subr.bf16.mxu0 0
      %913 = vmatpush1.bf16.xpose.msra.mxu0 0
      %914 = vmatprep.subr.bf16.mxu0 0
      %915 = vmatpush1.bf16.xpose.msra.mxu0 0
      %916 = vmatprep.subr.bf16.mxu0 0
      %917 = vmatpush1.bf16.xpose.msra.mxu0 0
      %918 = vmatprep.subr.bf16.mxu0 0
      %919 = vmatpush1.bf16.xpose.msra.mxu0 0
      %920 = vmatprep.subr.bf16.mxu0 0
      %921 = vmatpush1.bf16.xpose.msra.mxu0 0
      %922 = vmatprep.subr.bf16.mxu0 0
      %923 = vmatpush1.bf16.xpose.msra.mxu0 0
      %924 = vmatprep.subr.bf16.mxu0 0
      %925 = vmatpush1.bf16.xpose.msra.mxu0 0
      %926 = vmatprep.subr.bf16.mxu0 0
      %927 = vmatpush1.bf16.xpose.msra.mxu0 0
      %928 = vmatprep.subr.bf16.mxu0 0
      %929 = vmatpush1.bf16.xpose.msra.mxu0 0
      %930 = vmatprep.subr.bf16.mxu0 0
      %931 = vmatpush1.bf16.xpose.msra.mxu0 0
      %932 = vmatprep.subr.bf16.mxu0 0
      %933 = vmatpush1.bf16.xpose.msra.mxu0 0
      %934 = vmatprep.subr.bf16.mxu0 0
      %935 = vmatpush1.bf16.xpose.msra.mxu0 0
      %936 = vmatprep.mubr.bf16.mxu0 0
      %937 = vmatmul.mubr.bf16.gmra.mrb[0].mxu0 %v899
      %v938 = vpop.f32.mrb[0].mxu0
      %v939 = vadd.f32 0.0, %v938
      %v940 = vpop.f32.mrb[0].mxu0
      %v941 = vpop.f32.mrb[0].mxu0
      %v942 = vpop.f32.mrb[0].mxu0
      %943 = vdwg.mxu0
      %v944 = vmul.f32 %v939, 0.35355338
      %v945 = vsel %vm412, %v944, -inf
      %946 = vmax.xlane.f32.xlu0 %v945
      %v947 = vpop.xlane.xlu0 %946
      %v948 = vsub.f32 %v944, %v947
      %v949 = vmul.f32 %v948, 1.442695
      %v950 = vpow.pop %v949
      %v951 = vsel %vm412, %v950, 0.0
      %952 = vadd.xlane.f32.xlu0 %v951
      %v953 = vpop.xlane.xlu0 %952
      %v954 = vrcp.pop %v953
      %v955 = vmul.f32 %v950, %v954
      %v956 = vpack.c.bf16 %v955, %v955
      %957 = vrot.lane.b32.xlu0 %v638, 104
      %v958 = vpop.permute.xlu0 %957
      %v960 = vsel %vm412, %v956, 0
      %v963 = vsel %vm475, %v958, 0
      %965 = vmatprep.subr.bf16.mxu0 0
      %966 = vmatpush1.bf16.msra.mxu0 %v963
      %967 = vmatprep.subr.bf16.mxu0 0
      %968 = vmatpush1.bf16.msra.mxu0 0
      %969 = vmatprep.subr.bf16.mxu0 0
      %970 = vmatpush1.bf16.msra.mxu0 0
      %971 = vmatprep.subr.bf16.mxu0 0
      %972 = vmatpush1.bf16.msra.mxu0 0
      %973 = vmatprep.subr.bf16.mxu0 0
      %974 = vmatpush1.bf16.msra.mxu0 0
      %975 = vmatprep.subr.bf16.mxu0 0
      %976 = vmatpush1.bf16.msra.mxu0 0
      %977 = vmatprep.subr.bf16.mxu0 0
      %978 = vmatpush1.bf16.msra.mxu0 0
      %979 = vmatprep.subr.bf16.mxu0 0
      %980 = vmatpush1.bf16.msra.mxu0 0
      %981 = vmatprep.subr.bf16.mxu0 0
      %982 = vmatpush1.bf16.msra.mxu0 0
      %983 = vmatprep.subr.bf16.mxu0 0
      %984 = vmatpush1.bf16.msra.mxu0 0
      %985 = vmatprep.subr.bf16.mxu0 0
      %986 = vmatpush1.bf16.msra.mxu0 0
      %987 = vmatprep.subr.bf16.mxu0 0
      %988 = vmatpush1.bf16.msra.mxu0 0
      %989 = vmatprep.subr.bf16.mxu0 0
      %990 = vmatpush1.bf16.msra.mxu0 0
      %991 = vmatprep.subr.bf16.mxu0 0
      %992 = vmatpush1.bf16.msra.mxu0 0
      %993 = vmatprep.subr.bf16.mxu0 0
      %994 = vmatpush1.bf16.msra.mxu0 0
      %995 = vmatprep.subr.bf16.mxu0 0
      %996 = vmatpush1.bf16.msra.mxu0 0
      %997 = vmatprep.mubr.bf16.mxu0 0
      %998 = vmatmul.mubr.bf16.gmra.mrb[0].mxu0 %v960
      %v999 = vpop.f32.mrb[0].mxu0
      %v1000 = vadd.f32 0.0, %v999
      %v1001 = vpop.f32.mrb[0].mxu0
      %v1002 = vpop.f32.mrb[0].mxu0
      %v1003 = vpop.f32.mrb[0].mxu0
      %1004 = vdwg.mxu0
      %v1005 = vpack.c.bf16 %v1000, %v1000
      %v1007 = vsel %vm412, %v1005, 0
      %v1010 = vsel %vm475, %v401, 0
      %1012 = vmatprep.subr.bf16.mxu0 0
      %1013 = vmatpush1.bf16.msra.mxu0 %v1010
      %1014 = vmatprep.subr.bf16.mxu0 0
      %1015 = vmatpush1.bf16.msra.mxu0 0
      %1016 = vmatprep.subr.bf16.mxu0 0
      %1017 = vmatpush1.bf16.msra.mxu0 0
      %1018 = vmatprep.subr.bf16.mxu0 0
      %1019 = vmatpush1.bf16.msra.mxu0 0
      %1020 = vmatprep.subr.bf16.mxu0 0
      %1021 = vmatpush1.bf16.msra.mxu0 0
      %1022 = vmatprep.subr.bf16.mxu0 0
      %1023 = vmatpush1.bf16.msra.mxu0 0
      %1024 = vmatprep.subr.bf16.mxu0 0
      %1025 = vmatpush1.bf16.msra.mxu0 0
      %1026 = vmatprep.subr.bf16.mxu0 0
      %1027 = vmatpush1.bf16.msra.mxu0 0
      %1028 = vmatprep.subr.bf16.mxu0 0
      %1029 = vmatpush1.bf16.msra.mxu0 0
      %1030 = vmatprep.subr.bf16.mxu0 0
      %1031 = vmatpush1.bf16.msra.mxu0 0
      %1032 = vmatprep.subr.bf16.mxu0 0
      %1033 = vmatpush1.bf16.msra.mxu0 0
      %1034 = vmatprep.subr.bf16.mxu0 0
      %1035 = vmatpush1.bf16.msra.mxu0 0
      %1036 = vmatprep.subr.bf16.mxu0 0
      %1037 = vmatpush1.bf16.msra.mxu0 0
      %1038 = vmatprep.subr.bf16.mxu0 0
      %1039 = vmatpush1.bf16.msra.mxu0 0
      %1040 = vmatprep.subr.bf16.mxu0 0
      %1041 = vmatpush1.bf16.msra.mxu0 0
      %1042 = vmatprep.subr.bf16.mxu0 0
      %1043 = vmatpush1.bf16.msra.mxu0 0
      %1044 = vmatprep.mubr.bf16.mxu0 0
      %1045 = vmatmul.mubr.bf16.gmra.mrb[0].mxu0 %v1007
      %v1046 = vpop.f32.mrb[0].mxu0
      %v1047 = vadd.f32 0.0, %v1046
      %v1048 = vpop.f32.mrb[0].mxu0
      %v1049 = vpop.f32.mrb[0].mxu0
      %v1050 = vpop.f32.mrb[0].mxu0
      %1051 = vdwg.mxu0
      %v1052 = vadd.f32 %v893, %v1047
      %vm1053 = vcmask 261120
      %v1054 = vsel %vm1053, %v1052, 0.0
      %1055 = vadd.xlane.f32.xlu0 %v1054
      %v1056 = vpop.xlane.xlu0 %1055
      %v1057 = vrcp.pop 32.0
      %v1058 = vmul.f32 %v1056, %v1057
      %v1059 = vsub.f32 %v1052, %v1058
      %v1060 = vmul.f32 %v1059, %v1059
      %v1061 = vsel %vm1053, %v1060, 0.0
      %1062 = vadd.xlane.f32.xlu0 %v1061
      %v1063 = vpop.xlane.xlu0 %1062
      %v1064 = vmul.f32 %v1063, %v1057
      %v1065 = vadd.f32 %v1064, 1e-05
      %v1066 = vrsqrt.pop %v1065
      %v1067 = vmul.f32 %v1059, %v1066
      %v1068 = vld [vmem:[%s6] sm:$0x1]
      %v1070 = vlaneseq
      %v1071 = vshrl.u32 %v1070, 7
      %v1072 = vsub.s32 0, %v1071
      %v1073 = vrot.slane %v1068, %v1072
      %v1075 = vmul.f32 %v1067, %v1073
      %v1076 = vld [vmem:[%s7] sm:$0x1]
      %v1078 = vlaneseq
      %v1079 = vshrl.u32 %v1078, 7
      %v1080 = vsub.s32 0, %v1079
      %v1081 = vrot.slane %v1076, %v1080
      %v1083 = vadd.f32 %v1075, %v1081
      %v1084 = vpack.c.bf16 %v1083, %v1083
      %vm1085 = vcmask 257024
      %1086 = vst.msk [vmem:[%s393] sm:$0xf] %vm1085, %v1084
      %p1087 = scmp.lt.s32.totalorder %s23, 1
      %s1088 = scalar_select %p1087, %s23, 1
      %p1089 = scmp.lt.s32.totalorder %s24, 0
      %s1090 = scalar_select %p1089, %s24, 0
      %s1091 = sadd.s32 %s1090, %s1088
      %s1092 = smul.addr %s1091, 4
      %s1093 = scalar_lea.vmem %s8, %s1092
      // Predicated region
      $region53: #{_lambda_.30} parent=51 // pred_check
        %p1094 = pneg %p243
      $region54: #{_lambda_.30} parent=51 // pred_check_branch
        %1096 = sbr.rel (%p1094) target = $region56
      $region55: #{_lambda_.30} parent=51 // pred_region
        _
      $region56: #{_lambda_.30} parent=51 // pred_fallthru
        _
    $region52: #{_lambda_.30} parent=5 // pred_fallthru
      _
    %p1097 = scmp.le.s32.totalorder 2, %s14
    // Predicated region
    $region57: #{_lambda_.30} parent=5 // pred_check
      %p1098 = pneg %p1097
    $region58: #{_lambda_.30} parent=5 // pred_check_branch
      %1100 = sbr.rel (%p1098) target = $region60
    $region59: #{_lambda_.30} parent=5 // pred_region
      %s1101 = ssub.s32 %s14, 2
      // Predicated region
      $region61: #{_lambda_.30} parent=59 // pred_check
        %p1102 = pneg %p249
      $region62: #{_lambda_.30} parent=59 // pred_check_branch
        %1104 = sbr.rel (%p1102) target = $region64
      $region63: #{_lambda_.30} parent=59 // pred_region
        %p1105 = scmp.lt.s32.totalorder %s25, 1
        %s1106 = scalar_select %p1105, %s25, 1
        %p1107 = scmp.lt.s32.totalorder %s26, 0
        %s1108 = scalar_select %p1107, %s26, 0
        %s1109 = sadd.s32 %s1108, %s1106
        %s1110 = smul.addr %s1109, 4
        %s1111 = scalar_lea.vmem %s8, %s1110
      $region64: #{_lambda_.30} parent=59 // pred_fallthru
        _
    $region60: #{_lambda_.30} parent=5 // pred_fallthru
      _
  $region6: #{_lambda_.30} parent=0 // loop_footer
    %s18 = sadd.s32 1, %s14
  $region7: #{_lambda_.30} parent=0 // loop_footer_branch
    %13 = sbr.rel target = $region3
  $region8: #{_lambda_.30} parent=0 // loop_exit
    _

// kernel: _lambda_.33
$region0: #{_lambda_.33}
  #allocation0 [shape = 'u32[]', space=smem, size = 0x4, offset = 0x4, fixed_abs, tag = 'smem constant byte address 0x4 - core index']
  #allocation1 [shape = 'u32[144,128]{1,0:T(1,128)}', space=vmem, size = 0x12000, scoped, tag = 'internal scratch']
  %s0 = inlined_call_operand.vmem [shape: bf16[2,8,32], index: 0, kind: input, shape index: {}]
  %s1 = inlined_call_operand.vmem [shape: bf16[2,16,32], index: 1, kind: input, shape index: {}]
  %s2 = inlined_call_operand.vmem [shape: bf16[2,16,32], index: 2, kind: input, shape index: {}]
  %s3 = inlined_call_operand.vmem [shape: bf16[32,32], index: 3, kind: input, shape index: {}]
  %s4 = inlined_call_operand.vmem [shape: f32[1,32], index: 4, kind: input, shape index: {}]
  %s5 = inlined_call_operand.vmem [shape: bf16[2,8,32], index: 5, kind: input, shape index: {}]
  %s6 = inlined_call_operand.vmem [shape: f32[1,32], index: 6, kind: input, shape index: {}]
  %s7 = inlined_call_operand.vmem [shape: f32[1,32], index: 7, kind: input, shape index: {}]
  %s8 = inlined_call_operand.vmem [shape: bf16[2,8,32], index: 8, kind: output, shape index: {}]
  %s9 = sld [smem:[#allocation0]]
  $region65: #{_lambda_.33} parent=0
    _
  %s11 = ssub.s32 1, %s9
  %s12 = scalar_select 0, %s11, %s9
  loop: start=0, step=1, limit=4
  $region2: #{_lambda_.33} parent=0 // loop_pre_header
    _
  $region3: #{_lambda_.33} parent=0 // loop_header
    %s14 = sphi 0, %s18
    %p15 = scmp.ge.s32.totalorder %s14, 4
    %s21 = sphi 0, %s33
    %s22 = sphi 0, %s29
    %s23 = sphi 0, %s21
    %s24 = sphi 0, %s22
    %s25 = sphi 0, %s23
    %s26 = sphi 0, %s24
    %s38 = sphi 0, %s40
    %s41 = sphi 0, %s38
    %s42 = sphi 0, %s41
    %s58 = sphi 0, %s42
    %s64 = sphi 0, %s66
    %s67 = sphi 0, %s64
    %s68 = sphi 0, %s67
    %s84 = sphi 0, %s68
    %s90 = sphi 0, %s92
    %s93 = sphi 0, %s90
    %s94 = sphi 0, %s93
    %s110 = sphi 0, %s94
    %s114 = sphi 0, %s114
    %s116 = sphi 0, %s114
    %s117 = sphi 0, %s116
    %s131 = sphi 0, %s117
    %s135 = sphi 0, %s135
    %s137 = sphi 0, %s135
    %s138 = sphi 0, %s137
    %s152 = sphi 0, %s138
    %s160 = sphi 0, %s162
    %s163 = sphi 0, %s160
    %s164 = sphi 0, %s163
    %s180 = sphi 0, %s164
    %s184 = sphi 0, %s184
    %s186 = sphi 0, %s184
    %s187 = sphi 0, %s186
    %s201 = sphi 0, %s187
    %s205 = sphi 0, %s205
    %s207 = sphi 0, %s205
    %s208 = sphi 0, %s207
    %s222 = sphi 0, %s208
    %s230 = sphi 0, %s232
    %s233 = sphi 0, %s230
    %s234 = sphi 0, %s233
    %s250 = sphi 0, %s234
  $region4: #{_lambda_.33} parent=0 // loop_header_branch
    %17 = sbr.rel (%p15) target = $region8
  $region5: #{_lambda_.33} parent=0 // loop_body
    %s19 = ssub.s32 %s14, 1
    %s20 = ssub.s32 %s14, 2
    %s27 = sadd.s32 1, %s22
    %p28 = scmp.ge.s32.totalorder %s27, 1
    %s29 = scalar_select %p28, 0, %s27
    %s30 = sadd.s32 1, %s21
    %s31 = scalar_select %p28, %s30, %s21
    %p32 = scmp.ge.s32.totalorder %s31, 2
    %s33 = scalar_select %p32, 0, %s31
    %s34 = ssub.s32 %s21, %s33
    %s35 = ssub.s32 %s22, %s29
    %s36 = sor.u32 %s34, %s35
    %p37 = scmp.eq.s32.totalorder %s36, 0
    %s39 = sadd.s32 %s38, 1
    %s40 = scalar_select %p37, %s38, %s39
    %p43 = pneg %p37
    %p44 = scmp.eq.s32.totalorder %s14, 1
    %p45 = por %p43, %p44
    %p46 = scmp.ne.s32.totalorder %s38, %s41
    %p47 = scmp.eq.s32.totalorder %s14, 0
    %p48 = por %p46, %p47
    %p49 = scmp.ne.s32.totalorder %s38, %s41
    %p50 = scmp.eq.s32.totalorder %s19, 1
    %p51 = por %p49, %p50
    %p52 = scmp.ne.s32.totalorder %s41, %s42
    %p53 = scmp.eq.s32.totalorder %s19, 0
    %p54 = por %p52, %p53
    %p55 = scmp.ne.s32.totalorder %s41, %s42
    %p56 = scmp.eq.s32.totalorder %s20, 1
    %p57 = por %p55, %p56
    %p59 = scmp.ne.s32.totalorder %s42, %s58
    %p60 = scmp.eq.s32.totalorder %s20, 0
    %p61 = por %p59, %p60
    %s62 = ssub.s32 %s21, %s33
    %p63 = scmp.eq.s32.totalorder %s62, 0
    %s65 = sadd.s32 %s64, 1
    %s66 = scalar_select %p63, %s64, %s65
    %p69 = pneg %p63
    %p70 = scmp.eq.s32.totalorder %s14, 1
    %p71 = por %p69, %p70
    %p72 = scmp.ne.s32.totalorder %s64, %s67
    %p73 = scmp.eq.s32.totalorder %s14, 0
    %p74 = por %p72, %p73
    %p75 = scmp.ne.s32.totalorder %s64, %s67
    %p76 = scmp.eq.s32.totalorder %s19, 1
    %p77 = por %p75, %p76
    %p78 = scmp.ne.s32.totalorder %s67, %s68
    %p79 = scmp.eq.s32.totalorder %s19, 0
    %p80 = por %p78, %p79
    %p81 = scmp.ne.s32.totalorder %s67, %s68
    %p82 = scmp.eq.s32.totalorder %s20, 1
    %p83 = por %p81, %p82
    %p85 = scmp.ne.s32.totalorder %s68, %s84
    %p86 = scmp.eq.s32.totalorder %s20, 0
    %p87 = por %p85, %p86
    %s88 = ssub.s32 %s21, %s33
    %p89 = scmp.eq.s32.totalorder %s88, 0
    %s91 = sadd.s32 %s90, 1
    %s92 = scalar_select %p89, %s90, %s91
    %p95 = pneg %p89
    %p96 = scmp.eq.s32.totalorder %s14, 1
    %p97 = por %p95, %p96
    %p98 = scmp.ne.s32.totalorder %s90, %s93
    %p99 = scmp.eq.s32.totalorder %s14, 0
    %p100 = por %p98, %p99
    %p101 = scmp.ne.s32.totalorder %s90, %s93
    %p102 = scmp.eq.s32.totalorder %s19, 1
    %p103 = por %p101, %p102
    %p104 = scmp.ne.s32.totalorder %s93, %s94
    %p105 = scmp.eq.s32.totalorder %s19, 0
    %p106 = por %p104, %p105
    %p107 = scmp.ne.s32.totalorder %s93, %s94
    %p108 = scmp.eq.s32.totalorder %s20, 1
    %p109 = por %p107, %p108
    %p111 = scmp.ne.s32.totalorder %s94, %s110
    %p112 = scmp.eq.s32.totalorder %s20, 0
    %p113 = por %p111, %p112
    %s115 = sadd.s32 %s114, 1
    %p118 = scmp.eq.s32.totalorder %s14, 1
    %p119 = scmp.ne.s32.totalorder %s114, %s116
    %p120 = scmp.eq.s32.totalorder %s14, 0
    %p121 = por %p119, %p120
    %p122 = scmp.ne.s32.totalorder %s114, %s116
    %p123 = scmp.eq.s32.totalorder %s19, 1
    %p124 = por %p122, %p123
    %p125 = scmp.ne.s32.totalorder %s116, %s117
    %p126 = scmp.eq.s32.totalorder %s19, 0
    %p127 = por %p125, %p126
    %p128 = scmp.ne.s32.totalorder %s116, %s117
    %p129 = scmp.eq.s32.totalorder %s20, 1
    %p130 = por %p128, %p129
    %p132 = scmp.ne.s32.totalorder %s117, %s131
    %p133 = scmp.eq.s32.totalorder %s20, 0
    %p134 = por %p132, %p133
    %s136 = sadd.s32 %s135, 1
    %p139 = scmp.eq.s32.totalorder %s14, 1
    %p140 = scmp.ne.s32.totalorder %s135, %s137
    %p141 = scmp.eq.s32.totalorder %s14, 0
    %p142 = por %p140, %p141
    %p143 = scmp.ne.s32.totalorder %s135, %s137
    %p144 = scmp.eq.s32.totalorder %s19, 1
    %p145 = por %p143, %p144
    %p146 = scmp.ne.s32.totalorder %s137, %s138
    %p147 = scmp.eq.s32.totalorder %s19, 0
    %p148 = por %p146, %p147
    %p149 = scmp.ne.s32.totalorder %s137, %s138
    %p150 = scmp.eq.s32.totalorder %s20, 1
    %p151 = por %p149, %p150
    %p153 = scmp.ne.s32.totalorder %s138, %s152
    %p154 = scmp.eq.s32.totalorder %s20, 0
    %p155 = por %p153, %p154
    %s156 = ssub.s32 %s21, %s33
    %s157 = ssub.s32 %s22, %s29
    %s158 = sor.u32 %s156, %s157
    %p159 = scmp.eq.s32.totalorder %s158, 0
    %s161 = sadd.s32 %s160, 1
    %s162 = scalar_select %p159, %s160, %s161
    %p165 = pneg %p159
    %p166 = scmp.eq.s32.totalorder %s14, 1
    %p167 = por %p165, %p166
    %p168 = scmp.ne.s32.totalorder %s160, %s163
    %p169 = scmp.eq.s32.totalorder %s14, 0
    %p170 = por %p168, %p169
    %p171 = scmp.ne.s32.totalorder %s160, %s163
    %p172 = scmp.eq.s32.totalorder %s19, 1
    %p173 = por %p171, %p172
    %p174 = scmp.ne.s32.totalorder %s163, %s164
    %p175 = scmp.eq.s32.totalorder %s19, 0
    %p176 = por %p174, %p175
    %p177 = scmp.ne.s32.totalorder %s163, %s164
    %p178 = scmp.eq.s32.totalorder %s20, 1
    %p179 = por %p177, %p178
    %p181 = scmp.ne.s32.totalorder %s164, %s180
    %p182 = scmp.eq.s32.totalorder %s20, 0
    %p183 = por %p181, %p182
    %s185 = sadd.s32 %s184, 1
    %p188 = scmp.eq.s32.totalorder %s14, 1
    %p189 = scmp.ne.s32.totalorder %s184, %s186
    %p190 = scmp.eq.s32.totalorder %s14, 0
    %p191 = por %p189, %p190
    %p192 = scmp.ne.s32.totalorder %s184, %s186
    %p193 = scmp.eq.s32.totalorder %s19, 1
    %p194 = por %p192, %p193
    %p195 = scmp.ne.s32.totalorder %s186, %s187
    %p196 = scmp.eq.s32.totalorder %s19, 0
    %p197 = por %p195, %p196
    %p198 = scmp.ne.s32.totalorder %s186, %s187
    %p199 = scmp.eq.s32.totalorder %s20, 1
    %p200 = por %p198, %p199
    %p202 = scmp.ne.s32.totalorder %s187, %s201
    %p203 = scmp.eq.s32.totalorder %s20, 0
    %p204 = por %p202, %p203
    %s206 = sadd.s32 %s205, 1
    %p209 = scmp.eq.s32.totalorder %s14, 1
    %p210 = scmp.ne.s32.totalorder %s205, %s207
    %p211 = scmp.eq.s32.totalorder %s14, 0
    %p212 = por %p210, %p211
    %p213 = scmp.ne.s32.totalorder %s205, %s207
    %p214 = scmp.eq.s32.totalorder %s19, 1
    %p215 = por %p213, %p214
    %p216 = scmp.ne.s32.totalorder %s207, %s208
    %p217 = scmp.eq.s32.totalorder %s19, 0
    %p218 = por %p216, %p217
    %p219 = scmp.ne.s32.totalorder %s207, %s208
    %p220 = scmp.eq.s32.totalorder %s20, 1
    %p221 = por %p219, %p220
    %p223 = scmp.ne.s32.totalorder %s208, %s222
    %p224 = scmp.eq.s32.totalorder %s20, 0
    %p225 = por %p223, %p224
    %s226 = ssub.s32 %s21, %s33
    %s227 = ssub.s32 %s22, %s29
    %s228 = sor.u32 %s226, %s227
    %p229 = scmp.eq.s32.totalorder %s228, 0
    %s231 = sadd.s32 %s230, 1
    %s232 = scalar_select %p229, %s230, %s231
    %p235 = pneg %p229
    %p236 = scmp.eq.s32.totalorder %s14, 1
    %p237 = por %p235, %p236
    %p238 = scmp.ne.s32.totalorder %s230, %s233
    %p239 = scmp.eq.s32.totalorder %s14, 0
    %p240 = por %p238, %p239
    %p241 = scmp.ne.s32.totalorder %s230, %s233
    %p242 = scmp.eq.s32.totalorder %s19, 1
    %p243 = por %p241, %p242
    %p244 = scmp.ne.s32.totalorder %s233, %s234
    %p245 = scmp.eq.s32.totalorder %s19, 0
    %p246 = por %p244, %p245
    %p247 = scmp.ne.s32.totalorder %s233, %s234
    %p248 = scmp.eq.s32.totalorder %s20, 1
    %p249 = por %p247, %p248
    %p251 = scmp.ne.s32.totalorder %s234, %s250
    %p252 = scmp.eq.s32.totalorder %s20, 0
    %p253 = por %p251, %p252
    %p254 = scmp.le.s32.totalorder 1, %s14
    %p255 = scmp.lt.s32.totalorder %s14, 3
    %p256 = pnand %p254, %p255
    %p257 = pneg %p256
    // Predicated region
    $region9: #{_lambda_.33} parent=5 // pred_check
      _
    $region10: #{_lambda_.33} parent=5 // pred_check_branch
      %259 = sbr.rel (%p256) target = $region12
    $region11: #{_lambda_.33} parent=5 // pred_region
      %s260 = ssub.s32 %s14, 1
      // Predicated region
      $region13: #{_lambda_.33} parent=11 // pred_check
        %p261 = pneg %p127
      $region14: #{_lambda_.33} parent=11 // pred_check_branch
        %263 = sbr.rel (%p261) target = $region16
      $region15: #{_lambda_.33} parent=11 // pred_region
        _
      $region16: #{_lambda_.33} parent=11 // pred_fallthru
        _
      // Predicated region
      $region17: #{_lambda_.33} parent=11 // pred_check
        %p264 = pneg %p148
      $region18: #{_lambda_.33} parent=11 // pred_check_branch
        %266 = sbr.rel (%p264) target = $region20
      $region19: #{_lambda_.33} parent=11 // pred_region
        _
      $region20: #{_lambda_.33} parent=11 // pred_fallthru
        _
      // Predicated region
      $region21: #{_lambda_.33} parent=11 // pred_check
        %p267 = pneg %p197
      $region22: #{_lambda_.33} parent=11 // pred_check_branch
        %269 = sbr.rel (%p267) target = $region24
      $region23: #{_lambda_.33} parent=11 // pred_region
        _
      $region24: #{_lambda_.33} parent=11 // pred_fallthru
        _
      // Predicated region
      $region25: #{_lambda_.33} parent=11 // pred_check
        %p270 = pneg %p218
      $region26: #{_lambda_.33} parent=11 // pred_check_branch
        %272 = sbr.rel (%p270) target = $region28
      $region27: #{_lambda_.33} parent=11 // pred_region
        _
      $region28: #{_lambda_.33} parent=11 // pred_fallthru
        _
    $region12: #{_lambda_.33} parent=5 // pred_fallthru
      _
    %p273 = scmp.lt.s32.totalorder %s14, 2
    // Predicated region
    $region29: #{_lambda_.33} parent=5 // pred_check
      %p274 = pneg %p273
    $region30: #{_lambda_.33} parent=5 // pred_check_branch
      %276 = sbr.rel (%p274) target = $region32
    $region31: #{_lambda_.33} parent=5 // pred_region
      // Predicated region
      $region33: #{_lambda_.33} parent=31 // pred_check
        %p277 = pneg %p48
      $region34: #{_lambda_.33} parent=31 // pred_check_branch
        %279 = sbr.rel (%p277) target = $region36
      $region35: #{_lambda_.33} parent=31 // pred_region
        %p280 = scmp.lt.s32.totalorder %s21, 1
        %s281 = scalar_select %p280, %s21, 1
        %p282 = scmp.lt.s32.totalorder %s22, 0
        %s283 = scalar_select %p282, %s22, 0
        %s284 = sadd.s32 %s283, %s281
        %s285 = smul.addr %s284, 4
        %s286 = scalar_lea.vmem %s0, %s285
      $region36: #{_lambda_.33} parent=31 // pred_fallthru
        _
      // Predicated region
      $region37: #{_lambda_.33} parent=31 // pred_check
        %p287 = pneg %p74
      $region38: #{_lambda_.33} parent=31 // pred_check_branch
        %289 = sbr.rel (%p287) target = $region40
      $region39: #{_lambda_.33} parent=31 // pred_region
        %p290 = scmp.lt.s32.totalorder %s21, 1
        %s291 = scalar_select %p290, %s21, 1
        %s292 = smul.addr %s291, 2
        %s293 = smul.addr %s292, 4
        %s294 = scalar_lea.vmem %s1, %s293
      $region40: #{_lambda_.33} parent=31 // pred_fallthru
        _
      // Predicated region
      $region41: #{_lambda_.33} parent=31 // pred_check
        %p295 = pneg %p100
      $region42: #{_lambda_.33} parent=31 // pred_check_branch
        %297 = sbr.rel (%p295) target = $region44
      $region43: #{_lambda_.33} parent=31 // pred_region
        %p298 = scmp.lt.s32.totalorder %s21, 1
        %s299 = scalar_select %p298, %s21, 1
        %s300 = smul.addr %s299, 2
        %s301 = smul.addr %s300, 4
        %s302 = scalar_lea.vmem %s2, %s301
      $region44: #{_lambda_.33} parent=31 // pred_fallthru
        _
      // Predicated region
      $region45: #{_lambda_.33} parent=31 // pred_check
        %p303 = pneg %p170
      $region46: #{_lambda_.33} parent=31 // pred_check_branch
        %305 = sbr.rel (%p303) target = $region48
      $region47: #{_lambda_.33} parent=31 // pred_region
        %p306 = scmp.lt.s32.totalorder %s21, 1
        %s307 = scalar_select %p306, %s21, 1
        %p308 = scmp.lt.s32.totalorder %s22, 0
        %s309 = scalar_select %p308, %s22, 0
        %s310 = sadd.s32 %s309, %s307
        %s311 = smul.addr %s310, 4
        %s312 = scalar_lea.vmem %s5, %s311
      $region48: #{_lambda_.33} parent=31 // pred_fallthru
        _
    $region32: #{_lambda_.33} parent=5 // pred_fallthru
      _
    %p313 = scmp.le.s32.totalorder 1, %s14
    %p314 = scmp.lt.s32.totalorder %s14, 3
    %p315 = pnand %p313, %p314
    %p316 = pneg %p315
    // Predicated region
    $region49: #{_lambda_.33} parent=5 // pred_check
      _
    $region50: #{_lambda_.33} parent=5 // pred_check_branch
      %318 = sbr.rel (%p315) target = $region52
    $region51: #{_lambda_.33} parent=5 // pred_region
      %s319 = ssub.s32 %s14, 1
      %p320 = scmp.lt.s32.totalorder %s23, 1
      %s321 = scalar_select %p320, %s23, 1
      %p322 = scmp.lt.s32.totalorder %s24, 0
      %s323 = scalar_select %p322, %s24, 0
      %s324 = sadd.s32 %s323, %s321
      %s325 = smul.addr %s324, 4
      %s326 = scalar_lea.vmem %s0, %s325
      %p327 = pneg %p54
      %p328 = pneg %p51
      %p329 = scmp.lt.s32.totalorder %s23, 1
      %s330 = scalar_select %p329, %s23, 1
      %s331 = smul.addr %s330, 2
      %s332 = smul.addr %s331, 4
      %s333 = scalar_lea.vmem %s1, %s332
      %p334 = pneg %p80
      %p335 = pneg %p77
      %p336 = scmp.lt.s32.totalorder %s23, 1
      %s337 = scalar_select %p336, %s23, 1
      %s338 = smul.addr %s337, 2
      %s339 = smul.addr %s338, 4
      %s340 = scalar_lea.vmem %s2, %s339
      %p341 = pneg %p106
      %p342 = pneg %p103
      %p343 = pneg %p127
      %p344 = pneg %p124
      %p345 = pneg %p148
      %p346 = pneg %p145
      %p347 = scmp.lt.s32.totalorder %s23, 1
      %s348 = scalar_select %p347, %s23, 1
      %p349 = scmp.lt.s32.totalorder %s24, 0
      %s350 = scalar_select %p349, %s24, 0
      %s351 = sadd.s32 %s350, %s348
      %s352 = smul.addr %s351, 4
      %s353 = scalar_lea.vmem %s5, %s352
      %p354 = pneg %p176
      %p355 = pneg %p173
      %p356 = pneg %p197
      %p357 = pneg %p194
      %p358 = pneg %p218
      %p359 = pneg %p215
      %p360 = pneg %p246
      %p361 = pneg %p243
      %p362 = scmp.lt.s32.totalorder %s23, 1
      %s363 = scalar_select %p362, %s23, 1
      %p364 = scmp.lt.s32.totalorder %s24, 0
      %s365 = scalar_select %p364, %s24, 0
      %s366 = sadd.s32 %s365, %s363
      %s367 = smul.addr %s366, 4
      %s368 = scalar_lea.vmem %s8, %s367
      %p369 = scmp.lt.s32.totalorder %s23, 1
      %s370 = scalar_select %p369, %s23, 1
      %p371 = scmp.lt.s32.totalorder %s24, 0
      %s372 = scalar_select %p371, %s24, 0
      %s373 = sadd.s32 %s372, %s370
      %s374 = smul.addr %s373, 4
      %s375 = scalar_lea.vmem %s0, %s374
      %p376 = scmp.lt.s32.totalorder %s23, 1
      %s377 = scalar_select %p376, %s23, 1
      %s378 = smul.addr %s377, 2
      %s379 = smul.addr %s378, 4
      %s380 = scalar_lea.vmem %s1, %s379
      %p381 = scmp.lt.s32.totalorder %s23, 1
      %s382 = scalar_select %p381, %s23, 1
      %s383 = smul.addr %s382, 2
      %s384 = smul.addr %s383, 4
      %s385 = scalar_lea.vmem %s2, %s384
      %p386 = scmp.lt.s32.totalorder %s23, 1
      %s387 = scalar_select %p386, %s23, 1
      %p388 = scmp.lt.s32.totalorder %s24, 0
      %s389 = scalar_select %p388, %s24, 0
      %s390 = sadd.s32 %s389, %s387
      %s391 = smul.addr %s390, 4
      %s392 = scalar_lea.vmem %s5, %s391
      %p393 = scmp.lt.s32.totalorder %s23, 1
      %s394 = scalar_select %p393, %s23, 1
      %p395 = scmp.lt.s32.totalorder %s24, 0
      %s396 = scalar_select %p395, %s24, 0
      %s397 = sadd.s32 %s396, %s394
      %s398 = smul.addr %s397, 4
      %s399 = scalar_lea.vmem %s8, %s398
      %v401 = vld [vmem:[%s375] sm:$0xf]
      %v402 = vld [vmem:[%s380] sm:$0xf]
      %v403 = vld [vmem:[%s380 + $0x4] sm:$0xf]
      %v404 = vld [vmem:[%s385] sm:$0xf]
      %v405 = vld [vmem:[%s385 + $0x4] sm:$0xf]
      %v406 = vld [vmem:[%s3] sm:$0xf]
      %v407 = vld [vmem:[%s3 + $0x4] sm:$0xf]
      %v408 = vld [vmem:[%s3 + $0x8] sm:$0xf]
      %v409 = vld [vmem:[%s3 + $0xc] sm:$0xf]
      %v410 = vld [vmem:[%s392] sm:$0xf]
      %v411 = vunpack.c.l.bf16 %v410
      %v412 = vld [vmem:[%s4] sm:$0x1]
      %v414 = vlaneseq
      %v415 = vshrl.u32 %v414, 7
      %v416 = vsub.s32 0, %v415
      %v417 = vrot.slane %v412, %v416
      %v419 = vadd.f32 %v411, %v417
      %v422 = vunpack.c.l.b16 %v402
      %v423 = vunpack.c.l.b16 %v403
      %v424 = vpack.c.b16 %v423, %v422
      %vm425 = vcmask 64512
      %v427 = vsel %vm425, %v401, 0
      %v430 = vsel %vm425, %v424, 0
      %432 = vmatprep.subr.bf16.mxu0 0
      %433 = vmatpush1.bf16.xpose.msra.mxu0 %v430
      %434 = vmatprep.subr.bf16.mxu0 0
      %435 = vmatpush1.bf16.xpose.msra.mxu0 0
      %436 = vmatprep.subr.bf16.mxu0 0
      %437 = vmatpush1.bf16.xpose.msra.mxu0 0
      %438 = vmatprep.subr.bf16.mxu0 0
      %439 = vmatpush1.bf16.xpose.msra.mxu0 0
      %440 = vmatprep.subr.bf16.mxu0 0
      %441 = vmatpush1.bf16.xpose.msra.mxu0 0
      %442 = vmatprep.subr.bf16.mxu0 0
      %443 = vmatpush1.bf16.xpose.msra.mxu0 0
      %444 = vmatprep.subr.bf16.mxu0 0
      %445 = vmatpush1.bf16.xpose.msra.mxu0 0
      %446 = vmatprep.subr.bf16.mxu0 0
      %447 = vmatpush1.bf16.xpose.msra.mxu0 0
      %448 = vmatprep.subr.bf16.mxu0 0
      %449 = vmatpush1.bf16.xpose.msra.mxu0 0
      %450 = vmatprep.subr.bf16.mxu0 0
      %451 = vmatpush1.bf16.xpose.msra.mxu0 0
      %452 = vmatprep.subr.bf16.mxu0 0
      %453 = vmatpush1.bf16.xpose.msra.mxu0 0
      %454 = vmatprep.subr.bf16.mxu0 0
      %455 = vmatpush1.bf16.xpose.msra.mxu0 0
      %456 = vmatprep.subr.bf16.mxu0 0
      %457 = vmatpush1.bf16.xpose.msra.mxu0 0
      %458 = vmatprep.subr.bf16.mxu0 0
      %459 = vmatpush1.bf16.xpose.msra.mxu0 0
      %460 = vmatprep.subr.bf16.mxu0 0
      %461 = vmatpush1.bf16.xpose.msra.mxu0 0
      %462 = vmatprep.subr.bf16.mxu0 0
      %463 = vmatpush1.bf16.xpose.msra.mxu0 0
      %464 = vmatprep.mubr.bf16.mxu0 0
      %465 = vmatmul.mubr.bf16.gmra.mrb[0].mxu0 %v427
      %v466 = vpop.f32.mrb[0].mxu0
      %v467 = vadd.f32 0.0, %v466
      %v468 = vpop.f32.mrb[0].mxu0
      %v469 = vpop.f32.mrb[0].mxu0
      %v470 = vpop.f32.mrb[0].mxu0
      %471 = vdwg.mxu0
      %v472 = vmul.f32 %v467, 0.35355338
      %vm473 = vcmask 130048
      %v474 = vsel %vm473, %v472, -inf
      %475 = vmax.xlane.f32.xlu0 %v474
      %v476 = vpop.xlane.xlu0 %475
      %v477 = vsub.f32 %v472, %v476
      %v478 = vmul.f32 %v477, 1.442695
      %v479 = vpow.pop %v478
      %v480 = vsel %vm473, %v479, 0.0
      %481 = vadd.xlane.f32.xlu0 %v480
      %v482 = vpop.xlane.xlu0 %481
      %v483 = vrcp.pop %v482
      %v484 = vmul.f32 %v479, %v483
      %v485 = vpack.c.bf16 %v484, %v484
      %v488 = vunpack.c.l.b16 %v404
      %v489 = vunpack.c.l.b16 %v405
      %v490 = vpack.c.b16 %v489, %v488
      %v493 = vsel %vm473, %v485, 0
      %495 = vmatprep.subr.bf16.mxu0 0
      %496 = vmatpush1.bf16.msra.mxu0 %v490
      %497 = vmatprep.subr.bf16.mxu0 0
      %498 = vmatpush1.bf16.msra.mxu0 0
      %499 = vmatprep.subr.bf16.mxu0 0
      %500 = vmatpush1.bf16.msra.mxu0 0
      %501 = vmatprep.subr.bf16.mxu0 0
      %502 = vmatpush1.bf16.msra.mxu0 0
      %503 = vmatprep.subr.bf16.mxu0 0
      %504 = vmatpush1.bf16.msra.mxu0 0
      %505 = vmatprep.subr.bf16.mxu0 0
      %506 = vmatpush1.bf16.msra.mxu0 0
      %507 = vmatprep.subr.bf16.mxu0 0
      %508 = vmatpush1.bf16.msra.mxu0 0
      %509 = vmatprep.subr.bf16.mxu0 0
      %510 = vmatpush1.bf16.msra.mxu0 0
      %511 = vmatprep.subr.bf16.mxu0 0
      %512 = vmatpush1.bf16.msra.mxu0 0
      %513 = vmatprep.subr.bf16.mxu0 0
      %514 = vmatpush1.bf16.msra.mxu0 0
      %515 = vmatprep.subr.bf16.mxu0 0
      %516 = vmatpush1.bf16.msra.mxu0 0
      %517 = vmatprep.subr.bf16.mxu0 0
      %518 = vmatpush1.bf16.msra.mxu0 0
      %519 = vmatprep.subr.bf16.mxu0 0
      %520 = vmatpush1.bf16.msra.mxu0 0
      %521 = vmatprep.subr.bf16.mxu0 0
      %522 = vmatpush1.bf16.msra.mxu0 0
      %523 = vmatprep.subr.bf16.mxu0 0
      %524 = vmatpush1.bf16.msra.mxu0 0
      %525 = vmatprep.subr.bf16.mxu0 0
      %526 = vmatpush1.bf16.msra.mxu0 0
      %527 = vmatprep.mubr.bf16.mxu0 0
      %528 = vmatmul.mubr.bf16.gmra.mrb[0].mxu0 %v493
      %v529 = vpop.f32.mrb[0].mxu0
      %v530 = vadd.f32 0.0, %v529
      %v531 = vpop.f32.mrb[0].mxu0
      %v532 = vpop.f32.mrb[0].mxu0
      %v533 = vpop.f32.mrb[0].mxu0
      %534 = vdwg.mxu0
      %v535 = vpack.c.bf16 %v530, %v530
      %v537 = vsel %vm425, %v535, 0
      %vm539 = vcmask 1043456
      %v541 = vsel %vm539, %v406, 0
      %543 = vmatprep.subr.bf16.mxu0 0
      %544 = vmatpush1.bf16.msra.mxu0 %v541
      %545 = vmatprep.subr.bf16.mxu0 0
      %546 = vmatpush1.bf16.msra.mxu0 0
      %547 = vmatprep.subr.bf16.mxu0 0
      %548 = vmatpush1.bf16.msra.mxu0 0
      %549 = vmatprep.subr.bf16.mxu0 0
      %550 = vmatpush1.bf16.msra.mxu0 0
      %551 = vmatprep.subr.bf16.mxu0 0
      %552 = vmatpush1.bf16.msra.mxu0 0
      %553 = vmatprep.subr.bf16.mxu0 0
      %554 = vmatpush1.bf16.msra.mxu0 0
      %555 = vmatprep.subr.bf16.mxu0 0
      %556 = vmatpush1.bf16.msra.mxu0 0
      %557 = vmatprep.subr.bf16.mxu0 0
      %558 = vmatpush1.bf16.msra.mxu0 0
      %559 = vmatprep.subr.bf16.mxu0 0
      %560 = vmatpush1.bf16.msra.mxu0 0
      %561 = vmatprep.subr.bf16.mxu0 0
      %562 = vmatpush1.bf16.msra.mxu0 0
      %563 = vmatprep.subr.bf16.mxu0 0
      %564 = vmatpush1.bf16.msra.mxu0 0
      %565 = vmatprep.subr.bf16.mxu0 0
      %566 = vmatpush1.bf16.msra.mxu0 0
      %567 = vmatprep.subr.bf16.mxu0 0
      %568 = vmatpush1.bf16.msra.mxu0 0
      %569 = vmatprep.subr.bf16.mxu0 0
      %570 = vmatpush1.bf16.msra.mxu0 0
      %571 = vmatprep.subr.bf16.mxu0 0
      %572 = vmatpush1.bf16.msra.mxu0 0
      %573 = vmatprep.subr.bf16.mxu0 0
      %574 = vmatpush1.bf16.msra.mxu0 0
      %575 = vmatprep.mubr.bf16.mxu0 0
      %576 = vmatmul.mubr.bf16.gmra.mrb[0].mxu0 %v537
      %v577 = vpop.f32.mrb[0].mxu0
      %v578 = vadd.f32 0.0, %v577
      %v579 = vpop.f32.mrb[0].mxu0
      %v580 = vpop.f32.mrb[0].mxu0
      %v581 = vpop.f32.mrb[0].mxu0
      %582 = vdwg.mxu0
      %v583 = vadd.f32 %v419, %v578
      %v585 = vunpack.c.l.b16 %v401
      %v586 = vpack.c.b16 %v585, %v585
      %587 = vrot.lane.b32.xlu0 %v586, 120
      %v588 = vpop.permute.xlu0 %587
      %589 = vrot.lane.b32.xlu0 %v424, 120
      %v590 = vpop.permute.xlu0 %589
      %v592 = vsel %vm425, %v588, 0
      %v595 = vsel %vm425, %v590, 0
      %597 = vmatprep.subr.bf16.mxu0 0
      %598 = vmatpush1.bf16.xpose.msra.mxu0 %v595
      %599 = vmatprep.subr.bf16.mxu0 0
      %600 = vmatpush1.bf16.xpose.msra.mxu0 0
      %601 = vmatprep.subr.bf16.mxu0 0
      %602 = vmatpush1.bf16.xpose.msra.mxu0 0
      %603 = vmatprep.subr.bf16.mxu0 0
      %604 = vmatpush1.bf16.xpose.msra.mxu0 0
      %605 = vmatprep.subr.bf16.mxu0 0
      %606 = vmatpush1.bf16.xpose.msra.mxu0 0
      %607 = vmatprep.subr.bf16.mxu0 0
      %608 = vmatpush1.bf16.xpose.msra.mxu0 0
      %609 = vmatprep.subr.bf16.mxu0 0
      %610 = vmatpush1.bf16.xpose.msra.mxu0 0
      %611 = vmatprep.subr.bf16.mxu0 0
      %612 = vmatpush1.bf16.xpose.msra.mxu0 0
      %613 = vmatprep.subr.bf16.mxu0 0
      %614 = vmatpush1.bf16.xpose.msra.mxu0 0
      %615 = vmatprep.subr.bf16.mxu0 0
      %616 = vmatpush1.bf16.xpose.msra.mxu0 0
      %617 = vmatprep.subr.bf16.mxu0 0
      %618 = vmatpush1.bf16.xpose.msra.mxu0 0
      %619 = vmatprep.subr.bf16.mxu0 0
      %620 = vmatpush1.bf16.xpose.msra.mxu0 0
      %621 = vmatprep.subr.bf16.mxu0 0
      %622 = vmatpush1.bf16.xpose.msra.mxu0 0
      %623 = vmatprep.subr.bf16.mxu0 0
      %624 = vmatpush1.bf16.xpose.msra.mxu0 0
      %625 = vmatprep.subr.bf16.mxu0 0
      %626 = vmatpush1.bf16.xpose.msra.mxu0 0
      %627 = vmatprep.subr.bf16.mxu0 0
      %628 = vmatpush1.bf16.xpose.msra.mxu0 0
      %629 = vmatprep.mubr.bf16.mxu0 0
      %630 = vmatmul.mubr.bf16.gmra.mrb[0].mxu0 %v592
      %v631 = vpop.f32.mrb[0].mxu0
      %v632 = vadd.f32 0.0, %v631
      %v633 = vpop.f32.mrb[0].mxu0
      %v634 = vpop.f32.mrb[0].mxu0
      %v635 = vpop.f32.mrb[0].mxu0
      %636 = vdwg.mxu0
      %v637 = vmul.f32 %v632, 0.35355338
      %v638 = vsel %vm473, %v637, -inf
      %639 = vmax.xlane.f32.xlu0 %v638
      %v640 = vpop.xlane.xlu0 %639
      %v641 = vsub.f32 %v637, %v640
      %v642 = vmul.f32 %v641, 1.442695
      %v643 = vpow.pop %v642
      %v644 = vsel %vm473, %v643, 0.0
      %645 = vadd.xlane.f32.xlu0 %v644
      %v646 = vpop.xlane.xlu0 %645
      %v647 = vrcp.pop %v646
      %v648 = vmul.f32 %v643, %v647
      %v649 = vpack.c.bf16 %v648, %v648
      %650 = vrot.lane.b32.xlu0 %v490, 120
      %v651 = vpop.permute.xlu0 %650
      %v654 = vsel %vm473, %v649, 0
      %656 = vmatprep.subr.bf16.mxu0 0
      %657 = vmatpush1.bf16.msra.mxu0 %v651
      %658 = vmatprep.subr.bf16.mxu0 0
      %659 = vmatpush1.bf16.msra.mxu0 0
      %660 = vmatprep.subr.bf16.mxu0 0
      %661 = vmatpush1.bf16.msra.mxu0 0
      %662 = vmatprep.subr.bf16.mxu0 0
      %663 = vmatpush1.bf16.msra.mxu0 0
      %664 = vmatprep.subr.bf16.mxu0 0
      %665 = vmatpush1.bf16.msra.mxu0 0
      %666 = vmatprep.subr.bf16.mxu0 0
      %667 = vmatpush1.bf16.msra.mxu0 0
      %668 = vmatprep.subr.bf16.mxu0 0
      %669 = vmatpush1.bf16.msra.mxu0 0
      %670 = vmatprep.subr.bf16.mxu0 0
      %671 = vmatpush1.bf16.msra.mxu0 0
      %672 = vmatprep.subr.bf16.mxu0 0
      %673 = vmatpush1.bf16.msra.mxu0 0
      %674 = vmatprep.subr.bf16.mxu0 0
      %675 = vmatpush1.bf16.msra.mxu0 0
      %676 = vmatprep.subr.bf16.mxu0 0
      %677 = vmatpush1.bf16.msra.mxu0 0
      %678 = vmatprep.subr.bf16.mxu0 0
      %679 = vmatpush1.bf16.msra.mxu0 0
      %680 = vmatprep.subr.bf16.mxu0 0
      %681 = vmatpush1.bf16.msra.mxu0 0
      %682 = vmatprep.subr.bf16.mxu0 0
      %683 = vmatpush1.bf16.msra.mxu0 0
      %684 = vmatprep.subr.bf16.mxu0 0
      %685 = vmatpush1.bf16.msra.mxu0 0
      %686 = vmatprep.subr.bf16.mxu0 0
      %687 = vmatpush1.bf16.msra.mxu0 0
      %688 = vmatprep.mubr.bf16.mxu0 0
      %689 = vmatmul.mubr.bf16.gmra.mrb[0].mxu0 %v654
      %v690 = vpop.f32.mrb[0].mxu0
      %v691 = vadd.f32 0.0, %v690
      %v692 = vpop.f32.mrb[0].mxu0
      %v693 = vpop.f32.mrb[0].mxu0
      %v694 = vpop.f32.mrb[0].mxu0
      %695 = vdwg.mxu0
      %v696 = vpack.c.bf16 %v691, %v691
      %v698 = vsel %vm425, %v696, 0
      %v701 = vsel %vm539, %v407, 0
      %703 = vmatprep.subr.bf16.mxu0 0
      %704 = vmatpush1.bf16.msra.mxu0 %v701
      %705 = vmatprep.subr.bf16.mxu0 0
      %706 = vmatpush1.bf16.msra.mxu0 0
      %707 = vmatprep.subr.bf16.mxu0 0
      %708 = vmatpush1.bf16.msra.mxu0 0
      %709 = vmatprep.subr.bf16.mxu0 0
      %710 = vmatpush1.bf16.msra.mxu0 0
      %711 = vmatprep.subr.bf16.mxu0 0
      %712 = vmatpush1.bf16.msra.mxu0 0
      %713 = vmatprep.subr.bf16.mxu0 0
      %714 = vmatpush1.bf16.msra.mxu0 0
      %715 = vmatprep.subr.bf16.mxu0 0
      %716 = vmatpush1.bf16.msra.mxu0 0
      %717 = vmatprep.subr.bf16.mxu0 0
      %718 = vmatpush1.bf16.msra.mxu0 0
      %719 = vmatprep.subr.bf16.mxu0 0
      %720 = vmatpush1.bf16.msra.mxu0 0
      %721 = vmatprep.subr.bf16.mxu0 0
      %722 = vmatpush1.bf16.msra.mxu0 0
      %723 = vmatprep.subr.bf16.mxu0 0
      %724 = vmatpush1.bf16.msra.mxu0 0
      %725 = vmatprep.subr.bf16.mxu0 0
      %726 = vmatpush1.bf16.msra.mxu0 0
      %727 = vmatprep.subr.bf16.mxu0 0
      %728 = vmatpush1.bf16.msra.mxu0 0
      %729 = vmatprep.subr.bf16.mxu0 0
      %730 = vmatpush1.bf16.msra.mxu0 0
      %731 = vmatprep.subr.bf16.mxu0 0
      %732 = vmatpush1.bf16.msra.mxu0 0
      %733 = vmatprep.subr.bf16.mxu0 0
      %734 = vmatpush1.bf16.msra.mxu0 0
      %735 = vmatprep.mubr.bf16.mxu0 0
      %736 = vmatmul.mubr.bf16.gmra.mrb[0].mxu0 %v698
      %v737 = vpop.f32.mrb[0].mxu0
      %v738 = vadd.f32 0.0, %v737
      %v739 = vpop.f32.mrb[0].mxu0
      %v740 = vpop.f32.mrb[0].mxu0
      %v741 = vpop.f32.mrb[0].mxu0
      %742 = vdwg.mxu0
      %v743 = vadd.f32 %v583, %v738
      %744 = vrot.lane.b32.xlu0 %v586, 112
      %v745 = vpop.permute.xlu0 %744
      %746 = vrot.lane.b32.xlu0 %v424, 112
      %v747 = vpop.permute.xlu0 %746
      %v749 = vsel %vm425, %v745, 0
      %v752 = vsel %vm425, %v747, 0
      %754 = vmatprep.subr.bf16.mxu0 0
      %755 = vmatpush1.bf16.xpose.msra.mxu0 %v752
      %756 = vmatprep.subr.bf16.mxu0 0
      %757 = vmatpush1.bf16.xpose.msra.mxu0 0
      %758 = vmatprep.subr.bf16.mxu0 0
      %759 = vmatpush1.bf16.xpose.msra.mxu0 0
      %760 = vmatprep.subr.bf16.mxu0 0
      %761 = vmatpush1.bf16.xpose.msra.mxu0 0
      %762 = vmatprep.subr.bf16.mxu0 0
      %763 = vmatpush1.bf16.xpose.msra.mxu0 0
      %764 = vmatprep.subr.bf16.mxu0 0
      %765 = vmatpush1.bf16.xpose.msra.mxu0 0
      %766 = vmatprep.subr.bf16.mxu0 0
      %767 = vmatpush1.bf16.xpose.msra.mxu0 0
      %768 = vmatprep.subr.bf16.mxu0 0
      %769 = vmatpush1.bf16.xpose.msra.mxu0 0
      %770 = vmatprep.subr.bf16.mxu0 0
      %771 = vmatpush1.bf16.xpose.msra.mxu0 0
      %772 = vmatprep.subr.bf16.mxu0 0
      %773 = vmatpush1.bf16.xpose.msra.mxu0 0
      %774 = vmatprep.subr.bf16.mxu0 0
      %775 = vmatpush1.bf16.xpose.msra.mxu0 0
      %776 = vmatprep.subr.bf16.mxu0 0
      %777 = vmatpush1.bf16.xpose.msra.mxu0 0
      %778 = vmatprep.subr.bf16.mxu0 0
      %779 = vmatpush1.bf16.xpose.msra.mxu0 0
      %780 = vmatprep.subr.bf16.mxu0 0
      %781 = vmatpush1.bf16.xpose.msra.mxu0 0
      %782 = vmatprep.subr.bf16.mxu0 0
      %783 = vmatpush1.bf16.xpose.msra.mxu0 0
      %784 = vmatprep.subr.bf16.mxu0 0
      %785 = vmatpush1.bf16.xpose.msra.mxu0 0
      %786 = vmatprep.mubr.bf16.mxu0 0
      %787 = vmatmul.mubr.bf16.gmra.mrb[0].mxu0 %v749
      %v788 = vpop.f32.mrb[0].mxu0
      %v789 = vadd.f32 0.0, %v788
      %v790 = vpop.f32.mrb[0].mxu0
      %v791 = vpop.f32.mrb[0].mxu0
      %v792 = vpop.f32.mrb[0].mxu0
      %793 = vdwg.mxu0
      %v794 = vmul.f32 %v789, 0.35355338
      %v795 = vsel %vm473, %v794, -inf
      %796 = vmax.xlane.f32.xlu0 %v795
      %v797 = vpop.xlane.xlu0 %796
      %v798 = vsub.f32 %v794, %v797
      %v799 = vmul.f32 %v798, 1.442695
      %v800 = vpow.pop %v799
      %v801 = vsel %vm473, %v800, 0.0
      %802 = vadd.xlane.f32.xlu0 %v801
      %v803 = vpop.xlane.xlu0 %802
      %v804 = vrcp.pop %v803
      %v805 = vmul.f32 %v800, %v804
      %v806 = vpack.c.bf16 %v805, %v805
      %807 = vrot.lane.b32.xlu0 %v490, 112
      %v808 = vpop.permute.xlu0 %807
      %v811 = vsel %vm473, %v806, 0
      %813 = vmatprep.subr.bf16.mxu0 0
      %814 = vmatpush1.bf16.msra.mxu0 %v808
      %815 = vmatprep.subr.bf16.mxu0 0
      %816 = vmatpush1.bf16.msra.mxu0 0
      %817 = vmatprep.subr.bf16.mxu0 0
      %818 = vmatpush1.bf16.msra.mxu0 0
      %819 = vmatprep.subr.bf16.mxu0 0
      %820 = vmatpush1.bf16.msra.mxu0 0
      %821 = vmatprep.subr.bf16.mxu0 0
      %822 = vmatpush1.bf16.msra.mxu0 0
      %823 = vmatprep.subr.bf16.mxu0 0
      %824 = vmatpush1.bf16.msra.mxu0 0
      %825 = vmatprep.subr.bf16.mxu0 0
      %826 = vmatpush1.bf16.msra.mxu0 0
      %827 = vmatprep.subr.bf16.mxu0 0
      %828 = vmatpush1.bf16.msra.mxu0 0
      %829 = vmatprep.subr.bf16.mxu0 0
      %830 = vmatpush1.bf16.msra.mxu0 0
      %831 = vmatprep.subr.bf16.mxu0 0
      %832 = vmatpush1.bf16.msra.mxu0 0
      %833 = vmatprep.subr.bf16.mxu0 0
      %834 = vmatpush1.bf16.msra.mxu0 0
      %835 = vmatprep.subr.bf16.mxu0 0
      %836 = vmatpush1.bf16.msra.mxu0 0
      %837 = vmatprep.subr.bf16.mxu0 0
      %838 = vmatpush1.bf16.msra.mxu0 0
      %839 = vmatprep.subr.bf16.mxu0 0
      %840 = vmatpush1.bf16.msra.mxu0 0
      %841 = vmatprep.subr.bf16.mxu0 0
      %842 = vmatpush1.bf16.msra.mxu0 0
      %843 = vmatprep.subr.bf16.mxu0 0
      %844 = vmatpush1.bf16.msra.mxu0 0
      %845 = vmatprep.mubr.bf16.mxu0 0
      %846 = vmatmul.mubr.bf16.gmra.mrb[0].mxu0 %v811
      %v847 = vpop.f32.mrb[0].mxu0
      %v848 = vadd.f32 0.0, %v847
      %v849 = vpop.f32.mrb[0].mxu0
      %v850 = vpop.f32.mrb[0].mxu0
      %v851 = vpop.f32.mrb[0].mxu0
      %852 = vdwg.mxu0
      %v853 = vpack.c.bf16 %v848, %v848
      %v855 = vsel %vm425, %v853, 0
      %v858 = vsel %vm539, %v408, 0
      %860 = vmatprep.subr.bf16.mxu0 0
      %861 = vmatpush1.bf16.msra.mxu0 %v858
      %862 = vmatprep.subr.bf16.mxu0 0
      %863 = vmatpush1.bf16.msra.mxu0 0
      %864 = vmatprep.subr.bf16.mxu0 0
      %865 = vmatpush1.bf16.msra.mxu0 0
      %866 = vmatprep.subr.bf16.mxu0 0
      %867 = vmatpush1.bf16.msra.mxu0 0
      %868 = vmatprep.subr.bf16.mxu0 0
      %869 = vmatpush1.bf16.msra.mxu0 0
      %870 = vmatprep.subr.bf16.mxu0 0
      %871 = vmatpush1.bf16.msra.mxu0 0
      %872 = vmatprep.subr.bf16.mxu0 0
      %873 = vmatpush1.bf16.msra.mxu0 0
      %874 = vmatprep.subr.bf16.mxu0 0
      %875 = vmatpush1.bf16.msra.mxu0 0
      %876 = vmatprep.subr.bf16.mxu0 0
      %877 = vmatpush1.bf16.msra.mxu0 0
      %878 = vmatprep.subr.bf16.mxu0 0
      %879 = vmatpush1.bf16.msra.mxu0 0
      %880 = vmatprep.subr.bf16.mxu0 0
      %881 = vmatpush1.bf16.msra.mxu0 0
      %882 = vmatprep.subr.bf16.mxu0 0
      %883 = vmatpush1.bf16.msra.mxu0 0
      %884 = vmatprep.subr.bf16.mxu0 0
      %885 = vmatpush1.bf16.msra.mxu0 0
      %886 = vmatprep.subr.bf16.mxu0 0
      %887 = vmatpush1.bf16.msra.mxu0 0
      %888 = vmatprep.subr.bf16.mxu0 0
      %889 = vmatpush1.bf16.msra.mxu0 0
      %890 = vmatprep.subr.bf16.mxu0 0
      %891 = vmatpush1.bf16.msra.mxu0 0
      %892 = vmatprep.mubr.bf16.mxu0 0
      %893 = vmatmul.mubr.bf16.gmra.mrb[0].mxu0 %v855
      %v894 = vpop.f32.mrb[0].mxu0
      %v895 = vadd.f32 0.0, %v894
      %v896 = vpop.f32.mrb[0].mxu0
      %v897 = vpop.f32.mrb[0].mxu0
      %v898 = vpop.f32.mrb[0].mxu0
      %899 = vdwg.mxu0
      %v900 = vadd.f32 %v743, %v895
      %901 = vrot.lane.b32.xlu0 %v586, 104
      %v902 = vpop.permute.xlu0 %901
      %903 = vrot.lane.b32.xlu0 %v424, 104
      %v904 = vpop.permute.xlu0 %903
      %v906 = vsel %vm425, %v902, 0
      %v909 = vsel %vm425, %v904, 0
      %911 = vmatprep.subr.bf16.mxu0 0
      %912 = vmatpush1.bf16.xpose.msra.mxu0 %v909
      %913 = vmatprep.subr.bf16.mxu0 0
      %914 = vmatpush1.bf16.xpose.msra.mxu0 0
      %915 = vmatprep.subr.bf16.mxu0 0
      %916 = vmatpush1.bf16.xpose.msra.mxu0 0
      %917 = vmatprep.subr.bf16.mxu0 0
      %918 = vmatpush1.bf16.xpose.msra.mxu0 0
      %919 = vmatprep.subr.bf16.mxu0 0
      %920 = vmatpush1.bf16.xpose.msra.mxu0 0
      %921 = vmatprep.subr.bf16.mxu0 0
      %922 = vmatpush1.bf16.xpose.msra.mxu0 0
      %923 = vmatprep.subr.bf16.mxu0 0
      %924 = vmatpush1.bf16.xpose.msra.mxu0 0
      %925 = vmatprep.subr.bf16.mxu0 0
      %926 = vmatpush1.bf16.xpose.msra.mxu0 0
      %927 = vmatprep.subr.bf16.mxu0 0
      %928 = vmatpush1.bf16.xpose.msra.mxu0 0
      %929 = vmatprep.subr.bf16.mxu0 0
      %930 = vmatpush1.bf16.xpose.msra.mxu0 0
      %931 = vmatprep.subr.bf16.mxu0 0
      %932 = vmatpush1.bf16.xpose.msra.mxu0 0
      %933 = vmatprep.subr.bf16.mxu0 0
      %934 = vmatpush1.bf16.xpose.msra.mxu0 0
      %935 = vmatprep.subr.bf16.mxu0 0
      %936 = vmatpush1.bf16.xpose.msra.mxu0 0
      %937 = vmatprep.subr.bf16.mxu0 0
      %938 = vmatpush1.bf16.xpose.msra.mxu0 0
      %939 = vmatprep.subr.bf16.mxu0 0
      %940 = vmatpush1.bf16.xpose.msra.mxu0 0
      %941 = vmatprep.subr.bf16.mxu0 0
      %942 = vmatpush1.bf16.xpose.msra.mxu0 0
      %943 = vmatprep.mubr.bf16.mxu0 0
      %944 = vmatmul.mubr.bf16.gmra.mrb[0].mxu0 %v906
      %v945 = vpop.f32.mrb[0].mxu0
      %v946 = vadd.f32 0.0, %v945
      %v947 = vpop.f32.mrb[0].mxu0
      %v948 = vpop.f32.mrb[0].mxu0
      %v949 = vpop.f32.mrb[0].mxu0
      %950 = vdwg.mxu0
      %v951 = vmul.f32 %v946, 0.35355338
      %v952 = vsel %vm473, %v951, -inf
      %953 = vmax.xlane.f32.xlu0 %v952
      %v954 = vpop.xlane.xlu0 %953
      %v955 = vsub.f32 %v951, %v954
      %v956 = vmul.f32 %v955, 1.442695
      %v957 = vpow.pop %v956
      %v958 = vsel %vm473, %v957, 0.0
      %959 = vadd.xlane.f32.xlu0 %v958
      %v960 = vpop.xlane.xlu0 %959
      %v961 = vrcp.pop %v960
      %v962 = vmul.f32 %v957, %v961
      %v963 = vpack.c.bf16 %v962, %v962
      %964 = vrot.lane.b32.xlu0 %v490, 104
      %v965 = vpop.permute.xlu0 %964
      %v968 = vsel %vm473, %v963, 0
      %970 = vmatprep.subr.bf16.mxu0 0
      %971 = vmatpush1.bf16.msra.mxu0 %v965
      %972 = vmatprep.subr.bf16.mxu0 0
      %973 = vmatpush1.bf16.msra.mxu0 0
      %974 = vmatprep.subr.bf16.mxu0 0
      %975 = vmatpush1.bf16.msra.mxu0 0
      %976 = vmatprep.subr.bf16.mxu0 0
      %977 = vmatpush1.bf16.msra.mxu0 0
      %978 = vmatprep.subr.bf16.mxu0 0
      %979 = vmatpush1.bf16.msra.mxu0 0
      %980 = vmatprep.subr.bf16.mxu0 0
      %981 = vmatpush1.bf16.msra.mxu0 0
      %982 = vmatprep.subr.bf16.mxu0 0
      %983 = vmatpush1.bf16.msra.mxu0 0
      %984 = vmatprep.subr.bf16.mxu0 0
      %985 = vmatpush1.bf16.msra.mxu0 0
      %986 = vmatprep.subr.bf16.mxu0 0
      %987 = vmatpush1.bf16.msra.mxu0 0
      %988 = vmatprep.subr.bf16.mxu0 0
      %989 = vmatpush1.bf16.msra.mxu0 0
      %990 = vmatprep.subr.bf16.mxu0 0
      %991 = vmatpush1.bf16.msra.mxu0 0
      %992 = vmatprep.subr.bf16.mxu0 0
      %993 = vmatpush1.bf16.msra.mxu0 0
      %994 = vmatprep.subr.bf16.mxu0 0
      %995 = vmatpush1.bf16.msra.mxu0 0
      %996 = vmatprep.subr.bf16.mxu0 0
      %997 = vmatpush1.bf16.msra.mxu0 0
      %998 = vmatprep.subr.bf16.mxu0 0
      %999 = vmatpush1.bf16.msra.mxu0 0
      %1000 = vmatprep.subr.bf16.mxu0 0
      %1001 = vmatpush1.bf16.msra.mxu0 0
      %1002 = vmatprep.mubr.bf16.mxu0 0
      %1003 = vmatmul.mubr.bf16.gmra.mrb[0].mxu0 %v968
      %v1004 = vpop.f32.mrb[0].mxu0
      %v1005 = vadd.f32 0.0, %v1004
      %v1006 = vpop.f32.mrb[0].mxu0
      %v1007 = vpop.f32.mrb[0].mxu0
      %v1008 = vpop.f32.mrb[0].mxu0
      %1009 = vdwg.mxu0
      %v1010 = vpack.c.bf16 %v1005, %v1005
      %v1012 = vsel %vm425, %v1010, 0
      %v1015 = vsel %vm539, %v409, 0
      %1017 = vmatprep.subr.bf16.mxu0 0
      %1018 = vmatpush1.bf16.msra.mxu0 %v1015
      %1019 = vmatprep.subr.bf16.mxu0 0
      %1020 = vmatpush1.bf16.msra.mxu0 0
      %1021 = vmatprep.subr.bf16.mxu0 0
      %1022 = vmatpush1.bf16.msra.mxu0 0
      %1023 = vmatprep.subr.bf16.mxu0 0
      %1024 = vmatpush1.bf16.msra.mxu0 0
      %1025 = vmatprep.subr.bf16.mxu0 0
      %1026 = vmatpush1.bf16.msra.mxu0 0
      %1027 = vmatprep.subr.bf16.mxu0 0
      %1028 = vmatpush1.bf16.msra.mxu0 0
      %1029 = vmatprep.subr.bf16.mxu0 0
      %1030 = vmatpush1.bf16.msra.mxu0 0
      %1031 = vmatprep.subr.bf16.mxu0 0
      %1032 = vmatpush1.bf16.msra.mxu0 0
      %1033 = vmatprep.subr.bf16.mxu0 0
      %1034 = vmatpush1.bf16.msra.mxu0 0
      %1035 = vmatprep.subr.bf16.mxu0 0
      %1036 = vmatpush1.bf16.msra.mxu0 0
      %1037 = vmatprep.subr.bf16.mxu0 0
      %1038 = vmatpush1.bf16.msra.mxu0 0
      %1039 = vmatprep.subr.bf16.mxu0 0
      %1040 = vmatpush1.bf16.msra.mxu0 0
      %1041 = vmatprep.subr.bf16.mxu0 0
      %1042 = vmatpush1.bf16.msra.mxu0 0
      %1043 = vmatprep.subr.bf16.mxu0 0
      %1044 = vmatpush1.bf16.msra.mxu0 0
      %1045 = vmatprep.subr.bf16.mxu0 0
      %1046 = vmatpush1.bf16.msra.mxu0 0
      %1047 = vmatprep.subr.bf16.mxu0 0
      %1048 = vmatpush1.bf16.msra.mxu0 0
      %1049 = vmatprep.mubr.bf16.mxu0 0
      %1050 = vmatmul.mubr.bf16.gmra.mrb[0].mxu0 %v1012
      %v1051 = vpop.f32.mrb[0].mxu0
      %v1052 = vadd.f32 0.0, %v1051
      %v1053 = vpop.f32.mrb[0].mxu0
      %v1054 = vpop.f32.mrb[0].mxu0
      %v1055 = vpop.f32.mrb[0].mxu0
      %1056 = vdwg.mxu0
      %v1057 = vadd.f32 %v900, %v1052
      %vm1058 = vcmask 261120
      %v1059 = vsel %vm1058, %v1057, 0.0
      %1060 = vadd.xlane.f32.xlu0 %v1059
      %v1061 = vpop.xlane.xlu0 %1060
      %v1062 = vrcp.pop 32.0
      %v1063 = vmul.f32 %v1061, %v1062
      %v1064 = vsub.f32 %v1057, %v1063
      %v1065 = vmul.f32 %v1064, %v1064
      %v1066 = vsel %vm1058, %v1065, 0.0
      %1067 = vadd.xlane.f32.xlu0 %v1066
      %v1068 = vpop.xlane.xlu0 %1067
      %v1069 = vmul.f32 %v1068, %v1062
      %v1070 = vadd.f32 %v1069, 1e-05
      %v1071 = vrsqrt.pop %v1070
      %v1072 = vmul.f32 %v1064, %v1071
      %v1073 = vld [vmem:[%s6] sm:$0x1]
      %v1075 = vlaneseq
      %v1076 = vshrl.u32 %v1075, 7
      %v1077 = vsub.s32 0, %v1076
      %v1078 = vrot.slane %v1073, %v1077
      %v1080 = vmul.f32 %v1072, %v1078
      %v1081 = vld [vmem:[%s7] sm:$0x1]
      %v1083 = vlaneseq
      %v1084 = vshrl.u32 %v1083, 7
      %v1085 = vsub.s32 0, %v1084
      %v1086 = vrot.slane %v1081, %v1085
      %v1088 = vadd.f32 %v1080, %v1086
      %v1089 = vpack.c.bf16 %v1088, %v1088
      %vm1090 = vcmask 257024
      %1091 = vst.msk [vmem:[%s399] sm:$0xf] %vm1090, %v1089
      %p1092 = scmp.lt.s32.totalorder %s23, 1
      %s1093 = scalar_select %p1092, %s23, 1
      %p1094 = scmp.lt.s32.totalorder %s24, 0
      %s1095 = scalar_select %p1094, %s24, 0
      %s1096 = sadd.s32 %s1095, %s1093
      %s1097 = smul.addr %s1096, 4
      %s1098 = scalar_lea.vmem %s8, %s1097
      // Predicated region
      $region53: #{_lambda_.33} parent=51 // pred_check
        %p1099 = pneg %p243
      $region54: #{_lambda_.33} parent=51 // pred_check_branch
        %1101 = sbr.rel (%p1099) target = $region56
      $region55: #{_lambda_.33} parent=51 // pred_region
        _
      $region56: #{_lambda_.33} parent=51 // pred_fallthru
        _
    $region52: #{_lambda_.33} parent=5 // pred_fallthru
      _
    %p1102 = scmp.le.s32.totalorder 2, %s14
    // Predicated region
    $region57: #{_lambda_.33} parent=5 // pred_check
      %p1103 = pneg %p1102
    $region58: #{_lambda_.33} parent=5 // pred_check_branch
      %1105 = sbr.rel (%p1103) target = $region60
    $region59: #{_lambda_.33} parent=5 // pred_region
      %s1106 = ssub.s32 %s14, 2
      // Predicated region
      $region61: #{_lambda_.33} parent=59 // pred_check
        %p1107 = pneg %p249
      $region62: #{_lambda_.33} parent=59 // pred_check_branch
        %1109 = sbr.rel (%p1107) target = $region64
      $region63: #{_lambda_.33} parent=59 // pred_region
        %p1110 = scmp.lt.s32.totalorder %s25, 1
        %s1111 = scalar_select %p1110, %s25, 1
        %p1112 = scmp.lt.s32.totalorder %s26, 0
        %s1113 = scalar_select %p1112, %s26, 0
        %s1114 = sadd.s32 %s1113, %s1111
        %s1115 = smul.addr %s1114, 4
        %s1116 = scalar_lea.vmem %s8, %s1115
      $region64: #{_lambda_.33} parent=59 // pred_fallthru
        _
    $region60: #{_lambda_.33} parent=5 // pred_fallthru
      _
  $region6: #{_lambda_.33} parent=0 // loop_footer
    %s18 = sadd.s32 1, %s14
  $region7: #{_lambda_.33} parent=0 // loop_footer_branch
    %13 = sbr.rel target = $region3
  $region8: #{_lambda_.33} parent=0 // loop_exit
    _

// kernel: _lambda_.42
$region0: #{_lambda_.42}
  #allocation0 [shape = 'u32[]', space=smem, size = 0x4, offset = 0x4, fixed_abs, tag = 'smem constant byte address 0x4 - core index']
  #allocation1 [shape = 'u32[144,128]{1,0:T(1,128)}', space=vmem, size = 0x12000, scoped, tag = 'internal scratch']
  %s0 = inlined_call_operand.vmem [shape: bf16[16,32], index: 0, kind: input, shape index: {}]
  %s1 = inlined_call_operand.vmem [shape: f32[1,32], index: 1, kind: input, shape index: {}]
  %s2 = inlined_call_operand.vmem [shape: f32[1,32], index: 2, kind: input, shape index: {}]
  %s3 = inlined_call_operand.vmem [shape: bf16[16,32], index: 3, kind: output, shape index: {}]
  %s4 = sld [smem:[#allocation0]]
  $region22: #{_lambda_.42} parent=0
    _
  %s6 = ssub.s32 1, %s4
  %s7 = scalar_select 0, %s6, %s4
  // Predicated region
  $region2: #{_lambda_.42} parent=0 // pred_check
    _
  $region3: #{_lambda_.42} parent=0 // pred_check_branch
    %9 = sbr.rel (0) target = $region5
  $region4: #{_lambda_.42} parent=0 // pred_region
    _
  $region5: #{_lambda_.42} parent=0 // pred_fallthru
    _
  // Predicated region
  $region6: #{_lambda_.42} parent=0 // pred_check
    _
  $region7: #{_lambda_.42} parent=0 // pred_check_branch
    %11 = sbr.rel (0) target = $region9
  $region8: #{_lambda_.42} parent=0 // pred_region
    _
  $region9: #{_lambda_.42} parent=0 // pred_fallthru
    _
  // Predicated region
  $region10: #{_lambda_.42} parent=0 // pred_check
    _
  $region11: #{_lambda_.42} parent=0 // pred_check_branch
    %13 = sbr.rel (0) target = $region13
  $region12: #{_lambda_.42} parent=0 // pred_region
    _
  $region13: #{_lambda_.42} parent=0 // pred_fallthru
    _
  %v14 = vld [vmem:[%s0] sm:$0xf]
  %v15 = vld [vmem:[%s0 + $0x4] sm:$0xf]
  %v16 = vunpack.c.l.bf16 %v14
  %v17 = vunpack.c.l.bf16 %v15
  %vm18 = vcmask 261120
  %v19 = vsel %vm18, %v16, 0.0
  %20 = vadd.xlane.f32.xlu0 %v19
  %v21 = vpop.xlane.xlu0 %20
  %v22 = vsel %vm18, %v17, 0.0
  %23 = vadd.xlane.f32.xlu0 %v22
  %v24 = vpop.xlane.xlu0 %23
  %v25 = vrcp.pop 32.0
  %v26 = vmul.f32 %v21, %v25
  %v27 = vmul.f32 %v24, %v25
  %v28 = vsub.f32 %v16, %v26
  %v29 = vsub.f32 %v17, %v27
  %v30 = vmul.f32 %v28, %v28
  %v31 = vmul.f32 %v29, %v29
  %v32 = vsel %vm18, %v30, 0.0
  %33 = vadd.xlane.f32.xlu0 %v32
  %v34 = vpop.xlane.xlu0 %33
  %v35 = vsel %vm18, %v31, 0.0
  %36 = vadd.xlane.f32.xlu0 %v35
  %v37 = vpop.xlane.xlu0 %36
  %v38 = vmul.f32 %v34, %v25
  %v39 = vmul.f32 %v37, %v25
  %v40 = vadd.f32 %v38, 1e-05
  %v41 = vadd.f32 %v39, 1e-05
  %v42 = vrsqrt.pop %v40
  %v43 = vrsqrt.pop %v41
  %v44 = vmul.f32 %v28, %v42
  %v45 = vmul.f32 %v29, %v43
  %v46 = vld [vmem:[%s1] sm:$0x1]
  %v48 = vlaneseq
  %v49 = vshrl.u32 %v48, 7
  %v50 = vsub.s32 0, %v49
  %v51 = vrot.slane %v46, %v50
  %v53 = vmul.f32 %v44, %v51
  %v54 = vmul.f32 %v45, %v51
  %v55 = vld [vmem:[%s2] sm:$0x1]
  %v57 = vlaneseq
  %v58 = vshrl.u32 %v57, 7
  %v59 = vsub.s32 0, %v58
  %v60 = vrot.slane %v55, %v59
  %v62 = vadd.f32 %v53, %v60
  %v63 = vadd.f32 %v54, %v60
  %v64 = vpack.c.bf16 %v63, %v62
  %v66 = vunpack.c.l.b16 %v64
  %v67 = vunpack.c.h.b16 %v64
  %v68 = vpack.c.b16 %v66, %v66
  %v69 = vpack.c.b16 %v67, %v67
  %vm72 = vcmask 257024
  %73 = vst.msk [vmem:[%s3] sm:$0xf] %vm72, %v68
  %74 = vst.msk [vmem:[%s3 + $0x4] sm:$0xf] %vm72, %v69
  // Predicated region
  $region14: #{_lambda_.42} parent=0 // pred_check
    _
  $region15: #{_lambda_.42} parent=0 // pred_check_branch
    %76 = sbr.rel (0) target = $region17
  $region16: #{_lambda_.42} parent=0 // pred_region
    _
  $region17: #{_lambda_.42} parent=0 // pred_fallthru
    _
  // Predicated region
  $region18: #{_lambda_.42} parent=0 // pred_check
    _
  $region19: #{_lambda_.42} parent=0 // pred_check_branch
    %78 = sbr.rel (0) target = $region21
  $region20: #{_lambda_.42} parent=0 // pred_region
    _
  $region21: #{_lambda_.42} parent=0 // pred_fallthru
    _

// kernel: _lambda_.43
$region0: #{_lambda_.43}
  #allocation0 [shape = 'u32[]', space=smem, size = 0x4, offset = 0x4, fixed_abs, tag = 'smem constant byte address 0x4 - core index']
  #allocation1 [shape = 'u32[144,128]{1,0:T(1,128)}', space=vmem, size = 0x12000, scoped, tag = 'internal scratch']
  %s0 = inlined_call_operand.vmem [shape: bf16[32,32], index: 0, kind: input, shape index: {}]
  %s1 = inlined_call_operand.vmem [shape: bf16[32,128], index: 1, kind: input, shape index: {}]
  %s2 = inlined_call_operand.vmem [shape: f32[1,128], index: 2, kind: input, shape index: {}]
  %s3 = inlined_call_operand.vmem [shape: bf16[32,32], index: 3, kind: input, shape index: {}]
  %s4 = inlined_call_operand.vmem [shape: f32[1,32], index: 4, kind: input, shape index: {}]
  %s5 = inlined_call_operand.vmem [shape: bf16[32,32], index: 5, kind: input, shape index: {}]
  %s6 = inlined_call_operand.vmem [shape: f32[1,32], index: 6, kind: input, shape index: {}]
  %s7 = inlined_call_operand.vmem [shape: bf16[32,128], index: 7, kind: input, shape index: {}]
  %s8 = inlined_call_operand.vmem [shape: f32[1,128], index: 8, kind: input, shape index: {}]
  %s9 = inlined_call_operand.vmem [shape: f32[32,128], index: 9, kind: output, shape index: {0}]
  %s10 = inlined_call_operand.vmem [shape: f32[32,128], index: 10, kind: output, shape index: {1}]
  %11 = xla_tuple %s9, %s10
  %s12 = sld [smem:[#allocation0]]
  $region54: #{_lambda_.43} parent=0
    _
  %s14 = ssub.s32 1, %s12
  %s15 = scalar_select 0, %s14, %s12
  // Predicated region
  $region2: #{_lambda_.43} parent=0 // pred_check
    _
  $region3: #{_lambda_.43} parent=0 // pred_check_branch
    %17 = sbr.rel (0) target = $region5
  $region4: #{_lambda_.43} parent=0 // pred_region
    _
  $region5: #{_lambda_.43} parent=0 // pred_fallthru
    _
  // Predicated region
  $region6: #{_lambda_.43} parent=0 // pred_check
    _
  $region7: #{_lambda_.43} parent=0 // pred_check_branch
    %19 = sbr.rel (0) target = $region9
  $region8: #{_lambda_.43} parent=0 // pred_region
    _
  $region9: #{_lambda_.43} parent=0 // pred_fallthru
    _
  // Predicated region
  $region10: #{_lambda_.43} parent=0 // pred_check
    _
  $region11: #{_lambda_.43} parent=0 // pred_check_branch
    %21 = sbr.rel (0) target = $region13
  $region12: #{_lambda_.43} parent=0 // pred_region
    _
  $region13: #{_lambda_.43} parent=0 // pred_fallthru
    _
  // Predicated region
  $region14: #{_lambda_.43} parent=0 // pred_check
    _
  $region15: #{_lambda_.43} parent=0 // pred_check_branch
    %23 = sbr.rel (0) target = $region17
  $region16: #{_lambda_.43} parent=0 // pred_region
    _
  $region17: #{_lambda_.43} parent=0 // pred_fallthru
    _
  // Predicated region
  $region18: #{_lambda_.43} parent=0 // pred_check
    _
  $region19: #{_lambda_.43} parent=0 // pred_check_branch
    %25 = sbr.rel (0) target = $region21
  $region20: #{_lambda_.43} parent=0 // pred_region
    _
  $region21: #{_lambda_.43} parent=0 // pred_fallthru
    _
  // Predicated region
  $region22: #{_lambda_.43} parent=0 // pred_check
    _
  $region23: #{_lambda_.43} parent=0 // pred_check_branch
    %27 = sbr.rel (0) target = $region25
  $region24: #{_lambda_.43} parent=0 // pred_region
    _
  $region25: #{_lambda_.43} parent=0 // pred_fallthru
    _
  // Predicated region
  $region26: #{_lambda_.43} parent=0 // pred_check
    _
  $region27: #{_lambda_.43} parent=0 // pred_check_branch
    %29 = sbr.rel (0) target = $region29
  $region28: #{_lambda_.43} parent=0 // pred_region
    _
  $region29: #{_lambda_.43} parent=0 // pred_fallthru
    _
  // Predicated region
  $region30: #{_lambda_.43} parent=0 // pred_check
    _
  $region31: #{_lambda_.43} parent=0 // pred_check_branch
    %31 = sbr.rel (0) target = $region33
  $region32: #{_lambda_.43} parent=0 // pred_region
    _
  $region33: #{_lambda_.43} parent=0 // pred_fallthru
    _
  // Predicated region
  $region34: #{_lambda_.43} parent=0 // pred_check
    _
  $region35: #{_lambda_.43} parent=0 // pred_check_branch
    %33 = sbr.rel (0) target = $region37
  $region36: #{_lambda_.43} parent=0 // pred_region
    _
  $region37: #{_lambda_.43} parent=0 // pred_fallthru
    _
  %v35 = vld [vmem:[%s0] sm:$0xf]
  %v36 = vld [vmem:[%s0 + $0x4] sm:$0xf]
  %v37 = vld [vmem:[%s0 + $0x8] sm:$0xf]
  %v38 = vld [vmem:[%s0 + $0xc] sm:$0xf]
  %v39 = vld [vmem:[%s1] sm:$0xf]
  %v40 = vld [vmem:[%s1 + $0x4] sm:$0xf]
  %v41 = vld [vmem:[%s1 + $0x8] sm:$0xf]
  %v42 = vld [vmem:[%s1 + $0xc] sm:$0xf]
  %v43 = vld [vmem:[%s2] sm:$0x1]
  %v45 = vlaneseq
  %v46 = vshrl.u32 %v45, 7
  %v47 = vsub.s32 0, %v46
  %v48 = vrot.slane %v43, %v47
  %v54 = vunpack.c.l.b16 %v35
  %v55 = vunpack.c.l.b16 %v36
  %v56 = vunpack.c.l.b16 %v37
  %v57 = vunpack.c.l.b16 %v38
  %v58 = vpack.c.b16 %v55, %v54
  %v59 = vpack.c.b16 %v57, %v56
  %v64 = vunpack.c.l.b16 %v39
  %v65 = vunpack.c.l.b16 %v40
  %v66 = vunpack.c.l.b16 %v41
  %v67 = vunpack.c.l.b16 %v42
  %v68 = vpack.c.b16 %v65, %v64
  %v69 = vpack.c.b16 %v67, %v66
  %vm72 = vcmask 261120
  %v74 = vsel %vm72, %v58, 0
  %v77 = vsel %vm72, %v59, 0
  %79 = vmatprep.subr.bf16.mxu0 0
  %80 = vmatpush1.bf16.msra.mxu0 %v68
  %81 = vmatprep.subr.bf16.mxu0 0
  %82 = vmatpush1.bf16.msra.mxu0 %v69
  %83 = vmatprep.subr.bf16.mxu0 0
  %84 = vmatpush1.bf16.msra.mxu0 0
  %85 = vmatprep.subr.bf16.mxu0 0
  %86 = vmatpush1.bf16.msra.mxu0 0
  %87 = vmatprep.subr.bf16.mxu0 0
  %88 = vmatpush1.bf16.msra.mxu0 0
  %89 = vmatprep.subr.bf16.mxu0 0
  %90 = vmatpush1.bf16.msra.mxu0 0
  %91 = vmatprep.subr.bf16.mxu0 0
  %92 = vmatpush1.bf16.msra.mxu0 0
  %93 = vmatprep.subr.bf16.mxu0 0
  %94 = vmatpush1.bf16.msra.mxu0 0
  %95 = vmatprep.subr.bf16.mxu0 0
  %96 = vmatpush1.bf16.msra.mxu0 0
  %97 = vmatprep.subr.bf16.mxu0 0
  %98 = vmatpush1.bf16.msra.mxu0 0
  %99 = vmatprep.subr.bf16.mxu0 0
  %100 = vmatpush1.bf16.msra.mxu0 0
  %101 = vmatprep.subr.bf16.mxu0 0
  %102 = vmatpush1.bf16.msra.mxu0 0
  %103 = vmatprep.subr.bf16.mxu0 0
  %104 = vmatpush1.bf16.msra.mxu0 0
  %105 = vmatprep.subr.bf16.mxu0 0
  %106 = vmatpush1.bf16.msra.mxu0 0
  %107 = vmatprep.subr.bf16.mxu0 0
  %108 = vmatpush1.bf16.msra.mxu0 0
  %109 = vmatprep.subr.bf16.mxu0 0
  %110 = vmatpush1.bf16.msra.mxu0 0
  %111 = vmatprep.mubr.bf16.mxu0 0
  %112 = vmatmul.mubr.bf16.gmra.mrb[0].mxu0 %v74
  %v113 = vpop.f32.mrb[0].mxu0
  %v114 = vadd.f32 %v48, %v113
  %v115 = vpop.f32.mrb[0].mxu0
  %v116 = vpop.f32.mrb[0].mxu0
  %v117 = vadd.f32 %v48, %v116
  %v118 = vpop.f32.mrb[0].mxu0
  %119 = vmatprep.mubr.bf16.mxu0 0
  %120 = vmatmul.mubr.bf16.gmra.mrb[0].mxu0 %v77
  %v121 = vpop.f32.mrb[0].mxu0
  %v122 = vadd.f32 %v48, %v121
  %v123 = vpop.f32.mrb[0].mxu0
  %v124 = vpop.f32.mrb[0].mxu0
  %v125 = vadd.f32 %v48, %v124
  %v126 = vpop.f32.mrb[0].mxu0
  %127 = vdwg.mxu0
  %128 = vst [vmem:[%s9] sm:$0xff] %v114
  %129 = vst [vmem:[%s9 + $0x8] sm:$0xff] %v117
  %130 = vst [vmem:[%s9 + $0x10] sm:$0xff] %v122
  %131 = vst [vmem:[%s9 + $0x18] sm:$0xff] %v125
  %v132 = vld [vmem:[%s3] sm:$0xf]
  %v133 = vld [vmem:[%s3 + $0x4] sm:$0xf]
  %v134 = vld [vmem:[%s3 + $0x8] sm:$0xf]
  %v135 = vld [vmem:[%s3 + $0xc] sm:$0xf]
  %v136 = vld [vmem:[%s4] sm:$0x1]
  %v138 = vlaneseq
  %v139 = vshrl.u32 %v138, 7
  %v140 = vsub.s32 0, %v139
  %v141 = vrot.slane %v136, %v140
  %v147 = vunpack.c.l.b16 %v132
  %v148 = vunpack.c.l.b16 %v133
  %v149 = vunpack.c.l.b16 %v134
  %v150 = vunpack.c.l.b16 %v135
  %v151 = vpack.c.b16 %v148, %v147
  %v152 = vpack.c.b16 %v150, %v149
  %155 = vmatprep.subr.bf16.mxu0 0
  %156 = vmatpush1.bf16.msra.mxu0 %v151
  %157 = vmatprep.subr.bf16.mxu0 0
  %158 = vmatpush1.bf16.msra.mxu0 %v152
  %159 = vmatprep.subr.bf16.mxu0 0
  %160 = vmatpush1.bf16.msra.mxu0 0
  %161 = vmatprep.subr.bf16.mxu0 0
  %162 = vmatpush1.bf16.msra.mxu0 0
  %163 = vmatprep.subr.bf16.mxu0 0
  %164 = vmatpush1.bf16.msra.mxu0 0
  %165 = vmatprep.subr.bf16.mxu0 0
  %166 = vmatpush1.bf16.msra.mxu0 0
  %167 = vmatprep.subr.bf16.mxu0 0
  %168 = vmatpush1.bf16.msra.mxu0 0
  %169 = vmatprep.subr.bf16.mxu0 0
  %170 = vmatpush1.bf16.msra.mxu0 0
  %171 = vmatprep.subr.bf16.mxu0 0
  %172 = vmatpush1.bf16.msra.mxu0 0
  %173 = vmatprep.subr.bf16.mxu0 0
  %174 = vmatpush1.bf16.msra.mxu0 0
  %175 = vmatprep.subr.bf16.mxu0 0
  %176 = vmatpush1.bf16.msra.mxu0 0
  %177 = vmatprep.subr.bf16.mxu0 0
  %178 = vmatpush1.bf16.msra.mxu0 0
  %179 = vmatprep.subr.bf16.mxu0 0
  %180 = vmatpush1.bf16.msra.mxu0 0
  %181 = vmatprep.subr.bf16.mxu0 0
  %182 = vmatpush1.bf16.msra.mxu0 0
  %183 = vmatprep.subr.bf16.mxu0 0
  %184 = vmatpush1.bf16.msra.mxu0 0
  %185 = vmatprep.subr.bf16.mxu0 0
  %186 = vmatpush1.bf16.msra.mxu0 0
  %187 = vmatprep.mubr.bf16.mxu0 0
  %188 = vmatmul.mubr.bf16.gmra.mrb[0].mxu0 %v74
  %v189 = vpop.f32.mrb[0].mxu0
  %v190 = vadd.f32 %v141, %v189
  %v191 = vpop.f32.mrb[0].mxu0
  %v192 = vpop.f32.mrb[0].mxu0
  %v193 = vadd.f32 %v141, %v192
  %v194 = vpop.f32.mrb[0].mxu0
  %195 = vmatprep.mubr.bf16.mxu0 0
  %196 = vmatmul.mubr.bf16.gmra.mrb[0].mxu0 %v77
  %v197 = vpop.f32.mrb[0].mxu0
  %v198 = vadd.f32 %v141, %v197
  %v199 = vpop.f32.mrb[0].mxu0
  %v200 = vpop.f32.mrb[0].mxu0
  %v201 = vadd.f32 %v141, %v200
  %v202 = vpop.f32.mrb[0].mxu0
  %203 = vdwg.mxu0
  %v204 = vmax.f32 %v190, 0.0
  %v205 = vmax.f32 %v193, 0.0
  %v206 = vmax.f32 %v198, 0.0
  %v207 = vmax.f32 %v201, 0.0
  %v208 = vpack.c.bf16 %v205, %v204
  %v209 = vpack.c.bf16 %v207, %v206
  %v210 = vld [vmem:[%s5] sm:$0xf]
  %v211 = vld [vmem:[%s5 + $0x4] sm:$0xf]
  %v212 = vld [vmem:[%s5 + $0x8] sm:$0xf]
  %v213 = vld [vmem:[%s5 + $0xc] sm:$0xf]
  %v214 = vld [vmem:[%s6] sm:$0x1]
  %v216 = vlaneseq
  %v217 = vshrl.u32 %v216, 7
  %v218 = vsub.s32 0, %v217
  %v219 = vrot.slane %v214, %v218
  %v225 = vunpack.c.l.b16 %v210
  %v226 = vunpack.c.l.b16 %v211
  %v227 = vunpack.c.l.b16 %v212
  %v228 = vunpack.c.l.b16 %v213
  %v229 = vpack.c.b16 %v226, %v225
  %v230 = vpack.c.b16 %v228, %v227
  %v234 = vsel %vm72, %v208, 0
  %v237 = vsel %vm72, %v209, 0
  %239 = vmatprep.subr.bf16.mxu0 0
  %240 = vmatpush1.bf16.msra.mxu0 %v229
  %241 = vmatprep.subr.bf16.mxu0 0
  %242 = vmatpush1.bf16.msra.mxu0 %v230
  %243 = vmatprep.subr.bf16.mxu0 0
  %244 = vmatpush1.bf16.msra.mxu0 0
  %245 = vmatprep.subr.bf16.mxu0 0
  %246 = vmatpush1.bf16.msra.mxu0 0
  %247 = vmatprep.subr.bf16.mxu0 0
  %248 = vmatpush1.bf16.msra.mxu0 0
  %249 = vmatprep.subr.bf16.mxu0 0
  %250 = vmatpush1.bf16.msra.mxu0 0
  %251 = vmatprep.subr.bf16.mxu0 0
  %252 = vmatpush1.bf16.msra.mxu0 0
  %253 = vmatprep.subr.bf16.mxu0 0
  %254 = vmatpush1.bf16.msra.mxu0 0
  %255 = vmatprep.subr.bf16.mxu0 0
  %256 = vmatpush1.bf16.msra.mxu0 0
  %257 = vmatprep.subr.bf16.mxu0 0
  %258 = vmatpush1.bf16.msra.mxu0 0
  %259 = vmatprep.subr.bf16.mxu0 0
  %260 = vmatpush1.bf16.msra.mxu0 0
  %261 = vmatprep.subr.bf16.mxu0 0
  %262 = vmatpush1.bf16.msra.mxu0 0
  %263 = vmatprep.subr.bf16.mxu0 0
  %264 = vmatpush1.bf16.msra.mxu0 0
  %265 = vmatprep.subr.bf16.mxu0 0
  %266 = vmatpush1.bf16.msra.mxu0 0
  %267 = vmatprep.subr.bf16.mxu0 0
  %268 = vmatpush1.bf16.msra.mxu0 0
  %269 = vmatprep.subr.bf16.mxu0 0
  %270 = vmatpush1.bf16.msra.mxu0 0
  %271 = vmatprep.mubr.bf16.mxu0 0
  %272 = vmatmul.mubr.bf16.gmra.mrb[0].mxu0 %v234
  %v273 = vpop.f32.mrb[0].mxu0
  %v274 = vadd.f32 %v219, %v273
  %v275 = vpop.f32.mrb[0].mxu0
  %v276 = vpop.f32.mrb[0].mxu0
  %v277 = vadd.f32 %v219, %v276
  %v278 = vpop.f32.mrb[0].mxu0
  %279 = vmatprep.mubr.bf16.mxu0 0
  %280 = vmatmul.mubr.bf16.gmra.mrb[0].mxu0 %v237
  %v281 = vpop.f32.mrb[0].mxu0
  %v282 = vadd.f32 %v219, %v281
  %v283 = vpop.f32.mrb[0].mxu0
  %v284 = vpop.f32.mrb[0].mxu0
  %v285 = vadd.f32 %v219, %v284
  %v286 = vpop.f32.mrb[0].mxu0
  %287 = vdwg.mxu0
  %v288 = vmax.f32 %v274, 0.0
  %v289 = vmax.f32 %v277, 0.0
  %v290 = vmax.f32 %v282, 0.0
  %v291 = vmax.f32 %v285, 0.0
  %v292 = vpack.c.bf16 %v289, %v288
  %v293 = vpack.c.bf16 %v291, %v290
  %v294 = vld [vmem:[%s7] sm:$0xf]
  %v295 = vld [vmem:[%s7 + $0x4] sm:$0xf]
  %v296 = vld [vmem:[%s7 + $0x8] sm:$0xf]
  %v297 = vld [vmem:[%s7 + $0xc] sm:$0xf]
  %v298 = vld [vmem:[%s8] sm:$0x1]
  %v300 = vlaneseq
  %v301 = vshrl.u32 %v300, 7
  %v302 = vsub.s32 0, %v301
  %v303 = vrot.slane %v298, %v302
  %v309 = vunpack.c.l.b16 %v294
  %v310 = vunpack.c.l.b16 %v295
  %v311 = vunpack.c.l.b16 %v296
  %v312 = vunpack.c.l.b16 %v297
  %v313 = vpack.c.b16 %v310, %v309
  %v314 = vpack.c.b16 %v312, %v311
  %v318 = vsel %vm72, %v292, 0
  %v321 = vsel %vm72, %v293, 0
  %323 = vmatprep.subr.bf16.mxu0 0
  %324 = vmatpush1.bf16.msra.mxu0 %v313
  %325 = vmatprep.subr.bf16.mxu0 0
  %326 = vmatpush1.bf16.msra.mxu0 %v314
  %327 = vmatprep.subr.bf16.mxu0 0
  %328 = vmatpush1.bf16.msra.mxu0 0
  %329 = vmatprep.subr.bf16.mxu0 0
  %330 = vmatpush1.bf16.msra.mxu0 0
  %331 = vmatprep.subr.bf16.mxu0 0
  %332 = vmatpush1.bf16.msra.mxu0 0
  %333 = vmatprep.subr.bf16.mxu0 0
  %334 = vmatpush1.bf16.msra.mxu0 0
  %335 = vmatprep.subr.bf16.mxu0 0
  %336 = vmatpush1.bf16.msra.mxu0 0
  %337 = vmatprep.subr.bf16.mxu0 0
  %338 = vmatpush1.bf16.msra.mxu0 0
  %339 = vmatprep.subr.bf16.mxu0 0
  %340 = vmatpush1.bf16.msra.mxu0 0
  %341 = vmatprep.subr.bf16.mxu0 0
  %342 = vmatpush1.bf16.msra.mxu0 0
  %343 = vmatprep.subr.bf16.mxu0 0
  %344 = vmatpush1.bf16.msra.mxu0 0
  %345 = vmatprep.subr.bf16.mxu0 0
  %346 = vmatpush1.bf16.msra.mxu0 0
  %347 = vmatprep.subr.bf16.mxu0 0
  %348 = vmatpush1.bf16.msra.mxu0 0
  %349 = vmatprep.subr.bf16.mxu0 0
  %350 = vmatpush1.bf16.msra.mxu0 0
  %351 = vmatprep.subr.bf16.mxu0 0
  %352 = vmatpush1.bf16.msra.mxu0 0
  %353 = vmatprep.subr.bf16.mxu0 0
  %354 = vmatpush1.bf16.msra.mxu0 0
  %355 = vmatprep.mubr.bf16.mxu0 0
  %356 = vmatmul.mubr.bf16.gmra.mrb[0].mxu0 %v318
  %v357 = vpop.f32.mrb[0].mxu0
  %v358 = vadd.f32 %v303, %v357
  %v359 = vpop.f32.mrb[0].mxu0
  %v360 = vpop.f32.mrb[0].mxu0
  %v361 = vadd.f32 %v303, %v360
  %v362 = vpop.f32.mrb[0].mxu0
  %363 = vmatprep.mubr.bf16.mxu0 0
  %364 = vmatmul.mubr.bf16.gmra.mrb[0].mxu0 %v321
  %v365 = vpop.f32.mrb[0].mxu0
  %v366 = vadd.f32 %v303, %v365
  %v367 = vpop.f32.mrb[0].mxu0
  %v368 = vpop.f32.mrb[0].mxu0
  %v369 = vadd.f32 %v303, %v368
  %v370 = vpop.f32.mrb[0].mxu0
  %371 = vdwg.mxu0
  %v372 = vxor.u32 %v358, 2147483648
  %v373 = vxor.u32 %v361, 2147483648
  %v374 = vxor.u32 %v366, 2147483648
  %v375 = vxor.u32 %v369, 2147483648
  %v376 = vmul.f32 %v372, 1.442695
  %v377 = vpow.pop %v376
  %v378 = vmul.f32 %v373, 1.442695
  %v379 = vpow.pop %v378
  %v380 = vmul.f32 %v374, 1.442695
  %v381 = vpow.pop %v380
  %v382 = vmul.f32 %v375, 1.442695
  %v383 = vpow.pop %v382
  %v384 = vadd.f32 %v377, 1.0
  %v385 = vadd.f32 %v379, 1.0
  %v386 = vadd.f32 %v381, 1.0
  %v387 = vadd.f32 %v383, 1.0
  %v388 = vrcp.pop %v384
  %v389 = vmul.f32 1.0, %v388
  %v390 = vrcp.pop %v385
  %v391 = vmul.f32 1.0, %v390
  %v392 = vrcp.pop %v386
  %v393 = vmul.f32 1.0, %v392
  %v394 = vrcp.pop %v387
  %v395 = vmul.f32 1.0, %v394
  %396 = vst [vmem:[%s10] sm:$0xff] %v389
  %397 = vst [vmem:[%s10 + $0x8] sm:$0xff] %v391
  %398 = vst [vmem:[%s10 + $0x10] sm:$0xff] %v393
  %399 = vst [vmem:[%s10 + $0x18] sm:$0xff] %v395
  // Predicated region
  $region38: #{_lambda_.43} parent=0 // pred_check
    _
  $region39: #{_lambda_.43} parent=0 // pred_check_branch
    %401 = sbr.rel (0) target = $region41
  $region40: #{_lambda_.43} parent=0 // pred_region
    _
  $region41: #{_lambda_.43} parent=0 // pred_fallthru
    _
  // Predicated region
  $region42: #{_lambda_.43} parent=0 // pred_check
    _
  $region43: #{_lambda_.43} parent=0 // pred_check_branch
    %403 = sbr.rel (0) target = $region45
  $region44: #{_lambda_.43} parent=0 // pred_region
    _
  $region45: #{_lambda_.43} parent=0 // pred_fallthru
    _
  // Predicated region
  $region46: #{_lambda_.43} parent=0 // pred_check
    _
  $region47: #{_lambda_.43} parent=0 // pred_check_branch
    %405 = sbr.rel (0) target = $region49
  $region48: #{_lambda_.43} parent=0 // pred_region
    _
  $region49: #{_lambda_.43} parent=0 // pred_fallthru
    _
  // Predicated region
  $region50: #{_lambda_.43} parent=0 // pred_check
    _
  $region51: #{_lambda_.43} parent=0 // pred_check_branch
    %407 = sbr.rel (0) target = $region53
  $region52: #{_lambda_.43} parent=0 // pred_region
    _
  $region53: #{_lambda_.43} parent=0 // pred_fallthru
    _

</llo_original>
